<compile_context>
chip_gen: v5e
topology: v5e:2x2
jax: 0.10.0
libtpu: 0.0.40
codegen_flags: <defaults>
</compile_context>

<pallas_src>
import functools

import numpy as np

import jax
import jax.numpy as jnp
from jax.experimental import pallas as pl
from jax.experimental.pallas import tpu as pltpu


# ----------------------------------------------------------------------------
# small helpers
# ----------------------------------------------------------------------------

def _round_up(x, m):
    return (x + m - 1) // m * m


def _pad2d(a, rows, cols):
    r, c = a.shape
    return jnp.pad(a, ((0, rows - r), (0, cols - c)))


def _plan_m(M, target):
    """Split M into nm tiles of size tm (tm multiple of 8, minimal over-padding)."""
    M8 = _round_up(M, 8)
    nm = max(1, -(-M8 // target))
    tm = _round_up(-(-M8 // nm), 8)
    return nm * tm, tm, nm


# ----------------------------------------------------------------------------
# Tiled GEMM kernels:  o = maybe_relu( x @ w + b )     (bf16 in, f32 acc, bf16 out)
# ----------------------------------------------------------------------------

def _gemm_k1_kernel(x_ref, w_ref, b_ref, o_ref, *, out_relu):
    acc = jnp.dot(x_ref[...], w_ref[...], preferred_element_type=jnp.float32)
    acc = acc + b_ref[...]
    if out_relu:
        acc = jnp.maximum(acc, 0.0)
    o_ref[...] = acc.astype(o_ref.dtype)


def _gemm_kernel(x_ref, w_ref, b_ref, o_ref, acc_ref, *, out_relu):
    @pl.when(pl.program_id(2) == 0)
    def _():
        acc_ref[...] = jnp.zeros_like(acc_ref)

    acc_ref[...] += jnp.dot(x_ref[...], w_ref[...],
                            preferred_element_type=jnp.float32)

    @pl.when(pl.program_id(2) == pl.num_programs(2) - 1)
    def _():
        acc = acc_ref[...] + b_ref[...]
        if out_relu:
            acc = jnp.maximum(acc, 0.0)
        o_ref[...] = acc.astype(o_ref.dtype)


def gemm(x, w, b=None, *, out_relu=False, out_dtype=jnp.bfloat16,
         tm_target=256, tk_target=512, tk_single_max=1024):
    M, K = x.shape
    N = w.shape[1]

    Mp, tm, nm = _plan_m(M, tm_target)

    Kp128 = _round_up(K, 128)
    if Kp128 <= tk_single_max:
        Kp, tk, nk = Kp128, Kp128, 1
    else:
        nk = -(-Kp128 // tk_target)
        tk = 128 * (-(-Kp128 // (128 * nk)))
        Kp = nk * tk

    Np = _round_up(N, 128)
    tn = 256 if Np % 256 == 0 else 128
    tn = min(tn, Np)
    nn = Np // tn

    xp = _pad2d(x, Mp, Kp).astype(jnp.bfloat16)
    wp = _pad2d(w, Kp, Np).astype(jnp.bfloat16)
    bvec = jnp.zeros((N,), jnp.float32) if b is None else b.reshape(N).astype(jnp.float32)
    bp = _pad2d(bvec.reshape(1, N), 1, Np)

    if nk == 1:
        kernel = functools.partial(_gemm_k1_kernel, out_relu=out_relu)
        out = pl.pallas_call(
            kernel,
            out_shape=jax.ShapeDtypeStruct((Mp, Np), out_dtype),
            grid_spec=pltpu.PrefetchScalarGridSpec(
                num_scalar_prefetch=0,
                grid=(nm, nn),
                in_specs=[
                    pl.BlockSpec((tm, Kp), lambda i, j: (i, 0)),
                    pl.BlockSpec((Kp, tn), lambda i, j: (0, j)),
                    pl.BlockSpec((1, tn), lambda i, j: (0, j)),
                ],
                out_specs=pl.BlockSpec((tm, tn), lambda i, j: (i, j)),
            ),
            compiler_params=pltpu.CompilerParams(
                dimension_semantics=("parallel", "parallel")),
        )(xp, wp, bp)
    else:
        kernel = functools.partial(_gemm_kernel, out_relu=out_relu)
        out = pl.pallas_call(
            kernel,
            out_shape=jax.ShapeDtypeStruct((Mp, Np), out_dtype),
            grid_spec=pltpu.PrefetchScalarGridSpec(
                num_scalar_prefetch=0,
                grid=(nm, nn, nk),
                in_specs=[
                    pl.BlockSpec((tm, tk), lambda i, j, k: (i, k)),
                    pl.BlockSpec((tk, tn), lambda i, j, k: (k, j)),
                    pl.BlockSpec((1, tn), lambda i, j, k: (0, j)),
                ],
                out_specs=pl.BlockSpec((tm, tn), lambda i, j, k: (i, j)),
                scratch_shapes=[pltpu.VMEM((tm, tn), jnp.float32)],
            ),
            compiler_params=pltpu.CompilerParams(
                dimension_semantics=("parallel", "parallel", "arbitrary")),
        )(xp, wp, bp)
    return out[:M, :N]


# ----------------------------------------------------------------------------
# im2col conv (only used for the two 4x4 / stride-2 encoder convs)
# ----------------------------------------------------------------------------

def im2col(x, kh, kw, stride, pad):
    """x: (B,H,W,C) NHWC -> (B*Ho*Wo, kh*kw*C) patches."""
    B, H, W, C = x.shape
    xp = jnp.pad(x, ((0, 0), (pad, pad), (pad, pad), (0, 0)))
    Ho = (H + 2 * pad - kh) // stride + 1
    Wo = (W + 2 * pad - kw) // stride + 1
    cols = []
    for i in range(kh):
        for j in range(kw):
            cols.append(xp[:, i:i + Ho * stride:stride, j:j + Wo * stride:stride, :])
    patches = jnp.stack(cols, axis=3)                  # (B,Ho,Wo,kh*kw,C)
    return patches.reshape(B * Ho * Wo, kh * kw * C), (B, Ho, Wo)


def conv2d_im2col(x, w, b, stride, pad, *, out_relu=False, out_dtype=jnp.bfloat16):
    kh, kw, Cin, Cout = w.shape
    patches, (B, Ho, Wo) = im2col(x.astype(jnp.bfloat16), kh, kw, stride, pad)
    y = gemm(patches, w.reshape(kh * kw * Cin, Cout), b,
             out_relu=out_relu, out_dtype=out_dtype)
    return y.reshape(B, Ho, Wo, Cout)


# ----------------------------------------------------------------------------
# Direct (im2col-free) 3x3 stride-1 pad-1 convolution on a "padded-flat" layout.
#
# Padded-flat (PF) format for an (B,H,W,C) image:
#   (B*r_in, Cp) bf16, image b occupies rows [b*r_in, (b+1)*r_in);
#   within an image, row y*(W+2)+x holds the zero-padded pixel (y,x); trailing rows 0.
# Kernel OUT format: (B*rows_out, Np); row y*(W+2)+x of image b holds output pixel
#   (y,x) for y<H, x<W; every other row is zero-masked (so a simple row shift turns
#   OUT back into PF for the next 3x3 layer).
# ----------------------------------------------------------------------------

def _plan3x3(H, W, tm_target=512):
    wp2, hp2 = W + 2, H + 2
    m_in = hp2 * wp2
    nm = max(1, -(-m_in // tm_target))
    tm = _round_up(-(-m_in // nm), 8)
    rows_out = nm * tm
    off = wp2 + 1
    r_in = _round_up(rows_out + 2 * off, 8)
    m = np.arange(rows_out)
    valid = ((m // wp2 < H) & (m % wp2 < W)).astype(np.float32).reshape(-1, 1)
    return dict(H=H, W=W, hp2=hp2, wp2=wp2, nm=nm, tm=tm, rows_out=rows_out,
                off=off, r_in=r_in, mask=jnp.asarray(valid))


def image_to_pf(x_img, plan):
    B, H, W, C = x_img.shape
    Cp = _round_up(C, 128)
    xp = jnp.pad(x_img.astype(jnp.bfloat16),
                 ((0, 0), (1, 1), (1, 1), (0, Cp - C)))
    xf = xp.reshape(B, plan["hp2"] * plan["wp2"], Cp)
    xf = jnp.pad(xf, ((0, 0), (0, plan["r_in"] - plan["hp2"] * plan["wp2"]), (0, 0)))
    return xf.reshape(B * plan["r_in"], Cp)


def out_to_pf(y_out, B, plan):
    """Shift the kernel OUT format by off rows -> PF for the next 3x3 layer."""
    Cp = y_out.shape[-1]
    y = y_out.reshape(B, plan["rows_out"], Cp)
    y = jnp.pad(y, ((0, 0),
                    (plan["off"], plan["r_in"] - plan["off"] - plan["rows_out"]),
                    (0, 0)))
    return y.reshape(B * plan["r_in"], Cp)


def out_to_image(y_out, B, plan, C):
    hp2, wp2, H, W = plan["hp2"], plan["wp2"], plan["H"], plan["W"]
    y = y_out.reshape(B, plan["rows_out"], y_out.shape[-1])
    y = y[:, :hp2 * wp2, :C].reshape(B, hp2, wp2, C)
    return y[:, :H, :W, :]


def _conv3x3_kernel(x_ref, w_ref, b_ref, mask_ref, o_ref, *, wp2, nm, out_relu):
    tm, npad = o_ref.shape
    cp = x_ref.shape[1]
    if nm > 1:
        m0 = pl.multiple_of(pl.program_id(1) * tm, 8)
    else:
        m0 = 0
    acc = jnp.zeros((tm, npad), jnp.float32)
    for dy in range(3):
        for dx in range(3):
            sh = dy * wp2 + dx
            xs = x_ref[pl.ds(m0 + sh, tm), :]
            t = dy * 3 + dx
            acc = acc + jnp.dot(xs, w_ref[pl.ds(t * cp, cp), :],
                                preferred_element_type=jnp.float32)
    acc = acc + b_ref[...]
    if out_relu:
        acc = jnp.maximum(acc, 0.0)
    acc = acc * mask_ref[...]            # zero the padding / garbage rows
    o_ref[...] = acc.astype(o_ref.dtype)


def conv3x3_pf(x_pf, w, b, B, plan, *, out_relu=False, out_dtype=jnp.bfloat16):
    r_in, nm, tm, rows_out = plan["r_in"], plan["nm"], plan["tm"], plan["rows_out"]
    Cp = x_pf.shape[-1]
    _, _, Cin, N = w.shape
    Np = _round_up(N, 128)
    wp = jnp.pad(w.reshape(9, Cin, N),
                 ((0, 0), (0, Cp - Cin), (0, Np - N))).reshape(9 * Cp, Np)
    wp = wp.astype(jnp.bfloat16)
    bvec = jnp.zeros((N,), jnp.float32) if b is None else b.reshape(N).astype(jnp.float32)
    bp = _pad2d(bvec.reshape(1, N), 1, Np)

    kernel = functools.partial(_conv3x3_kernel, wp2=plan["wp2"], nm=nm,
                               out_relu=out_relu)
    out = pl.pallas_call(
        kernel,
        out_shape=jax.ShapeDtypeStruct((B * rows_out, Np), out_dtype),
        grid_spec=pltpu.PrefetchScalarGridSpec(
            num_scalar_prefetch=0,
            grid=(B, nm),
            in_specs=[
                pl.BlockSpec((r_in, Cp), lambda bb, i: (bb, 0)),
                pl.BlockSpec((9 * Cp, Np), lambda bb, i: (0, 0)),
                pl.BlockSpec((1, Np), lambda bb, i: (0, 0)),
                pl.BlockSpec((tm, 1), lambda bb, i: (i, 0)),
            ],
            out_specs=pl.BlockSpec((tm, Np), lambda bb, i: (bb * nm + i, 0)),
        ),
        compiler_params=pltpu.CompilerParams(
            dimension_semantics=("parallel", "arbitrary")),
    )(x_pf, wp, bp, plan["mask"])
    return out


# ----------------------------------------------------------------------------
# Fused residual layer:  y = x + conv1x1( relu( conv3x3( relu(x) ) ) )   [-> relu]
# (both convs bias-free), direct 3x3 on the PF layout, single kernel.
# ----------------------------------------------------------------------------

def _res3x3_kernel(x_ref, w3_ref, w1_ref, mask_ref, o_ref, *, wp2, off, nm, out_relu):
    tm, npad = o_ref.shape
    cp = x_ref.shape[1]
    rp = w1_ref.shape[0]
    if nm > 1:
        m0 = pl.multiple_of(pl.program_id(1) * tm, 8)
    else:
        m0 = 0
    hacc = jnp.zeros((tm, rp), jnp.float32)
    for dy in range(3):
        for dx in range(3):
            sh = dy * wp2 + dx
            xs = jnp.maximum(x_ref[pl.ds(m0 + sh, tm), :], 0)      # relu(x) tap
            t = dy * 3 + dx
            hacc = hacc + jnp.dot(xs, w3_ref[pl.ds(t * cp, cp), :],
                                  preferred_element_type=jnp.float32)
    h = jnp.maximum(hacc, 0.0).astype(jnp.bfloat16)
    y = jnp.dot(h, w1_ref[...], preferred_element_type=jnp.float32)
    y = y + x_ref[pl.ds(m0 + off, tm), :].astype(jnp.float32)      # residual add
    if out_relu:
        y = jnp.maximum(y, 0.0)
    y = y * mask_ref[...]
    o_ref[...] = y.astype(o_ref.dtype)


def res3x3_pf(x_pf, w3, w1, B, plan, *, out_relu, out_dtype=jnp.bfloat16):
    r_in, nm, tm, rows_out = plan["r_in"], plan["nm"], plan["tm"], plan["rows_out"]
    Cp = x_pf.shape[-1]
    _, _, Cin, R = w3.shape
    N = w1.shape[-1]
    Rp = _round_up(R, 128)
    Np = _round_up(N, 128)
    assert Np == Cp, "residual layer must preserve the channel count"

    w3p = jnp.pad(w3.reshape(9, Cin, R),
                  ((0, 0), (0, Cp - Cin), (0, Rp - R))).reshape(9 * Cp, Rp)
    w3p = w3p.astype(jnp.bfloat16)
    w1p = _pad2d(w1.reshape(R, N), Rp, Np).astype(jnp.bfloat16)

    kernel = functools.partial(_res3x3_kernel, wp2=plan["wp2"], off=plan["off"],
                               nm=nm, out_relu=out_relu)
    out = pl.pallas_call(
        kernel,
        out_shape=jax.ShapeDtypeStruct((B * rows_out, Np), out_dtype),
        grid_spec=pltpu.PrefetchScalarGridSpec(
            num_scalar_prefetch=0,
            grid=(B, nm),
            in_specs=[
                pl.BlockSpec((r_in, Cp), lambda bb, i: (bb, 0)),
                pl.BlockSpec((9 * Cp, Rp), lambda bb, i: (0, 0)),
                pl.BlockSpec((Rp, Np), lambda bb, i: (0, 0)),
                pl.BlockSpec((tm, 1), lambda bb, i: (i, 0)),
            ],
            out_specs=pl.BlockSpec((tm, Np), lambda bb, i: (bb * nm + i, 0)),
        ),
        compiler_params=pltpu.CompilerParams(
            dimension_semantics=("parallel", "arbitrary")),
    )(x_pf, w3p, w1p, plan["mask"])
    return out


# ----------------------------------------------------------------------------
# Fused pre-quantization 1x1 conv + VectorQuantizer (M axis fully parallel;
# per-tile SSE / code-count partials reduced in XLA).
# ----------------------------------------------------------------------------

def _vq_kernel(z_ref, wp_ref, bp_ref, e_ref, e2_ref, zq_ref, cnt_ref, sse_ref,
               *, M, K):
    i = pl.program_id(0)
    tm = z_ref.shape[0]
    kp = e_ref.shape[0]

    # fused pre-quantization 1x1 conv:  z_e = z @ W_pre + b_pre
    z_e = jnp.dot(z_ref[...], wp_ref[...],
                  preferred_element_type=jnp.float32) + bp_ref[...]   # (tm, Dp) f32

    e = e_ref[...]                                                    # (Kp, Dp) bf16
    # argmin_k |z_e - e_k|^2 == argmin_k (|e_k|^2 - 2 z_e . e_k)
    score = e2_ref[...] - 2.0 * jax.lax.dot_general(
        z_e.astype(jnp.bfloat16), e, (((1,), (1,)), ((), ())),
        preferred_element_type=jnp.float32)
    k_iota = jax.lax.broadcasted_iota(jnp.int32, score.shape, 1)
    score = jnp.where(k_iota < K, score, jnp.inf)                     # mask padded codes
    min_s = jnp.min(score, axis=1, keepdims=True)
    idx = jnp.min(jnp.where(score == min_s, k_iota, kp), axis=1, keepdims=True)
    onehot = (k_iota == idx).astype(jnp.float32)                      # (tm, Kp)

    z_q = jnp.dot(onehot.astype(jnp.bfloat16), e,
                  preferred_element_type=jnp.float32)                 # (tm, Dp)
    zq_ref[...] = z_q.astype(zq_ref.dtype)

    # per-tile partial statistics (rows padded beyond M excluded)
    row = jax.lax.broadcasted_iota(jnp.int32, (tm, 1), 0) + i * tm
    valid = (row < M).astype(jnp.float32)
    diff = (z_q - z_e) * valid
    sse = jnp.sum(jnp.sum(diff * diff, axis=1, keepdims=True),
                  axis=0, keepdims=True)                              # (1, 1)
    cnt = jnp.sum(onehot * valid, axis=0, keepdims=True)              # (1, Kp)
    cnt_ref[...] = jnp.broadcast_to(cnt, cnt_ref.shape)
    sse_ref[...] = jnp.broadcast_to(sse, sse_ref.shape)


def vector_quantize_fused(z_flat, w_pre, b_pre, codebook, beta, *, tm_target=1024):
    """z_flat: (M, Ch) encoder features. Returns (z_q (M,D) bf16, loss, perplexity)."""
    M, Ch = z_flat.shape
    K, D = codebook.shape

    Mp, tm, nm = _plan_m(M, tm_target)
    Chp = _round_up(Ch, 128)
    Dp = _round_up(D, 128)
    Kp = _round_up(K, 128)

    zp = _pad2d(z_flat, Mp, Chp).astype(jnp.bfloat16)
    wpp = _pad2d(w_pre, Chp, Dp).astype(jnp.bfloat16)
    bpp = _pad2d(b_pre.reshape(1, D).astype(jnp.float32), 1, Dp)
    e_bf = codebook.astype(jnp.bfloat16)
    ep = _pad2d(e_bf, Kp, Dp)
    e2 = jnp.sum(e_bf.astype(jnp.float32) ** 2, axis=1)
    e2p = _pad2d(e2.reshape(1, K), 1, Kp)

    kernel = functools.partial(_vq_kernel, M=M, K=K)
    zq, cnt, sse = pl.pallas_call(
        kernel,
        out_shape=(jax.ShapeDtypeStruct((Mp, Dp), jnp.bfloat16),
                   jax.ShapeDtypeStruct((nm * 8, Kp), jnp.float32),
                   jax.ShapeDtypeStruct((nm * 8, 128), jnp.float32)),
        grid_spec=pltpu.PrefetchScalarGridSpec(
            num_scalar_prefetch=0,
            grid=(nm,),
            in_specs=[
                pl.BlockSpec((tm, Chp), lambda i: (i, 0)),
                pl.BlockSpec((Chp, Dp), lambda i: (0, 0)),
                pl.BlockSpec((1, Dp), lambda i: (0, 0)),
                pl.BlockSpec((Kp, Dp), lambda i: (0, 0)),
                pl.BlockSpec((1, Kp), lambda i: (0, 0)),
            ],
            out_specs=(
                pl.BlockSpec((tm, Dp), lambda i: (i, 0)),
                pl.BlockSpec((8, Kp), lambda i: (i, 0)),
                pl.BlockSpec((8, 128), lambda i: (i, 0)),
            ),
        ),
        compiler_params=pltpu.CompilerParams(dimension_semantics=("parallel",)),
    )(zp, wpp, bpp, ep, e2p)

    # tiny final reduction + loss / perplexity in XLA
    counts = cnt.reshape(nm, 8, Kp)[:, 0, :K].sum(axis=0)             # (K,)
    sse_tot = sse.reshape(nm, 8, 128)[:, 0, 0].sum()
    # forward value: mean((sg(zq)-z_e)^2) + beta*mean((zq-sg(z_e))^2) = (1+beta)*MSE
    emb_loss = (1.0 + beta) * sse_tot / float(M * D)
    e_mean = counts / float(M)
    perplexity = jnp.exp(-jnp.sum(e_mean * jnp.log(e_mean + 1e-10)))
    return zq[:M, :D], emb_loss, perplexity


# ----------------------------------------------------------------------------
# ConvTranspose2d(k=4, s=2, p=1) as a sub-pixel stride-1 3x3 conv + depth-to-space
# ----------------------------------------------------------------------------

def _subpixel_weight(w):
    """(4,4,Cin,Cout) ConvTranspose(k=4,s=2,p=1) weight -> equivalent stride-1 3x3
    conv weight (3,3,Cin,4*Cout); output channels ordered (parity_y, parity_x, Cout)."""
    Cin, Cout = w.shape[2], w.shape[3]
    zero = jnp.zeros((Cin, Cout), w.dtype)

    def tap(par_y, par_x, py, px):
        if par_y == 0:
            if py > 1:
                return zero
            wy = 3 - 2 * py
        else:
            if py < 1:
                return zero
            wy = 4 - 2 * py
        if par_x == 0:
            if px > 1:
                return zero
            wx = 3 - 2 * px
        else:
            if px < 1:
                return zero
            wx = 4 - 2 * px
        return w[wy, wx]

    rows = []
    for py in range(3):
        cols = []
        for px in range(3):
            pars = [tap(dy, dx, py, px) for dy in (0, 1) for dx in (0, 1)]
            cols.append(jnp.concatenate(pars, axis=-1))       # (Cin, 4*Cout)
        rows.append(jnp.stack(cols, axis=0))
    return jnp.stack(rows, axis=0)                            # (3,3,Cin,4*Cout)


def conv_transpose_from_pf(x_pf, w, b, B, plan, *, out_relu, out_dtype):
    Cout = w.shape[3]
    w_eff = _subpixel_weight(w)                               # (3,3,Cin,4*Cout)
    b_eff = jnp.tile(b.reshape(Cout).astype(jnp.float32), (4,))
    out = conv3x3_pf(x_pf, w_eff, b_eff, B, plan,
                     out_relu=out_relu, out_dtype=out_dtype)
    y = out_to_image(out, B, plan, 4 * Cout)                  # (B,H,W,4*Cout)
    H, W = plan["H"], plan["W"]
    y = y.reshape(B, H, W, 2, 2, Cout)
    y = y.transpose(0, 1, 3, 2, 4, 5).reshape(B, 2 * H, 2 * W, Cout)
    return y


# ----------------------------------------------------------------------------
# VQVAE_5 parameters + forward
# ----------------------------------------------------------------------------

def init_params(key, in_chan, h_dim, res_h_dim, n_res_layers,
                n_embeddings, embedding_dim):
    keys = iter(jax.random.split(key, 64))

    def w(shape, scale=0.1):
        return jax.random.normal(next(keys), shape, jnp.float32) * scale

    p = {}
    # Encoder: conv4x4/s2 -> relu -> conv4x4/s2 -> relu -> conv3x3 -> res-stack
    p["enc_c1_w"], p["enc_c1_b"] = w((4, 4, in_chan, h_dim // 2)), w((h_dim // 2,))
    p["enc_c2_w"], p["enc_c2_b"] = w((4, 4, h_dim // 2, h_dim)), w((h_dim,))
    p["enc_c3_w"], p["enc_c3_b"] = w((3, 3, h_dim, h_dim)), w((h_dim,))
    p["enc_res"] = [(w((3, 3, h_dim, res_h_dim)), w((1, 1, res_h_dim, h_dim)))
                    for _ in range(n_res_layers)]
    # pre_quantization_conv: 1x1 conv h_dim -> embedding_dim (fused into VQ kernel)
    p["preq_w"], p["preq_b"] = w((1, 1, h_dim, embedding_dim)), w((embedding_dim,))
    # VectorQuantizer codebook: uniform(-1/K, 1/K)
    p["codebook"] = jax.random.uniform(next(keys), (n_embeddings, embedding_dim),
                                       jnp.float32,
                                       -1.0 / n_embeddings, 1.0 / n_embeddings)
    # Decoder: conv3x3 -> res-stack -> convT4x4/s2 -> relu -> convT4x4/s2
    p["dec_c1_w"], p["dec_c1_b"] = w((3, 3, embedding_dim, h_dim)), w((h_dim,))
    p["dec_res"] = [(w((3, 3, h_dim, res_h_dim)), w((1, 1, res_h_dim, h_dim)))
                    for _ in range(n_res_layers)]
    p["dec_t1_w"], p["dec_t1_b"] = w((4, 4, h_dim, h_dim // 2)), w((h_dim // 2,))
    p["dec_t2_w"], p["dec_t2_b"] = w((4, 4, h_dim // 2, in_chan)), w((in_chan,))
    return p


def vqvae_forward(params, x, *, beta=0.25):
    """x: (B,H,W,Cin) NHWC.  Returns (embedding_loss, x_hat, perplexity, z_q),
    with x_hat / z_q in NHWC (the PyTorch module returns NCHW)."""
    # ----- encoder downsampling: two 4x4 stride-2 convs (im2col + tiled GEMM) -----
    z = conv2d_im2col(x, params["enc_c1_w"], params["enc_c1_b"], 2, 1, out_relu=True)
    z = conv2d_im2col(z, params["enc_c2_w"], params["enc_c2_b"], 2, 1, out_relu=True)
    B, Hq, Wq, hd = z.shape
    plan = _plan3x3(Hq, Wq)

    # ----- encoder 3x3 conv + residual stack (direct, im2col-free kernels) -----
    out = conv3x3_pf(image_to_pf(z, plan),
                     params["enc_c3_w"], params["enc_c3_b"], B, plan)
    nres = len(params["enc_res"])
    for li, (w3, w1) in enumerate(params["enc_res"]):
        out = res3x3_pf(out_to_pf(out, B, plan), w3, w1, B, plan,
                        out_relu=(li == nres - 1))

    # ----- fused pre-quantization 1x1 conv + vector quantization -----
    z_flat = out_to_image(out, B, plan, hd).reshape(B * Hq * Wq, hd)
    D = params["codebook"].shape[1]
    zq_flat, emb_loss, perplexity = vector_quantize_fused(
        z_flat, params["preq_w"].reshape(hd, D), params["preq_b"],
        params["codebook"], beta)
    z_q = zq_flat.reshape(B, Hq, Wq, D)

    # ----- decoder 3x3 conv + residual stack -----
    out = conv3x3_pf(image_to_pf(z_q, plan),
                     params["dec_c1_w"], params["dec_c1_b"], B, plan)
    nres = len(params["dec_res"])
    for li, (w3, w1) in enumerate(params["dec_res"]):
        out = res3x3_pf(out_to_pf(out, B, plan), w3, w1, B, plan,
                        out_relu=(li == nres - 1))

    # ----- decoder upsampling: ConvTranspose2d(4,2,1) as sub-pixel 3x3 conv -----
    h_img = conv_transpose_from_pf(out_to_pf(out, B, plan),
                                   params["dec_t1_w"], params["dec_t1_b"],
                                   B, plan, out_relu=True, out_dtype=jnp.bfloat16)
    _, H2, W2, _ = h_img.shape
    plan2 = _plan3x3(H2, W2)
    x_hat = conv_transpose_from_pf(image_to_pf(h_img, plan2),
                                   params["dec_t2_w"], params["dec_t2_b"],
                                   B, plan2, out_relu=False, out_dtype=jnp.float32)
    return emb_loss, x_hat, perplexity, z_q.astype(jnp.float32)


# ----------------------------------------------------------------------------

if __name__ == "__main__":
    key = jax.random.PRNGKey(0)
    kp, kx = jax.random.split(key)

    # small, forward-consistent config
    in_chan, h_dim, res_h_dim, n_res_layers = 3, 32, 8, 2
    n_embeddings, embedding_dim, beta = 64, 16, 0.25

    params = init_params(kp, in_chan, h_dim, res_h_dim, n_res_layers,
                         n_embeddings, embedding_dim)
    x = jax.random.normal(kx, (2, 16, 16, in_chan), jnp.float32)   # NHWC

    fwd = jax.jit(functools.partial(vqvae_forward, beta=beta))
    emb_loss, x_hat, perplexity, z_q = fwd(params, x)
    jax.block_until_ready((emb_loss, x_hat, perplexity, z_q))

    assert x_hat.shape == (2, 16, 16, in_chan)
    assert z_q.shape == (2, 4, 4, embedding_dim)
    assert bool(jnp.isfinite(x_hat).all())
    assert bool(jnp.isfinite(emb_loss)) and bool(jnp.isfinite(perplexity))
    print("KERNEL_OK")
</pallas_src>

<mosaic_0001>
module attributes {stable_mosaic.version = 11 : i64} {
  func.func @_gemm_k1_kernel(%arg0: i32, %arg1: i32, %arg2: memref<128x128xbf16, #tpu.memory_space<vmem>>, %arg3: memref<128x128xbf16, #tpu.memory_space<vmem>>, %arg4: memref<1x128xf32, #tpu.memory_space<vmem>>, %arg5: memref<128x128xbf16, #tpu.memory_space<vmem>>) attributes {dimension_semantics = [#tpu.dimension_semantics<parallel>, #tpu.dimension_semantics<parallel>], iteration_bounds = array<i64: 1, 1>, scalar_prefetch = 0 : i64, scratch_operands = 0 : i64, tpu.core_type = #tpu.core_type<tc>, window_params = [{transform_indices = @transform_0, window_bounds = array<i64: 128, 128>}, {transform_indices = @transform_1, window_bounds = array<i64: 128, 128>}, {transform_indices = @transform_2, window_bounds = array<i64: 1, 128>}, {transform_indices = @transform_3, window_bounds = array<i64: 128, 128>}]} {
    %c0 = arith.constant 0 : index
    %c0_0 = arith.constant 0 : index
    %0 = vector.load %arg2[%c0, %c0_0] : memref<128x128xbf16, #tpu.memory_space<vmem>>, vector<128x128xbf16>
    %c0_1 = arith.constant 0 : index
    %c0_2 = arith.constant 0 : index
    %1 = vector.load %arg3[%c0_1, %c0_2] : memref<128x128xbf16, #tpu.memory_space<vmem>>, vector<128x128xbf16>
    %cst = arith.constant dense<0.000000e+00> : vector<128x128xf32>
    %2 = tpu.matmul %0, %1, %cst {dimension_numbers = #tpu.dot_dimension_numbers<[1], [0], [0], [1], [0, 0, 1, 1], [], []>} : vector<128x128xbf16>, vector<128x128xbf16>, vector<128x128xf32> -> vector<128x128xf32>
    %c0_3 = arith.constant 0 : index
    %c0_4 = arith.constant 0 : index
    %3 = vector.load %arg4[%c0_3, %c0_4] : memref<1x128xf32, #tpu.memory_space<vmem>>, vector<1x128xf32>
    %4 = vector.broadcast %3 : vector<1x128xf32> to vector<128x128xf32>
    %5 = arith.addf %2, %4 : vector<128x128xf32>
    %cst_5 = arith.constant 0.000000e+00 : f32
    %6 = vector.broadcast %cst_5 : f32 to vector<128x128xf32>
    %7 = arith.maximumf %5, %6 : vector<128x128xf32>
    %8 = arith.truncf %7 : vector<128x128xf32> to vector<128x128xbf16>
    %c0_6 = arith.constant 0 : index
    %c0_7 = arith.constant 0 : index
    %9 = vector.load %arg5[%c0_6, %c0_7] : memref<128x128xbf16, #tpu.memory_space<vmem>>, vector<128x128xbf16>
    tpu.vector_store %arg5[%c0_6, %c0_7], %8 {strides = array<i32>} : memref<128x128xbf16, #tpu.memory_space<vmem>>, vector<128x128xbf16>,
    return
  }
  func.func @transform_0(%arg0: i32, %arg1: i32) -> (i32, i32) {
    %c0_i32 = arith.constant 0 : i32
    %c0_i32_0 = arith.constant 0 : i32
    return %arg0, %c0_i32 : i32, i32
  }
  func.func @transform_1(%arg0: i32, %arg1: i32) -> (i32, i32) {
    %c0_i32 = arith.constant 0 : i32
    %c0_i32_0 = arith.constant 0 : i32
    return %c0_i32, %arg1 : i32, i32
  }
  func.func @transform_2(%arg0: i32, %arg1: i32) -> (i32, i32) {
    %c0_i32 = arith.constant 0 : i32
    %c0_i32_0 = arith.constant 0 : i32
    return %c0_i32, %arg1 : i32, i32
  }
  func.func @transform_3(%arg0: i32, %arg1: i32) -> (i32, i32) {
    %c0_i32 = arith.constant 0 : i32
    return %arg0, %arg1 : i32, i32
  }
}

module attributes {stable_mosaic.version = 11 : i64} {
  func.func @_gemm_k1_kernel(%arg0: i32, %arg1: i32, %arg2: memref<32x256xbf16, #tpu.memory_space<vmem>>, %arg3: memref<256x128xbf16, #tpu.memory_space<vmem>>, %arg4: memref<1x128xf32, #tpu.memory_space<vmem>>, %arg5: memref<32x128xbf16, #tpu.memory_space<vmem>>) attributes {dimension_semantics = [#tpu.dimension_semantics<parallel>, #tpu.dimension_semantics<parallel>], iteration_bounds = array<i64: 1, 1>, scalar_prefetch = 0 : i64, scratch_operands = 0 : i64, tpu.core_type = #tpu.core_type<tc>, window_params = [{transform_indices = @transform_0, window_bounds = array<i64: 32, 256>}, {transform_indices = @transform_1, window_bounds = array<i64: 256, 128>}, {transform_indices = @transform_2, window_bounds = array<i64: 1, 128>}, {transform_indices = @transform_3, window_bounds = array<i64: 32, 128>}]} {
    %c0 = arith.constant 0 : index
    %c0_0 = arith.constant 0 : index
    %0 = vector.load %arg2[%c0, %c0_0] : memref<32x256xbf16, #tpu.memory_space<vmem>>, vector<32x256xbf16>
    %c0_1 = arith.constant 0 : index
    %c0_2 = arith.constant 0 : index
    %1 = vector.load %arg3[%c0_1, %c0_2] : memref<256x128xbf16, #tpu.memory_space<vmem>>, vector<256x128xbf16>
    %cst = arith.constant dense<0.000000e+00> : vector<32x128xf32>
    %2 = tpu.matmul %0, %1, %cst {dimension_numbers = #tpu.dot_dimension_numbers<[1], [0], [0], [1], [0, 0, 1, 1], [], []>} : vector<32x256xbf16>, vector<256x128xbf16>, vector<32x128xf32> -> vector<32x128xf32>
    %c0_3 = arith.constant 0 : index
    %c0_4 = arith.constant 0 : index
    %3 = vector.load %arg4[%c0_3, %c0_4] : memref<1x128xf32, #tpu.memory_space<vmem>>, vector<1x128xf32>
    %4 = vector.broadcast %3 : vector<1x128xf32> to vector<32x128xf32>
    %5 = arith.addf %2, %4 : vector<32x128xf32>
    %cst_5 = arith.constant 0.000000e+00 : f32
    %6 = vector.broadcast %cst_5 : f32 to vector<32x128xf32>
    %7 = arith.maximumf %5, %6 : vector<32x128xf32>
    %8 = arith.truncf %7 : vector<32x128xf32> to vector<32x128xbf16>
    %c0_6 = arith.constant 0 : index
    %c0_7 = arith.constant 0 : index
    %9 = vector.load %arg5[%c0_6, %c0_7] : memref<32x128xbf16, #tpu.memory_space<vmem>>, vector<32x128xbf16>
    tpu.vector_store %arg5[%c0_6, %c0_7], %8 {strides = array<i32>} : memref<32x128xbf16, #tpu.memory_space<vmem>>, vector<32x128xbf16>,
    return
  }
  func.func @transform_0(%arg0: i32, %arg1: i32) -> (i32, i32) {
    %c0_i32 = arith.constant 0 : i32
    %c0_i32_0 = arith.constant 0 : i32
    return %arg0, %c0_i32 : i32, i32
  }
  func.func @transform_1(%arg0: i32, %arg1: i32) -> (i32, i32) {
    %c0_i32 = arith.constant 0 : i32
    %c0_i32_0 = arith.constant 0 : i32
    return %c0_i32, %arg1 : i32, i32
  }
  func.func @transform_2(%arg0: i32, %arg1: i32) -> (i32, i32) {
    %c0_i32 = arith.constant 0 : i32
    %c0_i32_0 = arith.constant 0 : i32
    return %c0_i32, %arg1 : i32, i32
  }
  func.func @transform_3(%arg0: i32, %arg1: i32) -> (i32, i32) {
    %c0_i32 = arith.constant 0 : i32
    return %arg0, %arg1 : i32, i32
  }
}

module attributes {stable_mosaic.version = 11 : i64} {
  func.func @_conv3x3_kernel(%arg0: i32, %arg1: i32, %arg2: memref<56x128xbf16, #tpu.memory_space<vmem>>, %arg3: memref<1152x128xbf16, #tpu.memory_space<vmem>>, %arg4: memref<1x128xf32, #tpu.memory_space<vmem>>, %arg5: memref<40x1xf32, #tpu.memory_space<vmem>>, %arg6: memref<40x128xbf16, #tpu.memory_space<vmem>>) attributes {dimension_semantics = [#tpu.dimension_semantics<parallel>, #tpu.dimension_semantics<arbitrary>], iteration_bounds = array<i64: 2, 1>, scalar_prefetch = 0 : i64, scratch_operands = 0 : i64, tpu.core_type = #tpu.core_type<tc>, window_params = [{transform_indices = @transform_0, window_bounds = array<i64: 56, 128>}, {pipeline_mode = #tpu.pipeline_mode<synchronous>, transform_indices = @transform_1, window_bounds = array<i64: 1152, 128>}, {pipeline_mode = #tpu.pipeline_mode<synchronous>, transform_indices = @transform_2, window_bounds = array<i64: 1, 128>}, {transform_indices = @transform_3, window_bounds = array<i64: 40, 1>}, {transform_indices = @transform_4, window_bounds = array<i64: 40, 128>}]} {
    %cst = arith.constant 0.000000e+00 : f32
    %0 = vector.broadcast %cst : f32 to vector<40x128xf32>
    %c0 = arith.constant 0 : index
    %c0_0 = arith.constant 0 : index
    %1 = vector.load %arg2[%c0, %c0_0] : memref<56x128xbf16, #tpu.memory_space<vmem>>, vector<40x128xbf16>
    %c0_1 = arith.constant 0 : index
    %c0_2 = arith.constant 0 : index
    %2 = vector.load %arg3[%c0_1, %c0_2] : memref<1152x128xbf16, #tpu.memory_space<vmem>>, vector<128x128xbf16>
    %cst_3 = arith.constant dense<0.000000e+00> : vector<40x128xf32>
    %3 = tpu.matmul %1, %2, %cst_3 {dimension_numbers = #tpu.dot_dimension_numbers<[1], [0], [0], [1], [0, 0, 1, 1], [], []>} : vector<40x128xbf16>, vector<128x128xbf16>, vector<40x128xf32> -> vector<40x128xf32>
    %4 = arith.addf %0, %3 : vector<40x128xf32>
    %c1 = arith.constant 1 : index
    %c0_4 = arith.constant 0 : index
    %5 = vector.load %arg2[%c1, %c0_4] : memref<56x128xbf16, #tpu.memory_space<vmem>>, vector<40x128xbf16>
    %c128 = arith.constant 128 : index
    %c0_5 = arith.constant 0 : index
    %6 = vector.load %arg3[%c128, %c0_5] : memref<1152x128xbf16, #tpu.memory_space<vmem>>, vector<128x128xbf16>
    %cst_6 = arith.constant dense<0.000000e+00> : vector<40x128xf32>
    %7 = tpu.matmul %5, %6, %cst_6 {dimension_numbers = #tpu.dot_dimension_numbers<[1], [0], [0], [1], [0, 0, 1, 1], [], []>} : vector<40x128xbf16>, vector<128x128xbf16>, vector<40x128xf32> -> vector<40x128xf32>
    %8 = arith.addf %4, %7 : vector<40x128xf32>
    %c2 = arith.constant 2 : index
    %c0_7 = arith.constant 0 : index
    %9 = vector.load %arg2[%c2, %c0_7] : memref<56x128xbf16, #tpu.memory_space<vmem>>, vector<40x128xbf16>
    %c256 = arith.constant 256 : index
    %c0_8 = arith.constant 0 : index
    %10 = vector.load %arg3[%c256, %c0_8] : memref<1152x128xbf16, #tpu.memory_space<vmem>>, vector<128x128xbf16>
    %cst_9 = arith.constant dense<0.000000e+00> : vector<40x128xf32>
    %11 = tpu.matmul %9, %10, %cst_9 {dimension_numbers = #tpu.dot_dimension_numbers<[1], [0], [0], [1], [0, 0, 1, 1], [], []>} : vector<40x128xbf16>, vector<128x128xbf16>, vector<40x128xf32> -> vector<40x128xf32>
    %12 = arith.addf %8, %11 : vector<40x128xf32>
    %c6 = arith.constant 6 : index
    %c0_10 = arith.constant 0 : index
    %13 = vector.load %arg2[%c6, %c0_10] : memref<56x128xbf16, #tpu.memory_space<vmem>>, vector<40x128xbf16>
    %c384 = arith.constant 384 : index
    %c0_11 = arith.constant 0 : index
    %14 = vector.load %arg3[%c384, %c0_11] : memref<1152x128xbf16, #tpu.memory_space<vmem>>, vector<128x128xbf16>
    %cst_12 = arith.constant dense<0.000000e+00> : vector<40x128xf32>
    %15 = tpu.matmul %13, %14, %cst_12 {dimension_numbers = #tpu.dot_dimension_numbers<[1], [0], [0], [1], [0, 0, 1, 1], [], []>} : vector<40x128xbf16>, vector<128x128xbf16>, vector<40x128xf32> -> vector<40x128xf32>
    %16 = arith.addf %12, %15 : vector<40x128xf32>
    %c7 = arith.constant 7 : index
    %c0_13 = arith.constant 0 : index
    %17 = vector.load %arg2[%c7, %c0_13] : memref<56x128xbf16, #tpu.memory_space<vmem>>, vector<40x128xbf16>
    %c512 = arith.constant 512 : index
    %c0_14 = arith.constant 0 : index
    %18 = vector.load %arg3[%c512, %c0_14] : memref<1152x128xbf16, #tpu.memory_space<vmem>>, vector<128x128xbf16>
    %cst_15 = arith.constant dense<0.000000e+00> : vector<40x128xf32>
    %19 = tpu.matmul %17, %18, %cst_15 {dimension_numbers = #tpu.dot_dimension_numbers<[1], [0], [0], [1], [0, 0, 1, 1], [], []>} : vector<40x128xbf16>, vector<128x128xbf16>, vector<40x128xf32> -> vector<40x128xf32>
    %20 = arith.addf %16, %19 : vector<40x128xf32>
    %c8 = arith.constant 8 : index
    %c0_16 = arith.constant 0 : index
    %21 = vector.load %arg2[%c8, %c0_16] : memref<56x128xbf16, #tpu.memory_space<vmem>>, vector<40x128xbf16>
    %c640 = arith.constant 640 : index
    %c0_17 = arith.constant 0 : index
    %22 = vector.load %arg3[%c640, %c0_17] : memref<1152x128xbf16, #tpu.memory_space<vmem>>, vector<128x128xbf16>
    %cst_18 = arith.constant dense<0.000000e+00> : vector<40x128xf32>
    %23 = tpu.matmul %21, %22, %cst_18 {dimension_numbers = #tpu.dot_dimension_numbers<[1], [0], [0], [1], [0, 0, 1, 1], [], []>} : vector<40x128xbf16>, vector<128x128xbf16>, vector<40x128xf32> -> vector<40x128xf32>
    %24 = arith.addf %20, %23 : vector<40x128xf32>
    %c12 = arith.constant 12 : index
    %c0_19 = arith.constant 0 : index
    %25 = vector.load %arg2[%c12, %c0_19] : memref<56x128xbf16, #tpu.memory_space<vmem>>, vector<40x128xbf16>
    %c768 = arith.constant 768 : index
    %c0_20 = arith.constant 0 : index
    %26 = vector.load %arg3[%c768, %c0_20] : memref<1152x128xbf16, #tpu.memory_space<vmem>>, vector<128x128xbf16>
    %cst_21 = arith.constant dense<0.000000e+00> : vector<40x128xf32>
    %27 = tpu.matmul %25, %26, %cst_21 {dimension_numbers = #tpu.dot_dimension_numbers<[1], [0], [0], [1], [0, 0, 1, 1], [], []>} : vector<40x128xbf16>, vector<128x128xbf16>, vector<40x128xf32> -> vector<40x128xf32>
    %28 = arith.addf %24, %27 : vector<40x128xf32>
    %c13 = arith.constant 13 : index
    %c0_22 = arith.constant 0 : index
    %29 = vector.load %arg2[%c13, %c0_22] : memref<56x128xbf16, #tpu.memory_space<vmem>>, vector<40x128xbf16>
    %c896 = arith.constant 896 : index
    %c0_23 = arith.constant 0 : index
    %30 = vector.load %arg3[%c896, %c0_23] : memref<1152x128xbf16, #tpu.memory_space<vmem>>, vector<128x128xbf16>
    %cst_24 = arith.constant dense<0.000000e+00> : vector<40x128xf32>
    %31 = tpu.matmul %29, %30, %cst_24 {dimension_numbers = #tpu.dot_dimension_numbers<[1], [0], [0], [1], [0, 0, 1, 1], [], []>} : vector<40x128xbf16>, vector<128x128xbf16>, vector<40x128xf32> -> vector<40x128xf32>
    %32 = arith.addf %28, %31 : vector<40x128xf32>
    %c14 = arith.constant 14 : index
    %c0_25 = arith.constant 0 : index
    %33 = vector.load %arg2[%c14, %c0_25] : memref<56x128xbf16, #tpu.memory_space<vmem>>, vector<40x128xbf16>
    %c1024 = arith.constant 1024 : index
    %c0_26 = arith.constant 0 : index
    %34 = vector.load %arg3[%c1024, %c0_26] : memref<1152x128xbf16, #tpu.memory_space<vmem>>, vector<128x128xbf16>
    %cst_27 = arith.constant dense<0.000000e+00> : vector<40x128xf32>
    %35 = tpu.matmul %33, %34, %cst_27 {dimension_numbers = #tpu.dot_dimension_numbers<[1], [0], [0], [1], [0, 0, 1, 1], [], []>} : vector<40x128xbf16>, vector<128x128xbf16>, vector<40x128xf32> -> vector<40x128xf32>
    %36 = arith.addf %32, %35 : vector<40x128xf32>
    %c0_28 = arith.constant 0 : index
    %c0_29 = arith.constant 0 : index
    %37 = vector.load %arg4[%c0_28, %c0_29] : memref<1x128xf32, #tpu.memory_space<vmem>>, vector<1x128xf32>
    %38 = vector.broadcast %37 : vector<1x128xf32> to vector<40x128xf32>
    %39 = arith.addf %36, %38 : vector<40x128xf32>
    %c0_30 = arith.constant 0 : index
    %c0_31 = arith.constant 0 : index
    %40 = vector.load %arg5[%c0_30, %c0_31] : memref<40x1xf32, #tpu.memory_space<vmem>>, vector<40x1xf32>
    %41 = vector.broadcast %40 : vector<40x1xf32> to vector<40x128xf32>
    %42 = arith.mulf %39, %41 : vector<40x128xf32>
    %43 = arith.truncf %42 : vector<40x128xf32> to vector<40x128xbf16>
    %c0_32 = arith.constant 0 : index
    %c0_33 = arith.constant 0 : index
    %44 = vector.load %arg6[%c0_32, %c0_33] : memref<40x128xbf16, #tpu.memory_space<vmem>>, vector<40x128xbf16>
    tpu.vector_store %arg6[%c0_32, %c0_33], %43 {strides = array<i32>} : memref<40x128xbf16, #tpu.memory_space<vmem>>, vector<40x128xbf16>,
    return
  }
  func.func @transform_0(%arg0: i32, %arg1: i32) -> (i32, i32) {
    %c0_i32 = arith.constant 0 : i32
    %c0_i32_0 = arith.constant 0 : i32
    return %arg0, %c0_i32 : i32, i32
  }
  func.func @transform_1(%arg0: i32, %arg1: i32) -> (i32, i32) {
    %c0_i32 = arith.constant 0 : i32
    %c0_i32_0 = arith.constant 0 : i32
    %c0_i32_1 = arith.constant 0 : i32
    return %c0_i32, %c0_i32_0 : i32, i32
  }
  func.func @transform_2(%arg0: i32, %arg1: i32) -> (i32, i32) {
    %c0_i32 = arith.constant 0 : i32
    %c0_i32_0 = arith.constant 0 : i32
    %c0_i32_1 = arith.constant 0 : i32
    return %c0_i32, %c0_i32_0 : i32, i32
  }
  func.func @transform_3(%arg0: i32, %arg1: i32) -> (i32, i32) {
    %c0_i32 = arith.constant 0 : i32
    %c0_i32_0 = arith.constant 0 : i32
    return %arg1, %c0_i32 : i32, i32
  }
  func.func @transform_4(%arg0: i32, %arg1: i32) -> (i32, i32) {
    %c1_i32 = arith.constant 1 : i32
    %0 = arith.muli %arg0, %c1_i32 : i32
    %1 = arith.addi %0, %arg1 : i32
    %c0_i32 = arith.constant 0 : i32
    %c0_i32_0 = arith.constant 0 : i32
    return %1, %c0_i32 : i32, i32
  }
}

module attributes {stable_mosaic.version = 11 : i64} {
  func.func @_res3x3_kernel(%arg0: i32, %arg1: i32, %arg2: memref<56x128xbf16, #tpu.memory_space<vmem>>, %arg3: memref<1152x128xbf16, #tpu.memory_space<vmem>>, %arg4: memref<128x128xbf16, #tpu.memory_space<vmem>>, %arg5: memref<40x1xf32, #tpu.memory_space<vmem>>, %arg6: memref<40x128xbf16, #tpu.memory_space<vmem>>) attributes {dimension_semantics = [#tpu.dimension_semantics<parallel>, #tpu.dimension_semantics<arbitrary>], iteration_bounds = array<i64: 2, 1>, scalar_prefetch = 0 : i64, scratch_operands = 0 : i64, tpu.core_type = #tpu.core_type<tc>, window_params = [{transform_indices = @transform_0, window_bounds = array<i64: 56, 128>}, {pipeline_mode = #tpu.pipeline_mode<synchronous>, transform_indices = @transform_1, window_bounds = array<i64: 1152, 128>}, {pipeline_mode = #tpu.pipeline_mode<synchronous>, transform_indices = @transform_2, window_bounds = array<i64: 128, 128>}, {transform_indices = @transform_3, window_bounds = array<i64: 40, 1>}, {transform_indices = @transform_4, window_bounds = array<i64: 40, 128>}]} {
    %cst = arith.constant 0.000000e+00 : f32
    %0 = vector.broadcast %cst : f32 to vector<40x128xf32>
    %c0 = arith.constant 0 : index
    %c0_0 = arith.constant 0 : index
    %1 = vector.load %arg2[%c0, %c0_0] : memref<56x128xbf16, #tpu.memory_space<vmem>>, vector<40x128xbf16>
    %cst_1 = arith.constant 0.000000e+00 : bf16
    %2 = vector.broadcast %cst_1 : bf16 to vector<40x128xbf16>
    %3 = arith.maximumf %1, %2 : vector<40x128xbf16>
    %c0_2 = arith.constant 0 : index
    %c0_3 = arith.constant 0 : index
    %4 = vector.load %arg3[%c0_2, %c0_3] : memref<1152x128xbf16, #tpu.memory_space<vmem>>, vector<128x128xbf16>
    %cst_4 = arith.constant dense<0.000000e+00> : vector<40x128xf32>
    %5 = tpu.matmul %3, %4, %cst_4 {dimension_numbers = #tpu.dot_dimension_numbers<[1], [0], [0], [1], [0, 0, 1, 1], [], []>} : vector<40x128xbf16>, vector<128x128xbf16>, vector<40x128xf32> -> vector<40x128xf32>
    %6 = arith.addf %0, %5 : vector<40x128xf32>
    %c1 = arith.constant 1 : index
    %c0_5 = arith.constant 0 : index
    %7 = vector.load %arg2[%c1, %c0_5] : memref<56x128xbf16, #tpu.memory_space<vmem>>, vector<40x128xbf16>
    %cst_6 = arith.constant 0.000000e+00 : bf16
    %8 = vector.broadcast %cst_6 : bf16 to vector<40x128xbf16>
    %9 = arith.maximumf %7, %8 : vector<40x128xbf16>
    %c128 = arith.constant 128 : index
    %c0_7 = arith.constant 0 : index
    %10 = vector.load %arg3[%c128, %c0_7] : memref<1152x128xbf16, #tpu.memory_space<vmem>>, vector<128x128xbf16>
    %cst_8 = arith.constant dense<0.000000e+00> : vector<40x128xf32>
    %11 = tpu.matmul %9, %10, %cst_8 {dimension_numbers = #tpu.dot_dimension_numbers<[1], [0], [0], [1], [0, 0, 1, 1], [], []>} : vector<40x128xbf16>, vector<128x128xbf16>, vector<40x128xf32> -> vector<40x128xf32>
    %12 = arith.addf %6, %11 : vector<40x128xf32>
    %c2 = arith.constant 2 : index
    %c0_9 = arith.constant 0 : index
    %13 = vector.load %arg2[%c2, %c0_9] : memref<56x128xbf16, #tpu.memory_space<vmem>>, vector<40x128xbf16>
    %cst_10 = arith.constant 0.000000e+00 : bf16
    %14 = vector.broadcast %cst_10 : bf16 to vector<40x128xbf16>
    %15 = arith.maximumf %13, %14 : vector<40x128xbf16>
    %c256 = arith.constant 256 : index
    %c0_11 = arith.constant 0 : index
    %16 = vector.load %arg3[%c256, %c0_11] : memref<1152x128xbf16, #tpu.memory_space<vmem>>, vector<128x128xbf16>
    %cst_12 = arith.constant dense<0.000000e+00> : vector<40x128xf32>
    %17 = tpu.matmul %15, %16, %cst_12 {dimension_numbers = #tpu.dot_dimension_numbers<[1], [0], [0], [1], [0, 0, 1, 1], [], []>} : vector<40x128xbf16>, vector<128x128xbf16>, vector<40x128xf32> -> vector<40x128xf32>
    %18 = arith.addf %12, %17 : vector<40x128xf32>
    %c6 = arith.constant 6 : index
    %c0_13 = arith.constant 0 : index
    %19 = vector.load %arg2[%c6, %c0_13] : memref<56x128xbf16, #tpu.memory_space<vmem>>, vector<40x128xbf16>
    %cst_14 = arith.constant 0.000000e+00 : bf16
    %20 = vector.broadcast %cst_14 : bf16 to vector<40x128xbf16>
    %21 = arith.maximumf %19, %20 : vector<40x128xbf16>
    %c384 = arith.constant 384 : index
    %c0_15 = arith.constant 0 : index
    %22 = vector.load %arg3[%c384, %c0_15] : memref<1152x128xbf16, #tpu.memory_space<vmem>>, vector<128x128xbf16>
    %cst_16 = arith.constant dense<0.000000e+00> : vector<40x128xf32>
    %23 = tpu.matmul %21, %22, %cst_16 {dimension_numbers = #tpu.dot_dimension_numbers<[1], [0], [0], [1], [0, 0, 1, 1], [], []>} : vector<40x128xbf16>, vector<128x128xbf16>, vector<40x128xf32> -> vector<40x128xf32>
    %24 = arith.addf %18, %23 : vector<40x128xf32>
    %c7 = arith.constant 7 : index
    %c0_17 = arith.constant 0 : index
    %25 = vector.load %arg2[%c7, %c0_17] : memref<56x128xbf16, #tpu.memory_space<vmem>>, vector<40x128xbf16>
    %cst_18 = arith.constant 0.000000e+00 : bf16
    %26 = vector.broadcast %cst_18 : bf16 to vector<40x128xbf16>
    %27 = arith.maximumf %25, %26 : vector<40x128xbf16>
    %c512 = arith.constant 512 : index
    %c0_19 = arith.constant 0 : index
    %28 = vector.load %arg3[%c512, %c0_19] : memref<1152x128xbf16, #tpu.memory_space<vmem>>, vector<128x128xbf16>
    %cst_20 = arith.constant dense<0.000000e+00> : vector<40x128xf32>
    %29 = tpu.matmul %27, %28, %cst_20 {dimension_numbers = #tpu.dot_dimension_numbers<[1], [0], [0], [1], [0, 0, 1, 1], [], []>} : vector<40x128xbf16>, vector<128x128xbf16>, vector<40x128xf32> -> vector<40x128xf32>
    %30 = arith.addf %24, %29 : vector<40x128xf32>
    %c8 = arith.constant 8 : index
    %c0_21 = arith.constant 0 : index
    %31 = vector.load %arg2[%c8, %c0_21] : memref<56x128xbf16, #tpu.memory_space<vmem>>, vector<40x128xbf16>
    %cst_22 = arith.constant 0.000000e+00 : bf16
    %32 = vector.broadcast %cst_22 : bf16 to vector<40x128xbf16>
    %33 = arith.maximumf %31, %32 : vector<40x128xbf16>
    %c640 = arith.constant 640 : index
    %c0_23 = arith.constant 0 : index
    %34 = vector.load %arg3[%c640, %c0_23] : memref<1152x128xbf16, #tpu.memory_space<vmem>>, vector<128x128xbf16>
    %cst_24 = arith.constant dense<0.000000e+00> : vector<40x128xf32>
    %35 = tpu.matmul %33, %34, %cst_24 {dimension_numbers = #tpu.dot_dimension_numbers<[1], [0], [0], [1], [0, 0, 1, 1], [], []>} : vector<40x128xbf16>, vector<128x128xbf16>, vector<40x128xf32> -> vector<40x128xf32>
    %36 = arith.addf %30, %35 : vector<40x128xf32>
    %c12 = arith.constant 12 : index
    %c0_25 = arith.constant 0 : index
    %37 = vector.load %arg2[%c12, %c0_25] : memref<56x128xbf16, #tpu.memory_space<vmem>>, vector<40x128xbf16>
    %cst_26 = arith.constant 0.000000e+00 : bf16
    %38 = vector.broadcast %cst_26 : bf16 to vector<40x128xbf16>
    %39 = arith.maximumf %37, %38 : vector<40x128xbf16>
    %c768 = arith.constant 768 : index
    %c0_27 = arith.constant 0 : index
    %40 = vector.load %arg3[%c768, %c0_27] : memref<1152x128xbf16, #tpu.memory_space<vmem>>, vector<128x128xbf16>
    %cst_28 = arith.constant dense<0.000000e+00> : vector<40x128xf32>
    %41 = tpu.matmul %39, %40, %cst_28 {dimension_numbers = #tpu.dot_dimension_numbers<[1], [0], [0], [1], [0, 0, 1, 1], [], []>} : vector<40x128xbf16>, vector<128x128xbf16>, vector<40x128xf32> -> vector<40x128xf32>
    %42 = arith.addf %36, %41 : vector<40x128xf32>
    %c13 = arith.constant 13 : index
    %c0_29 = arith.constant 0 : index
    %43 = vector.load %arg2[%c13, %c0_29] : memref<56x128xbf16, #tpu.memory_space<vmem>>, vector<40x128xbf16>
    %cst_30 = arith.constant 0.000000e+00 : bf16
    %44 = vector.broadcast %cst_30 : bf16 to vector<40x128xbf16>
    %45 = arith.maximumf %43, %44 : vector<40x128xbf16>
    %c896 = arith.constant 896 : index
    %c0_31 = arith.constant 0 : index
    %46 = vector.load %arg3[%c896, %c0_31] : memref<1152x128xbf16, #tpu.memory_space<vmem>>, vector<128x128xbf16>
    %cst_32 = arith.constant dense<0.000000e+00> : vector<40x128xf32>
    %47 = tpu.matmul %45, %46, %cst_32 {dimension_numbers = #tpu.dot_dimension_numbers<[1], [0], [0], [1], [0, 0, 1, 1], [], []>} : vector<40x128xbf16>, vector<128x128xbf16>, vector<40x128xf32> -> vector<40x128xf32>
    %48 = arith.addf %42, %47 : vector<40x128xf32>
    %c14 = arith.constant 14 : index
    %c0_33 = arith.constant 0 : index
    %49 = vector.load %arg2[%c14, %c0_33] : memref<56x128xbf16, #tpu.memory_space<vmem>>, vector<40x128xbf16>
    %cst_34 = arith.constant 0.000000e+00 : bf16
    %50 = vector.broadcast %cst_34 : bf16 to vector<40x128xbf16>
    %51 = arith.maximumf %49, %50 : vector<40x128xbf16>
    %c1024 = arith.constant 1024 : index
    %c0_35 = arith.constant 0 : index
    %52 = vector.load %arg3[%c1024, %c0_35] : memref<1152x128xbf16, #tpu.memory_space<vmem>>, vector<128x128xbf16>
    %cst_36 = arith.constant dense<0.000000e+00> : vector<40x128xf32>
    %53 = tpu.matmul %51, %52, %cst_36 {dimension_numbers = #tpu.dot_dimension_numbers<[1], [0], [0], [1], [0, 0, 1, 1], [], []>} : vector<40x128xbf16>, vector<128x128xbf16>, vector<40x128xf32> -> vector<40x128xf32>
    %54 = arith.addf %48, %53 : vector<40x128xf32>
    %cst_37 = arith.constant 0.000000e+00 : f32
    %55 = vector.broadcast %cst_37 : f32 to vector<40x128xf32>
    %56 = arith.maximumf %54, %55 : vector<40x128xf32>
    %57 = arith.truncf %56 : vector<40x128xf32> to vector<40x128xbf16>
    %c0_38 = arith.constant 0 : index
    %c0_39 = arith.constant 0 : index
    %58 = vector.load %arg4[%c0_38, %c0_39] : memref<128x128xbf16, #tpu.memory_space<vmem>>, vector<128x128xbf16>
    %cst_40 = arith.constant dense<0.000000e+00> : vector<40x128xf32>
    %59 = tpu.matmul %57, %58, %cst_40 {dimension_numbers = #tpu.dot_dimension_numbers<[1], [0], [0], [1], [0, 0, 1, 1], [], []>} : vector<40x128xbf16>, vector<128x128xbf16>, vector<40x128xf32> -> vector<40x128xf32>
    %c7_41 = arith.constant 7 : index
    %c0_42 = arith.constant 0 : index
    %60 = vector.load %arg2[%c7_41, %c0_42] : memref<56x128xbf16, #tpu.memory_space<vmem>>, vector<40x128xbf16>
    %61 = arith.extf %60 : vector<40x128xbf16> to vector<40x128xf32>
    %62 = arith.addf %59, %61 : vector<40x128xf32>
    %cst_43 = arith.constant 0.000000e+00 : f32
    %63 = vector.broadcast %cst_43 : f32 to vector<40x128xf32>
    %64 = arith.maximumf %62, %63 : vector<40x128xf32>
    %c0_44 = arith.constant 0 : index
    %c0_45 = arith.constant 0 : index
    %65 = vector.load %arg5[%c0_44, %c0_45] : memref<40x1xf32, #tpu.memory_space<vmem>>, vector<40x1xf32>
    %66 = vector.broadcast %65 : vector<40x1xf32> to vector<40x128xf32>
    %67 = arith.mulf %64, %66 : vector<40x128xf32>
    %68 = arith.truncf %67 : vector<40x128xf32> to vector<40x128xbf16>
    %c0_46 = arith.constant 0 : index
    %c0_47 = arith.constant 0 : index
    %69 = vector.load %arg6[%c0_46, %c0_47] : memref<40x128xbf16, #tpu.memory_space<vmem>>, vector<40x128xbf16>
    tpu.vector_store %arg6[%c0_46, %c0_47], %68 {strides = array<i32>} : memref<40x128xbf16, #tpu.memory_space<vmem>>, vector<40x128xbf16>,
    return
  }
  func.func @transform_0(%arg0: i32, %arg1: i32) -> (i32, i32) {
    %c0_i32 = arith.constant 0 : i32
    %c0_i32_0 = arith.constant 0 : i32
    return %arg0, %c0_i32 : i32, i32
  }
  func.func @transform_1(%arg0: i32, %arg1: i32) -> (i32, i32) {
    %c0_i32 = arith.constant 0 : i32
    %c0_i32_0 = arith.constant 0 : i32
    %c0_i32_1 = arith.constant 0 : i32
    return %c0_i32, %c0_i32_0 : i32, i32
  }
  func.func @transform_2(%arg0: i32, %arg1: i32) -> (i32, i32) {
    %c0_i32 = arith.constant 0 : i32
    %c0_i32_0 = arith.constant 0 : i32
    %c0_i32_1 = arith.constant 0 : i32
    return %c0_i32, %c0_i32_0 : i32, i32
  }
  func.func @transform_3(%arg0: i32, %arg1: i32) -> (i32, i32) {
    %c0_i32 = arith.constant 0 : i32
    %c0_i32_0 = arith.constant 0 : i32
    return %arg1, %c0_i32 : i32, i32
  }
  func.func @transform_4(%arg0: i32, %arg1: i32) -> (i32, i32) {
    %c1_i32 = arith.constant 1 : i32
    %0 = arith.muli %arg0, %c1_i32 : i32
    %1 = arith.addi %0, %arg1 : i32
    %c0_i32 = arith.constant 0 : i32
    %c0_i32_0 = arith.constant 0 : i32
    return %1, %c0_i32 : i32, i32
  }
}

module attributes {stable_mosaic.version = 11 : i64} {
  func.func @_res3x3_kernel(%arg0: i32, %arg1: i32, %arg2: memref<56x128xbf16, #tpu.memory_space<vmem>>, %arg3: memref<1152x128xbf16, #tpu.memory_space<vmem>>, %arg4: memref<128x128xbf16, #tpu.memory_space<vmem>>, %arg5: memref<40x1xf32, #tpu.memory_space<vmem>>, %arg6: memref<40x128xbf16, #tpu.memory_space<vmem>>) attributes {dimension_semantics = [#tpu.dimension_semantics<parallel>, #tpu.dimension_semantics<arbitrary>], iteration_bounds = array<i64: 2, 1>, scalar_prefetch = 0 : i64, scratch_operands = 0 : i64, tpu.core_type = #tpu.core_type<tc>, window_params = [{transform_indices = @transform_0, window_bounds = array<i64: 56, 128>}, {pipeline_mode = #tpu.pipeline_mode<synchronous>, transform_indices = @transform_1, window_bounds = array<i64: 1152, 128>}, {pipeline_mode = #tpu.pipeline_mode<synchronous>, transform_indices = @transform_2, window_bounds = array<i64: 128, 128>}, {transform_indices = @transform_3, window_bounds = array<i64: 40, 1>}, {transform_indices = @transform_4, window_bounds = array<i64: 40, 128>}]} {
    %cst = arith.constant 0.000000e+00 : f32
    %0 = vector.broadcast %cst : f32 to vector<40x128xf32>
    %c0 = arith.constant 0 : index
    %c0_0 = arith.constant 0 : index
    %1 = vector.load %arg2[%c0, %c0_0] : memref<56x128xbf16, #tpu.memory_space<vmem>>, vector<40x128xbf16>
    %cst_1 = arith.constant 0.000000e+00 : bf16
    %2 = vector.broadcast %cst_1 : bf16 to vector<40x128xbf16>
    %3 = arith.maximumf %1, %2 : vector<40x128xbf16>
    %c0_2 = arith.constant 0 : index
    %c0_3 = arith.constant 0 : index
    %4 = vector.load %arg3[%c0_2, %c0_3] : memref<1152x128xbf16, #tpu.memory_space<vmem>>, vector<128x128xbf16>
    %cst_4 = arith.constant dense<0.000000e+00> : vector<40x128xf32>
    %5 = tpu.matmul %3, %4, %cst_4 {dimension_numbers = #tpu.dot_dimension_numbers<[1], [0], [0], [1], [0, 0, 1, 1], [], []>} : vector<40x128xbf16>, vector<128x128xbf16>, vector<40x128xf32> -> vector<40x128xf32>
    %6 = arith.addf %0, %5 : vector<40x128xf32>
    %c1 = arith.constant 1 : index
    %c0_5 = arith.constant 0 : index
    %7 = vector.load %arg2[%c1, %c0_5] : memref<56x128xbf16, #tpu.memory_space<vmem>>, vector<40x128xbf16>
    %cst_6 = arith.constant 0.000000e+00 : bf16
    %8 = vector.broadcast %cst_6 : bf16 to vector<40x128xbf16>
    %9 = arith.maximumf %7, %8 : vector<40x128xbf16>
    %c128 = arith.constant 128 : index
    %c0_7 = arith.constant 0 : index
    %10 = vector.load %arg3[%c128, %c0_7] : memref<1152x128xbf16, #tpu.memory_space<vmem>>, vector<128x128xbf16>
    %cst_8 = arith.constant dense<0.000000e+00> : vector<40x128xf32>
    %11 = tpu.matmul %9, %10, %cst_8 {dimension_numbers = #tpu.dot_dimension_numbers<[1], [0], [0], [1], [0, 0, 1, 1], [], []>} : vector<40x128xbf16>, vector<128x128xbf16>, vector<40x128xf32> -> vector<40x128xf32>
    %12 = arith.addf %6, %11 : vector<40x128xf32>
    %c2 = arith.constant 2 : index
    %c0_9 = arith.constant 0 : index
    %13 = vector.load %arg2[%c2, %c0_9] : memref<56x128xbf16, #tpu.memory_space<vmem>>, vector<40x128xbf16>
    %cst_10 = arith.constant 0.000000e+00 : bf16
    %14 = vector.broadcast %cst_10 : bf16 to vector<40x128xbf16>
    %15 = arith.maximumf %13, %14 : vector<40x128xbf16>
    %c256 = arith.constant 256 : index
    %c0_11 = arith.constant 0 : index
    %16 = vector.load %arg3[%c256, %c0_11] : memref<1152x128xbf16, #tpu.memory_space<vmem>>, vector<128x128xbf16>
    %cst_12 = arith.constant dense<0.000000e+00> : vector<40x128xf32>
    %17 = tpu.matmul %15, %16, %cst_12 {dimension_numbers = #tpu.dot_dimension_numbers<[1], [0], [0], [1], [0, 0, 1, 1], [], []>} : vector<40x128xbf16>, vector<128x128xbf16>, vector<40x128xf32> -> vector<40x128xf32>
    %18 = arith.addf %12, %17 : vector<40x128xf32>
    %c6 = arith.constant 6 : index
    %c0_13 = arith.constant 0 : index
    %19 = vector.load %arg2[%c6, %c0_13] : memref<56x128xbf16, #tpu.memory_space<vmem>>, vector<40x128xbf16>
    %cst_14 = arith.constant 0.000000e+00 : bf16
    %20 = vector.broadcast %cst_14 : bf16 to vector<40x128xbf16>
    %21 = arith.maximumf %19, %20 : vector<40x128xbf16>
    %c384 = arith.constant 384 : index
    %c0_15 = arith.constant 0 : index
    %22 = vector.load %arg3[%c384, %c0_15] : memref<1152x128xbf16, #tpu.memory_space<vmem>>, vector<128x128xbf16>
    %cst_16 = arith.constant dense<0.000000e+00> : vector<40x128xf32>
    %23 = tpu.matmul %21, %22, %cst_16 {dimension_numbers = #tpu.dot_dimension_numbers<[1], [0], [0], [1], [0, 0, 1, 1], [], []>} : vector<40x128xbf16>, vector<128x128xbf16>, vector<40x128xf32> -> vector<40x128xf32>
    %24 = arith.addf %18, %23 : vector<40x128xf32>
    %c7 = arith.constant 7 : index
    %c0_17 = arith.constant 0 : index
    %25 = vector.load %arg2[%c7, %c0_17] : memref<56x128xbf16, #tpu.memory_space<vmem>>, vector<40x128xbf16>
    %cst_18 = arith.constant 0.000000e+00 : bf16
    %26 = vector.broadcast %cst_18 : bf16 to vector<40x128xbf16>
    %27 = arith.maximumf %25, %26 : vector<40x128xbf16>
    %c512 = arith.constant 512 : index
    %c0_19 = arith.constant 0 : index
    %28 = vector.load %arg3[%c512, %c0_19] : memref<1152x128xbf16, #tpu.memory_space<vmem>>, vector<128x128xbf16>
    %cst_20 = arith.constant dense<0.000000e+00> : vector<40x128xf32>
    %29 = tpu.matmul %27, %28, %cst_20 {dimension_numbers = #tpu.dot_dimension_numbers<[1], [0], [0], [1], [0, 0, 1, 1], [], []>} : vector<40x128xbf16>, vector<128x128xbf16>, vector<40x128xf32> -> vector<40x128xf32>
    %30 = arith.addf %24, %29 : vector<40x128xf32>
    %c8 = arith.constant 8 : index
    %c0_21 = arith.constant 0 : index
    %31 = vector.load %arg2[%c8, %c0_21] : memref<56x128xbf16, #tpu.memory_space<vmem>>, vector<40x128xbf16>
    %cst_22 = arith.constant 0.000000e+00 : bf16
    %32 = vector.broadcast %cst_22 : bf16 to vector<40x128xbf16>
    %33 = arith.maximumf %31, %32 : vector<40x128xbf16>
    %c640 = arith.constant 640 : index
    %c0_23 = arith.constant 0 : index
    %34 = vector.load %arg3[%c640, %c0_23] : memref<1152x128xbf16, #tpu.memory_space<vmem>>, vector<128x128xbf16>
    %cst_24 = arith.constant dense<0.000000e+00> : vector<40x128xf32>
    %35 = tpu.matmul %33, %34, %cst_24 {dimension_numbers = #tpu.dot_dimension_numbers<[1], [0], [0], [1], [0, 0, 1, 1], [], []>} : vector<40x128xbf16>, vector<128x128xbf16>, vector<40x128xf32> -> vector<40x128xf32>
    %36 = arith.addf %30, %35 : vector<40x128xf32>
    %c12 = arith.constant 12 : index
    %c0_25 = arith.constant 0 : index
    %37 = vector.load %arg2[%c12, %c0_25] : memref<56x128xbf16, #tpu.memory_space<vmem>>, vector<40x128xbf16>
    %cst_26 = arith.constant 0.000000e+00 : bf16
    %38 = vector.broadcast %cst_26 : bf16 to vector<40x128xbf16>
    %39 = arith.maximumf %37, %38 : vector<40x128xbf16>
    %c768 = arith.constant 768 : index
    %c0_27 = arith.constant 0 : index
    %40 = vector.load %arg3[%c768, %c0_27] : memref<1152x128xbf16, #tpu.memory_space<vmem>>, vector<128x128xbf16>
    %cst_28 = arith.constant dense<0.000000e+00> : vector<40x128xf32>
    %41 = tpu.matmul %39, %40, %cst_28 {dimension_numbers = #tpu.dot_dimension_numbers<[1], [0], [0], [1], [0, 0, 1, 1], [], []>} : vector<40x128xbf16>, vector<128x128xbf16>, vector<40x128xf32> -> vector<40x128xf32>
    %42 = arith.addf %36, %41 : vector<40x128xf32>
    %c13 = arith.constant 13 : index
    %c0_29 = arith.constant 0 : index
    %43 = vector.load %arg2[%c13, %c0_29] : memref<56x128xbf16, #tpu.memory_space<vmem>>, vector<40x128xbf16>
    %cst_30 = arith.constant 0.000000e+00 : bf16
    %44 = vector.broadcast %cst_30 : bf16 to vector<40x128xbf16>
    %45 = arith.maximumf %43, %44 : vector<40x128xbf16>
    %c896 = arith.constant 896 : index
    %c0_31 = arith.constant 0 : index
    %46 = vector.load %arg3[%c896, %c0_31] : memref<1152x128xbf16, #tpu.memory_space<vmem>>, vector<128x128xbf16>
    %cst_32 = arith.constant dense<0.000000e+00> : vector<40x128xf32>
    %47 = tpu.matmul %45, %46, %cst_32 {dimension_numbers = #tpu.dot_dimension_numbers<[1], [0], [0], [1], [0, 0, 1, 1], [], []>} : vector<40x128xbf16>, vector<128x128xbf16>, vector<40x128xf32> -> vector<40x128xf32>
    %48 = arith.addf %42, %47 : vector<40x128xf32>
    %c14 = arith.constant 14 : index
    %c0_33 = arith.constant 0 : index
    %49 = vector.load %arg2[%c14, %c0_33] : memref<56x128xbf16, #tpu.memory_space<vmem>>, vector<40x128xbf16>
    %cst_34 = arith.constant 0.000000e+00 : bf16
    %50 = vector.broadcast %cst_34 : bf16 to vector<40x128xbf16>
    %51 = arith.maximumf %49, %50 : vector<40x128xbf16>
    %c1024 = arith.constant 1024 : index
    %c0_35 = arith.constant 0 : index
    %52 = vector.load %arg3[%c1024, %c0_35] : memref<1152x128xbf16, #tpu.memory_space<vmem>>, vector<128x128xbf16>
    %cst_36 = arith.constant dense<0.000000e+00> : vector<40x128xf32>
    %53 = tpu.matmul %51, %52, %cst_36 {dimension_numbers = #tpu.dot_dimension_numbers<[1], [0], [0], [1], [0, 0, 1, 1], [], []>} : vector<40x128xbf16>, vector<128x128xbf16>, vector<40x128xf32> -> vector<40x128xf32>
    %54 = arith.addf %48, %53 : vector<40x128xf32>
    %cst_37 = arith.constant 0.000000e+00 : f32
    %55 = vector.broadcast %cst_37 : f32 to vector<40x128xf32>
    %56 = arith.maximumf %54, %55 : vector<40x128xf32>
    %57 = arith.truncf %56 : vector<40x128xf32> to vector<40x128xbf16>
    %c0_38 = arith.constant 0 : index
    %c0_39 = arith.constant 0 : index
    %58 = vector.load %arg4[%c0_38, %c0_39] : memref<128x128xbf16, #tpu.memory_space<vmem>>, vector<128x128xbf16>
    %cst_40 = arith.constant dense<0.000000e+00> : vector<40x128xf32>
    %59 = tpu.matmul %57, %58, %cst_40 {dimension_numbers = #tpu.dot_dimension_numbers<[1], [0], [0], [1], [0, 0, 1, 1], [], []>} : vector<40x128xbf16>, vector<128x128xbf16>, vector<40x128xf32> -> vector<40x128xf32>
    %c7_41 = arith.constant 7 : index
    %c0_42 = arith.constant 0 : index
    %60 = vector.load %arg2[%c7_41, %c0_42] : memref<56x128xbf16, #tpu.memory_space<vmem>>, vector<40x128xbf16>
    %61 = arith.extf %60 : vector<40x128xbf16> to vector<40x128xf32>
    %62 = arith.addf %59, %61 : vector<40x128xf32>
    %c0_43 = arith.constant 0 : index
    %c0_44 = arith.constant 0 : index
    %63 = vector.load %arg5[%c0_43, %c0_44] : memref<40x1xf32, #tpu.memory_space<vmem>>, vector<40x1xf32>
    %64 = vector.broadcast %63 : vector<40x1xf32> to vector<40x128xf32>
    %65 = arith.mulf %62, %64 : vector<40x128xf32>
    %66 = arith.truncf %65 : vector<40x128xf32> to vector<40x128xbf16>
    %c0_45 = arith.constant 0 : index
    %c0_46 = arith.constant 0 : index
    %67 = vector.load %arg6[%c0_45, %c0_46] : memref<40x128xbf16, #tpu.memory_space<vmem>>, vector<40x128xbf16>
    tpu.vector_store %arg6[%c0_45, %c0_46], %66 {strides = array<i32>} : memref<40x128xbf16, #tpu.memory_space<vmem>>, vector<40x128xbf16>,
    return
  }
  func.func @transform_0(%arg0: i32, %arg1: i32) -> (i32, i32) {
    %c0_i32 = arith.constant 0 : i32
    %c0_i32_0 = arith.constant 0 : i32
    return %arg0, %c0_i32 : i32, i32
  }
  func.func @transform_1(%arg0: i32, %arg1: i32) -> (i32, i32) {
    %c0_i32 = arith.constant 0 : i32
    %c0_i32_0 = arith.constant 0 : i32
    %c0_i32_1 = arith.constant 0 : i32
    return %c0_i32, %c0_i32_0 : i32, i32
  }
  func.func @transform_2(%arg0: i32, %arg1: i32) -> (i32, i32) {
    %c0_i32 = arith.constant 0 : i32
    %c0_i32_0 = arith.constant 0 : i32
    %c0_i32_1 = arith.constant 0 : i32
    return %c0_i32, %c0_i32_0 : i32, i32
  }
  func.func @transform_3(%arg0: i32, %arg1: i32) -> (i32, i32) {
    %c0_i32 = arith.constant 0 : i32
    %c0_i32_0 = arith.constant 0 : i32
    return %arg1, %c0_i32 : i32, i32
  }
  func.func @transform_4(%arg0: i32, %arg1: i32) -> (i32, i32) {
    %c1_i32 = arith.constant 1 : i32
    %0 = arith.muli %arg0, %c1_i32 : i32
    %1 = arith.addi %0, %arg1 : i32
    %c0_i32 = arith.constant 0 : i32
    %c0_i32_0 = arith.constant 0 : i32
    return %1, %c0_i32 : i32, i32
  }
}

module attributes {stable_mosaic.version = 11 : i64} {
  func.func @_vq_kernel(%arg0: i32, %arg1: memref<32x128xbf16, #tpu.memory_space<vmem>>, %arg2: memref<128x128xbf16, #tpu.memory_space<vmem>>, %arg3: memref<1x128xf32, #tpu.memory_space<vmem>>, %arg4: memref<128x128xbf16, #tpu.memory_space<vmem>>, %arg5: memref<1x128xf32, #tpu.memory_space<vmem>>, %arg6: memref<32x128xbf16, #tpu.memory_space<vmem>>, %arg7: memref<8x128xf32, #tpu.memory_space<vmem>>, %arg8: memref<8x128xf32, #tpu.memory_space<vmem>>) attributes {dimension_semantics = [#tpu.dimension_semantics<parallel>], iteration_bounds = array<i64: 1>, scalar_prefetch = 0 : i64, scratch_operands = 0 : i64, tpu.core_type = #tpu.core_type<tc>, window_params = [{transform_indices = @transform_0, window_bounds = array<i64: 32, 128>}, {pipeline_mode = #tpu.pipeline_mode<synchronous>, transform_indices = @transform_1, window_bounds = array<i64: 128, 128>}, {pipeline_mode = #tpu.pipeline_mode<synchronous>, transform_indices = @transform_2, window_bounds = array<i64: 1, 128>}, {pipeline_mode = #tpu.pipeline_mode<synchronous>, transform_indices = @transform_3, window_bounds = array<i64: 128, 128>}, {pipeline_mode = #tpu.pipeline_mode<synchronous>, transform_indices = @transform_4, window_bounds = array<i64: 1, 128>}, {transform_indices = @transform_5, window_bounds = array<i64: 32, 128>}, {transform_indices = @transform_6, window_bounds = array<i64: 8, 128>}, {transform_indices = @transform_7, window_bounds = array<i64: 8, 128>}]} {
    %c0 = arith.constant 0 : index
    %c0_0 = arith.constant 0 : index
    %0 = vector.load %arg1[%c0, %c0_0] : memref<32x128xbf16, #tpu.memory_space<vmem>>, vector<32x128xbf16>
    %c0_1 = arith.constant 0 : index
    %c0_2 = arith.constant 0 : index
    %1 = vector.load %arg2[%c0_1, %c0_2] : memref<128x128xbf16, #tpu.memory_space<vmem>>, vector<128x128xbf16>
    %cst = arith.constant dense<0.000000e+00> : vector<32x128xf32>
    %2 = tpu.matmul %0, %1, %cst {dimension_numbers = #tpu.dot_dimension_numbers<[1], [0], [0], [1], [0, 0, 1, 1], [], []>} : vector<32x128xbf16>, vector<128x128xbf16>, vector<32x128xf32> -> vector<32x128xf32>
    %c0_3 = arith.constant 0 : index
    %c0_4 = arith.constant 0 : index
    %3 = vector.load %arg3[%c0_3, %c0_4] : memref<1x128xf32, #tpu.memory_space<vmem>>, vector<1x128xf32>
    %4 = vector.broadcast %3 : vector<1x128xf32> to vector<32x128xf32>
    %5 = arith.addf %2, %4 : vector<32x128xf32>
    %c0_5 = arith.constant 0 : index
    %c0_6 = arith.constant 0 : index
    %6 = vector.load %arg4[%c0_5, %c0_6] : memref<128x128xbf16, #tpu.memory_space<vmem>>, vector<128x128xbf16>
    %c0_7 = arith.constant 0 : index
    %c0_8 = arith.constant 0 : index
    %7 = vector.load %arg5[%c0_7, %c0_8] : memref<1x128xf32, #tpu.memory_space<vmem>>, vector<1x128xf32>
    %8 = arith.truncf %5 : vector<32x128xf32> to vector<32x128xbf16>
    %cst_9 = arith.constant dense<0.000000e+00> : vector<32x128xf32>
    %9 = tpu.matmul %8, %6, %cst_9 {dimension_numbers = #tpu.dot_dimension_numbers<[1], [1], [0], [0], [0, 0, 1, 0], [], []>} : vector<32x128xbf16>, vector<128x128xbf16>, vector<32x128xf32> -> vector<32x128xf32>
    %cst_10 = arith.constant 2.000000e+00 : f32
    %10 = vector.broadcast %cst_10 : f32 to vector<32x128xf32>
    %11 = arith.mulf %10, %9 : vector<32x128xf32>
    %12 = vector.broadcast %7 : vector<1x128xf32> to vector<32x128xf32>
    %13 = arith.subf %12, %11 : vector<32x128xf32>
    %14 = tpu.iota {dimensions = array<i32: 1>} : vector<32x128xi32>
    %c64_i32 = arith.constant 64 : i32
    %15 = vector.broadcast %c64_i32 : i32 to vector<32x128xi32>
    %16 = arith.cmpi slt, %14, %15 : vector<32x128xi32>
    %cst_11 = arith.constant 0x7F800000 : f32
    %17 = vector.broadcast %cst_11 : f32 to vector<32x128xf32>
    %18 = arith.select %16, %13, %17 : vector<32x128xi1>, vector<32x128xf32>
    %cst_12 = arith.constant dense<0x7F800000> : vector<32xf32>
    %19 = vector.multi_reduction <minimumf>, %18, %cst_12 [1] : vector<32x128xf32> to vector<32xf32>
    %20 = vector.shape_cast %19 : vector<32xf32> to vector<32x1xf32>
    %21 = vector.broadcast %20 : vector<32x1xf32> to vector<32x128xf32>
    %22 = arith.cmpf oeq, %18, %21 : vector<32x128xf32>
    %c128_i32 = arith.constant 128 : i32
    %23 = vector.broadcast %c128_i32 : i32 to vector<32x128xi32>
    %24 = arith.select %22, %14, %23 : vector<32x128xi1>, vector<32x128xi32>
    %cst_13 = arith.constant dense<2147483647> : vector<32xi32>
    %25 = vector.multi_reduction <minsi>, %24, %cst_13 [1] : vector<32x128xi32> to vector<32xi32>
    %26 = vector.shape_cast %25 : vector<32xi32> to vector<32x1xi32>
    %27 = vector.broadcast %26 : vector<32x1xi32> to vector<32x128xi32>
    %28 = arith.cmpi eq, %14, %27 : vector<32x128xi32>
    %29 = arith.extui %28 : vector<32x128xi1> to vector<32x128xi32>
    %30 = arith.sitofp %29 : vector<32x128xi32> to vector<32x128xf32>
    %31 = arith.truncf %30 : vector<32x128xf32> to vector<32x128xbf16>
    %cst_14 = arith.constant dense<0.000000e+00> : vector<32x128xf32>
    %32 = tpu.matmul %31, %6, %cst_14 {dimension_numbers = #tpu.dot_dimension_numbers<[1], [0], [0], [1], [0, 0, 1, 1], [], []>} : vector<32x128xbf16>, vector<128x128xbf16>, vector<32x128xf32> -> vector<32x128xf32>
    %33 = arith.truncf %32 : vector<32x128xf32> to vector<32x128xbf16>
    %c0_15 = arith.constant 0 : index
    %c0_16 = arith.constant 0 : index
    %34 = vector.load %arg6[%c0_15, %c0_16] : memref<32x128xbf16, #tpu.memory_space<vmem>>, vector<32x128xbf16>
    tpu.vector_store %arg6[%c0_15, %c0_16], %33 {strides = array<i32>} : memref<32x128xbf16, #tpu.memory_space<vmem>>, vector<32x128xbf16>,
    %35 = tpu.iota {dimensions = array<i32: 0>} : vector<32x1xi32>
    %c32_i32 = arith.constant 32 : i32
    %36 = arith.muli %arg0, %c32_i32 : i32
    %37 = vector.broadcast %36 : i32 to vector<32x1xi32>
    %38 = arith.addi %35, %37 : vector<32x1xi32>
    %c32_i32_17 = arith.constant 32 : i32
    %39 = vector.broadcast %c32_i32_17 : i32 to vector<32x1xi32>
    %40 = arith.cmpi slt, %38, %39 : vector<32x1xi32>
    %41 = arith.extui %40 : vector<32x1xi1> to vector<32x1xi32>
    %42 = arith.sitofp %41 : vector<32x1xi32> to vector<32x1xf32>
    %43 = arith.subf %32, %5 : vector<32x128xf32>
    %44 = vector.broadcast %42 : vector<32x1xf32> to vector<32x128xf32>
    %45 = arith.mulf %43, %44 : vector<32x128xf32>
    %46 = arith.mulf %45, %45 : vector<32x128xf32>
    %cst_18 = arith.constant dense<0.000000e+00> : vector<32xf32>
    %47 = vector.multi_reduction <add>, %46, %cst_18 [1] : vector<32x128xf32> to vector<32xf32>
    %48 = vector.shape_cast %47 : vector<32xf32> to vector<32x1xf32>
    %cst_19 = arith.constant dense<0.000000e+00> : vector<1xf32>
    %49 = vector.multi_reduction <add>, %48, %cst_19 [0] : vector<32x1xf32> to vector<1xf32>
    %50 = vector.shape_cast %49 : vector<1xf32> to vector<1x1xf32>
    %51 = vector.broadcast %42 : vector<32x1xf32> to vector<32x128xf32>
    %52 = arith.mulf %30, %51 : vector<32x128xf32>
    %cst_20 = arith.constant dense<0.000000e+00> : vector<128xf32>
    %53 = vector.multi_reduction <add>, %52, %cst_20 [0] : vector<32x128xf32> to vector<128xf32>
    %54 = vector.shape_cast %53 : vector<128xf32> to vector<1x128xf32>
    %55 = vector.shape_cast %54 : vector<1x128xf32> to vector<1x128xf32>
    %56 = vector.broadcast %55 : vector<1x128xf32> to vector<8x128xf32>
    %c0_21 = arith.constant 0 : index
    %c0_22 = arith.constant 0 : index
    %57 = vector.load %arg7[%c0_21, %c0_22] : memref<8x128xf32, #tpu.memory_space<vmem>>, vector<8x128xf32>
    tpu.vector_store %arg7[%c0_21, %c0_22], %56 {strides = array<i32>} : memref<8x128xf32, #tpu.memory_space<vmem>>, vector<8x128xf32>,
    %58 = vector.shape_cast %50 : vector<1x1xf32> to vector<1x1xf32>
    %59 = vector.broadcast %58 : vector<1x1xf32> to vector<8x128xf32>
    %c0_23 = arith.constant 0 : index
    %c0_24 = arith.constant 0 : index
    %60 = vector.load %arg8[%c0_23, %c0_24] : memref<8x128xf32, #tpu.memory_space<vmem>>, vector<8x128xf32>
    tpu.vector_store %arg8[%c0_23, %c0_24], %59 {strides = array<i32>} : memref<8x128xf32, #tpu.memory_space<vmem>>, vector<8x128xf32>,
    return
  }
  func.func @transform_0(%arg0: i32) -> (i32, i32) {
    %c0_i32 = arith.constant 0 : i32
    %c0_i32_0 = arith.constant 0 : i32
    return %arg0, %c0_i32 : i32, i32
  }
  func.func @transform_1(%arg0: i32) -> (i32, i32) {
    %c0_i32 = arith.constant 0 : i32
    %c0_i32_0 = arith.constant 0 : i32
    %c0_i32_1 = arith.constant 0 : i32
    return %c0_i32, %c0_i32_0 : i32, i32
  }
  func.func @transform_2(%arg0: i32) -> (i32, i32) {
    %c0_i32 = arith.constant 0 : i32
    %c0_i32_0 = arith.constant 0 : i32
    %c0_i32_1 = arith.constant 0 : i32
    return %c0_i32, %c0_i32_0 : i32, i32
  }
  func.func @transform_3(%arg0: i32) -> (i32, i32) {
    %c0_i32 = arith.constant 0 : i32
    %c0_i32_0 = arith.constant 0 : i32
    %c0_i32_1 = arith.constant 0 : i32
    return %c0_i32, %c0_i32_0 : i32, i32
  }
  func.func @transform_4(%arg0: i32) -> (i32, i32) {
    %c0_i32 = arith.constant 0 : i32
    %c0_i32_0 = arith.constant 0 : i32
    %c0_i32_1 = arith.constant 0 : i32
    return %c0_i32, %c0_i32_0 : i32, i32
  }
  func.func @transform_5(%arg0: i32) -> (i32, i32) {
    %c0_i32 = arith.constant 0 : i32
    %c0_i32_0 = arith.constant 0 : i32
    return %arg0, %c0_i32 : i32, i32
  }
  func.func @transform_6(%arg0: i32) -> (i32, i32) {
    %c0_i32 = arith.constant 0 : i32
    %c0_i32_0 = arith.constant 0 : i32
    return %arg0, %c0_i32 : i32, i32
  }
  func.func @transform_7(%arg0: i32) -> (i32, i32) {
    %c0_i32 = arith.constant 0 : i32
    %c0_i32_0 = arith.constant 0 : i32
    return %arg0, %c0_i32 : i32, i32
  }
}

module attributes {stable_mosaic.version = 11 : i64} {
  func.func @_conv3x3_kernel(%arg0: i32, %arg1: i32, %arg2: memref<56x128xbf16, #tpu.memory_space<vmem>>, %arg3: memref<1152x128xbf16, #tpu.memory_space<vmem>>, %arg4: memref<1x128xf32, #tpu.memory_space<vmem>>, %arg5: memref<40x1xf32, #tpu.memory_space<vmem>>, %arg6: memref<40x128xbf16, #tpu.memory_space<vmem>>) attributes {dimension_semantics = [#tpu.dimension_semantics<parallel>, #tpu.dimension_semantics<arbitrary>], iteration_bounds = array<i64: 2, 1>, scalar_prefetch = 0 : i64, scratch_operands = 0 : i64, tpu.core_type = #tpu.core_type<tc>, window_params = [{transform_indices = @transform_0, window_bounds = array<i64: 56, 128>}, {pipeline_mode = #tpu.pipeline_mode<synchronous>, transform_indices = @transform_1, window_bounds = array<i64: 1152, 128>}, {pipeline_mode = #tpu.pipeline_mode<synchronous>, transform_indices = @transform_2, window_bounds = array<i64: 1, 128>}, {transform_indices = @transform_3, window_bounds = array<i64: 40, 1>}, {transform_indices = @transform_4, window_bounds = array<i64: 40, 128>}]} {
    %cst = arith.constant 0.000000e+00 : f32
    %0 = vector.broadcast %cst : f32 to vector<40x128xf32>
    %c0 = arith.constant 0 : index
    %c0_0 = arith.constant 0 : index
    %1 = vector.load %arg2[%c0, %c0_0] : memref<56x128xbf16, #tpu.memory_space<vmem>>, vector<40x128xbf16>
    %c0_1 = arith.constant 0 : index
    %c0_2 = arith.constant 0 : index
    %2 = vector.load %arg3[%c0_1, %c0_2] : memref<1152x128xbf16, #tpu.memory_space<vmem>>, vector<128x128xbf16>
    %cst_3 = arith.constant dense<0.000000e+00> : vector<40x128xf32>
    %3 = tpu.matmul %1, %2, %cst_3 {dimension_numbers = #tpu.dot_dimension_numbers<[1], [0], [0], [1], [0, 0, 1, 1], [], []>} : vector<40x128xbf16>, vector<128x128xbf16>, vector<40x128xf32> -> vector<40x128xf32>
    %4 = arith.addf %0, %3 : vector<40x128xf32>
    %c1 = arith.constant 1 : index
    %c0_4 = arith.constant 0 : index
    %5 = vector.load %arg2[%c1, %c0_4] : memref<56x128xbf16, #tpu.memory_space<vmem>>, vector<40x128xbf16>
    %c128 = arith.constant 128 : index
    %c0_5 = arith.constant 0 : index
    %6 = vector.load %arg3[%c128, %c0_5] : memref<1152x128xbf16, #tpu.memory_space<vmem>>, vector<128x128xbf16>
    %cst_6 = arith.constant dense<0.000000e+00> : vector<40x128xf32>
    %7 = tpu.matmul %5, %6, %cst_6 {dimension_numbers = #tpu.dot_dimension_numbers<[1], [0], [0], [1], [0, 0, 1, 1], [], []>} : vector<40x128xbf16>, vector<128x128xbf16>, vector<40x128xf32> -> vector<40x128xf32>
    %8 = arith.addf %4, %7 : vector<40x128xf32>
    %c2 = arith.constant 2 : index
    %c0_7 = arith.constant 0 : index
    %9 = vector.load %arg2[%c2, %c0_7] : memref<56x128xbf16, #tpu.memory_space<vmem>>, vector<40x128xbf16>
    %c256 = arith.constant 256 : index
    %c0_8 = arith.constant 0 : index
    %10 = vector.load %arg3[%c256, %c0_8] : memref<1152x128xbf16, #tpu.memory_space<vmem>>, vector<128x128xbf16>
    %cst_9 = arith.constant dense<0.000000e+00> : vector<40x128xf32>
    %11 = tpu.matmul %9, %10, %cst_9 {dimension_numbers = #tpu.dot_dimension_numbers<[1], [0], [0], [1], [0, 0, 1, 1], [], []>} : vector<40x128xbf16>, vector<128x128xbf16>, vector<40x128xf32> -> vector<40x128xf32>
    %12 = arith.addf %8, %11 : vector<40x128xf32>
    %c6 = arith.constant 6 : index
    %c0_10 = arith.constant 0 : index
    %13 = vector.load %arg2[%c6, %c0_10] : memref<56x128xbf16, #tpu.memory_space<vmem>>, vector<40x128xbf16>
    %c384 = arith.constant 384 : index
    %c0_11 = arith.constant 0 : index
    %14 = vector.load %arg3[%c384, %c0_11] : memref<1152x128xbf16, #tpu.memory_space<vmem>>, vector<128x128xbf16>
    %cst_12 = arith.constant dense<0.000000e+00> : vector<40x128xf32>
    %15 = tpu.matmul %13, %14, %cst_12 {dimension_numbers = #tpu.dot_dimension_numbers<[1], [0], [0], [1], [0, 0, 1, 1], [], []>} : vector<40x128xbf16>, vector<128x128xbf16>, vector<40x128xf32> -> vector<40x128xf32>
    %16 = arith.addf %12, %15 : vector<40x128xf32>
    %c7 = arith.constant 7 : index
    %c0_13 = arith.constant 0 : index
    %17 = vector.load %arg2[%c7, %c0_13] : memref<56x128xbf16, #tpu.memory_space<vmem>>, vector<40x128xbf16>
    %c512 = arith.constant 512 : index
    %c0_14 = arith.constant 0 : index
    %18 = vector.load %arg3[%c512, %c0_14] : memref<1152x128xbf16, #tpu.memory_space<vmem>>, vector<128x128xbf16>
    %cst_15 = arith.constant dense<0.000000e+00> : vector<40x128xf32>
    %19 = tpu.matmul %17, %18, %cst_15 {dimension_numbers = #tpu.dot_dimension_numbers<[1], [0], [0], [1], [0, 0, 1, 1], [], []>} : vector<40x128xbf16>, vector<128x128xbf16>, vector<40x128xf32> -> vector<40x128xf32>
    %20 = arith.addf %16, %19 : vector<40x128xf32>
    %c8 = arith.constant 8 : index
    %c0_16 = arith.constant 0 : index
    %21 = vector.load %arg2[%c8, %c0_16] : memref<56x128xbf16, #tpu.memory_space<vmem>>, vector<40x128xbf16>
    %c640 = arith.constant 640 : index
    %c0_17 = arith.constant 0 : index
    %22 = vector.load %arg3[%c640, %c0_17] : memref<1152x128xbf16, #tpu.memory_space<vmem>>, vector<128x128xbf16>
    %cst_18 = arith.constant dense<0.000000e+00> : vector<40x128xf32>
    %23 = tpu.matmul %21, %22, %cst_18 {dimension_numbers = #tpu.dot_dimension_numbers<[1], [0], [0], [1], [0, 0, 1, 1], [], []>} : vector<40x128xbf16>, vector<128x128xbf16>, vector<40x128xf32> -> vector<40x128xf32>
    %24 = arith.addf %20, %23 : vector<40x128xf32>
    %c12 = arith.constant 12 : index
    %c0_19 = arith.constant 0 : index
    %25 = vector.load %arg2[%c12, %c0_19] : memref<56x128xbf16, #tpu.memory_space<vmem>>, vector<40x128xbf16>
    %c768 = arith.constant 768 : index
    %c0_20 = arith.constant 0 : index
    %26 = vector.load %arg3[%c768, %c0_20] : memref<1152x128xbf16, #tpu.memory_space<vmem>>, vector<128x128xbf16>
    %cst_21 = arith.constant dense<0.000000e+00> : vector<40x128xf32>
    %27 = tpu.matmul %25, %26, %cst_21 {dimension_numbers = #tpu.dot_dimension_numbers<[1], [0], [0], [1], [0, 0, 1, 1], [], []>} : vector<40x128xbf16>, vector<128x128xbf16>, vector<40x128xf32> -> vector<40x128xf32>
    %28 = arith.addf %24, %27 : vector<40x128xf32>
    %c13 = arith.constant 13 : index
    %c0_22 = arith.constant 0 : index
    %29 = vector.load %arg2[%c13, %c0_22] : memref<56x128xbf16, #tpu.memory_space<vmem>>, vector<40x128xbf16>
    %c896 = arith.constant 896 : index
    %c0_23 = arith.constant 0 : index
    %30 = vector.load %arg3[%c896, %c0_23] : memref<1152x128xbf16, #tpu.memory_space<vmem>>, vector<128x128xbf16>
    %cst_24 = arith.constant dense<0.000000e+00> : vector<40x128xf32>
    %31 = tpu.matmul %29, %30, %cst_24 {dimension_numbers = #tpu.dot_dimension_numbers<[1], [0], [0], [1], [0, 0, 1, 1], [], []>} : vector<40x128xbf16>, vector<128x128xbf16>, vector<40x128xf32> -> vector<40x128xf32>
    %32 = arith.addf %28, %31 : vector<40x128xf32>
    %c14 = arith.constant 14 : index
    %c0_25 = arith.constant 0 : index
    %33 = vector.load %arg2[%c14, %c0_25] : memref<56x128xbf16, #tpu.memory_space<vmem>>, vector<40x128xbf16>
    %c1024 = arith.constant 1024 : index
    %c0_26 = arith.constant 0 : index
    %34 = vector.load %arg3[%c1024, %c0_26] : memref<1152x128xbf16, #tpu.memory_space<vmem>>, vector<128x128xbf16>
    %cst_27 = arith.constant dense<0.000000e+00> : vector<40x128xf32>
    %35 = tpu.matmul %33, %34, %cst_27 {dimension_numbers = #tpu.dot_dimension_numbers<[1], [0], [0], [1], [0, 0, 1, 1], [], []>} : vector<40x128xbf16>, vector<128x128xbf16>, vector<40x128xf32> -> vector<40x128xf32>
    %36 = arith.addf %32, %35 : vector<40x128xf32>
    %c0_28 = arith.constant 0 : index
    %c0_29 = arith.constant 0 : index
    %37 = vector.load %arg4[%c0_28, %c0_29] : memref<1x128xf32, #tpu.memory_space<vmem>>, vector<1x128xf32>
    %38 = vector.broadcast %37 : vector<1x128xf32> to vector<40x128xf32>
    %39 = arith.addf %36, %38 : vector<40x128xf32>
    %cst_30 = arith.constant 0.000000e+00 : f32
    %40 = vector.broadcast %cst_30 : f32 to vector<40x128xf32>
    %41 = arith.maximumf %39, %40 : vector<40x128xf32>
    %c0_31 = arith.constant 0 : index
    %c0_32 = arith.constant 0 : index
    %42 = vector.load %arg5[%c0_31, %c0_32] : memref<40x1xf32, #tpu.memory_space<vmem>>, vector<40x1xf32>
    %43 = vector.broadcast %42 : vector<40x1xf32> to vector<40x128xf32>
    %44 = arith.mulf %41, %43 : vector<40x128xf32>
    %45 = arith.truncf %44 : vector<40x128xf32> to vector<40x128xbf16>
    %c0_33 = arith.constant 0 : index
    %c0_34 = arith.constant 0 : index
    %46 = vector.load %arg6[%c0_33, %c0_34] : memref<40x128xbf16, #tpu.memory_space<vmem>>, vector<40x128xbf16>
    tpu.vector_store %arg6[%c0_33, %c0_34], %45 {strides = array<i32>} : memref<40x128xbf16, #tpu.memory_space<vmem>>, vector<40x128xbf16>,
    return
  }
  func.func @transform_0(%arg0: i32, %arg1: i32) -> (i32, i32) {
    %c0_i32 = arith.constant 0 : i32
    %c0_i32_0 = arith.constant 0 : i32
    return %arg0, %c0_i32 : i32, i32
  }
  func.func @transform_1(%arg0: i32, %arg1: i32) -> (i32, i32) {
    %c0_i32 = arith.constant 0 : i32
    %c0_i32_0 = arith.constant 0 : i32
    %c0_i32_1 = arith.constant 0 : i32
    return %c0_i32, %c0_i32_0 : i32, i32
  }
  func.func @transform_2(%arg0: i32, %arg1: i32) -> (i32, i32) {
    %c0_i32 = arith.constant 0 : i32
    %c0_i32_0 = arith.constant 0 : i32
    %c0_i32_1 = arith.constant 0 : i32
    return %c0_i32, %c0_i32_0 : i32, i32
  }
  func.func @transform_3(%arg0: i32, %arg1: i32) -> (i32, i32) {
    %c0_i32 = arith.constant 0 : i32
    %c0_i32_0 = arith.constant 0 : i32
    return %arg1, %c0_i32 : i32, i32
  }
  func.func @transform_4(%arg0: i32, %arg1: i32) -> (i32, i32) {
    %c1_i32 = arith.constant 1 : i32
    %0 = arith.muli %arg0, %c1_i32 : i32
    %1 = arith.addi %0, %arg1 : i32
    %c0_i32 = arith.constant 0 : i32
    %c0_i32_0 = arith.constant 0 : i32
    return %1, %c0_i32 : i32, i32
  }
}

module attributes {stable_mosaic.version = 11 : i64} {
  func.func @_conv3x3_kernel(%arg0: i32, %arg1: i32, %arg2: memref<128x128xbf16, #tpu.memory_space<vmem>>, %arg3: memref<1152x128xbf16, #tpu.memory_space<vmem>>, %arg4: memref<1x128xf32, #tpu.memory_space<vmem>>, %arg5: memref<104x1xf32, #tpu.memory_space<vmem>>, %arg6: memref<104x128xf32, #tpu.memory_space<vmem>>) attributes {dimension_semantics = [#tpu.dimension_semantics<parallel>, #tpu.dimension_semantics<arbitrary>], iteration_bounds = array<i64: 2, 1>, scalar_prefetch = 0 : i64, scratch_operands = 0 : i64, tpu.core_type = #tpu.core_type<tc>, window_params = [{transform_indices = @transform_0, window_bounds = array<i64: 128, 128>}, {pipeline_mode = #tpu.pipeline_mode<synchronous>, transform_indices = @transform_1, window_bounds = array<i64: 1152, 128>}, {pipeline_mode = #tpu.pipeline_mode<synchronous>, transform_indices = @transform_2, window_bounds = array<i64: 1, 128>}, {transform_indices = @transform_3, window_bounds = array<i64: 104, 1>}, {transform_indices = @transform_4, window_bounds = array<i64: 104, 128>}]} {
    %cst = arith.constant 0.000000e+00 : f32
    %0 = vector.broadcast %cst : f32 to vector<104x128xf32>
    %c0 = arith.constant 0 : index
    %c0_0 = arith.constant 0 : index
    %1 = vector.load %arg2[%c0, %c0_0] : memref<128x128xbf16, #tpu.memory_space<vmem>>, vector<104x128xbf16>
    %c0_1 = arith.constant 0 : index
    %c0_2 = arith.constant 0 : index
    %2 = vector.load %arg3[%c0_1, %c0_2] : memref<1152x128xbf16, #tpu.memory_space<vmem>>, vector<128x128xbf16>
    %cst_3 = arith.constant dense<0.000000e+00> : vector<104x128xf32>
    %3 = tpu.matmul %1, %2, %cst_3 {dimension_numbers = #tpu.dot_dimension_numbers<[1], [0], [0], [1], [0, 0, 1, 1], [], []>} : vector<104x128xbf16>, vector<128x128xbf16>, vector<104x128xf32> -> vector<104x128xf32>
    %4 = arith.addf %0, %3 : vector<104x128xf32>
    %c1 = arith.constant 1 : index
    %c0_4 = arith.constant 0 : index
    %5 = vector.load %arg2[%c1, %c0_4] : memref<128x128xbf16, #tpu.memory_space<vmem>>, vector<104x128xbf16>
    %c128 = arith.constant 128 : index
    %c0_5 = arith.constant 0 : index
    %6 = vector.load %arg3[%c128, %c0_5] : memref<1152x128xbf16, #tpu.memory_space<vmem>>, vector<128x128xbf16>
    %cst_6 = arith.constant dense<0.000000e+00> : vector<104x128xf32>
    %7 = tpu.matmul %5, %6, %cst_6 {dimension_numbers = #tpu.dot_dimension_numbers<[1], [0], [0], [1], [0, 0, 1, 1], [], []>} : vector<104x128xbf16>, vector<128x128xbf16>, vector<104x128xf32> -> vector<104x128xf32>
    %8 = arith.addf %4, %7 : vector<104x128xf32>
    %c2 = arith.constant 2 : index
    %c0_7 = arith.constant 0 : index
    %9 = vector.load %arg2[%c2, %c0_7] : memref<128x128xbf16, #tpu.memory_space<vmem>>, vector<104x128xbf16>
    %c256 = arith.constant 256 : index
    %c0_8 = arith.constant 0 : index
    %10 = vector.load %arg3[%c256, %c0_8] : memref<1152x128xbf16, #tpu.memory_space<vmem>>, vector<128x128xbf16>
    %cst_9 = arith.constant dense<0.000000e+00> : vector<104x128xf32>
    %11 = tpu.matmul %9, %10, %cst_9 {dimension_numbers = #tpu.dot_dimension_numbers<[1], [0], [0], [1], [0, 0, 1, 1], [], []>} : vector<104x128xbf16>, vector<128x128xbf16>, vector<104x128xf32> -> vector<104x128xf32>
    %12 = arith.addf %8, %11 : vector<104x128xf32>
    %c10 = arith.constant 10 : index
    %c0_10 = arith.constant 0 : index
    %13 = vector.load %arg2[%c10, %c0_10] : memref<128x128xbf16, #tpu.memory_space<vmem>>, vector<104x128xbf16>
    %c384 = arith.constant 384 : index
    %c0_11 = arith.constant 0 : index
    %14 = vector.load %arg3[%c384, %c0_11] : memref<1152x128xbf16, #tpu.memory_space<vmem>>, vector<128x128xbf16>
    %cst_12 = arith.constant dense<0.000000e+00> : vector<104x128xf32>
    %15 = tpu.matmul %13, %14, %cst_12 {dimension_numbers = #tpu.dot_dimension_numbers<[1], [0], [0], [1], [0, 0, 1, 1], [], []>} : vector<104x128xbf16>, vector<128x128xbf16>, vector<104x128xf32> -> vector<104x128xf32>
    %16 = arith.addf %12, %15 : vector<104x128xf32>
    %c11 = arith.constant 11 : index
    %c0_13 = arith.constant 0 : index
    %17 = vector.load %arg2[%c11, %c0_13] : memref<128x128xbf16, #tpu.memory_space<vmem>>, vector<104x128xbf16>
    %c512 = arith.constant 512 : index
    %c0_14 = arith.constant 0 : index
    %18 = vector.load %arg3[%c512, %c0_14] : memref<1152x128xbf16, #tpu.memory_space<vmem>>, vector<128x128xbf16>
    %cst_15 = arith.constant dense<0.000000e+00> : vector<104x128xf32>
    %19 = tpu.matmul %17, %18, %cst_15 {dimension_numbers = #tpu.dot_dimension_numbers<[1], [0], [0], [1], [0, 0, 1, 1], [], []>} : vector<104x128xbf16>, vector<128x128xbf16>, vector<104x128xf32> -> vector<104x128xf32>
    %20 = arith.addf %16, %19 : vector<104x128xf32>
    %c12 = arith.constant 12 : index
    %c0_16 = arith.constant 0 : index
    %21 = vector.load %arg2[%c12, %c0_16] : memref<128x128xbf16, #tpu.memory_space<vmem>>, vector<104x128xbf16>
    %c640 = arith.constant 640 : index
    %c0_17 = arith.constant 0 : index
    %22 = vector.load %arg3[%c640, %c0_17] : memref<1152x128xbf16, #tpu.memory_space<vmem>>, vector<128x128xbf16>
    %cst_18 = arith.constant dense<0.000000e+00> : vector<104x128xf32>
    %23 = tpu.matmul %21, %22, %cst_18 {dimension_numbers = #tpu.dot_dimension_numbers<[1], [0], [0], [1], [0, 0, 1, 1], [], []>} : vector<104x128xbf16>, vector<128x128xbf16>, vector<104x128xf32> -> vector<104x128xf32>
    %24 = arith.addf %20, %23 : vector<104x128xf32>
    %c20 = arith.constant 20 : index
    %c0_19 = arith.constant 0 : index
    %25 = vector.load %arg2[%c20, %c0_19] : memref<128x128xbf16, #tpu.memory_space<vmem>>, vector<104x128xbf16>
    %c768 = arith.constant 768 : index
    %c0_20 = arith.constant 0 : index
    %26 = vector.load %arg3[%c768, %c0_20] : memref<1152x128xbf16, #tpu.memory_space<vmem>>, vector<128x128xbf16>
    %cst_21 = arith.constant dense<0.000000e+00> : vector<104x128xf32>
    %27 = tpu.matmul %25, %26, %cst_21 {dimension_numbers = #tpu.dot_dimension_numbers<[1], [0], [0], [1], [0, 0, 1, 1], [], []>} : vector<104x128xbf16>, vector<128x128xbf16>, vector<104x128xf32> -> vector<104x128xf32>
    %28 = arith.addf %24, %27 : vector<104x128xf32>
    %c21 = arith.constant 21 : index
    %c0_22 = arith.constant 0 : index
    %29 = vector.load %arg2[%c21, %c0_22] : memref<128x128xbf16, #tpu.memory_space<vmem>>, vector<104x128xbf16>
    %c896 = arith.constant 896 : index
    %c0_23 = arith.constant 0 : index
    %30 = vector.load %arg3[%c896, %c0_23] : memref<1152x128xbf16, #tpu.memory_space<vmem>>, vector<128x128xbf16>
    %cst_24 = arith.constant dense<0.000000e+00> : vector<104x128xf32>
    %31 = tpu.matmul %29, %30, %cst_24 {dimension_numbers = #tpu.dot_dimension_numbers<[1], [0], [0], [1], [0, 0, 1, 1], [], []>} : vector<104x128xbf16>, vector<128x128xbf16>, vector<104x128xf32> -> vector<104x128xf32>
    %32 = arith.addf %28, %31 : vector<104x128xf32>
    %c22 = arith.constant 22 : index
    %c0_25 = arith.constant 0 : index
    %33 = vector.load %arg2[%c22, %c0_25] : memref<128x128xbf16, #tpu.memory_space<vmem>>, vector<104x128xbf16>
    %c1024 = arith.constant 1024 : index
    %c0_26 = arith.constant 0 : index
    %34 = vector.load %arg3[%c1024, %c0_26] : memref<1152x128xbf16, #tpu.memory_space<vmem>>, vector<128x128xbf16>
    %cst_27 = arith.constant dense<0.000000e+00> : vector<104x128xf32>
    %35 = tpu.matmul %33, %34, %cst_27 {dimension_numbers = #tpu.dot_dimension_numbers<[1], [0], [0], [1], [0, 0, 1, 1], [], []>} : vector<104x128xbf16>, vector<128x128xbf16>, vector<104x128xf32> -> vector<104x128xf32>
    %36 = arith.addf %32, %35 : vector<104x128xf32>
    %c0_28 = arith.constant 0 : index
    %c0_29 = arith.constant 0 : index
    %37 = vector.load %arg4[%c0_28, %c0_29] : memref<1x128xf32, #tpu.memory_space<vmem>>, vector<1x128xf32>
    %38 = vector.broadcast %37 : vector<1x128xf32> to vector<104x128xf32>
    %39 = arith.addf %36, %38 : vector<104x128xf32>
    %c0_30 = arith.constant 0 : index
    %c0_31 = arith.constant 0 : index
    %40 = vector.load %arg5[%c0_30, %c0_31] : memref<104x1xf32, #tpu.memory_space<vmem>>, vector<104x1xf32>
    %41 = vector.broadcast %40 : vector<104x1xf32> to vector<104x128xf32>
    %42 = arith.mulf %39, %41 : vector<104x128xf32>
    %c0_32 = arith.constant 0 : index
    %c0_33 = arith.constant 0 : index
    %43 = vector.load %arg6[%c0_32, %c0_33] : memref<104x128xf32, #tpu.memory_space<vmem>>, vector<104x128xf32>
    tpu.vector_store %arg6[%c0_32, %c0_33], %42 {strides = array<i32>} : memref<104x128xf32, #tpu.memory_space<vmem>>, vector<104x128xf32>,
    return
  }
  func.func @transform_0(%arg0: i32, %arg1: i32) -> (i32, i32) {
    %c0_i32 = arith.constant 0 : i32
    %c0_i32_0 = arith.constant 0 : i32
    return %arg0, %c0_i32 : i32, i32
  }
  func.func @transform_1(%arg0: i32, %arg1: i32) -> (i32, i32) {
    %c0_i32 = arith.constant 0 : i32
    %c0_i32_0 = arith.constant 0 : i32
    %c0_i32_1 = arith.constant 0 : i32
    return %c0_i32, %c0_i32_0 : i32, i32
  }
  func.func @transform_2(%arg0: i32, %arg1: i32) -> (i32, i32) {
    %c0_i32 = arith.constant 0 : i32
    %c0_i32_0 = arith.constant 0 : i32
    %c0_i32_1 = arith.constant 0 : i32
    return %c0_i32, %c0_i32_0 : i32, i32
  }
  func.func @transform_3(%arg0: i32, %arg1: i32) -> (i32, i32) {
    %c0_i32 = arith.constant 0 : i32
    %c0_i32_0 = arith.constant 0 : i32
    return %arg1, %c0_i32 : i32, i32
  }
  func.func @transform_4(%arg0: i32, %arg1: i32) -> (i32, i32) {
    %c1_i32 = arith.constant 1 : i32
    %0 = arith.muli %arg0, %c1_i32 : i32
    %1 = arith.addi %0, %arg1 : i32
    %c0_i32 = arith.constant 0 : i32
    %c0_i32_0 = arith.constant 0 : i32
    return %1, %c0_i32 : i32, i32
  }
}

</mosaic_0001>

<llo_original>
// kernel: vqvae_forward.11
$region0: #{vqvae_forward.11}
  #allocation0 [shape = 'u32[]', space=smem, size = 0x4, offset = 0x4, fixed_abs, tag = 'smem constant byte address 0x4 - core index']
  #allocation1 [shape = 'u32[72,128]{1,0:T(1,128)}', space=vmem, size = 0x9000, scoped, tag = 'internal scratch']
  %s0 = inlined_call_operand.vmem [shape: bf16[128,128], index: 0, kind: input, shape index: {}]
  %s1 = inlined_call_operand.vmem [shape: bf16[128,128], index: 1, kind: input, shape index: {}]
  %s2 = inlined_call_operand.vmem [shape: f32[1,128], index: 2, kind: input, shape index: {}]
  %s3 = inlined_call_operand.vmem [shape: bf16[128,128], index: 3, kind: output, shape index: {}]
  %s4 = sld [smem:[#allocation0]]
  $region22: #{vqvae_forward.11} parent=0
    _
  %s6 = ssub.s32 1, %s4
  %s7 = scalar_select 0, %s6, %s4
  // Predicated region
  $region2: #{vqvae_forward.11} parent=0 // pred_check
    _
  $region3: #{vqvae_forward.11} parent=0 // pred_check_branch
    %9 = sbr.rel (0) target = $region5
  $region4: #{vqvae_forward.11} parent=0 // pred_region
    _
  $region5: #{vqvae_forward.11} parent=0 // pred_fallthru
    _
  // Predicated region
  $region6: #{vqvae_forward.11} parent=0 // pred_check
    _
  $region7: #{vqvae_forward.11} parent=0 // pred_check_branch
    %11 = sbr.rel (0) target = $region9
  $region8: #{vqvae_forward.11} parent=0 // pred_region
    _
  $region9: #{vqvae_forward.11} parent=0 // pred_fallthru
    _
  // Predicated region
  $region10: #{vqvae_forward.11} parent=0 // pred_check
    _
  $region11: #{vqvae_forward.11} parent=0 // pred_check_branch
    %13 = sbr.rel (0) target = $region13
  $region12: #{vqvae_forward.11} parent=0 // pred_region
    _
  $region13: #{vqvae_forward.11} parent=0 // pred_fallthru
    _
  %v14 = vld [vmem:[%s0] sm:$0xf]
  %v15 = vld [vmem:[%s0 + $0x4] sm:$0xf]
  %v16 = vld [vmem:[%s0 + $0x8] sm:$0xf]
  %v17 = vld [vmem:[%s0 + $0xc] sm:$0xf]
  %v18 = vld [vmem:[%s0 + $0x10] sm:$0xf]
  %v19 = vld [vmem:[%s0 + $0x14] sm:$0xf]
  %v20 = vld [vmem:[%s0 + $0x18] sm:$0xf]
  %v21 = vld [vmem:[%s0 + $0x1c] sm:$0xf]
  %v22 = vld [vmem:[%s0 + $0x20] sm:$0xf]
  %v23 = vld [vmem:[%s0 + $0x24] sm:$0xf]
  %v24 = vld [vmem:[%s0 + $0x28] sm:$0xf]
  %v25 = vld [vmem:[%s0 + $0x2c] sm:$0xf]
  %v26 = vld [vmem:[%s0 + $0x30] sm:$0xf]
  %v27 = vld [vmem:[%s0 + $0x34] sm:$0xf]
  %v28 = vld [vmem:[%s0 + $0x38] sm:$0xf]
  %v29 = vld [vmem:[%s0 + $0x3c] sm:$0xf]
  %v30 = vld [vmem:[%s1] sm:$0xf]
  %v31 = vld [vmem:[%s1 + $0x4] sm:$0xf]
  %v32 = vld [vmem:[%s1 + $0x8] sm:$0xf]
  %v33 = vld [vmem:[%s1 + $0xc] sm:$0xf]
  %v34 = vld [vmem:[%s1 + $0x10] sm:$0xf]
  %v35 = vld [vmem:[%s1 + $0x14] sm:$0xf]
  %v36 = vld [vmem:[%s1 + $0x18] sm:$0xf]
  %v37 = vld [vmem:[%s1 + $0x1c] sm:$0xf]
  %v38 = vld [vmem:[%s1 + $0x20] sm:$0xf]
  %v39 = vld [vmem:[%s1 + $0x24] sm:$0xf]
  %v40 = vld [vmem:[%s1 + $0x28] sm:$0xf]
  %v41 = vld [vmem:[%s1 + $0x2c] sm:$0xf]
  %v42 = vld [vmem:[%s1 + $0x30] sm:$0xf]
  %v43 = vld [vmem:[%s1 + $0x34] sm:$0xf]
  %v44 = vld [vmem:[%s1 + $0x38] sm:$0xf]
  %v45 = vld [vmem:[%s1 + $0x3c] sm:$0xf]
  %v46 = vld [vmem:[%s2] sm:$0x1]
  %v48 = vperm.slane %v46, 0
  %v66 = vunpack.c.l.b16 %v14
  %v67 = vunpack.c.l.b16 %v15
  %v68 = vunpack.c.l.b16 %v16
  %v69 = vunpack.c.l.b16 %v17
  %v70 = vunpack.c.l.b16 %v18
  %v71 = vunpack.c.l.b16 %v19
  %v72 = vunpack.c.l.b16 %v20
  %v73 = vunpack.c.l.b16 %v21
  %v74 = vunpack.c.l.b16 %v22
  %v75 = vunpack.c.l.b16 %v23
  %v76 = vunpack.c.l.b16 %v24
  %v77 = vunpack.c.l.b16 %v25
  %v78 = vunpack.c.l.b16 %v26
  %v79 = vunpack.c.l.b16 %v27
  %v80 = vunpack.c.l.b16 %v28
  %v81 = vunpack.c.l.b16 %v29
  %v82 = vpack.c.b16 %v67, %v66
  %v83 = vpack.c.b16 %v69, %v68
  %v84 = vpack.c.b16 %v71, %v70
  %v85 = vpack.c.b16 %v73, %v72
  %v86 = vpack.c.b16 %v75, %v74
  %v87 = vpack.c.b16 %v77, %v76
  %v88 = vpack.c.b16 %v79, %v78
  %v89 = vpack.c.b16 %v81, %v80
  %v114 = vunpack.c.l.b16 %v30
  %v115 = vunpack.c.l.b16 %v31
  %v116 = vunpack.c.l.b16 %v32
  %v117 = vunpack.c.l.b16 %v33
  %v118 = vunpack.c.l.b16 %v34
  %v119 = vunpack.c.l.b16 %v35
  %v120 = vunpack.c.l.b16 %v36
  %v121 = vunpack.c.l.b16 %v37
  %v122 = vunpack.c.l.b16 %v38
  %v123 = vunpack.c.l.b16 %v39
  %v124 = vunpack.c.l.b16 %v40
  %v125 = vunpack.c.l.b16 %v41
  %v126 = vunpack.c.l.b16 %v42
  %v127 = vunpack.c.l.b16 %v43
  %v128 = vunpack.c.l.b16 %v44
  %v129 = vunpack.c.l.b16 %v45
  %v130 = vpack.c.b16 %v115, %v114
  %v131 = vpack.c.b16 %v117, %v116
  %v132 = vpack.c.b16 %v119, %v118
  %v133 = vpack.c.b16 %v121, %v120
  %v134 = vpack.c.b16 %v123, %v122
  %v135 = vpack.c.b16 %v125, %v124
  %v136 = vpack.c.b16 %v127, %v126
  %v137 = vpack.c.b16 %v129, %v128
  %146 = vmatpush.bf16.msra.mxu0 %v137
  %147 = vmatpush.bf16.msra.mxu0 %v136
  %148 = vmatpush.bf16.msra.mxu0 %v135
  %149 = vmatpush.bf16.msra.mxu0 %v134
  %150 = vmatpush.bf16.msra.mxu0 %v133
  %151 = vmatpush.bf16.msra.mxu0 %v132
  %152 = vmatpush.bf16.msra.mxu0 %v131
  %153 = vmatpush.bf16.msra.mxu0 %v130
  %154 = vmatmul.bf16.gmra.mxu0 %v82
  %v155 = vpop.f32.mrf.mxu0
  %v156 = vadd.f32 %v48, %v155
  %v157 = vpop.f32.mrf.mxu0
  %v158 = vadd.f32 %v48, %v157
  %159 = vmatmul.bf16.gmra.mxu0 %v83
  %v160 = vpop.f32.mrf.mxu0
  %v161 = vadd.f32 %v48, %v160
  %v162 = vpop.f32.mrf.mxu0
  %v163 = vadd.f32 %v48, %v162
  %164 = vmatmul.bf16.gmra.mxu0 %v84
  %v165 = vpop.f32.mrf.mxu0
  %v166 = vadd.f32 %v48, %v165
  %v167 = vpop.f32.mrf.mxu0
  %v168 = vadd.f32 %v48, %v167
  %169 = vmatmul.bf16.gmra.mxu0 %v85
  %v170 = vpop.f32.mrf.mxu0
  %v171 = vadd.f32 %v48, %v170
  %v172 = vpop.f32.mrf.mxu0
  %v173 = vadd.f32 %v48, %v172
  %174 = vmatmul.bf16.gmra.mxu0 %v86
  %v175 = vpop.f32.mrf.mxu0
  %v176 = vadd.f32 %v48, %v175
  %v177 = vpop.f32.mrf.mxu0
  %v178 = vadd.f32 %v48, %v177
  %179 = vmatmul.bf16.gmra.mxu0 %v87
  %v180 = vpop.f32.mrf.mxu0
  %v181 = vadd.f32 %v48, %v180
  %v182 = vpop.f32.mrf.mxu0
  %v183 = vadd.f32 %v48, %v182
  %184 = vmatmul.bf16.gmra.mxu0 %v88
  %v185 = vpop.f32.mrf.mxu0
  %v186 = vadd.f32 %v48, %v185
  %v187 = vpop.f32.mrf.mxu0
  %v188 = vadd.f32 %v48, %v187
  %189 = vmatmul.bf16.gmra.mxu0 %v89
  %v190 = vpop.f32.mrf.mxu0
  %v191 = vadd.f32 %v48, %v190
  %v192 = vpop.f32.mrf.mxu0
  %v193 = vadd.f32 %v48, %v192
  %194 = vdwg.mxu0
  %v195 = vmax.f32 %v156, 0.0
  %v196 = vmax.f32 %v158, 0.0
  %v197 = vmax.f32 %v161, 0.0
  %v198 = vmax.f32 %v163, 0.0
  %v199 = vmax.f32 %v166, 0.0
  %v200 = vmax.f32 %v168, 0.0
  %v201 = vmax.f32 %v171, 0.0
  %v202 = vmax.f32 %v173, 0.0
  %v203 = vmax.f32 %v176, 0.0
  %v204 = vmax.f32 %v178, 0.0
  %v205 = vmax.f32 %v181, 0.0
  %v206 = vmax.f32 %v183, 0.0
  %v207 = vmax.f32 %v186, 0.0
  %v208 = vmax.f32 %v188, 0.0
  %v209 = vmax.f32 %v191, 0.0
  %v210 = vmax.f32 %v193, 0.0
  %v211 = vpack.c.bf16 %v195, %v195
  %v212 = vpack.c.bf16 %v196, %v196
  %v213 = vpack.c.bf16 %v197, %v197
  %v214 = vpack.c.bf16 %v198, %v198
  %v215 = vpack.c.bf16 %v199, %v199
  %v216 = vpack.c.bf16 %v200, %v200
  %v217 = vpack.c.bf16 %v201, %v201
  %v218 = vpack.c.bf16 %v202, %v202
  %v219 = vpack.c.bf16 %v203, %v203
  %v220 = vpack.c.bf16 %v204, %v204
  %v221 = vpack.c.bf16 %v205, %v205
  %v222 = vpack.c.bf16 %v206, %v206
  %v223 = vpack.c.bf16 %v207, %v207
  %v224 = vpack.c.bf16 %v208, %v208
  %v225 = vpack.c.bf16 %v209, %v209
  %v226 = vpack.c.bf16 %v210, %v210
  %227 = vst [vmem:[%s3] sm:$0xf] %v211
  %228 = vst [vmem:[%s3 + $0x4] sm:$0xf] %v212
  %229 = vst [vmem:[%s3 + $0x8] sm:$0xf] %v213
  %230 = vst [vmem:[%s3 + $0xc] sm:$0xf] %v214
  %231 = vst [vmem:[%s3 + $0x10] sm:$0xf] %v215
  %232 = vst [vmem:[%s3 + $0x14] sm:$0xf] %v216
  %233 = vst [vmem:[%s3 + $0x18] sm:$0xf] %v217
  %234 = vst [vmem:[%s3 + $0x1c] sm:$0xf] %v218
  %235 = vst [vmem:[%s3 + $0x20] sm:$0xf] %v219
  %236 = vst [vmem:[%s3 + $0x24] sm:$0xf] %v220
  %237 = vst [vmem:[%s3 + $0x28] sm:$0xf] %v221
  %238 = vst [vmem:[%s3 + $0x2c] sm:$0xf] %v222
  %239 = vst [vmem:[%s3 + $0x30] sm:$0xf] %v223
  %240 = vst [vmem:[%s3 + $0x34] sm:$0xf] %v224
  %241 = vst [vmem:[%s3 + $0x38] sm:$0xf] %v225
  %242 = vst [vmem:[%s3 + $0x3c] sm:$0xf] %v226
  // Predicated region
  $region14: #{vqvae_forward.11} parent=0 // pred_check
    _
  $region15: #{vqvae_forward.11} parent=0 // pred_check_branch
    %244 = sbr.rel (0) target = $region17
  $region16: #{vqvae_forward.11} parent=0 // pred_region
    _
  $region17: #{vqvae_forward.11} parent=0 // pred_fallthru
    _
  // Predicated region
  $region18: #{vqvae_forward.11} parent=0 // pred_check
    _
  $region19: #{vqvae_forward.11} parent=0 // pred_check_branch
    %246 = sbr.rel (0) target = $region21
  $region20: #{vqvae_forward.11} parent=0 // pred_region
    _
  $region21: #{vqvae_forward.11} parent=0 // pred_fallthru
    _

// kernel: vqvae_forward.12
$region0: #{vqvae_forward.12}
  #allocation0 [shape = 'u32[]', space=smem, size = 0x4, offset = 0x4, fixed_abs, tag = 'smem constant byte address 0x4 - core index']
  #allocation1 [shape = 'u32[72,128]{1,0:T(1,128)}', space=vmem, size = 0x9000, scoped, tag = 'internal scratch']
  %s0 = inlined_call_operand.vmem [shape: bf16[32,256], index: 0, kind: input, shape index: {}]
  %s1 = inlined_call_operand.vmem [shape: bf16[256,128], index: 1, kind: input, shape index: {}]
  %s2 = inlined_call_operand.vmem [shape: f32[1,128], index: 2, kind: input, shape index: {}]
  %s3 = inlined_call_operand.vmem [shape: bf16[32,128], index: 3, kind: output, shape index: {}]
  %s4 = sld [smem:[#allocation0]]
  $region22: #{vqvae_forward.12} parent=0
    _
  %s6 = ssub.s32 1, %s4
  %s7 = scalar_select 0, %s6, %s4
  // Predicated region
  $region2: #{vqvae_forward.12} parent=0 // pred_check
    _
  $region3: #{vqvae_forward.12} parent=0 // pred_check_branch
    %9 = sbr.rel (0) target = $region5
  $region4: #{vqvae_forward.12} parent=0 // pred_region
    _
  $region5: #{vqvae_forward.12} parent=0 // pred_fallthru
    _
  // Predicated region
  $region6: #{vqvae_forward.12} parent=0 // pred_check
    _
  $region7: #{vqvae_forward.12} parent=0 // pred_check_branch
    %11 = sbr.rel (0) target = $region9
  $region8: #{vqvae_forward.12} parent=0 // pred_region
    _
  $region9: #{vqvae_forward.12} parent=0 // pred_fallthru
    _
  // Predicated region
  $region10: #{vqvae_forward.12} parent=0 // pred_check
    _
  $region11: #{vqvae_forward.12} parent=0 // pred_check_branch
    %13 = sbr.rel (0) target = $region13
  $region12: #{vqvae_forward.12} parent=0 // pred_region
    _
  $region13: #{vqvae_forward.12} parent=0 // pred_fallthru
    _
  %v14 = vld [vmem:[%s0] sm:$0xff]
  %v15 = vld [vmem:[%s0 + $0x8] sm:$0xff]
  %v16 = vld [vmem:[%s0 + $0x10] sm:$0xff]
  %v17 = vld [vmem:[%s0 + $0x18] sm:$0xff]
  %v18 = vld [vmem:[%s1] sm:$0xf]
  %v19 = vld [vmem:[%s1 + $0x4] sm:$0xf]
  %v20 = vld [vmem:[%s1 + $0x8] sm:$0xf]
  %v21 = vld [vmem:[%s1 + $0xc] sm:$0xf]
  %v22 = vld [vmem:[%s1 + $0x10] sm:$0xf]
  %v23 = vld [vmem:[%s1 + $0x14] sm:$0xf]
  %v24 = vld [vmem:[%s1 + $0x18] sm:$0xf]
  %v25 = vld [vmem:[%s1 + $0x1c] sm:$0xf]
  %v26 = vld [vmem:[%s1 + $0x20] sm:$0xf]
  %v27 = vld [vmem:[%s1 + $0x24] sm:$0xf]
  %v28 = vld [vmem:[%s1 + $0x28] sm:$0xf]
  %v29 = vld [vmem:[%s1 + $0x2c] sm:$0xf]
  %v30 = vld [vmem:[%s1 + $0x30] sm:$0xf]
  %v31 = vld [vmem:[%s1 + $0x34] sm:$0xf]
  %v32 = vld [vmem:[%s1 + $0x38] sm:$0xf]
  %v33 = vld [vmem:[%s1 + $0x3c] sm:$0xf]
  %v34 = vld [vmem:[%s1 + $0x40] sm:$0xf]
  %v35 = vld [vmem:[%s1 + $0x44] sm:$0xf]
  %v36 = vld [vmem:[%s1 + $0x48] sm:$0xf]
  %v37 = vld [vmem:[%s1 + $0x4c] sm:$0xf]
  %v38 = vld [vmem:[%s1 + $0x50] sm:$0xf]
  %v39 = vld [vmem:[%s1 + $0x54] sm:$0xf]
  %v40 = vld [vmem:[%s1 + $0x58] sm:$0xf]
  %v41 = vld [vmem:[%s1 + $0x5c] sm:$0xf]
  %v42 = vld [vmem:[%s1 + $0x60] sm:$0xf]
  %v43 = vld [vmem:[%s1 + $0x64] sm:$0xf]
  %v44 = vld [vmem:[%s1 + $0x68] sm:$0xf]
  %v45 = vld [vmem:[%s1 + $0x6c] sm:$0xf]
  %v46 = vld [vmem:[%s1 + $0x70] sm:$0xf]
  %v47 = vld [vmem:[%s1 + $0x74] sm:$0xf]
  %v48 = vld [vmem:[%s1 + $0x78] sm:$0xf]
  %v49 = vld [vmem:[%s1 + $0x7c] sm:$0xf]
  %v50 = vld [vmem:[%s2] sm:$0x1]
  %v52 = vperm.slane %v50, 0
  %v58 = vunpack.c.l.b16 %v14
  %v59 = vunpack.c.h.b16 %v14
  %v60 = vunpack.c.l.b16 %v15
  %v61 = vunpack.c.h.b16 %v15
  %v62 = vunpack.c.l.b16 %v16
  %v63 = vunpack.c.h.b16 %v16
  %v64 = vunpack.c.l.b16 %v17
  %v65 = vunpack.c.h.b16 %v17
  %v66 = vpack.c.b16 %v60, %v58
  %v67 = vpack.c.b16 %v61, %v59
  %v68 = vpack.c.b16 %v64, %v62
  %v69 = vpack.c.b16 %v65, %v63
  %v106 = vunpack.c.l.b16 %v18
  %v107 = vunpack.c.l.b16 %v19
  %v108 = vunpack.c.l.b16 %v20
  %v109 = vunpack.c.l.b16 %v21
  %v110 = vunpack.c.l.b16 %v22
  %v111 = vunpack.c.l.b16 %v23
  %v112 = vunpack.c.l.b16 %v24
  %v113 = vunpack.c.l.b16 %v25
  %v114 = vunpack.c.l.b16 %v26
  %v115 = vunpack.c.l.b16 %v27
  %v116 = vunpack.c.l.b16 %v28
  %v117 = vunpack.c.l.b16 %v29
  %v118 = vunpack.c.l.b16 %v30
  %v119 = vunpack.c.l.b16 %v31
  %v120 = vunpack.c.l.b16 %v32
  %v121 = vunpack.c.l.b16 %v33
  %v122 = vunpack.c.l.b16 %v34
  %v123 = vunpack.c.l.b16 %v35
  %v124 = vunpack.c.l.b16 %v36
  %v125 = vunpack.c.l.b16 %v37
  %v126 = vunpack.c.l.b16 %v38
  %v127 = vunpack.c.l.b16 %v39
  %v128 = vunpack.c.l.b16 %v40
  %v129 = vunpack.c.l.b16 %v41
  %v130 = vunpack.c.l.b16 %v42
  %v131 = vunpack.c.l.b16 %v43
  %v132 = vunpack.c.l.b16 %v44
  %v133 = vunpack.c.l.b16 %v45
  %v134 = vunpack.c.l.b16 %v46
  %v135 = vunpack.c.l.b16 %v47
  %v136 = vunpack.c.l.b16 %v48
  %v137 = vunpack.c.l.b16 %v49
  %v138 = vpack.c.b16 %v107, %v106
  %v139 = vpack.c.b16 %v109, %v108
  %v140 = vpack.c.b16 %v111, %v110
  %v141 = vpack.c.b16 %v113, %v112
  %v142 = vpack.c.b16 %v115, %v114
  %v143 = vpack.c.b16 %v117, %v116
  %v144 = vpack.c.b16 %v119, %v118
  %v145 = vpack.c.b16 %v121, %v120
  %v146 = vpack.c.b16 %v123, %v122
  %v147 = vpack.c.b16 %v125, %v124
  %v148 = vpack.c.b16 %v127, %v126
  %v149 = vpack.c.b16 %v129, %v128
  %v150 = vpack.c.b16 %v131, %v130
  %v151 = vpack.c.b16 %v133, %v132
  %v152 = vpack.c.b16 %v135, %v134
  %v153 = vpack.c.b16 %v137, %v136
  %170 = vmatpush.bf16.msra.mxu0 %v145
  %171 = vmatpush.bf16.msra.mxu0 %v144
  %172 = vmatpush.bf16.msra.mxu0 %v143
  %173 = vmatpush.bf16.msra.mxu0 %v142
  %174 = vmatpush.bf16.msra.mxu0 %v141
  %175 = vmatpush.bf16.msra.mxu0 %v140
  %176 = vmatpush.bf16.msra.mxu0 %v139
  %177 = vmatpush.bf16.msra.mxu0 %v138
  %178 = vmatmul.bf16.gmra.mxu0 %v66
  %v179 = vpop.f32.mrf.mxu0
  %v180 = vadd.f32 %v52, %v179
  %v181 = vpop.f32.mrf.mxu0
  %v182 = vadd.f32 %v52, %v181
  %183 = vmatmul.bf16.gmra.mxu0 %v68
  %v184 = vpop.f32.mrf.mxu0
  %v185 = vadd.f32 %v52, %v184
  %v186 = vpop.f32.mrf.mxu0
  %v187 = vadd.f32 %v52, %v186
  %188 = vdwg.mxu0
  %189 = vmatpush.bf16.msra.mxu0 %v153
  %190 = vmatpush.bf16.msra.mxu0 %v152
  %191 = vmatpush.bf16.msra.mxu0 %v151
  %192 = vmatpush.bf16.msra.mxu0 %v150
  %193 = vmatpush.bf16.msra.mxu0 %v149
  %194 = vmatpush.bf16.msra.mxu0 %v148
  %195 = vmatpush.bf16.msra.mxu0 %v147
  %196 = vmatpush.bf16.msra.mxu0 %v146
  %197 = vmatmul.bf16.gmra.mxu0 %v67
  %v198 = vpop.f32.mrf.mxu0
  %v199 = vadd.f32 %v180, %v198
  %v200 = vpop.f32.mrf.mxu0
  %v201 = vadd.f32 %v182, %v200
  %202 = vmatmul.bf16.gmra.mxu0 %v69
  %v203 = vpop.f32.mrf.mxu0
  %v204 = vadd.f32 %v185, %v203
  %v205 = vpop.f32.mrf.mxu0
  %v206 = vadd.f32 %v187, %v205
  %207 = vdwg.mxu0
  %v208 = vmax.f32 %v199, 0.0
  %v209 = vmax.f32 %v201, 0.0
  %v210 = vmax.f32 %v204, 0.0
  %v211 = vmax.f32 %v206, 0.0
  %v212 = vpack.c.bf16 %v208, %v208
  %v213 = vpack.c.bf16 %v209, %v209
  %v214 = vpack.c.bf16 %v210, %v210
  %v215 = vpack.c.bf16 %v211, %v211
  %216 = vst [vmem:[%s3] sm:$0xf] %v212
  %217 = vst [vmem:[%s3 + $0x4] sm:$0xf] %v213
  %218 = vst [vmem:[%s3 + $0x8] sm:$0xf] %v214
  %219 = vst [vmem:[%s3 + $0xc] sm:$0xf] %v215
  // Predicated region
  $region14: #{vqvae_forward.12} parent=0 // pred_check
    _
  $region15: #{vqvae_forward.12} parent=0 // pred_check_branch
    %221 = sbr.rel (0) target = $region17
  $region16: #{vqvae_forward.12} parent=0 // pred_region
    _
  $region17: #{vqvae_forward.12} parent=0 // pred_fallthru
    _
  // Predicated region
  $region18: #{vqvae_forward.12} parent=0 // pred_check
    _
  $region19: #{vqvae_forward.12} parent=0 // pred_check_branch
    %223 = sbr.rel (0) target = $region21
  $region20: #{vqvae_forward.12} parent=0 // pred_region
    _
  $region21: #{vqvae_forward.12} parent=0 // pred_fallthru
    _

// kernel: vqvae_forward.13
$region0: #{vqvae_forward.13}
  #allocation0 [shape = 'u32[]', space=smem, size = 0x4, offset = 0x4, fixed_abs, tag = 'smem constant byte address 0x4 - core index']
  #allocation1 [shape = 'u32[72,128]{1,0:T(1,128)}', space=vmem, size = 0x9000, scoped, tag = 'internal scratch']
  %s0 = inlined_call_operand.vmem [shape: bf16[112,128], index: 0, kind: input, shape index: {}]
  %s1 = inlined_call_operand.vmem [shape: bf16[1152,128], index: 1, kind: input, shape index: {}]
  %s2 = inlined_call_operand.vmem [shape: f32[1,128], index: 2, kind: input, shape index: {}]
  %s3 = inlined_call_operand.vmem [shape: f32[40,1], index: 3, kind: input, shape index: {}]
  %s4 = inlined_call_operand.vmem [shape: bf16[80,128], index: 4, kind: output, shape index: {}]
  %s5 = sld [smem:[#allocation0]]
  $region49: #{vqvae_forward.13} parent=0
    _
  %s7 = ssub.s32 1, %s5
  %s8 = scalar_select 0, %s7, %s5
  loop: start=0, step=1, limit=4
  $region2: #{vqvae_forward.13} parent=0 // loop_pre_header
    _
  $region3: #{vqvae_forward.13} parent=0 // loop_header
    %s10 = sphi 0, %s14
    %p11 = scmp.ge.s32.totalorder %s10, 4
    %s17 = sphi 0, %s29
    %s18 = sphi 0, %s25
    %s19 = sphi 0, %s17
    %s20 = sphi 0, %s18
    %s21 = sphi 0, %s19
    %s22 = sphi 0, %s20
    %s32 = sphi 0, %s34
    %s35 = sphi 0, %s32
    %s36 = sphi 0, %s35
    %s52 = sphi 0, %s36
    %s56 = sphi 0, %s56
    %s58 = sphi 0, %s56
    %s59 = sphi 0, %s58
    %s73 = sphi 0, %s59
    %s77 = sphi 0, %s77
    %s79 = sphi 0, %s77
    %s80 = sphi 0, %s79
    %s94 = sphi 0, %s80
    %s100 = sphi 0, %s102
    %s103 = sphi 0, %s100
    %s104 = sphi 0, %s103
    %s120 = sphi 0, %s104
    %s128 = sphi 0, %s130
    %s131 = sphi 0, %s128
    %s132 = sphi 0, %s131
    %s148 = sphi 0, %s132
  $region4: #{vqvae_forward.13} parent=0 // loop_header_branch
    %13 = sbr.rel (%p11) target = $region8
  $region5: #{vqvae_forward.13} parent=0 // loop_body
    %s15 = ssub.s32 %s10, 1
    %s16 = ssub.s32 %s10, 2
    %s23 = sadd.s32 1, %s18
    %p24 = scmp.ge.s32.totalorder %s23, 1
    %s25 = scalar_select %p24, 0, %s23
    %s26 = sadd.s32 1, %s17
    %s27 = scalar_select %p24, %s26, %s17
    %p28 = scmp.ge.s32.totalorder %s27, 2
    %s29 = scalar_select %p28, 0, %s27
    %s30 = ssub.s32 %s17, %s29
    %p31 = scmp.eq.s32.totalorder %s30, 0
    %s33 = sadd.s32 %s32, 1
    %s34 = scalar_select %p31, %s32, %s33
    %p37 = pneg %p31
    %p38 = scmp.eq.s32.totalorder %s10, 1
    %p39 = por %p37, %p38
    %p40 = scmp.ne.s32.totalorder %s32, %s35
    %p41 = scmp.eq.s32.totalorder %s10, 0
    %p42 = por %p40, %p41
    %p43 = scmp.ne.s32.totalorder %s32, %s35
    %p44 = scmp.eq.s32.totalorder %s15, 1
    %p45 = por %p43, %p44
    %p46 = scmp.ne.s32.totalorder %s35, %s36
    %p47 = scmp.eq.s32.totalorder %s15, 0
    %p48 = por %p46, %p47
    %p49 = scmp.ne.s32.totalorder %s35, %s36
    %p50 = scmp.eq.s32.totalorder %s16, 1
    %p51 = por %p49, %p50
    %p53 = scmp.ne.s32.totalorder %s36, %s52
    %p54 = scmp.eq.s32.totalorder %s16, 0
    %p55 = por %p53, %p54
    %s57 = sadd.s32 %s56, 1
    %p60 = scmp.eq.s32.totalorder %s10, 1
    %p61 = scmp.ne.s32.totalorder %s56, %s58
    %p62 = scmp.eq.s32.totalorder %s10, 0
    %p63 = por %p61, %p62
    %p64 = scmp.ne.s32.totalorder %s56, %s58
    %p65 = scmp.eq.s32.totalorder %s15, 1
    %p66 = por %p64, %p65
    %p67 = scmp.ne.s32.totalorder %s58, %s59
    %p68 = scmp.eq.s32.totalorder %s15, 0
    %p69 = por %p67, %p68
    %p70 = scmp.ne.s32.totalorder %s58, %s59
    %p71 = scmp.eq.s32.totalorder %s16, 1
    %p72 = por %p70, %p71
    %p74 = scmp.ne.s32.totalorder %s59, %s73
    %p75 = scmp.eq.s32.totalorder %s16, 0
    %p76 = por %p74, %p75
    %s78 = sadd.s32 %s77, 1
    %p81 = scmp.eq.s32.totalorder %s10, 1
    %p82 = scmp.ne.s32.totalorder %s77, %s79
    %p83 = scmp.eq.s32.totalorder %s10, 0
    %p84 = por %p82, %p83
    %p85 = scmp.ne.s32.totalorder %s77, %s79
    %p86 = scmp.eq.s32.totalorder %s15, 1
    %p87 = por %p85, %p86
    %p88 = scmp.ne.s32.totalorder %s79, %s80
    %p89 = scmp.eq.s32.totalorder %s15, 0
    %p90 = por %p88, %p89
    %p91 = scmp.ne.s32.totalorder %s79, %s80
    %p92 = scmp.eq.s32.totalorder %s16, 1
    %p93 = por %p91, %p92
    %p95 = scmp.ne.s32.totalorder %s80, %s94
    %p96 = scmp.eq.s32.totalorder %s16, 0
    %p97 = por %p95, %p96
    %s98 = ssub.s32 %s18, %s25
    %p99 = scmp.eq.s32.totalorder %s98, 0
    %s101 = sadd.s32 %s100, 1
    %s102 = scalar_select %p99, %s100, %s101
    %p105 = pneg %p99
    %p106 = scmp.eq.s32.totalorder %s10, 1
    %p107 = por %p105, %p106
    %p108 = scmp.ne.s32.totalorder %s100, %s103
    %p109 = scmp.eq.s32.totalorder %s10, 0
    %p110 = por %p108, %p109
    %p111 = scmp.ne.s32.totalorder %s100, %s103
    %p112 = scmp.eq.s32.totalorder %s15, 1
    %p113 = por %p111, %p112
    %p114 = scmp.ne.s32.totalorder %s103, %s104
    %p115 = scmp.eq.s32.totalorder %s15, 0
    %p116 = por %p114, %p115
    %p117 = scmp.ne.s32.totalorder %s103, %s104
    %p118 = scmp.eq.s32.totalorder %s16, 1
    %p119 = por %p117, %p118
    %p121 = scmp.ne.s32.totalorder %s104, %s120
    %p122 = scmp.eq.s32.totalorder %s16, 0
    %p123 = por %p121, %p122
    %s124 = sadd.s32 %s17, %s18
    %s125 = sadd.s32 %s29, %s25
    %s126 = ssub.s32 %s124, %s125
    %p127 = scmp.eq.s32.totalorder %s126, 0
    %s129 = sadd.s32 %s128, 1
    %s130 = scalar_select %p127, %s128, %s129
    %p133 = pneg %p127
    %p134 = scmp.eq.s32.totalorder %s10, 1
    %p135 = por %p133, %p134
    %p136 = scmp.ne.s32.totalorder %s128, %s131
    %p137 = scmp.eq.s32.totalorder %s10, 0
    %p138 = por %p136, %p137
    %p139 = scmp.ne.s32.totalorder %s128, %s131
    %p140 = scmp.eq.s32.totalorder %s15, 1
    %p141 = por %p139, %p140
    %p142 = scmp.ne.s32.totalorder %s131, %s132
    %p143 = scmp.eq.s32.totalorder %s15, 0
    %p144 = por %p142, %p143
    %p145 = scmp.ne.s32.totalorder %s131, %s132
    %p146 = scmp.eq.s32.totalorder %s16, 1
    %p147 = por %p145, %p146
    %p149 = scmp.ne.s32.totalorder %s132, %s148
    %p150 = scmp.eq.s32.totalorder %s16, 0
    %p151 = por %p149, %p150
    %p152 = scmp.le.s32.totalorder 1, %s10
    %p153 = scmp.lt.s32.totalorder %s10, 3
    %p154 = pnand %p152, %p153
    %p155 = pneg %p154
    // Predicated region
    $region9: #{vqvae_forward.13} parent=5 // pred_check
      _
    $region10: #{vqvae_forward.13} parent=5 // pred_check_branch
      %157 = sbr.rel (%p154) target = $region12
    $region11: #{vqvae_forward.13} parent=5 // pred_region
      %s158 = ssub.s32 %s10, 1
      // Predicated region
      $region13: #{vqvae_forward.13} parent=11 // pred_check
        %p159 = pneg %p69
      $region14: #{vqvae_forward.13} parent=11 // pred_check_branch
        %161 = sbr.rel (%p159) target = $region16
      $region15: #{vqvae_forward.13} parent=11 // pred_region
        _
      $region16: #{vqvae_forward.13} parent=11 // pred_fallthru
        _
      // Predicated region
      $region17: #{vqvae_forward.13} parent=11 // pred_check
        %p162 = pneg %p90
      $region18: #{vqvae_forward.13} parent=11 // pred_check_branch
        %164 = sbr.rel (%p162) target = $region20
      $region19: #{vqvae_forward.13} parent=11 // pred_region
        _
      $region20: #{vqvae_forward.13} parent=11 // pred_fallthru
        _
      // Predicated region
      $region21: #{vqvae_forward.13} parent=11 // pred_check
        %p165 = pneg %p116
      $region22: #{vqvae_forward.13} parent=11 // pred_check_branch
        %167 = sbr.rel (%p165) target = $region24
      $region23: #{vqvae_forward.13} parent=11 // pred_region
        %s168 = smul.u32 5, %s20
        %p169 = scmp.lt.s32.totalorder %s168, 4
        %s170 = scalar_select %p169, %s168, 4
        %s171 = smul.addr %s170, 8
        %s172 = scalar_lea.vmem %s3, %s171
        %s173 = smul.u32 5, %s20
      $region24: #{vqvae_forward.13} parent=11 // pred_fallthru
        _
    $region12: #{vqvae_forward.13} parent=5 // pred_fallthru
      _
    %p174 = scmp.lt.s32.totalorder %s10, 2
    // Predicated region
    $region25: #{vqvae_forward.13} parent=5 // pred_check
      %p175 = pneg %p174
    $region26: #{vqvae_forward.13} parent=5 // pred_check_branch
      %177 = sbr.rel (%p175) target = $region28
    $region27: #{vqvae_forward.13} parent=5 // pred_region
      // Predicated region
      $region29: #{vqvae_forward.13} parent=27 // pred_check
        %p178 = pneg %p42
      $region30: #{vqvae_forward.13} parent=27 // pred_check_branch
        %180 = sbr.rel (%p178) target = $region32
      $region31: #{vqvae_forward.13} parent=27 // pred_region
        %s181 = smul.u32 7, %s17
        %p182 = scmp.lt.s32.totalorder %s181, 13
        %s183 = scalar_select %p182, %s181, 13
        %s184 = smul.addr %s183, 4
        %s185 = scalar_lea.vmem %s0, %s184
        %s186 = smul.u32 7, %s17
      $region32: #{vqvae_forward.13} parent=27 // pred_fallthru
        _
    $region28: #{vqvae_forward.13} parent=5 // pred_fallthru
      _
    %p187 = scmp.le.s32.totalorder 1, %s10
    %p188 = scmp.lt.s32.totalorder %s10, 3
    %p189 = pnand %p187, %p188
    %p190 = pneg %p189
    // Predicated region
    $region33: #{vqvae_forward.13} parent=5 // pred_check
      _
    $region34: #{vqvae_forward.13} parent=5 // pred_check_branch
      %192 = sbr.rel (%p189) target = $region36
    $region35: #{vqvae_forward.13} parent=5 // pred_region
      %s193 = ssub.s32 %s10, 1
      %s194 = smul.u32 7, %s19
      %p195 = scmp.lt.s32.totalorder %s194, 13
      %s196 = scalar_select %p195, %s194, 13
      %s197 = smul.addr %s196, 4
      %s198 = scalar_lea.vmem %s0, %s197
      %p199 = pneg %p48
      %p200 = pneg %p45
      %p201 = pneg %p69
      %p202 = pneg %p66
      %p203 = pneg %p90
      %p204 = pneg %p87
      %s205 = smul.u32 5, %s20
      %p206 = scmp.lt.s32.totalorder %s205, 4
      %s207 = scalar_select %p206, %s205, 4
      %s208 = smul.addr %s207, 8
      %s209 = scalar_lea.vmem %s3, %s208
      %p210 = pneg %p116
      %p211 = pneg %p113
      %p212 = pneg %p144
      %p213 = pneg %p141
      %s214 = sadd.s32 %s19, %s20
      %s215 = smul.u32 5, %s214
      %p216 = scmp.lt.s32.totalorder %s215, 9
      %s217 = scalar_select %p216, %s215, 9
      %s218 = smul.addr %s217, 4
      %s219 = scalar_lea.vmem %s4, %s218
      %s220 = smul.u32 7, %s19
      %p221 = scmp.lt.s32.totalorder %s220, 13
      %s222 = scalar_select %p221, %s220, 13
      %s223 = smul.addr %s222, 4
      %s224 = scalar_lea.vmem %s0, %s223
      %s225 = smul.u32 7, %s19
      %s226 = smul.u32 5, %s20
      %p227 = scmp.lt.s32.totalorder %s226, 4
      %s228 = scalar_select %p227, %s226, 4
      %s229 = smul.addr %s228, 8
      %s230 = scalar_lea.vmem %s3, %s229
      %s231 = smul.u32 5, %s20
      %s232 = sadd.s32 %s19, %s20
      %s233 = smul.u32 5, %s232
      %p234 = scmp.lt.s32.totalorder %s233, 9
      %s235 = scalar_select %p234, %s233, 9
      %s236 = smul.addr %s235, 4
      %s237 = scalar_lea.vmem %s4, %s236
      %s238 = sadd.s32 %s19, %s20
      %s239 = smul.u32 5, %s238
      %v240 = vld [vmem:[%s224] sm:$0xf]
      %v241 = vld [vmem:[%s224 + $0x4] sm:$0xf]
      %v242 = vld [vmem:[%s224 + $0x8] sm:$0xf]
      %v243 = vld [vmem:[%s224 + $0xc] sm:$0xf]
      %v244 = vld [vmem:[%s224 + $0x10] sm:$0xf]
      %v245 = vld [vmem:[%s1] sm:$0xf]
      %v246 = vld [vmem:[%s1 + $0x4] sm:$0xf]
      %v247 = vld [vmem:[%s1 + $0x8] sm:$0xf]
      %v248 = vld [vmem:[%s1 + $0xc] sm:$0xf]
      %v249 = vld [vmem:[%s1 + $0x10] sm:$0xf]
      %v250 = vld [vmem:[%s1 + $0x14] sm:$0xf]
      %v251 = vld [vmem:[%s1 + $0x18] sm:$0xf]
      %v252 = vld [vmem:[%s1 + $0x1c] sm:$0xf]
      %v253 = vld [vmem:[%s1 + $0x20] sm:$0xf]
      %v254 = vld [vmem:[%s1 + $0x24] sm:$0xf]
      %v255 = vld [vmem:[%s1 + $0x28] sm:$0xf]
      %v256 = vld [vmem:[%s1 + $0x2c] sm:$0xf]
      %v257 = vld [vmem:[%s1 + $0x30] sm:$0xf]
      %v258 = vld [vmem:[%s1 + $0x34] sm:$0xf]
      %v259 = vld [vmem:[%s1 + $0x38] sm:$0xf]
      %v260 = vld [vmem:[%s1 + $0x3c] sm:$0xf]
      %v261 = vld [vmem:[%s224 + $0x14] sm:$0x1]
      %v262 = vld [vmem:[%s1 + $0x40] sm:$0xf]
      %v263 = vld [vmem:[%s1 + $0x44] sm:$0xf]
      %v264 = vld [vmem:[%s1 + $0x48] sm:$0xf]
      %v265 = vld [vmem:[%s1 + $0x4c] sm:$0xf]
      %v266 = vld [vmem:[%s1 + $0x50] sm:$0xf]
      %v267 = vld [vmem:[%s1 + $0x54] sm:$0xf]
      %v268 = vld [vmem:[%s1 + $0x58] sm:$0xf]
      %v269 = vld [vmem:[%s1 + $0x5c] sm:$0xf]
      %v270 = vld [vmem:[%s1 + $0x60] sm:$0xf]
      %v271 = vld [vmem:[%s1 + $0x64] sm:$0xf]
      %v272 = vld [vmem:[%s1 + $0x68] sm:$0xf]
      %v273 = vld [vmem:[%s1 + $0x6c] sm:$0xf]
      %v274 = vld [vmem:[%s1 + $0x70] sm:$0xf]
      %v275 = vld [vmem:[%s1 + $0x74] sm:$0xf]
      %v276 = vld [vmem:[%s1 + $0x78] sm:$0xf]
      %v277 = vld [vmem:[%s1 + $0x7c] sm:$0xf]
      %v284 = vunpack.c.l.b16 %v240
      %v285 = vunpack.c.l.b16 %v241
      %v286 = vunpack.c.l.b16 %v242
      %v287 = vunpack.c.l.b16 %v243
      %v288 = vunpack.c.l.b16 %v244
      %v289 = vunpack.c.l.b16 %v261
      %v290 = vpack.c.b16 %v285, %v284
      %v291 = vpack.c.b16 %v287, %v286
      %v292 = vpack.c.b16 %v289, %v288
      %vm293 = vsmask.f32 7424
      %v295 = vshrl.u32 %v290, 16
      %v297 = vshll.u32 %v290, 16
      %v299 = vrot.slane %v297, 1
      %v300 = vor.u32 %v295, %v299
      %v302 = vshll.u32 %v291, 16
      %v304 = vrot.slane %v302, 1
      %v305 = vsel %vm293, %v300, %v304
      %v306 = vshrl.u32 %v291, 16
      %v308 = vor.u32 %v306, %v304
      %v310 = vshll.u32 %v292, 16
      %v312 = vrot.slane %v310, 1
      %v313 = vsel %vm293, %v308, %v312
      %v314 = vshrl.u32 %v292, 16
      %v316 = vor.u32 %v314, %v312
      %v336 = vunpack.c.l.b16 %v262
      %v337 = vunpack.c.l.b16 %v263
      %v338 = vunpack.c.l.b16 %v264
      %v339 = vunpack.c.l.b16 %v265
      %v340 = vunpack.c.l.b16 %v266
      %v341 = vunpack.c.l.b16 %v267
      %v342 = vunpack.c.l.b16 %v268
      %v343 = vunpack.c.l.b16 %v269
      %v344 = vunpack.c.l.b16 %v270
      %v345 = vunpack.c.l.b16 %v271
      %v346 = vunpack.c.l.b16 %v272
      %v347 = vunpack.c.l.b16 %v273
      %v348 = vunpack.c.l.b16 %v274
      %v349 = vunpack.c.l.b16 %v275
      %v350 = vunpack.c.l.b16 %v276
      %v351 = vunpack.c.l.b16 %v277
      %v352 = vpack.c.b16 %v337, %v336
      %v353 = vpack.c.b16 %v339, %v338
      %v354 = vpack.c.b16 %v341, %v340
      %v355 = vpack.c.b16 %v343, %v342
      %v356 = vpack.c.b16 %v345, %v344
      %v357 = vpack.c.b16 %v347, %v346
      %v358 = vpack.c.b16 %v349, %v348
      %v359 = vpack.c.b16 %v351, %v350
      %368 = vmatpush.bf16.msra.mxu0 %v359
      %369 = vmatpush.bf16.msra.mxu0 %v358
      %370 = vmatpush.bf16.msra.mxu0 %v357
      %371 = vmatpush.bf16.msra.mxu0 %v356
      %372 = vmatpush.bf16.msra.mxu0 %v355
      %373 = vmatpush.bf16.msra.mxu0 %v354
      %374 = vmatpush.bf16.msra.mxu0 %v353
      %375 = vmatpush.bf16.msra.mxu0 %v352
      %376 = vmatmul.bf16.gmra.mxu0 %v305
      %v377 = vpop.f32.mrf.mxu0
      %v378 = vadd.f32 0.0, %v377
      %v379 = vpop.f32.mrf.mxu0
      %v380 = vadd.f32 0.0, %v379
      %381 = vmatmul.bf16.gmra.mxu0 %v313
      %v382 = vpop.f32.mrf.mxu0
      %v383 = vadd.f32 0.0, %v382
      %v384 = vpop.f32.mrf.mxu0
      %v385 = vadd.f32 0.0, %v384
      %386 = vmatmul.bf16.gmra.mxu0 %v316
      %v387 = vpop.f32.mrf.mxu0
      %v388 = vadd.f32 0.0, %v387
      %v389 = vpop.f32.mrf.mxu0
      %390 = vdwg.mxu0
      %v391 = vpack.c.b16 %v288, %v288
      %v411 = vunpack.c.l.b16 %v245
      %v412 = vunpack.c.l.b16 %v246
      %v413 = vunpack.c.l.b16 %v247
      %v414 = vunpack.c.l.b16 %v248
      %v415 = vunpack.c.l.b16 %v249
      %v416 = vunpack.c.l.b16 %v250
      %v417 = vunpack.c.l.b16 %v251
      %v418 = vunpack.c.l.b16 %v252
      %v419 = vunpack.c.l.b16 %v253
      %v420 = vunpack.c.l.b16 %v254
      %v421 = vunpack.c.l.b16 %v255
      %v422 = vunpack.c.l.b16 %v256
      %v423 = vunpack.c.l.b16 %v257
      %v424 = vunpack.c.l.b16 %v258
      %v425 = vunpack.c.l.b16 %v259
      %v426 = vunpack.c.l.b16 %v260
      %v427 = vpack.c.b16 %v412, %v411
      %v428 = vpack.c.b16 %v414, %v413
      %v429 = vpack.c.b16 %v416, %v415
      %v430 = vpack.c.b16 %v418, %v417
      %v431 = vpack.c.b16 %v420, %v419
      %v432 = vpack.c.b16 %v422, %v421
      %v433 = vpack.c.b16 %v424, %v423
      %v434 = vpack.c.b16 %v426, %v425
      %443 = vmatpush.bf16.msra.mxu0 %v434
      %444 = vmatpush.bf16.msra.mxu0 %v433
      %445 = vmatpush.bf16.msra.mxu0 %v432
      %446 = vmatpush.bf16.msra.mxu0 %v431
      %447 = vmatpush.bf16.msra.mxu0 %v430
      %448 = vmatpush.bf16.msra.mxu0 %v429
      %449 = vmatpush.bf16.msra.mxu0 %v428
      %450 = vmatpush.bf16.msra.mxu0 %v427
      %451 = vmatmul.bf16.gmra.mxu0 %v290
      %v452 = vpop.f32.mrf.mxu0
      %v453 = vadd.f32 %v378, %v452
      %v454 = vpop.f32.mrf.mxu0
      %v455 = vadd.f32 %v380, %v454
      %456 = vmatmul.bf16.gmra.mxu0 %v291
      %v457 = vpop.f32.mrf.mxu0
      %v458 = vadd.f32 %v383, %v457
      %v459 = vpop.f32.mrf.mxu0
      %v460 = vadd.f32 %v385, %v459
      %461 = vmatmul.bf16.gmra.mxu0 %v391
      %v462 = vpop.f32.mrf.mxu0
      %v463 = vadd.f32 %v388, %v462
      %v464 = vpop.f32.mrf.mxu0
      %465 = vdwg.mxu0
      %v466 = vld [vmem:[%s224] sm:$0xe]
      %v467 = vld [vmem:[%s1 + $0x80] sm:$0xf]
      %v468 = vld [vmem:[%s1 + $0x84] sm:$0xf]
      %v469 = vld [vmem:[%s1 + $0x88] sm:$0xf]
      %v470 = vld [vmem:[%s1 + $0x8c] sm:$0xf]
      %v471 = vld [vmem:[%s1 + $0x90] sm:$0xf]
      %v472 = vld [vmem:[%s1 + $0x94] sm:$0xf]
      %v473 = vld [vmem:[%s1 + $0x98] sm:$0xf]
      %v474 = vld [vmem:[%s1 + $0x9c] sm:$0xf]
      %v475 = vld [vmem:[%s1 + $0xa0] sm:$0xf]
      %v476 = vld [vmem:[%s1 + $0xa4] sm:$0xf]
      %v477 = vld [vmem:[%s1 + $0xa8] sm:$0xf]
      %v478 = vld [vmem:[%s1 + $0xac] sm:$0xf]
      %v479 = vld [vmem:[%s1 + $0xb0] sm:$0xf]
      %v480 = vld [vmem:[%s1 + $0xb4] sm:$0xf]
      %v481 = vld [vmem:[%s1 + $0xb8] sm:$0xf]
      %v482 = vld [vmem:[%s1 + $0xbc] sm:$0xf]
      %v484 = vunpack.c.l.b16 %v466
      %v485 = vpack.c.b16 %v285, %v484
      %vm486 = vcmask 1046528
      %v487 = vrot.slane %v485, 1
      %v488 = vrot.slane %v291, 1
      %v489 = vsel %vm486, %v487, %v488
      %v490 = vrot.slane %v292, 1
      %v491 = vsel %vm486, %v488, %v490
      %v511 = vunpack.c.l.b16 %v467
      %v512 = vunpack.c.l.b16 %v468
      %v513 = vunpack.c.l.b16 %v469
      %v514 = vunpack.c.l.b16 %v470
      %v515 = vunpack.c.l.b16 %v471
      %v516 = vunpack.c.l.b16 %v472
      %v517 = vunpack.c.l.b16 %v473
      %v518 = vunpack.c.l.b16 %v474
      %v519 = vunpack.c.l.b16 %v475
      %v520 = vunpack.c.l.b16 %v476
      %v521 = vunpack.c.l.b16 %v477
      %v522 = vunpack.c.l.b16 %v478
      %v523 = vunpack.c.l.b16 %v479
      %v524 = vunpack.c.l.b16 %v480
      %v525 = vunpack.c.l.b16 %v481
      %v526 = vunpack.c.l.b16 %v482
      %v527 = vpack.c.b16 %v512, %v511
      %v528 = vpack.c.b16 %v514, %v513
      %v529 = vpack.c.b16 %v516, %v515
      %v530 = vpack.c.b16 %v518, %v517
      %v531 = vpack.c.b16 %v520, %v519
      %v532 = vpack.c.b16 %v522, %v521
      %v533 = vpack.c.b16 %v524, %v523
      %v534 = vpack.c.b16 %v526, %v525
      %543 = vmatpush.bf16.msra.mxu0 %v534
      %544 = vmatpush.bf16.msra.mxu0 %v533
      %545 = vmatpush.bf16.msra.mxu0 %v532
      %546 = vmatpush.bf16.msra.mxu0 %v531
      %547 = vmatpush.bf16.msra.mxu0 %v530
      %548 = vmatpush.bf16.msra.mxu0 %v529
      %549 = vmatpush.bf16.msra.mxu0 %v528
      %550 = vmatpush.bf16.msra.mxu0 %v527
      %551 = vmatmul.bf16.gmra.mxu0 %v489
      %v552 = vpop.f32.mrf.mxu0
      %v553 = vadd.f32 0.0, %v552
      %v554 = vpop.f32.mrf.mxu0
      %v555 = vadd.f32 0.0, %v554
      %556 = vmatmul.bf16.gmra.mxu0 %v491
      %v557 = vpop.f32.mrf.mxu0
      %v558 = vadd.f32 0.0, %v557
      %v559 = vpop.f32.mrf.mxu0
      %v560 = vadd.f32 0.0, %v559
      %561 = vmatmul.bf16.gmra.mxu0 %v490
      %v562 = vpop.f32.mrf.mxu0
      %v563 = vadd.f32 0.0, %v562
      %v564 = vpop.f32.mrf.mxu0
      %565 = vdwg.mxu0
      %v566 = vadd.f32 %v453, %v553
      %v567 = vadd.f32 %v455, %v555
      %v568 = vadd.f32 %v458, %v558
      %v569 = vadd.f32 %v460, %v560
      %v570 = vadd.f32 %v463, %v563
      %v571 = vld [vmem:[%s224] sm:$0x8]
      %v572 = vld [vmem:[%s224 + $0x14] sm:$0x7]
      %v573 = vld [vmem:[%s1 + $0xc0] sm:$0xf]
      %v574 = vld [vmem:[%s1 + $0xc4] sm:$0xf]
      %v575 = vld [vmem:[%s1 + $0xc8] sm:$0xf]
      %v576 = vld [vmem:[%s1 + $0xcc] sm:$0xf]
      %v577 = vld [vmem:[%s1 + $0xd0] sm:$0xf]
      %v578 = vld [vmem:[%s1 + $0xd4] sm:$0xf]
      %v579 = vld [vmem:[%s1 + $0xd8] sm:$0xf]
      %v580 = vld [vmem:[%s1 + $0xdc] sm:$0xf]
      %v581 = vld [vmem:[%s1 + $0xe0] sm:$0xf]
      %v582 = vld [vmem:[%s1 + $0xe4] sm:$0xf]
      %v583 = vld [vmem:[%s1 + $0xe8] sm:$0xf]
      %v584 = vld [vmem:[%s1 + $0xec] sm:$0xf]
      %v585 = vld [vmem:[%s1 + $0xf0] sm:$0xf]
      %v586 = vld [vmem:[%s1 + $0xf4] sm:$0xf]
      %v587 = vld [vmem:[%s1 + $0xf8] sm:$0xf]
      %v588 = vld [vmem:[%s1 + $0xfc] sm:$0xf]
      %v591 = vunpack.c.l.b16 %v571
      %v592 = vunpack.c.l.b16 %v572
      %v593 = vpack.c.b16 %v285, %v591
      %v594 = vpack.c.b16 %v592, %v288
      %vm595 = vcmask 1044480
      %v596 = vrot.slane %v593, 3
      %v597 = vrot.slane %v291, 3
      %v598 = vsel %vm595, %v596, %v597
      %v599 = vrot.slane %v594, 3
      %v600 = vsel %vm595, %v597, %v599
      %v620 = vunpack.c.l.b16 %v573
      %v621 = vunpack.c.l.b16 %v574
      %v622 = vunpack.c.l.b16 %v575
      %v623 = vunpack.c.l.b16 %v576
      %v624 = vunpack.c.l.b16 %v577
      %v625 = vunpack.c.l.b16 %v578
      %v626 = vunpack.c.l.b16 %v579
      %v627 = vunpack.c.l.b16 %v580
      %v628 = vunpack.c.l.b16 %v581
      %v629 = vunpack.c.l.b16 %v582
      %v630 = vunpack.c.l.b16 %v583
      %v631 = vunpack.c.l.b16 %v584
      %v632 = vunpack.c.l.b16 %v585
      %v633 = vunpack.c.l.b16 %v586
      %v634 = vunpack.c.l.b16 %v587
      %v635 = vunpack.c.l.b16 %v588
      %v636 = vpack.c.b16 %v621, %v620
      %v637 = vpack.c.b16 %v623, %v622
      %v638 = vpack.c.b16 %v625, %v624
      %v639 = vpack.c.b16 %v627, %v626
      %v640 = vpack.c.b16 %v629, %v628
      %v641 = vpack.c.b16 %v631, %v630
      %v642 = vpack.c.b16 %v633, %v632
      %v643 = vpack.c.b16 %v635, %v634
      %652 = vmatpush.bf16.msra.mxu0 %v643
      %653 = vmatpush.bf16.msra.mxu0 %v642
      %654 = vmatpush.bf16.msra.mxu0 %v641
      %655 = vmatpush.bf16.msra.mxu0 %v640
      %656 = vmatpush.bf16.msra.mxu0 %v639
      %657 = vmatpush.bf16.msra.mxu0 %v638
      %658 = vmatpush.bf16.msra.mxu0 %v637
      %659 = vmatpush.bf16.msra.mxu0 %v636
      %660 = vmatmul.bf16.gmra.mxu0 %v598
      %v661 = vpop.f32.mrf.mxu0
      %v662 = vadd.f32 0.0, %v661
      %v663 = vpop.f32.mrf.mxu0
      %v664 = vadd.f32 0.0, %v663
      %665 = vmatmul.bf16.gmra.mxu0 %v600
      %v666 = vpop.f32.mrf.mxu0
      %v667 = vadd.f32 0.0, %v666
      %v668 = vpop.f32.mrf.mxu0
      %v669 = vadd.f32 0.0, %v668
      %670 = vmatmul.bf16.gmra.mxu0 %v599
      %v671 = vpop.f32.mrf.mxu0
      %v672 = vadd.f32 0.0, %v671
      %v673 = vpop.f32.mrf.mxu0
      %674 = vdwg.mxu0
      %v675 = vadd.f32 %v566, %v662
      %v676 = vadd.f32 %v567, %v664
      %v677 = vadd.f32 %v568, %v667
      %v678 = vadd.f32 %v569, %v669
      %v679 = vadd.f32 %v570, %v672
      %v680 = vld [vmem:[%s224 + $0x14] sm:$0xf]
      %v681 = vld [vmem:[%s1 + $0x100] sm:$0xf]
      %v682 = vld [vmem:[%s1 + $0x104] sm:$0xf]
      %v683 = vld [vmem:[%s1 + $0x108] sm:$0xf]
      %v684 = vld [vmem:[%s1 + $0x10c] sm:$0xf]
      %v685 = vld [vmem:[%s1 + $0x110] sm:$0xf]
      %v686 = vld [vmem:[%s1 + $0x114] sm:$0xf]
      %v687 = vld [vmem:[%s1 + $0x118] sm:$0xf]
      %v688 = vld [vmem:[%s1 + $0x11c] sm:$0xf]
      %v689 = vld [vmem:[%s1 + $0x120] sm:$0xf]
      %v690 = vld [vmem:[%s1 + $0x124] sm:$0xf]
      %v691 = vld [vmem:[%s1 + $0x128] sm:$0xf]
      %v692 = vld [vmem:[%s1 + $0x12c] sm:$0xf]
      %v693 = vld [vmem:[%s1 + $0x130] sm:$0xf]
      %v694 = vld [vmem:[%s1 + $0x134] sm:$0xf]
      %v695 = vld [vmem:[%s1 + $0x138] sm:$0xf]
      %v696 = vld [vmem:[%s1 + $0x13c] sm:$0xf]
      %v698 = vunpack.c.l.b16 %v680
      %v699 = vpack.c.b16 %v698, %v288
      %vm700 = vsmask.f32 4352
      %v702 = vshrl.u32 %v593, 16
      %v704 = vrot.slane %v702, 3
      %v705 = vshll.u32 %v593, 16
      %v707 = vrot.slane %v705, 4
      %v708 = vor.u32 %v704, %v707
      %v709 = vrot.slane %v306, 3
      %v710 = vrot.slane %v302, 4
      %v711 = vor.u32 %v709, %v710
      %v712 = vsel %vm700, %v708, %v711
      %v714 = vshrl.u32 %v699, 16
      %v716 = vrot.slane %v714, 3
      %v717 = vshll.u32 %v699, 16
      %v719 = vrot.slane %v717, 4
      %v720 = vor.u32 %v716, %v719
      %v721 = vsel %vm700, %v711, %v720
      %v741 = vunpack.c.l.b16 %v681
      %v742 = vunpack.c.l.b16 %v682
      %v743 = vunpack.c.l.b16 %v683
      %v744 = vunpack.c.l.b16 %v684
      %v745 = vunpack.c.l.b16 %v685
      %v746 = vunpack.c.l.b16 %v686
      %v747 = vunpack.c.l.b16 %v687
      %v748 = vunpack.c.l.b16 %v688
      %v749 = vunpack.c.l.b16 %v689
      %v750 = vunpack.c.l.b16 %v690
      %v751 = vunpack.c.l.b16 %v691
      %v752 = vunpack.c.l.b16 %v692
      %v753 = vunpack.c.l.b16 %v693
      %v754 = vunpack.c.l.b16 %v694
      %v755 = vunpack.c.l.b16 %v695
      %v756 = vunpack.c.l.b16 %v696
      %v757 = vpack.c.b16 %v742, %v741
      %v758 = vpack.c.b16 %v744, %v743
      %v759 = vpack.c.b16 %v746, %v745
      %v760 = vpack.c.b16 %v748, %v747
      %v761 = vpack.c.b16 %v750, %v749
      %v762 = vpack.c.b16 %v752, %v751
      %v763 = vpack.c.b16 %v754, %v753
      %v764 = vpack.c.b16 %v756, %v755
      %773 = vmatpush.bf16.msra.mxu0 %v764
      %774 = vmatpush.bf16.msra.mxu0 %v763
      %775 = vmatpush.bf16.msra.mxu0 %v762
      %776 = vmatpush.bf16.msra.mxu0 %v761
      %777 = vmatpush.bf16.msra.mxu0 %v760
      %778 = vmatpush.bf16.msra.mxu0 %v759
      %779 = vmatpush.bf16.msra.mxu0 %v758
      %780 = vmatpush.bf16.msra.mxu0 %v757
      %781 = vmatmul.bf16.gmra.mxu0 %v712
      %v782 = vpop.f32.mrf.mxu0
      %v783 = vadd.f32 0.0, %v782
      %v784 = vpop.f32.mrf.mxu0
      %v785 = vadd.f32 0.0, %v784
      %786 = vmatmul.bf16.gmra.mxu0 %v721
      %v787 = vpop.f32.mrf.mxu0
      %v788 = vadd.f32 0.0, %v787
      %v789 = vpop.f32.mrf.mxu0
      %v790 = vadd.f32 0.0, %v789
      %791 = vmatmul.bf16.gmra.mxu0 %v720
      %v792 = vpop.f32.mrf.mxu0
      %v793 = vadd.f32 0.0, %v792
      %v794 = vpop.f32.mrf.mxu0
      %795 = vdwg.mxu0
      %v796 = vadd.f32 %v675, %v783
      %v797 = vadd.f32 %v676, %v785
      %v798 = vadd.f32 %v677, %v788
      %v799 = vadd.f32 %v678, %v790
      %v800 = vadd.f32 %v679, %v793
      %v801 = vld [vmem:[%s1 + $0x140] sm:$0xf]
      %v802 = vld [vmem:[%s1 + $0x144] sm:$0xf]
      %v803 = vld [vmem:[%s1 + $0x148] sm:$0xf]
      %v804 = vld [vmem:[%s1 + $0x14c] sm:$0xf]
      %v805 = vld [vmem:[%s1 + $0x150] sm:$0xf]
      %v806 = vld [vmem:[%s1 + $0x154] sm:$0xf]
      %v807 = vld [vmem:[%s1 + $0x158] sm:$0xf]
      %v808 = vld [vmem:[%s1 + $0x15c] sm:$0xf]
      %v809 = vld [vmem:[%s1 + $0x160] sm:$0xf]
      %v810 = vld [vmem:[%s1 + $0x164] sm:$0xf]
      %v811 = vld [vmem:[%s1 + $0x168] sm:$0xf]
      %v812 = vld [vmem:[%s1 + $0x16c] sm:$0xf]
      %v813 = vld [vmem:[%s1 + $0x170] sm:$0xf]
      %v814 = vld [vmem:[%s1 + $0x174] sm:$0xf]
      %v815 = vld [vmem:[%s1 + $0x178] sm:$0xf]
      %v816 = vld [vmem:[%s1 + $0x17c] sm:$0xf]
      %v817 = vpack.c.b16 %v286, %v285
      %v818 = vpack.c.b16 %v288, %v287
      %v819 = vpack.c.b16 %v698, %v698
      %v839 = vunpack.c.l.b16 %v801
      %v840 = vunpack.c.l.b16 %v802
      %v841 = vunpack.c.l.b16 %v803
      %v842 = vunpack.c.l.b16 %v804
      %v843 = vunpack.c.l.b16 %v805
      %v844 = vunpack.c.l.b16 %v806
      %v845 = vunpack.c.l.b16 %v807
      %v846 = vunpack.c.l.b16 %v808
      %v847 = vunpack.c.l.b16 %v809
      %v848 = vunpack.c.l.b16 %v810
      %v849 = vunpack.c.l.b16 %v811
      %v850 = vunpack.c.l.b16 %v812
      %v851 = vunpack.c.l.b16 %v813
      %v852 = vunpack.c.l.b16 %v814
      %v853 = vunpack.c.l.b16 %v815
      %v854 = vunpack.c.l.b16 %v816
      %v855 = vpack.c.b16 %v840, %v839
      %v856 = vpack.c.b16 %v842, %v841
      %v857 = vpack.c.b16 %v844, %v843
      %v858 = vpack.c.b16 %v846, %v845
      %v859 = vpack.c.b16 %v848, %v847
      %v860 = vpack.c.b16 %v850, %v849
      %v861 = vpack.c.b16 %v852, %v851
      %v862 = vpack.c.b16 %v854, %v853
      %871 = vmatpush.bf16.msra.mxu0 %v862
      %872 = vmatpush.bf16.msra.mxu0 %v861
      %873 = vmatpush.bf16.msra.mxu0 %v860
      %874 = vmatpush.bf16.msra.mxu0 %v859
      %875 = vmatpush.bf16.msra.mxu0 %v858
      %876 = vmatpush.bf16.msra.mxu0 %v857
      %877 = vmatpush.bf16.msra.mxu0 %v856
      %878 = vmatpush.bf16.msra.mxu0 %v855
      %879 = vmatmul.bf16.gmra.mxu0 %v817
      %v880 = vpop.f32.mrf.mxu0
      %v881 = vadd.f32 0.0, %v880
      %v882 = vpop.f32.mrf.mxu0
      %v883 = vadd.f32 0.0, %v882
      %884 = vmatmul.bf16.gmra.mxu0 %v818
      %v885 = vpop.f32.mrf.mxu0
      %v886 = vadd.f32 0.0, %v885
      %v887 = vpop.f32.mrf.mxu0
      %v888 = vadd.f32 0.0, %v887
      %889 = vmatmul.bf16.gmra.mxu0 %v819
      %v890 = vpop.f32.mrf.mxu0
      %v891 = vadd.f32 0.0, %v890
      %v892 = vpop.f32.mrf.mxu0
      %893 = vdwg.mxu0
      %v894 = vadd.f32 %v796, %v881
      %v895 = vadd.f32 %v797, %v883
      %v896 = vadd.f32 %v798, %v886
      %v897 = vadd.f32 %v799, %v888
      %v898 = vadd.f32 %v800, %v891
      %v899 = vld [vmem:[%s224 + $0x4] sm:$0xc]
      %v900 = vld [vmem:[%s224 + $0x8] sm:$0xf]
      %v901 = vld [vmem:[%s224 + $0xc] sm:$0xf]
      %v902 = vld [vmem:[%s224 + $0x10] sm:$0xf]
      %v903 = vld [vmem:[%s224 + $0x14] sm:$0xf]
      %v904 = vld [vmem:[%s224 + $0x18] sm:$0x3]
      %v905 = vld [vmem:[%s1 + $0x180] sm:$0xf]
      %v906 = vld [vmem:[%s1 + $0x184] sm:$0xf]
      %v907 = vld [vmem:[%s1 + $0x188] sm:$0xf]
      %v908 = vld [vmem:[%s1 + $0x18c] sm:$0xf]
      %v909 = vld [vmem:[%s1 + $0x190] sm:$0xf]
      %v910 = vld [vmem:[%s1 + $0x194] sm:$0xf]
      %v911 = vld [vmem:[%s1 + $0x198] sm:$0xf]
      %v912 = vld [vmem:[%s1 + $0x19c] sm:$0xf]
      %v913 = vld [vmem:[%s1 + $0x1a0] sm:$0xf]
      %v914 = vld [vmem:[%s1 + $0x1a4] sm:$0xf]
      %v915 = vld [vmem:[%s1 + $0x1a8] sm:$0xf]
      %v916 = vld [vmem:[%s1 + $0x1ac] sm:$0xf]
      %v917 = vld [vmem:[%s1 + $0x1b0] sm:$0xf]
      %v918 = vld [vmem:[%s1 + $0x1b4] sm:$0xf]
      %v919 = vld [vmem:[%s1 + $0x1b8] sm:$0xf]
      %v920 = vld [vmem:[%s1 + $0x1bc] sm:$0xf]
      %v927 = vunpack.c.l.b16 %v899
      %v928 = vunpack.c.l.b16 %v900
      %v929 = vunpack.c.l.b16 %v901
      %v930 = vunpack.c.l.b16 %v902
      %v931 = vunpack.c.l.b16 %v903
      %v932 = vunpack.c.l.b16 %v904
      %v933 = vpack.c.b16 %v928, %v927
      %v934 = vpack.c.b16 %v930, %v929
      %v935 = vpack.c.b16 %v932, %v931
      %vm936 = vcmask 1045504
      %v937 = vrot.slane %v933, 2
      %v938 = vrot.slane %v934, 2
      %v939 = vsel %vm936, %v937, %v938
      %v940 = vrot.slane %v935, 2
      %v941 = vsel %vm936, %v938, %v940
      %v961 = vunpack.c.l.b16 %v905
      %v962 = vunpack.c.l.b16 %v906
      %v963 = vunpack.c.l.b16 %v907
      %v964 = vunpack.c.l.b16 %v908
      %v965 = vunpack.c.l.b16 %v909
      %v966 = vunpack.c.l.b16 %v910
      %v967 = vunpack.c.l.b16 %v911
      %v968 = vunpack.c.l.b16 %v912
      %v969 = vunpack.c.l.b16 %v913
      %v970 = vunpack.c.l.b16 %v914
      %v971 = vunpack.c.l.b16 %v915
      %v972 = vunpack.c.l.b16 %v916
      %v973 = vunpack.c.l.b16 %v917
      %v974 = vunpack.c.l.b16 %v918
      %v975 = vunpack.c.l.b16 %v919
      %v976 = vunpack.c.l.b16 %v920
      %v977 = vpack.c.b16 %v962, %v961
      %v978 = vpack.c.b16 %v964, %v963
      %v979 = vpack.c.b16 %v966, %v965
      %v980 = vpack.c.b16 %v968, %v967
      %v981 = vpack.c.b16 %v970, %v969
      %v982 = vpack.c.b16 %v972, %v971
      %v983 = vpack.c.b16 %v974, %v973
      %v984 = vpack.c.b16 %v976, %v975
      %993 = vmatpush.bf16.msra.mxu0 %v984
      %994 = vmatpush.bf16.msra.mxu0 %v983
      %995 = vmatpush.bf16.msra.mxu0 %v982
      %996 = vmatpush.bf16.msra.mxu0 %v981
      %997 = vmatpush.bf16.msra.mxu0 %v980
      %998 = vmatpush.bf16.msra.mxu0 %v979
      %999 = vmatpush.bf16.msra.mxu0 %v978
      %1000 = vmatpush.bf16.msra.mxu0 %v977
      %1001 = vmatmul.bf16.gmra.mxu0 %v939
      %v1002 = vpop.f32.mrf.mxu0
      %v1003 = vadd.f32 0.0, %v1002
      %v1004 = vpop.f32.mrf.mxu0
      %v1005 = vadd.f32 0.0, %v1004
      %1006 = vmatmul.bf16.gmra.mxu0 %v941
      %v1007 = vpop.f32.mrf.mxu0
      %v1008 = vadd.f32 0.0, %v1007
      %v1009 = vpop.f32.mrf.mxu0
      %v1010 = vadd.f32 0.0, %v1009
      %1011 = vmatmul.bf16.gmra.mxu0 %v940
      %v1012 = vpop.f32.mrf.mxu0
      %v1013 = vadd.f32 0.0, %v1012
      %v1014 = vpop.f32.mrf.mxu0
      %1015 = vdwg.mxu0
      %v1016 = vadd.f32 %v894, %v1003
      %v1017 = vadd.f32 %v895, %v1005
      %v1018 = vadd.f32 %v896, %v1008
      %v1019 = vadd.f32 %v897, %v1010
      %v1020 = vadd.f32 %v898, %v1013
      %v1021 = vld [vmem:[%s224 + $0x18] sm:$0x7]
      %v1022 = vld [vmem:[%s1 + $0x1c0] sm:$0xf]
      %v1023 = vld [vmem:[%s1 + $0x1c4] sm:$0xf]
      %v1024 = vld [vmem:[%s1 + $0x1c8] sm:$0xf]
      %v1025 = vld [vmem:[%s1 + $0x1cc] sm:$0xf]
      %v1026 = vld [vmem:[%s1 + $0x1d0] sm:$0xf]
      %v1027 = vld [vmem:[%s1 + $0x1d4] sm:$0xf]
      %v1028 = vld [vmem:[%s1 + $0x1d8] sm:$0xf]
      %v1029 = vld [vmem:[%s1 + $0x1dc] sm:$0xf]
      %v1030 = vld [vmem:[%s1 + $0x1e0] sm:$0xf]
      %v1031 = vld [vmem:[%s1 + $0x1e4] sm:$0xf]
      %v1032 = vld [vmem:[%s1 + $0x1e8] sm:$0xf]
      %v1033 = vld [vmem:[%s1 + $0x1ec] sm:$0xf]
      %v1034 = vld [vmem:[%s1 + $0x1f0] sm:$0xf]
      %v1035 = vld [vmem:[%s1 + $0x1f4] sm:$0xf]
      %v1036 = vld [vmem:[%s1 + $0x1f8] sm:$0xf]
      %v1037 = vld [vmem:[%s1 + $0x1fc] sm:$0xf]
      %v1039 = vunpack.c.l.b16 %v1021
      %v1040 = vpack.c.b16 %v1039, %v931
      %vm1041 = vsmask.f32 5376
      %v1043 = vshrl.u32 %v933, 16
      %v1045 = vrot.slane %v1043, 2
      %v1046 = vshll.u32 %v933, 16
      %v1048 = vrot.slane %v1046, 3
      %v1049 = vor.u32 %v1045, %v1048
      %v1051 = vshrl.u32 %v934, 16
      %v1053 = vrot.slane %v1051, 2
      %v1054 = vshll.u32 %v934, 16
      %v1056 = vrot.slane %v1054, 3
      %v1057 = vor.u32 %v1053, %v1056
      %v1058 = vsel %vm1041, %v1049, %v1057
      %v1060 = vshrl.u32 %v1040, 16
      %v1062 = vrot.slane %v1060, 2
      %v1063 = vshll.u32 %v1040, 16
      %v1065 = vrot.slane %v1063, 3
      %v1066 = vor.u32 %v1062, %v1065
      %v1067 = vsel %vm1041, %v1057, %v1066
      %v1087 = vunpack.c.l.b16 %v1022
      %v1088 = vunpack.c.l.b16 %v1023
      %v1089 = vunpack.c.l.b16 %v1024
      %v1090 = vunpack.c.l.b16 %v1025
      %v1091 = vunpack.c.l.b16 %v1026
      %v1092 = vunpack.c.l.b16 %v1027
      %v1093 = vunpack.c.l.b16 %v1028
      %v1094 = vunpack.c.l.b16 %v1029
      %v1095 = vunpack.c.l.b16 %v1030
      %v1096 = vunpack.c.l.b16 %v1031
      %v1097 = vunpack.c.l.b16 %v1032
      %v1098 = vunpack.c.l.b16 %v1033
      %v1099 = vunpack.c.l.b16 %v1034
      %v1100 = vunpack.c.l.b16 %v1035
      %v1101 = vunpack.c.l.b16 %v1036
      %v1102 = vunpack.c.l.b16 %v1037
      %v1103 = vpack.c.b16 %v1088, %v1087
      %v1104 = vpack.c.b16 %v1090, %v1089
      %v1105 = vpack.c.b16 %v1092, %v1091
      %v1106 = vpack.c.b16 %v1094, %v1093
      %v1107 = vpack.c.b16 %v1096, %v1095
      %v1108 = vpack.c.b16 %v1098, %v1097
      %v1109 = vpack.c.b16 %v1100, %v1099
      %v1110 = vpack.c.b16 %v1102, %v1101
      %1119 = vmatpush.bf16.msra.mxu0 %v1110
      %1120 = vmatpush.bf16.msra.mxu0 %v1109
      %1121 = vmatpush.bf16.msra.mxu0 %v1108
      %1122 = vmatpush.bf16.msra.mxu0 %v1107
      %1123 = vmatpush.bf16.msra.mxu0 %v1106
      %1124 = vmatpush.bf16.msra.mxu0 %v1105
      %1125 = vmatpush.bf16.msra.mxu0 %v1104
      %1126 = vmatpush.bf16.msra.mxu0 %v1103
      %1127 = vmatmul.bf16.gmra.mxu0 %v1058
      %v1128 = vpop.f32.mrf.mxu0
      %v1129 = vadd.f32 0.0, %v1128
      %v1130 = vpop.f32.mrf.mxu0
      %v1131 = vadd.f32 0.0, %v1130
      %1132 = vmatmul.bf16.gmra.mxu0 %v1067
      %v1133 = vpop.f32.mrf.mxu0
      %v1134 = vadd.f32 0.0, %v1133
      %v1135 = vpop.f32.mrf.mxu0
      %v1136 = vadd.f32 0.0, %v1135
      %1137 = vmatmul.bf16.gmra.mxu0 %v1066
      %v1138 = vpop.f32.mrf.mxu0
      %v1139 = vadd.f32 0.0, %v1138
      %v1140 = vpop.f32.mrf.mxu0
      %1141 = vdwg.mxu0
      %v1142 = vadd.f32 %v1016, %v1129
      %v1143 = vadd.f32 %v1017, %v1131
      %v1144 = vadd.f32 %v1018, %v1134
      %v1145 = vadd.f32 %v1019, %v1136
      %v1146 = vadd.f32 %v1020, %v1139
      %v1147 = vld [vmem:[%s224 + $0x4] sm:$0x8]
      %v1148 = vld [vmem:[%s1 + $0x200] sm:$0xf]
      %v1149 = vld [vmem:[%s1 + $0x204] sm:$0xf]
      %v1150 = vld [vmem:[%s1 + $0x208] sm:$0xf]
      %v1151 = vld [vmem:[%s1 + $0x20c] sm:$0xf]
      %v1152 = vld [vmem:[%s1 + $0x210] sm:$0xf]
      %v1153 = vld [vmem:[%s1 + $0x214] sm:$0xf]
      %v1154 = vld [vmem:[%s1 + $0x218] sm:$0xf]
      %v1155 = vld [vmem:[%s1 + $0x21c] sm:$0xf]
      %v1156 = vld [vmem:[%s1 + $0x220] sm:$0xf]
      %v1157 = vld [vmem:[%s1 + $0x224] sm:$0xf]
      %v1158 = vld [vmem:[%s1 + $0x228] sm:$0xf]
      %v1159 = vld [vmem:[%s1 + $0x22c] sm:$0xf]
      %v1160 = vld [vmem:[%s1 + $0x230] sm:$0xf]
      %v1161 = vld [vmem:[%s1 + $0x234] sm:$0xf]
      %v1162 = vld [vmem:[%s1 + $0x238] sm:$0xf]
      %v1163 = vld [vmem:[%s1 + $0x23c] sm:$0xf]
      %v1165 = vunpack.c.l.b16 %v1147
      %v1166 = vpack.c.b16 %v928, %v1165
      %v1167 = vrot.slane %v1166, 3
      %v1168 = vrot.slane %v934, 3
      %v1169 = vsel %vm595, %v1167, %v1168
      %v1170 = vrot.slane %v1040, 3
      %v1171 = vsel %vm595, %v1168, %v1170
      %v1191 = vunpack.c.l.b16 %v1148
      %v1192 = vunpack.c.l.b16 %v1149
      %v1193 = vunpack.c.l.b16 %v1150
      %v1194 = vunpack.c.l.b16 %v1151
      %v1195 = vunpack.c.l.b16 %v1152
      %v1196 = vunpack.c.l.b16 %v1153
      %v1197 = vunpack.c.l.b16 %v1154
      %v1198 = vunpack.c.l.b16 %v1155
      %v1199 = vunpack.c.l.b16 %v1156
      %v1200 = vunpack.c.l.b16 %v1157
      %v1201 = vunpack.c.l.b16 %v1158
      %v1202 = vunpack.c.l.b16 %v1159
      %v1203 = vunpack.c.l.b16 %v1160
      %v1204 = vunpack.c.l.b16 %v1161
      %v1205 = vunpack.c.l.b16 %v1162
      %v1206 = vunpack.c.l.b16 %v1163
      %v1207 = vpack.c.b16 %v1192, %v1191
      %v1208 = vpack.c.b16 %v1194, %v1193
      %v1209 = vpack.c.b16 %v1196, %v1195
      %v1210 = vpack.c.b16 %v1198, %v1197
      %v1211 = vpack.c.b16 %v1200, %v1199
      %v1212 = vpack.c.b16 %v1202, %v1201
      %v1213 = vpack.c.b16 %v1204, %v1203
      %v1214 = vpack.c.b16 %v1206, %v1205
      %1223 = vmatpush.bf16.msra.mxu0 %v1214
      %1224 = vmatpush.bf16.msra.mxu0 %v1213
      %1225 = vmatpush.bf16.msra.mxu0 %v1212
      %1226 = vmatpush.bf16.msra.mxu0 %v1211
      %1227 = vmatpush.bf16.msra.mxu0 %v1210
      %1228 = vmatpush.bf16.msra.mxu0 %v1209
      %1229 = vmatpush.bf16.msra.mxu0 %v1208
      %1230 = vmatpush.bf16.msra.mxu0 %v1207
      %1231 = vmatmul.bf16.gmra.mxu0 %v1169
      %v1232 = vpop.f32.mrf.mxu0
      %v1233 = vadd.f32 0.0, %v1232
      %v1234 = vpop.f32.mrf.mxu0
      %v1235 = vadd.f32 0.0, %v1234
      %1236 = vmatmul.bf16.gmra.mxu0 %v1171
      %v1237 = vpop.f32.mrf.mxu0
      %v1238 = vadd.f32 0.0, %v1237
      %v1239 = vpop.f32.mrf.mxu0
      %v1240 = vadd.f32 0.0, %v1239
      %1241 = vmatmul.bf16.gmra.mxu0 %v1170
      %v1242 = vpop.f32.mrf.mxu0
      %v1243 = vadd.f32 0.0, %v1242
      %v1244 = vpop.f32.mrf.mxu0
      %1245 = vdwg.mxu0
      %v1246 = vadd.f32 %v1142, %v1233
      %v1247 = vadd.f32 %v1143, %v1235
      %v1248 = vadd.f32 %v1144, %v1238
      %v1249 = vadd.f32 %v1145, %v1240
      %v1250 = vadd.f32 %v1146, %v1243
      %v1251 = vld [vmem:[%s2] sm:$0x1]
      %v1253 = vperm.slane %v1251, 0
      %v1255 = vadd.f32 %v1246, %v1253
      %v1256 = vadd.f32 %v1247, %v1253
      %v1257 = vadd.f32 %v1248, %v1253
      %v1258 = vadd.f32 %v1249, %v1253
      %v1259 = vadd.f32 %v1250, %v1253
      %v1260 = vld [vmem:[%s230] sm:$0xff]
      %v1261 = vld [vmem:[%s230 + $0x8] sm:$0xff]
      %v1262 = vld [vmem:[%s230 + $0x10] sm:$0xff]
      %v1263 = vld [vmem:[%s230 + $0x18] sm:$0xff]
      %v1264 = vld [vmem:[%s230 + $0x20] sm:$0xff]
      %1266 = vset.pattern.permute.xlu0 0
      %1267 = vperm.xlu0 %1266, %v1260
      %v1268 = vpop.permute.xlu0 %1267
      %1271 = vset.pattern.permute.xlu0 0
      %1272 = vperm.xlu0 %1271, %v1261
      %v1273 = vpop.permute.xlu0 %1272
      %1276 = vset.pattern.permute.xlu0 0
      %1277 = vperm.xlu0 %1276, %v1262
      %v1278 = vpop.permute.xlu0 %1277
      %1281 = vset.pattern.permute.xlu0 0
      %1282 = vperm.xlu0 %1281, %v1263
      %v1283 = vpop.permute.xlu0 %1282
      %1286 = vset.pattern.permute.xlu0 0
      %1287 = vperm.xlu0 %1286, %v1264
      %v1288 = vpop.permute.xlu0 %1287
      %v1290 = vmul.f32 %v1255, %v1268
      %v1291 = vmul.f32 %v1256, %v1273
      %v1292 = vmul.f32 %v1257, %v1278
      %v1293 = vmul.f32 %v1258, %v1283
      %v1294 = vmul.f32 %v1259, %v1288
      %v1295 = vpack.c.bf16 %v1290, %v1290
      %v1296 = vpack.c.bf16 %v1291, %v1291
      %v1297 = vpack.c.bf16 %v1292, %v1292
      %v1298 = vpack.c.bf16 %v1293, %v1293
      %v1299 = vpack.c.bf16 %v1294, %v1294
      %1300 = vst [vmem:[%s237] sm:$0xf] %v1295
      %1301 = vst [vmem:[%s237 + $0x4] sm:$0xf] %v1296
      %1302 = vst [vmem:[%s237 + $0x8] sm:$0xf] %v1297
      %1303 = vst [vmem:[%s237 + $0xc] sm:$0xf] %v1298
      %1304 = vst [vmem:[%s237 + $0x10] sm:$0xf] %v1299
      %s1305 = sadd.s32 %s19, %s20
      %s1306 = smul.u32 5, %s1305
      %p1307 = scmp.lt.s32.totalorder %s1306, 9
      %s1308 = scalar_select %p1307, %s1306, 9
      %s1309 = smul.addr %s1308, 4
      %s1310 = scalar_lea.vmem %s4, %s1309
      // Predicated region
      $region37: #{vqvae_forward.13} parent=35 // pred_check
        %p1311 = pneg %p141
      $region38: #{vqvae_forward.13} parent=35 // pred_check_branch
        %1313 = sbr.rel (%p1311) target = $region40
      $region39: #{vqvae_forward.13} parent=35 // pred_region
        %s1314 = sadd.s32 %s19, %s20
        %s1315 = smul.u32 5, %s1314
      $region40: #{vqvae_forward.13} parent=35 // pred_fallthru
        _
    $region36: #{vqvae_forward.13} parent=5 // pred_fallthru
      _
    %p1316 = scmp.le.s32.totalorder 2, %s10
    // Predicated region
    $region41: #{vqvae_forward.13} parent=5 // pred_check
      %p1317 = pneg %p1316
    $region42: #{vqvae_forward.13} parent=5 // pred_check_branch
      %1319 = sbr.rel (%p1317) target = $region44
    $region43: #{vqvae_forward.13} parent=5 // pred_region
      %s1320 = ssub.s32 %s10, 2
      // Predicated region
      $region45: #{vqvae_forward.13} parent=43 // pred_check
        %p1321 = pneg %p147
      $region46: #{vqvae_forward.13} parent=43 // pred_check_branch
        %1323 = sbr.rel (%p1321) target = $region48
      $region47: #{vqvae_forward.13} parent=43 // pred_region
        %s1324 = sadd.s32 %s21, %s22
        %s1325 = smul.u32 5, %s1324
        %p1326 = scmp.lt.s32.totalorder %s1325, 9
        %s1327 = scalar_select %p1326, %s1325, 9
        %s1328 = smul.addr %s1327, 4
        %s1329 = scalar_lea.vmem %s4, %s1328
      $region48: #{vqvae_forward.13} parent=43 // pred_fallthru
        _
    $region44: #{vqvae_forward.13} parent=5 // pred_fallthru
      _
  $region6: #{vqvae_forward.13} parent=0 // loop_footer
    %s14 = sadd.s32 1, %s10
  $region7: #{vqvae_forward.13} parent=0 // loop_footer_branch
    %9 = sbr.rel target = $region3
  $region8: #{vqvae_forward.13} parent=0 // loop_exit
    _

// kernel: vqvae_forward.15
$region0: #{vqvae_forward.15}
  #allocation0 [shape = 'u32[]', space=smem, size = 0x4, offset = 0x4, fixed_abs, tag = 'smem constant byte address 0x4 - core index']
  #allocation1 [shape = 'u32[72,128]{1,0:T(1,128)}', space=vmem, size = 0x9000, scoped, tag = 'internal scratch']
  %s0 = inlined_call_operand.vmem [shape: bf16[112,128], index: 0, kind: input, shape index: {}]
  %s1 = inlined_call_operand.vmem [shape: bf16[1152,128], index: 1, kind: input, shape index: {}]
  %s2 = inlined_call_operand.vmem [shape: bf16[128,128], index: 2, kind: input, shape index: {}]
  %s3 = inlined_call_operand.vmem [shape: f32[40,1], index: 3, kind: input, shape index: {}]
  %s4 = inlined_call_operand.vmem [shape: bf16[80,128], index: 4, kind: output, shape index: {}]
  %s5 = sld [smem:[#allocation0]]
  $region49: #{vqvae_forward.15} parent=0
    _
  %s7 = ssub.s32 1, %s5
  %s8 = scalar_select 0, %s7, %s5
  loop: start=0, step=1, limit=4
  $region2: #{vqvae_forward.15} parent=0 // loop_pre_header
    _
  $region3: #{vqvae_forward.15} parent=0 // loop_header
    %s10 = sphi 0, %s14
    %p11 = scmp.ge.s32.totalorder %s10, 4
    %s17 = sphi 0, %s29
    %s18 = sphi 0, %s25
    %s19 = sphi 0, %s17
    %s20 = sphi 0, %s18
    %s21 = sphi 0, %s19
    %s22 = sphi 0, %s20
    %s32 = sphi 0, %s34
    %s35 = sphi 0, %s32
    %s36 = sphi 0, %s35
    %s52 = sphi 0, %s36
    %s56 = sphi 0, %s56
    %s58 = sphi 0, %s56
    %s59 = sphi 0, %s58
    %s73 = sphi 0, %s59
    %s77 = sphi 0, %s77
    %s79 = sphi 0, %s77
    %s80 = sphi 0, %s79
    %s94 = sphi 0, %s80
    %s100 = sphi 0, %s102
    %s103 = sphi 0, %s100
    %s104 = sphi 0, %s103
    %s120 = sphi 0, %s104
    %s128 = sphi 0, %s130
    %s131 = sphi 0, %s128
    %s132 = sphi 0, %s131
    %s148 = sphi 0, %s132
  $region4: #{vqvae_forward.15} parent=0 // loop_header_branch
    %13 = sbr.rel (%p11) target = $region8
  $region5: #{vqvae_forward.15} parent=0 // loop_body
    %s15 = ssub.s32 %s10, 1
    %s16 = ssub.s32 %s10, 2
    %s23 = sadd.s32 1, %s18
    %p24 = scmp.ge.s32.totalorder %s23, 1
    %s25 = scalar_select %p24, 0, %s23
    %s26 = sadd.s32 1, %s17
    %s27 = scalar_select %p24, %s26, %s17
    %p28 = scmp.ge.s32.totalorder %s27, 2
    %s29 = scalar_select %p28, 0, %s27
    %s30 = ssub.s32 %s17, %s29
    %p31 = scmp.eq.s32.totalorder %s30, 0
    %s33 = sadd.s32 %s32, 1
    %s34 = scalar_select %p31, %s32, %s33
    %p37 = pneg %p31
    %p38 = scmp.eq.s32.totalorder %s10, 1
    %p39 = por %p37, %p38
    %p40 = scmp.ne.s32.totalorder %s32, %s35
    %p41 = scmp.eq.s32.totalorder %s10, 0
    %p42 = por %p40, %p41
    %p43 = scmp.ne.s32.totalorder %s32, %s35
    %p44 = scmp.eq.s32.totalorder %s15, 1
    %p45 = por %p43, %p44
    %p46 = scmp.ne.s32.totalorder %s35, %s36
    %p47 = scmp.eq.s32.totalorder %s15, 0
    %p48 = por %p46, %p47
    %p49 = scmp.ne.s32.totalorder %s35, %s36
    %p50 = scmp.eq.s32.totalorder %s16, 1
    %p51 = por %p49, %p50
    %p53 = scmp.ne.s32.totalorder %s36, %s52
    %p54 = scmp.eq.s32.totalorder %s16, 0
    %p55 = por %p53, %p54
    %s57 = sadd.s32 %s56, 1
    %p60 = scmp.eq.s32.totalorder %s10, 1
    %p61 = scmp.ne.s32.totalorder %s56, %s58
    %p62 = scmp.eq.s32.totalorder %s10, 0
    %p63 = por %p61, %p62
    %p64 = scmp.ne.s32.totalorder %s56, %s58
    %p65 = scmp.eq.s32.totalorder %s15, 1
    %p66 = por %p64, %p65
    %p67 = scmp.ne.s32.totalorder %s58, %s59
    %p68 = scmp.eq.s32.totalorder %s15, 0
    %p69 = por %p67, %p68
    %p70 = scmp.ne.s32.totalorder %s58, %s59
    %p71 = scmp.eq.s32.totalorder %s16, 1
    %p72 = por %p70, %p71
    %p74 = scmp.ne.s32.totalorder %s59, %s73
    %p75 = scmp.eq.s32.totalorder %s16, 0
    %p76 = por %p74, %p75
    %s78 = sadd.s32 %s77, 1
    %p81 = scmp.eq.s32.totalorder %s10, 1
    %p82 = scmp.ne.s32.totalorder %s77, %s79
    %p83 = scmp.eq.s32.totalorder %s10, 0
    %p84 = por %p82, %p83
    %p85 = scmp.ne.s32.totalorder %s77, %s79
    %p86 = scmp.eq.s32.totalorder %s15, 1
    %p87 = por %p85, %p86
    %p88 = scmp.ne.s32.totalorder %s79, %s80
    %p89 = scmp.eq.s32.totalorder %s15, 0
    %p90 = por %p88, %p89
    %p91 = scmp.ne.s32.totalorder %s79, %s80
    %p92 = scmp.eq.s32.totalorder %s16, 1
    %p93 = por %p91, %p92
    %p95 = scmp.ne.s32.totalorder %s80, %s94
    %p96 = scmp.eq.s32.totalorder %s16, 0
    %p97 = por %p95, %p96
    %s98 = ssub.s32 %s18, %s25
    %p99 = scmp.eq.s32.totalorder %s98, 0
    %s101 = sadd.s32 %s100, 1
    %s102 = scalar_select %p99, %s100, %s101
    %p105 = pneg %p99
    %p106 = scmp.eq.s32.totalorder %s10, 1
    %p107 = por %p105, %p106
    %p108 = scmp.ne.s32.totalorder %s100, %s103
    %p109 = scmp.eq.s32.totalorder %s10, 0
    %p110 = por %p108, %p109
    %p111 = scmp.ne.s32.totalorder %s100, %s103
    %p112 = scmp.eq.s32.totalorder %s15, 1
    %p113 = por %p111, %p112
    %p114 = scmp.ne.s32.totalorder %s103, %s104
    %p115 = scmp.eq.s32.totalorder %s15, 0
    %p116 = por %p114, %p115
    %p117 = scmp.ne.s32.totalorder %s103, %s104
    %p118 = scmp.eq.s32.totalorder %s16, 1
    %p119 = por %p117, %p118
    %p121 = scmp.ne.s32.totalorder %s104, %s120
    %p122 = scmp.eq.s32.totalorder %s16, 0
    %p123 = por %p121, %p122
    %s124 = sadd.s32 %s17, %s18
    %s125 = sadd.s32 %s29, %s25
    %s126 = ssub.s32 %s124, %s125
    %p127 = scmp.eq.s32.totalorder %s126, 0
    %s129 = sadd.s32 %s128, 1
    %s130 = scalar_select %p127, %s128, %s129
    %p133 = pneg %p127
    %p134 = scmp.eq.s32.totalorder %s10, 1
    %p135 = por %p133, %p134
    %p136 = scmp.ne.s32.totalorder %s128, %s131
    %p137 = scmp.eq.s32.totalorder %s10, 0
    %p138 = por %p136, %p137
    %p139 = scmp.ne.s32.totalorder %s128, %s131
    %p140 = scmp.eq.s32.totalorder %s15, 1
    %p141 = por %p139, %p140
    %p142 = scmp.ne.s32.totalorder %s131, %s132
    %p143 = scmp.eq.s32.totalorder %s15, 0
    %p144 = por %p142, %p143
    %p145 = scmp.ne.s32.totalorder %s131, %s132
    %p146 = scmp.eq.s32.totalorder %s16, 1
    %p147 = por %p145, %p146
    %p149 = scmp.ne.s32.totalorder %s132, %s148
    %p150 = scmp.eq.s32.totalorder %s16, 0
    %p151 = por %p149, %p150
    %p152 = scmp.le.s32.totalorder 1, %s10
    %p153 = scmp.lt.s32.totalorder %s10, 3
    %p154 = pnand %p152, %p153
    %p155 = pneg %p154
    // Predicated region
    $region9: #{vqvae_forward.15} parent=5 // pred_check
      _
    $region10: #{vqvae_forward.15} parent=5 // pred_check_branch
      %157 = sbr.rel (%p154) target = $region12
    $region11: #{vqvae_forward.15} parent=5 // pred_region
      %s158 = ssub.s32 %s10, 1
      // Predicated region
      $region13: #{vqvae_forward.15} parent=11 // pred_check
        %p159 = pneg %p69
      $region14: #{vqvae_forward.15} parent=11 // pred_check_branch
        %161 = sbr.rel (%p159) target = $region16
      $region15: #{vqvae_forward.15} parent=11 // pred_region
        _
      $region16: #{vqvae_forward.15} parent=11 // pred_fallthru
        _
      // Predicated region
      $region17: #{vqvae_forward.15} parent=11 // pred_check
        %p162 = pneg %p90
      $region18: #{vqvae_forward.15} parent=11 // pred_check_branch
        %164 = sbr.rel (%p162) target = $region20
      $region19: #{vqvae_forward.15} parent=11 // pred_region
        _
      $region20: #{vqvae_forward.15} parent=11 // pred_fallthru
        _
      // Predicated region
      $region21: #{vqvae_forward.15} parent=11 // pred_check
        %p165 = pneg %p116
      $region22: #{vqvae_forward.15} parent=11 // pred_check_branch
        %167 = sbr.rel (%p165) target = $region24
      $region23: #{vqvae_forward.15} parent=11 // pred_region
        %s168 = smul.u32 5, %s20
        %p169 = scmp.lt.s32.totalorder %s168, 4
        %s170 = scalar_select %p169, %s168, 4
        %s171 = smul.addr %s170, 8
        %s172 = scalar_lea.vmem %s3, %s171
        %s173 = smul.u32 5, %s20
      $region24: #{vqvae_forward.15} parent=11 // pred_fallthru
        _
    $region12: #{vqvae_forward.15} parent=5 // pred_fallthru
      _
    %p174 = scmp.lt.s32.totalorder %s10, 2
    // Predicated region
    $region25: #{vqvae_forward.15} parent=5 // pred_check
      %p175 = pneg %p174
    $region26: #{vqvae_forward.15} parent=5 // pred_check_branch
      %177 = sbr.rel (%p175) target = $region28
    $region27: #{vqvae_forward.15} parent=5 // pred_region
      // Predicated region
      $region29: #{vqvae_forward.15} parent=27 // pred_check
        %p178 = pneg %p42
      $region30: #{vqvae_forward.15} parent=27 // pred_check_branch
        %180 = sbr.rel (%p178) target = $region32
      $region31: #{vqvae_forward.15} parent=27 // pred_region
        %s181 = smul.u32 7, %s17
        %p182 = scmp.lt.s32.totalorder %s181, 13
        %s183 = scalar_select %p182, %s181, 13
        %s184 = smul.addr %s183, 4
        %s185 = scalar_lea.vmem %s0, %s184
        %s186 = smul.u32 7, %s17
      $region32: #{vqvae_forward.15} parent=27 // pred_fallthru
        _
    $region28: #{vqvae_forward.15} parent=5 // pred_fallthru
      _
    %p187 = scmp.le.s32.totalorder 1, %s10
    %p188 = scmp.lt.s32.totalorder %s10, 3
    %p189 = pnand %p187, %p188
    %p190 = pneg %p189
    // Predicated region
    $region33: #{vqvae_forward.15} parent=5 // pred_check
      _
    $region34: #{vqvae_forward.15} parent=5 // pred_check_branch
      %192 = sbr.rel (%p189) target = $region36
    $region35: #{vqvae_forward.15} parent=5 // pred_region
      %s193 = ssub.s32 %s10, 1
      %s194 = smul.u32 7, %s19
      %p195 = scmp.lt.s32.totalorder %s194, 13
      %s196 = scalar_select %p195, %s194, 13
      %s197 = smul.addr %s196, 4
      %s198 = scalar_lea.vmem %s0, %s197
      %p199 = pneg %p48
      %p200 = pneg %p45
      %p201 = pneg %p69
      %p202 = pneg %p66
      %p203 = pneg %p90
      %p204 = pneg %p87
      %s205 = smul.u32 5, %s20
      %p206 = scmp.lt.s32.totalorder %s205, 4
      %s207 = scalar_select %p206, %s205, 4
      %s208 = smul.addr %s207, 8
      %s209 = scalar_lea.vmem %s3, %s208
      %p210 = pneg %p116
      %p211 = pneg %p113
      %p212 = pneg %p144
      %p213 = pneg %p141
      %s214 = sadd.s32 %s19, %s20
      %s215 = smul.u32 5, %s214
      %p216 = scmp.lt.s32.totalorder %s215, 9
      %s217 = scalar_select %p216, %s215, 9
      %s218 = smul.addr %s217, 4
      %s219 = scalar_lea.vmem %s4, %s218
      %s220 = smul.u32 7, %s19
      %p221 = scmp.lt.s32.totalorder %s220, 13
      %s222 = scalar_select %p221, %s220, 13
      %s223 = smul.addr %s222, 4
      %s224 = scalar_lea.vmem %s0, %s223
      %s225 = smul.u32 7, %s19
      %s226 = smul.u32 5, %s20
      %p227 = scmp.lt.s32.totalorder %s226, 4
      %s228 = scalar_select %p227, %s226, 4
      %s229 = smul.addr %s228, 8
      %s230 = scalar_lea.vmem %s3, %s229
      %s231 = smul.u32 5, %s20
      %s232 = sadd.s32 %s19, %s20
      %s233 = smul.u32 5, %s232
      %p234 = scmp.lt.s32.totalorder %s233, 9
      %s235 = scalar_select %p234, %s233, 9
      %s236 = smul.addr %s235, 4
      %s237 = scalar_lea.vmem %s4, %s236
      %s238 = sadd.s32 %s19, %s20
      %s239 = smul.u32 5, %s238
      %v240 = vld [vmem:[%s224] sm:$0xf]
      %v241 = vld [vmem:[%s224 + $0x4] sm:$0xf]
      %v242 = vld [vmem:[%s224 + $0x8] sm:$0xf]
      %v243 = vld [vmem:[%s224 + $0xc] sm:$0xf]
      %v244 = vld [vmem:[%s224 + $0x10] sm:$0xf]
      %v245 = vunpack.c.l.bf16 %v240
      %v246 = vunpack.c.l.bf16 %v241
      %v247 = vunpack.c.l.bf16 %v242
      %v248 = vunpack.c.l.bf16 %v243
      %v249 = vunpack.c.l.bf16 %v244
      %v250 = vmax.f32 %v245, 0.0
      %v251 = vmax.f32 %v246, 0.0
      %v252 = vmax.f32 %v247, 0.0
      %v253 = vmax.f32 %v248, 0.0
      %v254 = vmax.f32 %v249, 0.0
      %v255 = vpack.c.bf16 %v251, %v250
      %v256 = vpack.c.bf16 %v253, %v252
      %v257 = vpack.c.bf16 %v254, %v254
      %v258 = vld [vmem:[%s1] sm:$0xf]
      %v259 = vld [vmem:[%s1 + $0x4] sm:$0xf]
      %v260 = vld [vmem:[%s1 + $0x8] sm:$0xf]
      %v261 = vld [vmem:[%s1 + $0xc] sm:$0xf]
      %v262 = vld [vmem:[%s1 + $0x10] sm:$0xf]
      %v263 = vld [vmem:[%s1 + $0x14] sm:$0xf]
      %v264 = vld [vmem:[%s1 + $0x18] sm:$0xf]
      %v265 = vld [vmem:[%s1 + $0x1c] sm:$0xf]
      %v266 = vld [vmem:[%s1 + $0x20] sm:$0xf]
      %v267 = vld [vmem:[%s1 + $0x24] sm:$0xf]
      %v268 = vld [vmem:[%s1 + $0x28] sm:$0xf]
      %v269 = vld [vmem:[%s1 + $0x2c] sm:$0xf]
      %v270 = vld [vmem:[%s1 + $0x30] sm:$0xf]
      %v271 = vld [vmem:[%s1 + $0x34] sm:$0xf]
      %v272 = vld [vmem:[%s1 + $0x38] sm:$0xf]
      %v273 = vld [vmem:[%s1 + $0x3c] sm:$0xf]
      %v274 = vld [vmem:[%s224 + $0x14] sm:$0x1]
      %v275 = vunpack.c.l.bf16 %v274
      %v276 = vmax.f32 %v275, 0.0
      %v277 = vpack.c.bf16 %v276, %v254
      %v278 = vld [vmem:[%s1 + $0x40] sm:$0xf]
      %v279 = vld [vmem:[%s1 + $0x44] sm:$0xf]
      %v280 = vld [vmem:[%s1 + $0x48] sm:$0xf]
      %v281 = vld [vmem:[%s1 + $0x4c] sm:$0xf]
      %v282 = vld [vmem:[%s1 + $0x50] sm:$0xf]
      %v283 = vld [vmem:[%s1 + $0x54] sm:$0xf]
      %v284 = vld [vmem:[%s1 + $0x58] sm:$0xf]
      %v285 = vld [vmem:[%s1 + $0x5c] sm:$0xf]
      %v286 = vld [vmem:[%s1 + $0x60] sm:$0xf]
      %v287 = vld [vmem:[%s1 + $0x64] sm:$0xf]
      %v288 = vld [vmem:[%s1 + $0x68] sm:$0xf]
      %v289 = vld [vmem:[%s1 + $0x6c] sm:$0xf]
      %v290 = vld [vmem:[%s1 + $0x70] sm:$0xf]
      %v291 = vld [vmem:[%s1 + $0x74] sm:$0xf]
      %v292 = vld [vmem:[%s1 + $0x78] sm:$0xf]
      %v293 = vld [vmem:[%s1 + $0x7c] sm:$0xf]
      %vm294 = vsmask.f32 7424
      %v296 = vshrl.u32 %v255, 16
      %v298 = vshll.u32 %v255, 16
      %v300 = vrot.slane %v298, 1
      %v301 = vor.u32 %v296, %v300
      %v303 = vshll.u32 %v256, 16
      %v305 = vrot.slane %v303, 1
      %v306 = vsel %vm294, %v301, %v305
      %v307 = vshrl.u32 %v256, 16
      %v309 = vor.u32 %v307, %v305
      %v311 = vshll.u32 %v277, 16
      %v313 = vrot.slane %v311, 1
      %v314 = vsel %vm294, %v309, %v313
      %v315 = vshrl.u32 %v277, 16
      %v317 = vor.u32 %v315, %v313
      %v337 = vunpack.c.l.b16 %v278
      %v338 = vunpack.c.l.b16 %v279
      %v339 = vunpack.c.l.b16 %v280
      %v340 = vunpack.c.l.b16 %v281
      %v341 = vunpack.c.l.b16 %v282
      %v342 = vunpack.c.l.b16 %v283
      %v343 = vunpack.c.l.b16 %v284
      %v344 = vunpack.c.l.b16 %v285
      %v345 = vunpack.c.l.b16 %v286
      %v346 = vunpack.c.l.b16 %v287
      %v347 = vunpack.c.l.b16 %v288
      %v348 = vunpack.c.l.b16 %v289
      %v349 = vunpack.c.l.b16 %v290
      %v350 = vunpack.c.l.b16 %v291
      %v351 = vunpack.c.l.b16 %v292
      %v352 = vunpack.c.l.b16 %v293
      %v353 = vpack.c.b16 %v338, %v337
      %v354 = vpack.c.b16 %v340, %v339
      %v355 = vpack.c.b16 %v342, %v341
      %v356 = vpack.c.b16 %v344, %v343
      %v357 = vpack.c.b16 %v346, %v345
      %v358 = vpack.c.b16 %v348, %v347
      %v359 = vpack.c.b16 %v350, %v349
      %v360 = vpack.c.b16 %v352, %v351
      %369 = vmatpush.bf16.msra.mxu0 %v360
      %370 = vmatpush.bf16.msra.mxu0 %v359
      %371 = vmatpush.bf16.msra.mxu0 %v358
      %372 = vmatpush.bf16.msra.mxu0 %v357
      %373 = vmatpush.bf16.msra.mxu0 %v356
      %374 = vmatpush.bf16.msra.mxu0 %v355
      %375 = vmatpush.bf16.msra.mxu0 %v354
      %376 = vmatpush.bf16.msra.mxu0 %v353
      %377 = vmatmul.bf16.gmra.mxu0 %v306
      %v378 = vpop.f32.mrf.mxu0
      %v379 = vadd.f32 0.0, %v378
      %v380 = vpop.f32.mrf.mxu0
      %v381 = vadd.f32 0.0, %v380
      %382 = vmatmul.bf16.gmra.mxu0 %v314
      %v383 = vpop.f32.mrf.mxu0
      %v384 = vadd.f32 0.0, %v383
      %v385 = vpop.f32.mrf.mxu0
      %v386 = vadd.f32 0.0, %v385
      %387 = vmatmul.bf16.gmra.mxu0 %v317
      %v388 = vpop.f32.mrf.mxu0
      %v389 = vadd.f32 0.0, %v388
      %v390 = vpop.f32.mrf.mxu0
      %391 = vdwg.mxu0
      %v408 = vunpack.c.l.b16 %v258
      %v409 = vunpack.c.l.b16 %v259
      %v410 = vunpack.c.l.b16 %v260
      %v411 = vunpack.c.l.b16 %v261
      %v412 = vunpack.c.l.b16 %v262
      %v413 = vunpack.c.l.b16 %v263
      %v414 = vunpack.c.l.b16 %v264
      %v415 = vunpack.c.l.b16 %v265
      %v416 = vunpack.c.l.b16 %v266
      %v417 = vunpack.c.l.b16 %v267
      %v418 = vunpack.c.l.b16 %v268
      %v419 = vunpack.c.l.b16 %v269
      %v420 = vunpack.c.l.b16 %v270
      %v421 = vunpack.c.l.b16 %v271
      %v422 = vunpack.c.l.b16 %v272
      %v423 = vunpack.c.l.b16 %v273
      %v424 = vpack.c.b16 %v409, %v408
      %v425 = vpack.c.b16 %v411, %v410
      %v426 = vpack.c.b16 %v413, %v412
      %v427 = vpack.c.b16 %v415, %v414
      %v428 = vpack.c.b16 %v417, %v416
      %v429 = vpack.c.b16 %v419, %v418
      %v430 = vpack.c.b16 %v421, %v420
      %v431 = vpack.c.b16 %v423, %v422
      %440 = vmatpush.bf16.msra.mxu0 %v431
      %441 = vmatpush.bf16.msra.mxu0 %v430
      %442 = vmatpush.bf16.msra.mxu0 %v429
      %443 = vmatpush.bf16.msra.mxu0 %v428
      %444 = vmatpush.bf16.msra.mxu0 %v427
      %445 = vmatpush.bf16.msra.mxu0 %v426
      %446 = vmatpush.bf16.msra.mxu0 %v425
      %447 = vmatpush.bf16.msra.mxu0 %v424
      %448 = vmatmul.bf16.gmra.mxu0 %v255
      %v449 = vpop.f32.mrf.mxu0
      %v450 = vadd.f32 %v379, %v449
      %v451 = vpop.f32.mrf.mxu0
      %v452 = vadd.f32 %v381, %v451
      %453 = vmatmul.bf16.gmra.mxu0 %v256
      %v454 = vpop.f32.mrf.mxu0
      %v455 = vadd.f32 %v384, %v454
      %v456 = vpop.f32.mrf.mxu0
      %v457 = vadd.f32 %v386, %v456
      %458 = vmatmul.bf16.gmra.mxu0 %v257
      %v459 = vpop.f32.mrf.mxu0
      %v460 = vadd.f32 %v389, %v459
      %v461 = vpop.f32.mrf.mxu0
      %462 = vdwg.mxu0
      %v463 = vld [vmem:[%s224] sm:$0xe]
      %v464 = vunpack.c.l.bf16 %v463
      %v465 = vmax.f32 %v464, 0.0
      %v466 = vpack.c.bf16 %v251, %v465
      %v467 = vld [vmem:[%s1 + $0x80] sm:$0xf]
      %v468 = vld [vmem:[%s1 + $0x84] sm:$0xf]
      %v469 = vld [vmem:[%s1 + $0x88] sm:$0xf]
      %v470 = vld [vmem:[%s1 + $0x8c] sm:$0xf]
      %v471 = vld [vmem:[%s1 + $0x90] sm:$0xf]
      %v472 = vld [vmem:[%s1 + $0x94] sm:$0xf]
      %v473 = vld [vmem:[%s1 + $0x98] sm:$0xf]
      %v474 = vld [vmem:[%s1 + $0x9c] sm:$0xf]
      %v475 = vld [vmem:[%s1 + $0xa0] sm:$0xf]
      %v476 = vld [vmem:[%s1 + $0xa4] sm:$0xf]
      %v477 = vld [vmem:[%s1 + $0xa8] sm:$0xf]
      %v478 = vld [vmem:[%s1 + $0xac] sm:$0xf]
      %v479 = vld [vmem:[%s1 + $0xb0] sm:$0xf]
      %v480 = vld [vmem:[%s1 + $0xb4] sm:$0xf]
      %v481 = vld [vmem:[%s1 + $0xb8] sm:$0xf]
      %v482 = vld [vmem:[%s1 + $0xbc] sm:$0xf]
      %vm486 = vcmask 1046528
      %v487 = vrot.slane %v466, 1
      %v488 = vrot.slane %v256, 1
      %v489 = vsel %vm486, %v487, %v488
      %v490 = vrot.slane %v277, 1
      %v491 = vsel %vm486, %v488, %v490
      %v511 = vunpack.c.l.b16 %v467
      %v512 = vunpack.c.l.b16 %v468
      %v513 = vunpack.c.l.b16 %v469
      %v514 = vunpack.c.l.b16 %v470
      %v515 = vunpack.c.l.b16 %v471
      %v516 = vunpack.c.l.b16 %v472
      %v517 = vunpack.c.l.b16 %v473
      %v518 = vunpack.c.l.b16 %v474
      %v519 = vunpack.c.l.b16 %v475
      %v520 = vunpack.c.l.b16 %v476
      %v521 = vunpack.c.l.b16 %v477
      %v522 = vunpack.c.l.b16 %v478
      %v523 = vunpack.c.l.b16 %v479
      %v524 = vunpack.c.l.b16 %v480
      %v525 = vunpack.c.l.b16 %v481
      %v526 = vunpack.c.l.b16 %v482
      %v527 = vpack.c.b16 %v512, %v511
      %v528 = vpack.c.b16 %v514, %v513
      %v529 = vpack.c.b16 %v516, %v515
      %v530 = vpack.c.b16 %v518, %v517
      %v531 = vpack.c.b16 %v520, %v519
      %v532 = vpack.c.b16 %v522, %v521
      %v533 = vpack.c.b16 %v524, %v523
      %v534 = vpack.c.b16 %v526, %v525
      %543 = vmatpush.bf16.msra.mxu0 %v534
      %544 = vmatpush.bf16.msra.mxu0 %v533
      %545 = vmatpush.bf16.msra.mxu0 %v532
      %546 = vmatpush.bf16.msra.mxu0 %v531
      %547 = vmatpush.bf16.msra.mxu0 %v530
      %548 = vmatpush.bf16.msra.mxu0 %v529
      %549 = vmatpush.bf16.msra.mxu0 %v528
      %550 = vmatpush.bf16.msra.mxu0 %v527
      %551 = vmatmul.bf16.gmra.mxu0 %v489
      %v552 = vpop.f32.mrf.mxu0
      %v553 = vadd.f32 0.0, %v552
      %v554 = vpop.f32.mrf.mxu0
      %v555 = vadd.f32 0.0, %v554
      %556 = vmatmul.bf16.gmra.mxu0 %v491
      %v557 = vpop.f32.mrf.mxu0
      %v558 = vadd.f32 0.0, %v557
      %v559 = vpop.f32.mrf.mxu0
      %v560 = vadd.f32 0.0, %v559
      %561 = vmatmul.bf16.gmra.mxu0 %v490
      %v562 = vpop.f32.mrf.mxu0
      %v563 = vadd.f32 0.0, %v562
      %v564 = vpop.f32.mrf.mxu0
      %565 = vdwg.mxu0
      %v566 = vadd.f32 %v450, %v553
      %v567 = vadd.f32 %v452, %v555
      %v568 = vadd.f32 %v455, %v558
      %v569 = vadd.f32 %v457, %v560
      %v570 = vadd.f32 %v460, %v563
      %v571 = vld [vmem:[%s224] sm:$0x8]
      %v572 = vld [vmem:[%s224 + $0x14] sm:$0x7]
      %v573 = vunpack.c.l.bf16 %v571
      %v574 = vunpack.c.l.bf16 %v572
      %v575 = vmax.f32 %v573, 0.0
      %v576 = vmax.f32 %v574, 0.0
      %v577 = vpack.c.bf16 %v251, %v575
      %v578 = vpack.c.bf16 %v576, %v254
      %v579 = vld [vmem:[%s1 + $0xc0] sm:$0xf]
      %v580 = vld [vmem:[%s1 + $0xc4] sm:$0xf]
      %v581 = vld [vmem:[%s1 + $0xc8] sm:$0xf]
      %v582 = vld [vmem:[%s1 + $0xcc] sm:$0xf]
      %v583 = vld [vmem:[%s1 + $0xd0] sm:$0xf]
      %v584 = vld [vmem:[%s1 + $0xd4] sm:$0xf]
      %v585 = vld [vmem:[%s1 + $0xd8] sm:$0xf]
      %v586 = vld [vmem:[%s1 + $0xdc] sm:$0xf]
      %v587 = vld [vmem:[%s1 + $0xe0] sm:$0xf]
      %v588 = vld [vmem:[%s1 + $0xe4] sm:$0xf]
      %v589 = vld [vmem:[%s1 + $0xe8] sm:$0xf]
      %v590 = vld [vmem:[%s1 + $0xec] sm:$0xf]
      %v591 = vld [vmem:[%s1 + $0xf0] sm:$0xf]
      %v592 = vld [vmem:[%s1 + $0xf4] sm:$0xf]
      %v593 = vld [vmem:[%s1 + $0xf8] sm:$0xf]
      %v594 = vld [vmem:[%s1 + $0xfc] sm:$0xf]
      %vm597 = vcmask 1044480
      %v598 = vrot.slane %v577, 3
      %v599 = vrot.slane %v256, 3
      %v600 = vsel %vm597, %v598, %v599
      %v601 = vrot.slane %v578, 3
      %v602 = vsel %vm597, %v599, %v601
      %v622 = vunpack.c.l.b16 %v579
      %v623 = vunpack.c.l.b16 %v580
      %v624 = vunpack.c.l.b16 %v581
      %v625 = vunpack.c.l.b16 %v582
      %v626 = vunpack.c.l.b16 %v583
      %v627 = vunpack.c.l.b16 %v584
      %v628 = vunpack.c.l.b16 %v585
      %v629 = vunpack.c.l.b16 %v586
      %v630 = vunpack.c.l.b16 %v587
      %v631 = vunpack.c.l.b16 %v588
      %v632 = vunpack.c.l.b16 %v589
      %v633 = vunpack.c.l.b16 %v590
      %v634 = vunpack.c.l.b16 %v591
      %v635 = vunpack.c.l.b16 %v592
      %v636 = vunpack.c.l.b16 %v593
      %v637 = vunpack.c.l.b16 %v594
      %v638 = vpack.c.b16 %v623, %v622
      %v639 = vpack.c.b16 %v625, %v624
      %v640 = vpack.c.b16 %v627, %v626
      %v641 = vpack.c.b16 %v629, %v628
      %v642 = vpack.c.b16 %v631, %v630
      %v643 = vpack.c.b16 %v633, %v632
      %v644 = vpack.c.b16 %v635, %v634
      %v645 = vpack.c.b16 %v637, %v636
      %654 = vmatpush.bf16.msra.mxu0 %v645
      %655 = vmatpush.bf16.msra.mxu0 %v644
      %656 = vmatpush.bf16.msra.mxu0 %v643
      %657 = vmatpush.bf16.msra.mxu0 %v642
      %658 = vmatpush.bf16.msra.mxu0 %v641
      %659 = vmatpush.bf16.msra.mxu0 %v640
      %660 = vmatpush.bf16.msra.mxu0 %v639
      %661 = vmatpush.bf16.msra.mxu0 %v638
      %662 = vmatmul.bf16.gmra.mxu0 %v600
      %v663 = vpop.f32.mrf.mxu0
      %v664 = vadd.f32 0.0, %v663
      %v665 = vpop.f32.mrf.mxu0
      %v666 = vadd.f32 0.0, %v665
      %667 = vmatmul.bf16.gmra.mxu0 %v602
      %v668 = vpop.f32.mrf.mxu0
      %v669 = vadd.f32 0.0, %v668
      %v670 = vpop.f32.mrf.mxu0
      %v671 = vadd.f32 0.0, %v670
      %672 = vmatmul.bf16.gmra.mxu0 %v601
      %v673 = vpop.f32.mrf.mxu0
      %v674 = vadd.f32 0.0, %v673
      %v675 = vpop.f32.mrf.mxu0
      %676 = vdwg.mxu0
      %v677 = vadd.f32 %v566, %v664
      %v678 = vadd.f32 %v567, %v666
      %v679 = vadd.f32 %v568, %v669
      %v680 = vadd.f32 %v569, %v671
      %v681 = vadd.f32 %v570, %v674
      %v682 = vld [vmem:[%s224 + $0x14] sm:$0xf]
      %v683 = vunpack.c.l.bf16 %v682
      %v684 = vmax.f32 %v683, 0.0
      %v685 = vpack.c.bf16 %v684, %v254
      %v686 = vld [vmem:[%s1 + $0x100] sm:$0xf]
      %v687 = vld [vmem:[%s1 + $0x104] sm:$0xf]
      %v688 = vld [vmem:[%s1 + $0x108] sm:$0xf]
      %v689 = vld [vmem:[%s1 + $0x10c] sm:$0xf]
      %v690 = vld [vmem:[%s1 + $0x110] sm:$0xf]
      %v691 = vld [vmem:[%s1 + $0x114] sm:$0xf]
      %v692 = vld [vmem:[%s1 + $0x118] sm:$0xf]
      %v693 = vld [vmem:[%s1 + $0x11c] sm:$0xf]
      %v694 = vld [vmem:[%s1 + $0x120] sm:$0xf]
      %v695 = vld [vmem:[%s1 + $0x124] sm:$0xf]
      %v696 = vld [vmem:[%s1 + $0x128] sm:$0xf]
      %v697 = vld [vmem:[%s1 + $0x12c] sm:$0xf]
      %v698 = vld [vmem:[%s1 + $0x130] sm:$0xf]
      %v699 = vld [vmem:[%s1 + $0x134] sm:$0xf]
      %v700 = vld [vmem:[%s1 + $0x138] sm:$0xf]
      %v701 = vld [vmem:[%s1 + $0x13c] sm:$0xf]
      %vm702 = vsmask.f32 4352
      %v704 = vshrl.u32 %v577, 16
      %v706 = vrot.slane %v704, 3
      %v707 = vshll.u32 %v577, 16
      %v709 = vrot.slane %v707, 4
      %v710 = vor.u32 %v706, %v709
      %v711 = vrot.slane %v307, 3
      %v712 = vrot.slane %v303, 4
      %v713 = vor.u32 %v711, %v712
      %v714 = vsel %vm702, %v710, %v713
      %v716 = vshrl.u32 %v685, 16
      %v718 = vrot.slane %v716, 3
      %v719 = vshll.u32 %v685, 16
      %v721 = vrot.slane %v719, 4
      %v722 = vor.u32 %v718, %v721
      %v723 = vsel %vm702, %v713, %v722
      %v743 = vunpack.c.l.b16 %v686
      %v744 = vunpack.c.l.b16 %v687
      %v745 = vunpack.c.l.b16 %v688
      %v746 = vunpack.c.l.b16 %v689
      %v747 = vunpack.c.l.b16 %v690
      %v748 = vunpack.c.l.b16 %v691
      %v749 = vunpack.c.l.b16 %v692
      %v750 = vunpack.c.l.b16 %v693
      %v751 = vunpack.c.l.b16 %v694
      %v752 = vunpack.c.l.b16 %v695
      %v753 = vunpack.c.l.b16 %v696
      %v754 = vunpack.c.l.b16 %v697
      %v755 = vunpack.c.l.b16 %v698
      %v756 = vunpack.c.l.b16 %v699
      %v757 = vunpack.c.l.b16 %v700
      %v758 = vunpack.c.l.b16 %v701
      %v759 = vpack.c.b16 %v744, %v743
      %v760 = vpack.c.b16 %v746, %v745
      %v761 = vpack.c.b16 %v748, %v747
      %v762 = vpack.c.b16 %v750, %v749
      %v763 = vpack.c.b16 %v752, %v751
      %v764 = vpack.c.b16 %v754, %v753
      %v765 = vpack.c.b16 %v756, %v755
      %v766 = vpack.c.b16 %v758, %v757
      %775 = vmatpush.bf16.msra.mxu0 %v766
      %776 = vmatpush.bf16.msra.mxu0 %v765
      %777 = vmatpush.bf16.msra.mxu0 %v764
      %778 = vmatpush.bf16.msra.mxu0 %v763
      %779 = vmatpush.bf16.msra.mxu0 %v762
      %780 = vmatpush.bf16.msra.mxu0 %v761
      %781 = vmatpush.bf16.msra.mxu0 %v760
      %782 = vmatpush.bf16.msra.mxu0 %v759
      %783 = vmatmul.bf16.gmra.mxu0 %v714
      %v784 = vpop.f32.mrf.mxu0
      %v785 = vadd.f32 0.0, %v784
      %v786 = vpop.f32.mrf.mxu0
      %v787 = vadd.f32 0.0, %v786
      %788 = vmatmul.bf16.gmra.mxu0 %v723
      %v789 = vpop.f32.mrf.mxu0
      %v790 = vadd.f32 0.0, %v789
      %v791 = vpop.f32.mrf.mxu0
      %v792 = vadd.f32 0.0, %v791
      %793 = vmatmul.bf16.gmra.mxu0 %v722
      %v794 = vpop.f32.mrf.mxu0
      %v795 = vadd.f32 0.0, %v794
      %v796 = vpop.f32.mrf.mxu0
      %797 = vdwg.mxu0
      %v798 = vadd.f32 %v677, %v785
      %v799 = vadd.f32 %v678, %v787
      %v800 = vadd.f32 %v679, %v790
      %v801 = vadd.f32 %v680, %v792
      %v802 = vadd.f32 %v681, %v795
      %v803 = vpack.c.bf16 %v252, %v251
      %v804 = vpack.c.bf16 %v254, %v253
      %v805 = vpack.c.bf16 %v684, %v684
      %v806 = vld [vmem:[%s1 + $0x140] sm:$0xf]
      %v807 = vld [vmem:[%s1 + $0x144] sm:$0xf]
      %v808 = vld [vmem:[%s1 + $0x148] sm:$0xf]
      %v809 = vld [vmem:[%s1 + $0x14c] sm:$0xf]
      %v810 = vld [vmem:[%s1 + $0x150] sm:$0xf]
      %v811 = vld [vmem:[%s1 + $0x154] sm:$0xf]
      %v812 = vld [vmem:[%s1 + $0x158] sm:$0xf]
      %v813 = vld [vmem:[%s1 + $0x15c] sm:$0xf]
      %v814 = vld [vmem:[%s1 + $0x160] sm:$0xf]
      %v815 = vld [vmem:[%s1 + $0x164] sm:$0xf]
      %v816 = vld [vmem:[%s1 + $0x168] sm:$0xf]
      %v817 = vld [vmem:[%s1 + $0x16c] sm:$0xf]
      %v818 = vld [vmem:[%s1 + $0x170] sm:$0xf]
      %v819 = vld [vmem:[%s1 + $0x174] sm:$0xf]
      %v820 = vld [vmem:[%s1 + $0x178] sm:$0xf]
      %v821 = vld [vmem:[%s1 + $0x17c] sm:$0xf]
      %v838 = vunpack.c.l.b16 %v806
      %v839 = vunpack.c.l.b16 %v807
      %v840 = vunpack.c.l.b16 %v808
      %v841 = vunpack.c.l.b16 %v809
      %v842 = vunpack.c.l.b16 %v810
      %v843 = vunpack.c.l.b16 %v811
      %v844 = vunpack.c.l.b16 %v812
      %v845 = vunpack.c.l.b16 %v813
      %v846 = vunpack.c.l.b16 %v814
      %v847 = vunpack.c.l.b16 %v815
      %v848 = vunpack.c.l.b16 %v816
      %v849 = vunpack.c.l.b16 %v817
      %v850 = vunpack.c.l.b16 %v818
      %v851 = vunpack.c.l.b16 %v819
      %v852 = vunpack.c.l.b16 %v820
      %v853 = vunpack.c.l.b16 %v821
      %v854 = vpack.c.b16 %v839, %v838
      %v855 = vpack.c.b16 %v841, %v840
      %v856 = vpack.c.b16 %v843, %v842
      %v857 = vpack.c.b16 %v845, %v844
      %v858 = vpack.c.b16 %v847, %v846
      %v859 = vpack.c.b16 %v849, %v848
      %v860 = vpack.c.b16 %v851, %v850
      %v861 = vpack.c.b16 %v853, %v852
      %870 = vmatpush.bf16.msra.mxu0 %v861
      %871 = vmatpush.bf16.msra.mxu0 %v860
      %872 = vmatpush.bf16.msra.mxu0 %v859
      %873 = vmatpush.bf16.msra.mxu0 %v858
      %874 = vmatpush.bf16.msra.mxu0 %v857
      %875 = vmatpush.bf16.msra.mxu0 %v856
      %876 = vmatpush.bf16.msra.mxu0 %v855
      %877 = vmatpush.bf16.msra.mxu0 %v854
      %878 = vmatmul.bf16.gmra.mxu0 %v803
      %v879 = vpop.f32.mrf.mxu0
      %v880 = vadd.f32 0.0, %v879
      %v881 = vpop.f32.mrf.mxu0
      %v882 = vadd.f32 0.0, %v881
      %883 = vmatmul.bf16.gmra.mxu0 %v804
      %v884 = vpop.f32.mrf.mxu0
      %v885 = vadd.f32 0.0, %v884
      %v886 = vpop.f32.mrf.mxu0
      %v887 = vadd.f32 0.0, %v886
      %888 = vmatmul.bf16.gmra.mxu0 %v805
      %v889 = vpop.f32.mrf.mxu0
      %v890 = vadd.f32 0.0, %v889
      %v891 = vpop.f32.mrf.mxu0
      %892 = vdwg.mxu0
      %v893 = vadd.f32 %v798, %v880
      %v894 = vadd.f32 %v799, %v882
      %v895 = vadd.f32 %v800, %v885
      %v896 = vadd.f32 %v801, %v887
      %v897 = vadd.f32 %v802, %v890
      %v898 = vld [vmem:[%s224 + $0x4] sm:$0xc]
      %v899 = vld [vmem:[%s224 + $0x8] sm:$0xf]
      %v900 = vld [vmem:[%s224 + $0xc] sm:$0xf]
      %v901 = vld [vmem:[%s224 + $0x10] sm:$0xf]
      %v902 = vld [vmem:[%s224 + $0x14] sm:$0xf]
      %v903 = vld [vmem:[%s224 + $0x18] sm:$0x3]
      %v904 = vunpack.c.l.bf16 %v898
      %v905 = vunpack.c.l.bf16 %v899
      %v906 = vunpack.c.l.bf16 %v900
      %v907 = vunpack.c.l.bf16 %v901
      %v908 = vunpack.c.l.bf16 %v902
      %v909 = vunpack.c.l.bf16 %v903
      %v910 = vmax.f32 %v904, 0.0
      %v911 = vmax.f32 %v905, 0.0
      %v912 = vmax.f32 %v906, 0.0
      %v913 = vmax.f32 %v907, 0.0
      %v914 = vmax.f32 %v908, 0.0
      %v915 = vmax.f32 %v909, 0.0
      %v916 = vpack.c.bf16 %v911, %v910
      %v917 = vpack.c.bf16 %v913, %v912
      %v918 = vpack.c.bf16 %v915, %v914
      %v919 = vld [vmem:[%s1 + $0x180] sm:$0xf]
      %v920 = vld [vmem:[%s1 + $0x184] sm:$0xf]
      %v921 = vld [vmem:[%s1 + $0x188] sm:$0xf]
      %v922 = vld [vmem:[%s1 + $0x18c] sm:$0xf]
      %v923 = vld [vmem:[%s1 + $0x190] sm:$0xf]
      %v924 = vld [vmem:[%s1 + $0x194] sm:$0xf]
      %v925 = vld [vmem:[%s1 + $0x198] sm:$0xf]
      %v926 = vld [vmem:[%s1 + $0x19c] sm:$0xf]
      %v927 = vld [vmem:[%s1 + $0x1a0] sm:$0xf]
      %v928 = vld [vmem:[%s1 + $0x1a4] sm:$0xf]
      %v929 = vld [vmem:[%s1 + $0x1a8] sm:$0xf]
      %v930 = vld [vmem:[%s1 + $0x1ac] sm:$0xf]
      %v931 = vld [vmem:[%s1 + $0x1b0] sm:$0xf]
      %v932 = vld [vmem:[%s1 + $0x1b4] sm:$0xf]
      %v933 = vld [vmem:[%s1 + $0x1b8] sm:$0xf]
      %v934 = vld [vmem:[%s1 + $0x1bc] sm:$0xf]
      %vm938 = vcmask 1045504
      %v939 = vrot.slane %v916, 2
      %v940 = vrot.slane %v917, 2
      %v941 = vsel %vm938, %v939, %v940
      %v942 = vrot.slane %v918, 2
      %v943 = vsel %vm938, %v940, %v942
      %v963 = vunpack.c.l.b16 %v919
      %v964 = vunpack.c.l.b16 %v920
      %v965 = vunpack.c.l.b16 %v921
      %v966 = vunpack.c.l.b16 %v922
      %v967 = vunpack.c.l.b16 %v923
      %v968 = vunpack.c.l.b16 %v924
      %v969 = vunpack.c.l.b16 %v925
      %v970 = vunpack.c.l.b16 %v926
      %v971 = vunpack.c.l.b16 %v927
      %v972 = vunpack.c.l.b16 %v928
      %v973 = vunpack.c.l.b16 %v929
      %v974 = vunpack.c.l.b16 %v930
      %v975 = vunpack.c.l.b16 %v931
      %v976 = vunpack.c.l.b16 %v932
      %v977 = vunpack.c.l.b16 %v933
      %v978 = vunpack.c.l.b16 %v934
      %v979 = vpack.c.b16 %v964, %v963
      %v980 = vpack.c.b16 %v966, %v965
      %v981 = vpack.c.b16 %v968, %v967
      %v982 = vpack.c.b16 %v970, %v969
      %v983 = vpack.c.b16 %v972, %v971
      %v984 = vpack.c.b16 %v974, %v973
      %v985 = vpack.c.b16 %v976, %v975
      %v986 = vpack.c.b16 %v978, %v977
      %995 = vmatpush.bf16.msra.mxu0 %v986
      %996 = vmatpush.bf16.msra.mxu0 %v985
      %997 = vmatpush.bf16.msra.mxu0 %v984
      %998 = vmatpush.bf16.msra.mxu0 %v983
      %999 = vmatpush.bf16.msra.mxu0 %v982
      %1000 = vmatpush.bf16.msra.mxu0 %v981
      %1001 = vmatpush.bf16.msra.mxu0 %v980
      %1002 = vmatpush.bf16.msra.mxu0 %v979
      %1003 = vmatmul.bf16.gmra.mxu0 %v941
      %v1004 = vpop.f32.mrf.mxu0
      %v1005 = vadd.f32 0.0, %v1004
      %v1006 = vpop.f32.mrf.mxu0
      %v1007 = vadd.f32 0.0, %v1006
      %1008 = vmatmul.bf16.gmra.mxu0 %v943
      %v1009 = vpop.f32.mrf.mxu0
      %v1010 = vadd.f32 0.0, %v1009
      %v1011 = vpop.f32.mrf.mxu0
      %v1012 = vadd.f32 0.0, %v1011
      %1013 = vmatmul.bf16.gmra.mxu0 %v942
      %v1014 = vpop.f32.mrf.mxu0
      %v1015 = vadd.f32 0.0, %v1014
      %v1016 = vpop.f32.mrf.mxu0
      %1017 = vdwg.mxu0
      %v1018 = vadd.f32 %v893, %v1005
      %v1019 = vadd.f32 %v894, %v1007
      %v1020 = vadd.f32 %v895, %v1010
      %v1021 = vadd.f32 %v896, %v1012
      %v1022 = vadd.f32 %v897, %v1015
      %v1023 = vld [vmem:[%s224 + $0x18] sm:$0x7]
      %v1024 = vunpack.c.l.bf16 %v1023
      %v1025 = vmax.f32 %v1024, 0.0
      %v1026 = vpack.c.bf16 %v1025, %v914
      %v1027 = vld [vmem:[%s1 + $0x1c0] sm:$0xf]
      %v1028 = vld [vmem:[%s1 + $0x1c4] sm:$0xf]
      %v1029 = vld [vmem:[%s1 + $0x1c8] sm:$0xf]
      %v1030 = vld [vmem:[%s1 + $0x1cc] sm:$0xf]
      %v1031 = vld [vmem:[%s1 + $0x1d0] sm:$0xf]
      %v1032 = vld [vmem:[%s1 + $0x1d4] sm:$0xf]
      %v1033 = vld [vmem:[%s1 + $0x1d8] sm:$0xf]
      %v1034 = vld [vmem:[%s1 + $0x1dc] sm:$0xf]
      %v1035 = vld [vmem:[%s1 + $0x1e0] sm:$0xf]
      %v1036 = vld [vmem:[%s1 + $0x1e4] sm:$0xf]
      %v1037 = vld [vmem:[%s1 + $0x1e8] sm:$0xf]
      %v1038 = vld [vmem:[%s1 + $0x1ec] sm:$0xf]
      %v1039 = vld [vmem:[%s1 + $0x1f0] sm:$0xf]
      %v1040 = vld [vmem:[%s1 + $0x1f4] sm:$0xf]
      %v1041 = vld [vmem:[%s1 + $0x1f8] sm:$0xf]
      %v1042 = vld [vmem:[%s1 + $0x1fc] sm:$0xf]
      %vm1043 = vsmask.f32 5376
      %v1045 = vshrl.u32 %v916, 16
      %v1047 = vrot.slane %v1045, 2
      %v1048 = vshll.u32 %v916, 16
      %v1050 = vrot.slane %v1048, 3
      %v1051 = vor.u32 %v1047, %v1050
      %v1053 = vshrl.u32 %v917, 16
      %v1055 = vrot.slane %v1053, 2
      %v1056 = vshll.u32 %v917, 16
      %v1058 = vrot.slane %v1056, 3
      %v1059 = vor.u32 %v1055, %v1058
      %v1060 = vsel %vm1043, %v1051, %v1059
      %v1062 = vshrl.u32 %v1026, 16
      %v1064 = vrot.slane %v1062, 2
      %v1065 = vshll.u32 %v1026, 16
      %v1067 = vrot.slane %v1065, 3
      %v1068 = vor.u32 %v1064, %v1067
      %v1069 = vsel %vm1043, %v1059, %v1068
      %v1089 = vunpack.c.l.b16 %v1027
      %v1090 = vunpack.c.l.b16 %v1028
      %v1091 = vunpack.c.l.b16 %v1029
      %v1092 = vunpack.c.l.b16 %v1030
      %v1093 = vunpack.c.l.b16 %v1031
      %v1094 = vunpack.c.l.b16 %v1032
      %v1095 = vunpack.c.l.b16 %v1033
      %v1096 = vunpack.c.l.b16 %v1034
      %v1097 = vunpack.c.l.b16 %v1035
      %v1098 = vunpack.c.l.b16 %v1036
      %v1099 = vunpack.c.l.b16 %v1037
      %v1100 = vunpack.c.l.b16 %v1038
      %v1101 = vunpack.c.l.b16 %v1039
      %v1102 = vunpack.c.l.b16 %v1040
      %v1103 = vunpack.c.l.b16 %v1041
      %v1104 = vunpack.c.l.b16 %v1042
      %v1105 = vpack.c.b16 %v1090, %v1089
      %v1106 = vpack.c.b16 %v1092, %v1091
      %v1107 = vpack.c.b16 %v1094, %v1093
      %v1108 = vpack.c.b16 %v1096, %v1095
      %v1109 = vpack.c.b16 %v1098, %v1097
      %v1110 = vpack.c.b16 %v1100, %v1099
      %v1111 = vpack.c.b16 %v1102, %v1101
      %v1112 = vpack.c.b16 %v1104, %v1103
      %1121 = vmatpush.bf16.msra.mxu0 %v1112
      %1122 = vmatpush.bf16.msra.mxu0 %v1111
      %1123 = vmatpush.bf16.msra.mxu0 %v1110
      %1124 = vmatpush.bf16.msra.mxu0 %v1109
      %1125 = vmatpush.bf16.msra.mxu0 %v1108
      %1126 = vmatpush.bf16.msra.mxu0 %v1107
      %1127 = vmatpush.bf16.msra.mxu0 %v1106
      %1128 = vmatpush.bf16.msra.mxu0 %v1105
      %1129 = vmatmul.bf16.gmra.mxu0 %v1060
      %v1130 = vpop.f32.mrf.mxu0
      %v1131 = vadd.f32 0.0, %v1130
      %v1132 = vpop.f32.mrf.mxu0
      %v1133 = vadd.f32 0.0, %v1132
      %1134 = vmatmul.bf16.gmra.mxu0 %v1069
      %v1135 = vpop.f32.mrf.mxu0
      %v1136 = vadd.f32 0.0, %v1135
      %v1137 = vpop.f32.mrf.mxu0
      %v1138 = vadd.f32 0.0, %v1137
      %1139 = vmatmul.bf16.gmra.mxu0 %v1068
      %v1140 = vpop.f32.mrf.mxu0
      %v1141 = vadd.f32 0.0, %v1140
      %v1142 = vpop.f32.mrf.mxu0
      %1143 = vdwg.mxu0
      %v1144 = vadd.f32 %v1018, %v1131
      %v1145 = vadd.f32 %v1019, %v1133
      %v1146 = vadd.f32 %v1020, %v1136
      %v1147 = vadd.f32 %v1021, %v1138
      %v1148 = vadd.f32 %v1022, %v1141
      %v1149 = vld [vmem:[%s224 + $0x4] sm:$0x8]
      %v1150 = vunpack.c.l.bf16 %v1149
      %v1151 = vmax.f32 %v1150, 0.0
      %v1152 = vpack.c.bf16 %v911, %v1151
      %v1153 = vld [vmem:[%s1 + $0x200] sm:$0xf]
      %v1154 = vld [vmem:[%s1 + $0x204] sm:$0xf]
      %v1155 = vld [vmem:[%s1 + $0x208] sm:$0xf]
      %v1156 = vld [vmem:[%s1 + $0x20c] sm:$0xf]
      %v1157 = vld [vmem:[%s1 + $0x210] sm:$0xf]
      %v1158 = vld [vmem:[%s1 + $0x214] sm:$0xf]
      %v1159 = vld [vmem:[%s1 + $0x218] sm:$0xf]
      %v1160 = vld [vmem:[%s1 + $0x21c] sm:$0xf]
      %v1161 = vld [vmem:[%s1 + $0x220] sm:$0xf]
      %v1162 = vld [vmem:[%s1 + $0x224] sm:$0xf]
      %v1163 = vld [vmem:[%s1 + $0x228] sm:$0xf]
      %v1164 = vld [vmem:[%s1 + $0x22c] sm:$0xf]
      %v1165 = vld [vmem:[%s1 + $0x230] sm:$0xf]
      %v1166 = vld [vmem:[%s1 + $0x234] sm:$0xf]
      %v1167 = vld [vmem:[%s1 + $0x238] sm:$0xf]
      %v1168 = vld [vmem:[%s1 + $0x23c] sm:$0xf]
      %v1171 = vrot.slane %v1152, 3
      %v1172 = vrot.slane %v917, 3
      %v1173 = vsel %vm597, %v1171, %v1172
      %v1174 = vrot.slane %v1026, 3
      %v1175 = vsel %vm597, %v1172, %v1174
      %v1195 = vunpack.c.l.b16 %v1153
      %v1196 = vunpack.c.l.b16 %v1154
      %v1197 = vunpack.c.l.b16 %v1155
      %v1198 = vunpack.c.l.b16 %v1156
      %v1199 = vunpack.c.l.b16 %v1157
      %v1200 = vunpack.c.l.b16 %v1158
      %v1201 = vunpack.c.l.b16 %v1159
      %v1202 = vunpack.c.l.b16 %v1160
      %v1203 = vunpack.c.l.b16 %v1161
      %v1204 = vunpack.c.l.b16 %v1162
      %v1205 = vunpack.c.l.b16 %v1163
      %v1206 = vunpack.c.l.b16 %v1164
      %v1207 = vunpack.c.l.b16 %v1165
      %v1208 = vunpack.c.l.b16 %v1166
      %v1209 = vunpack.c.l.b16 %v1167
      %v1210 = vunpack.c.l.b16 %v1168
      %v1211 = vpack.c.b16 %v1196, %v1195
      %v1212 = vpack.c.b16 %v1198, %v1197
      %v1213 = vpack.c.b16 %v1200, %v1199
      %v1214 = vpack.c.b16 %v1202, %v1201
      %v1215 = vpack.c.b16 %v1204, %v1203
      %v1216 = vpack.c.b16 %v1206, %v1205
      %v1217 = vpack.c.b16 %v1208, %v1207
      %v1218 = vpack.c.b16 %v1210, %v1209
      %1227 = vmatpush.bf16.msra.mxu0 %v1218
      %1228 = vmatpush.bf16.msra.mxu0 %v1217
      %1229 = vmatpush.bf16.msra.mxu0 %v1216
      %1230 = vmatpush.bf16.msra.mxu0 %v1215
      %1231 = vmatpush.bf16.msra.mxu0 %v1214
      %1232 = vmatpush.bf16.msra.mxu0 %v1213
      %1233 = vmatpush.bf16.msra.mxu0 %v1212
      %1234 = vmatpush.bf16.msra.mxu0 %v1211
      %1235 = vmatmul.bf16.gmra.mxu0 %v1173
      %v1236 = vpop.f32.mrf.mxu0
      %v1237 = vadd.f32 0.0, %v1236
      %v1238 = vpop.f32.mrf.mxu0
      %v1239 = vadd.f32 0.0, %v1238
      %1240 = vmatmul.bf16.gmra.mxu0 %v1175
      %v1241 = vpop.f32.mrf.mxu0
      %v1242 = vadd.f32 0.0, %v1241
      %v1243 = vpop.f32.mrf.mxu0
      %v1244 = vadd.f32 0.0, %v1243
      %1245 = vmatmul.bf16.gmra.mxu0 %v1174
      %v1246 = vpop.f32.mrf.mxu0
      %v1247 = vadd.f32 0.0, %v1246
      %v1248 = vpop.f32.mrf.mxu0
      %1249 = vdwg.mxu0
      %v1250 = vadd.f32 %v1144, %v1237
      %v1251 = vadd.f32 %v1145, %v1239
      %v1252 = vadd.f32 %v1146, %v1242
      %v1253 = vadd.f32 %v1147, %v1244
      %v1254 = vadd.f32 %v1148, %v1247
      %v1255 = vmax.f32 %v1250, 0.0
      %v1256 = vmax.f32 %v1251, 0.0
      %v1257 = vmax.f32 %v1252, 0.0
      %v1258 = vmax.f32 %v1253, 0.0
      %v1259 = vmax.f32 %v1254, 0.0
      %v1260 = vpack.c.bf16 %v1256, %v1255
      %v1261 = vpack.c.bf16 %v1258, %v1257
      %v1262 = vpack.c.bf16 %v1259, %v1259
      %v1263 = vld [vmem:[%s2] sm:$0xf]
      %v1264 = vld [vmem:[%s2 + $0x4] sm:$0xf]
      %v1265 = vld [vmem:[%s2 + $0x8] sm:$0xf]
      %v1266 = vld [vmem:[%s2 + $0xc] sm:$0xf]
      %v1267 = vld [vmem:[%s2 + $0x10] sm:$0xf]
      %v1268 = vld [vmem:[%s2 + $0x14] sm:$0xf]
      %v1269 = vld [vmem:[%s2 + $0x18] sm:$0xf]
      %v1270 = vld [vmem:[%s2 + $0x1c] sm:$0xf]
      %v1271 = vld [vmem:[%s2 + $0x20] sm:$0xf]
      %v1272 = vld [vmem:[%s2 + $0x24] sm:$0xf]
      %v1273 = vld [vmem:[%s2 + $0x28] sm:$0xf]
      %v1274 = vld [vmem:[%s2 + $0x2c] sm:$0xf]
      %v1275 = vld [vmem:[%s2 + $0x30] sm:$0xf]
      %v1276 = vld [vmem:[%s2 + $0x34] sm:$0xf]
      %v1277 = vld [vmem:[%s2 + $0x38] sm:$0xf]
      %v1278 = vld [vmem:[%s2 + $0x3c] sm:$0xf]
      %v1295 = vunpack.c.l.b16 %v1263
      %v1296 = vunpack.c.l.b16 %v1264
      %v1297 = vunpack.c.l.b16 %v1265
      %v1298 = vunpack.c.l.b16 %v1266
      %v1299 = vunpack.c.l.b16 %v1267
      %v1300 = vunpack.c.l.b16 %v1268
      %v1301 = vunpack.c.l.b16 %v1269
      %v1302 = vunpack.c.l.b16 %v1270
      %v1303 = vunpack.c.l.b16 %v1271
      %v1304 = vunpack.c.l.b16 %v1272
      %v1305 = vunpack.c.l.b16 %v1273
      %v1306 = vunpack.c.l.b16 %v1274
      %v1307 = vunpack.c.l.b16 %v1275
      %v1308 = vunpack.c.l.b16 %v1276
      %v1309 = vunpack.c.l.b16 %v1277
      %v1310 = vunpack.c.l.b16 %v1278
      %v1311 = vpack.c.b16 %v1296, %v1295
      %v1312 = vpack.c.b16 %v1298, %v1297
      %v1313 = vpack.c.b16 %v1300, %v1299
      %v1314 = vpack.c.b16 %v1302, %v1301
      %v1315 = vpack.c.b16 %v1304, %v1303
      %v1316 = vpack.c.b16 %v1306, %v1305
      %v1317 = vpack.c.b16 %v1308, %v1307
      %v1318 = vpack.c.b16 %v1310, %v1309
      %vm1333 = vcmask 1040384
      %v1334 = vrot.slane %v573, 7
      %v1335 = vrot.slane %v246, 7
      %v1336 = vsel %vm1333, %v1334, %v1335
      %v1337 = vrot.slane %v247, 7
      %v1338 = vsel %vm1333, %v1335, %v1337
      %v1339 = vrot.slane %v248, 7
      %v1340 = vsel %vm1333, %v1337, %v1339
      %v1341 = vrot.slane %v249, 7
      %v1342 = vsel %vm1333, %v1339, %v1341
      %v1343 = vrot.slane %v683, 7
      %v1344 = vsel %vm1333, %v1341, %v1343
      %1350 = vmatpush.bf16.msra.mxu0 %v1318
      %1351 = vmatpush.bf16.msra.mxu0 %v1317
      %1352 = vmatpush.bf16.msra.mxu0 %v1316
      %1353 = vmatpush.bf16.msra.mxu0 %v1315
      %1354 = vmatpush.bf16.msra.mxu0 %v1314
      %1355 = vmatpush.bf16.msra.mxu0 %v1313
      %1356 = vmatpush.bf16.msra.mxu0 %v1312
      %1357 = vmatpush.bf16.msra.mxu0 %v1311
      %1358 = vmatmul.bf16.gmra.mxu0 %v1260
      %v1359 = vpop.f32.mrf.mxu0
      %v1360 = vadd.f32 %v1336, %v1359
      %v1361 = vpop.f32.mrf.mxu0
      %v1362 = vadd.f32 %v1338, %v1361
      %1363 = vmatmul.bf16.gmra.mxu0 %v1261
      %v1364 = vpop.f32.mrf.mxu0
      %v1365 = vadd.f32 %v1340, %v1364
      %v1366 = vpop.f32.mrf.mxu0
      %v1367 = vadd.f32 %v1342, %v1366
      %1368 = vmatmul.bf16.gmra.mxu0 %v1262
      %v1369 = vpop.f32.mrf.mxu0
      %v1370 = vadd.f32 %v1344, %v1369
      %v1371 = vpop.f32.mrf.mxu0
      %1372 = vdwg.mxu0
      %v1373 = vmax.f32 %v1360, 0.0
      %v1374 = vmax.f32 %v1362, 0.0
      %v1375 = vmax.f32 %v1365, 0.0
      %v1376 = vmax.f32 %v1367, 0.0
      %v1377 = vmax.f32 %v1370, 0.0
      %v1378 = vld [vmem:[%s230] sm:$0xff]
      %v1379 = vld [vmem:[%s230 + $0x8] sm:$0xff]
      %v1380 = vld [vmem:[%s230 + $0x10] sm:$0xff]
      %v1381 = vld [vmem:[%s230 + $0x18] sm:$0xff]
      %v1382 = vld [vmem:[%s230 + $0x20] sm:$0xff]
      %1384 = vset.pattern.permute.xlu0 0
      %1385 = vperm.xlu0 %1384, %v1378
      %v1386 = vpop.permute.xlu0 %1385
      %1389 = vset.pattern.permute.xlu0 0
      %1390 = vperm.xlu0 %1389, %v1379
      %v1391 = vpop.permute.xlu0 %1390
      %1394 = vset.pattern.permute.xlu0 0
      %1395 = vperm.xlu0 %1394, %v1380
      %v1396 = vpop.permute.xlu0 %1395
      %1399 = vset.pattern.permute.xlu0 0
      %1400 = vperm.xlu0 %1399, %v1381
      %v1401 = vpop.permute.xlu0 %1400
      %1404 = vset.pattern.permute.xlu0 0
      %1405 = vperm.xlu0 %1404, %v1382
      %v1406 = vpop.permute.xlu0 %1405
      %v1408 = vmul.f32 %v1373, %v1386
      %v1409 = vmul.f32 %v1374, %v1391
      %v1410 = vmul.f32 %v1375, %v1396
      %v1411 = vmul.f32 %v1376, %v1401
      %v1412 = vmul.f32 %v1377, %v1406
      %v1413 = vpack.c.bf16 %v1408, %v1408
      %v1414 = vpack.c.bf16 %v1409, %v1409
      %v1415 = vpack.c.bf16 %v1410, %v1410
      %v1416 = vpack.c.bf16 %v1411, %v1411
      %v1417 = vpack.c.bf16 %v1412, %v1412
      %1418 = vst [vmem:[%s237] sm:$0xf] %v1413
      %1419 = vst [vmem:[%s237 + $0x4] sm:$0xf] %v1414
      %1420 = vst [vmem:[%s237 + $0x8] sm:$0xf] %v1415
      %1421 = vst [vmem:[%s237 + $0xc] sm:$0xf] %v1416
      %1422 = vst [vmem:[%s237 + $0x10] sm:$0xf] %v1417
      %s1423 = sadd.s32 %s19, %s20
      %s1424 = smul.u32 5, %s1423
      %p1425 = scmp.lt.s32.totalorder %s1424, 9
      %s1426 = scalar_select %p1425, %s1424, 9
      %s1427 = smul.addr %s1426, 4
      %s1428 = scalar_lea.vmem %s4, %s1427
      // Predicated region
      $region37: #{vqvae_forward.15} parent=35 // pred_check
        %p1429 = pneg %p141
      $region38: #{vqvae_forward.15} parent=35 // pred_check_branch
        %1431 = sbr.rel (%p1429) target = $region40
      $region39: #{vqvae_forward.15} parent=35 // pred_region
        %s1432 = sadd.s32 %s19, %s20
        %s1433 = smul.u32 5, %s1432
      $region40: #{vqvae_forward.15} parent=35 // pred_fallthru
        _
    $region36: #{vqvae_forward.15} parent=5 // pred_fallthru
      _
    %p1434 = scmp.le.s32.totalorder 2, %s10
    // Predicated region
    $region41: #{vqvae_forward.15} parent=5 // pred_check
      %p1435 = pneg %p1434
    $region42: #{vqvae_forward.15} parent=5 // pred_check_branch
      %1437 = sbr.rel (%p1435) target = $region44
    $region43: #{vqvae_forward.15} parent=5 // pred_region
      %s1438 = ssub.s32 %s10, 2
      // Predicated region
      $region45: #{vqvae_forward.15} parent=43 // pred_check
        %p1439 = pneg %p147
      $region46: #{vqvae_forward.15} parent=43 // pred_check_branch
        %1441 = sbr.rel (%p1439) target = $region48
      $region47: #{vqvae_forward.15} parent=43 // pred_region
        %s1442 = sadd.s32 %s21, %s22
        %s1443 = smul.u32 5, %s1442
        %p1444 = scmp.lt.s32.totalorder %s1443, 9
        %s1445 = scalar_select %p1444, %s1443, 9
        %s1446 = smul.addr %s1445, 4
        %s1447 = scalar_lea.vmem %s4, %s1446
      $region48: #{vqvae_forward.15} parent=43 // pred_fallthru
        _
    $region44: #{vqvae_forward.15} parent=5 // pred_fallthru
      _
  $region6: #{vqvae_forward.15} parent=0 // loop_footer
    %s14 = sadd.s32 1, %s10
  $region7: #{vqvae_forward.15} parent=0 // loop_footer_branch
    %9 = sbr.rel target = $region3
  $region8: #{vqvae_forward.15} parent=0 // loop_exit
    _

// kernel: vqvae_forward.14
$region0: #{vqvae_forward.14}
  #allocation0 [shape = 'u32[]', space=smem, size = 0x4, offset = 0x4, fixed_abs, tag = 'smem constant byte address 0x4 - core index']
  #allocation1 [shape = 'u32[72,128]{1,0:T(1,128)}', space=vmem, size = 0x9000, scoped, tag = 'internal scratch']
  %s0 = inlined_call_operand.vmem [shape: bf16[112,128], index: 0, kind: input, shape index: {}]
  %s1 = inlined_call_operand.vmem [shape: bf16[1152,128], index: 1, kind: input, shape index: {}]
  %s2 = inlined_call_operand.vmem [shape: bf16[128,128], index: 2, kind: input, shape index: {}]
  %s3 = inlined_call_operand.vmem [shape: f32[40,1], index: 3, kind: input, shape index: {}]
  %s4 = inlined_call_operand.vmem [shape: bf16[80,128], index: 4, kind: output, shape index: {}]
  %s5 = sld [smem:[#allocation0]]
  $region49: #{vqvae_forward.14} parent=0
    _
  %s7 = ssub.s32 1, %s5
  %s8 = scalar_select 0, %s7, %s5
  loop: start=0, step=1, limit=4
  $region2: #{vqvae_forward.14} parent=0 // loop_pre_header
    _
  $region3: #{vqvae_forward.14} parent=0 // loop_header
    %s10 = sphi 0, %s14
    %p11 = scmp.ge.s32.totalorder %s10, 4
    %s17 = sphi 0, %s29
    %s18 = sphi 0, %s25
    %s19 = sphi 0, %s17
    %s20 = sphi 0, %s18
    %s21 = sphi 0, %s19
    %s22 = sphi 0, %s20
    %s32 = sphi 0, %s34
    %s35 = sphi 0, %s32
    %s36 = sphi 0, %s35
    %s52 = sphi 0, %s36
    %s56 = sphi 0, %s56
    %s58 = sphi 0, %s56
    %s59 = sphi 0, %s58
    %s73 = sphi 0, %s59
    %s77 = sphi 0, %s77
    %s79 = sphi 0, %s77
    %s80 = sphi 0, %s79
    %s94 = sphi 0, %s80
    %s100 = sphi 0, %s102
    %s103 = sphi 0, %s100
    %s104 = sphi 0, %s103
    %s120 = sphi 0, %s104
    %s128 = sphi 0, %s130
    %s131 = sphi 0, %s128
    %s132 = sphi 0, %s131
    %s148 = sphi 0, %s132
  $region4: #{vqvae_forward.14} parent=0 // loop_header_branch
    %13 = sbr.rel (%p11) target = $region8
  $region5: #{vqvae_forward.14} parent=0 // loop_body
    %s15 = ssub.s32 %s10, 1
    %s16 = ssub.s32 %s10, 2
    %s23 = sadd.s32 1, %s18
    %p24 = scmp.ge.s32.totalorder %s23, 1
    %s25 = scalar_select %p24, 0, %s23
    %s26 = sadd.s32 1, %s17
    %s27 = scalar_select %p24, %s26, %s17
    %p28 = scmp.ge.s32.totalorder %s27, 2
    %s29 = scalar_select %p28, 0, %s27
    %s30 = ssub.s32 %s17, %s29
    %p31 = scmp.eq.s32.totalorder %s30, 0
    %s33 = sadd.s32 %s32, 1
    %s34 = scalar_select %p31, %s32, %s33
    %p37 = pneg %p31
    %p38 = scmp.eq.s32.totalorder %s10, 1
    %p39 = por %p37, %p38
    %p40 = scmp.ne.s32.totalorder %s32, %s35
    %p41 = scmp.eq.s32.totalorder %s10, 0
    %p42 = por %p40, %p41
    %p43 = scmp.ne.s32.totalorder %s32, %s35
    %p44 = scmp.eq.s32.totalorder %s15, 1
    %p45 = por %p43, %p44
    %p46 = scmp.ne.s32.totalorder %s35, %s36
    %p47 = scmp.eq.s32.totalorder %s15, 0
    %p48 = por %p46, %p47
    %p49 = scmp.ne.s32.totalorder %s35, %s36
    %p50 = scmp.eq.s32.totalorder %s16, 1
    %p51 = por %p49, %p50
    %p53 = scmp.ne.s32.totalorder %s36, %s52
    %p54 = scmp.eq.s32.totalorder %s16, 0
    %p55 = por %p53, %p54
    %s57 = sadd.s32 %s56, 1
    %p60 = scmp.eq.s32.totalorder %s10, 1
    %p61 = scmp.ne.s32.totalorder %s56, %s58
    %p62 = scmp.eq.s32.totalorder %s10, 0
    %p63 = por %p61, %p62
    %p64 = scmp.ne.s32.totalorder %s56, %s58
    %p65 = scmp.eq.s32.totalorder %s15, 1
    %p66 = por %p64, %p65
    %p67 = scmp.ne.s32.totalorder %s58, %s59
    %p68 = scmp.eq.s32.totalorder %s15, 0
    %p69 = por %p67, %p68
    %p70 = scmp.ne.s32.totalorder %s58, %s59
    %p71 = scmp.eq.s32.totalorder %s16, 1
    %p72 = por %p70, %p71
    %p74 = scmp.ne.s32.totalorder %s59, %s73
    %p75 = scmp.eq.s32.totalorder %s16, 0
    %p76 = por %p74, %p75
    %s78 = sadd.s32 %s77, 1
    %p81 = scmp.eq.s32.totalorder %s10, 1
    %p82 = scmp.ne.s32.totalorder %s77, %s79
    %p83 = scmp.eq.s32.totalorder %s10, 0
    %p84 = por %p82, %p83
    %p85 = scmp.ne.s32.totalorder %s77, %s79
    %p86 = scmp.eq.s32.totalorder %s15, 1
    %p87 = por %p85, %p86
    %p88 = scmp.ne.s32.totalorder %s79, %s80
    %p89 = scmp.eq.s32.totalorder %s15, 0
    %p90 = por %p88, %p89
    %p91 = scmp.ne.s32.totalorder %s79, %s80
    %p92 = scmp.eq.s32.totalorder %s16, 1
    %p93 = por %p91, %p92
    %p95 = scmp.ne.s32.totalorder %s80, %s94
    %p96 = scmp.eq.s32.totalorder %s16, 0
    %p97 = por %p95, %p96
    %s98 = ssub.s32 %s18, %s25
    %p99 = scmp.eq.s32.totalorder %s98, 0
    %s101 = sadd.s32 %s100, 1
    %s102 = scalar_select %p99, %s100, %s101
    %p105 = pneg %p99
    %p106 = scmp.eq.s32.totalorder %s10, 1
    %p107 = por %p105, %p106
    %p108 = scmp.ne.s32.totalorder %s100, %s103
    %p109 = scmp.eq.s32.totalorder %s10, 0
    %p110 = por %p108, %p109
    %p111 = scmp.ne.s32.totalorder %s100, %s103
    %p112 = scmp.eq.s32.totalorder %s15, 1
    %p113 = por %p111, %p112
    %p114 = scmp.ne.s32.totalorder %s103, %s104
    %p115 = scmp.eq.s32.totalorder %s15, 0
    %p116 = por %p114, %p115
    %p117 = scmp.ne.s32.totalorder %s103, %s104
    %p118 = scmp.eq.s32.totalorder %s16, 1
    %p119 = por %p117, %p118
    %p121 = scmp.ne.s32.totalorder %s104, %s120
    %p122 = scmp.eq.s32.totalorder %s16, 0
    %p123 = por %p121, %p122
    %s124 = sadd.s32 %s17, %s18
    %s125 = sadd.s32 %s29, %s25
    %s126 = ssub.s32 %s124, %s125
    %p127 = scmp.eq.s32.totalorder %s126, 0
    %s129 = sadd.s32 %s128, 1
    %s130 = scalar_select %p127, %s128, %s129
    %p133 = pneg %p127
    %p134 = scmp.eq.s32.totalorder %s10, 1
    %p135 = por %p133, %p134
    %p136 = scmp.ne.s32.totalorder %s128, %s131
    %p137 = scmp.eq.s32.totalorder %s10, 0
    %p138 = por %p136, %p137
    %p139 = scmp.ne.s32.totalorder %s128, %s131
    %p140 = scmp.eq.s32.totalorder %s15, 1
    %p141 = por %p139, %p140
    %p142 = scmp.ne.s32.totalorder %s131, %s132
    %p143 = scmp.eq.s32.totalorder %s15, 0
    %p144 = por %p142, %p143
    %p145 = scmp.ne.s32.totalorder %s131, %s132
    %p146 = scmp.eq.s32.totalorder %s16, 1
    %p147 = por %p145, %p146
    %p149 = scmp.ne.s32.totalorder %s132, %s148
    %p150 = scmp.eq.s32.totalorder %s16, 0
    %p151 = por %p149, %p150
    %p152 = scmp.le.s32.totalorder 1, %s10
    %p153 = scmp.lt.s32.totalorder %s10, 3
    %p154 = pnand %p152, %p153
    %p155 = pneg %p154
    // Predicated region
    $region9: #{vqvae_forward.14} parent=5 // pred_check
      _
    $region10: #{vqvae_forward.14} parent=5 // pred_check_branch
      %157 = sbr.rel (%p154) target = $region12
    $region11: #{vqvae_forward.14} parent=5 // pred_region
      %s158 = ssub.s32 %s10, 1
      // Predicated region
      $region13: #{vqvae_forward.14} parent=11 // pred_check
        %p159 = pneg %p69
      $region14: #{vqvae_forward.14} parent=11 // pred_check_branch
        %161 = sbr.rel (%p159) target = $region16
      $region15: #{vqvae_forward.14} parent=11 // pred_region
        _
      $region16: #{vqvae_forward.14} parent=11 // pred_fallthru
        _
      // Predicated region
      $region17: #{vqvae_forward.14} parent=11 // pred_check
        %p162 = pneg %p90
      $region18: #{vqvae_forward.14} parent=11 // pred_check_branch
        %164 = sbr.rel (%p162) target = $region20
      $region19: #{vqvae_forward.14} parent=11 // pred_region
        _
      $region20: #{vqvae_forward.14} parent=11 // pred_fallthru
        _
      // Predicated region
      $region21: #{vqvae_forward.14} parent=11 // pred_check
        %p165 = pneg %p116
      $region22: #{vqvae_forward.14} parent=11 // pred_check_branch
        %167 = sbr.rel (%p165) target = $region24
      $region23: #{vqvae_forward.14} parent=11 // pred_region
        %s168 = smul.u32 5, %s20
        %p169 = scmp.lt.s32.totalorder %s168, 4
        %s170 = scalar_select %p169, %s168, 4
        %s171 = smul.addr %s170, 8
        %s172 = scalar_lea.vmem %s3, %s171
        %s173 = smul.u32 5, %s20
      $region24: #{vqvae_forward.14} parent=11 // pred_fallthru
        _
    $region12: #{vqvae_forward.14} parent=5 // pred_fallthru
      _
    %p174 = scmp.lt.s32.totalorder %s10, 2
    // Predicated region
    $region25: #{vqvae_forward.14} parent=5 // pred_check
      %p175 = pneg %p174
    $region26: #{vqvae_forward.14} parent=5 // pred_check_branch
      %177 = sbr.rel (%p175) target = $region28
    $region27: #{vqvae_forward.14} parent=5 // pred_region
      // Predicated region
      $region29: #{vqvae_forward.14} parent=27 // pred_check
        %p178 = pneg %p42
      $region30: #{vqvae_forward.14} parent=27 // pred_check_branch
        %180 = sbr.rel (%p178) target = $region32
      $region31: #{vqvae_forward.14} parent=27 // pred_region
        %s181 = smul.u32 7, %s17
        %p182 = scmp.lt.s32.totalorder %s181, 13
        %s183 = scalar_select %p182, %s181, 13
        %s184 = smul.addr %s183, 4
        %s185 = scalar_lea.vmem %s0, %s184
        %s186 = smul.u32 7, %s17
      $region32: #{vqvae_forward.14} parent=27 // pred_fallthru
        _
    $region28: #{vqvae_forward.14} parent=5 // pred_fallthru
      _
    %p187 = scmp.le.s32.totalorder 1, %s10
    %p188 = scmp.lt.s32.totalorder %s10, 3
    %p189 = pnand %p187, %p188
    %p190 = pneg %p189
    // Predicated region
    $region33: #{vqvae_forward.14} parent=5 // pred_check
      _
    $region34: #{vqvae_forward.14} parent=5 // pred_check_branch
      %192 = sbr.rel (%p189) target = $region36
    $region35: #{vqvae_forward.14} parent=5 // pred_region
      %s193 = ssub.s32 %s10, 1
      %s194 = smul.u32 7, %s19
      %p195 = scmp.lt.s32.totalorder %s194, 13
      %s196 = scalar_select %p195, %s194, 13
      %s197 = smul.addr %s196, 4
      %s198 = scalar_lea.vmem %s0, %s197
      %p199 = pneg %p48
      %p200 = pneg %p45
      %p201 = pneg %p69
      %p202 = pneg %p66
      %p203 = pneg %p90
      %p204 = pneg %p87
      %s205 = smul.u32 5, %s20
      %p206 = scmp.lt.s32.totalorder %s205, 4
      %s207 = scalar_select %p206, %s205, 4
      %s208 = smul.addr %s207, 8
      %s209 = scalar_lea.vmem %s3, %s208
      %p210 = pneg %p116
      %p211 = pneg %p113
      %p212 = pneg %p144
      %p213 = pneg %p141
      %s214 = sadd.s32 %s19, %s20
      %s215 = smul.u32 5, %s214
      %p216 = scmp.lt.s32.totalorder %s215, 9
      %s217 = scalar_select %p216, %s215, 9
      %s218 = smul.addr %s217, 4
      %s219 = scalar_lea.vmem %s4, %s218
      %s220 = smul.u32 7, %s19
      %p221 = scmp.lt.s32.totalorder %s220, 13
      %s222 = scalar_select %p221, %s220, 13
      %s223 = smul.addr %s222, 4
      %s224 = scalar_lea.vmem %s0, %s223
      %s225 = smul.u32 7, %s19
      %s226 = smul.u32 5, %s20
      %p227 = scmp.lt.s32.totalorder %s226, 4
      %s228 = scalar_select %p227, %s226, 4
      %s229 = smul.addr %s228, 8
      %s230 = scalar_lea.vmem %s3, %s229
      %s231 = smul.u32 5, %s20
      %s232 = sadd.s32 %s19, %s20
      %s233 = smul.u32 5, %s232
      %p234 = scmp.lt.s32.totalorder %s233, 9
      %s235 = scalar_select %p234, %s233, 9
      %s236 = smul.addr %s235, 4
      %s237 = scalar_lea.vmem %s4, %s236
      %s238 = sadd.s32 %s19, %s20
      %s239 = smul.u32 5, %s238
      %v240 = vld [vmem:[%s224] sm:$0xf]
      %v241 = vld [vmem:[%s224 + $0x4] sm:$0xf]
      %v242 = vld [vmem:[%s224 + $0x8] sm:$0xf]
      %v243 = vld [vmem:[%s224 + $0xc] sm:$0xf]
      %v244 = vld [vmem:[%s224 + $0x10] sm:$0xf]
      %v245 = vunpack.c.l.bf16 %v240
      %v246 = vunpack.c.l.bf16 %v241
      %v247 = vunpack.c.l.bf16 %v242
      %v248 = vunpack.c.l.bf16 %v243
      %v249 = vunpack.c.l.bf16 %v244
      %v250 = vmax.f32 %v245, 0.0
      %v251 = vmax.f32 %v246, 0.0
      %v252 = vmax.f32 %v247, 0.0
      %v253 = vmax.f32 %v248, 0.0
      %v254 = vmax.f32 %v249, 0.0
      %v255 = vpack.c.bf16 %v251, %v250
      %v256 = vpack.c.bf16 %v253, %v252
      %v257 = vpack.c.bf16 %v254, %v254
      %v258 = vld [vmem:[%s1] sm:$0xf]
      %v259 = vld [vmem:[%s1 + $0x4] sm:$0xf]
      %v260 = vld [vmem:[%s1 + $0x8] sm:$0xf]
      %v261 = vld [vmem:[%s1 + $0xc] sm:$0xf]
      %v262 = vld [vmem:[%s1 + $0x10] sm:$0xf]
      %v263 = vld [vmem:[%s1 + $0x14] sm:$0xf]
      %v264 = vld [vmem:[%s1 + $0x18] sm:$0xf]
      %v265 = vld [vmem:[%s1 + $0x1c] sm:$0xf]
      %v266 = vld [vmem:[%s1 + $0x20] sm:$0xf]
      %v267 = vld [vmem:[%s1 + $0x24] sm:$0xf]
      %v268 = vld [vmem:[%s1 + $0x28] sm:$0xf]
      %v269 = vld [vmem:[%s1 + $0x2c] sm:$0xf]
      %v270 = vld [vmem:[%s1 + $0x30] sm:$0xf]
      %v271 = vld [vmem:[%s1 + $0x34] sm:$0xf]
      %v272 = vld [vmem:[%s1 + $0x38] sm:$0xf]
      %v273 = vld [vmem:[%s1 + $0x3c] sm:$0xf]
      %v274 = vld [vmem:[%s224 + $0x14] sm:$0x1]
      %v275 = vunpack.c.l.bf16 %v274
      %v276 = vmax.f32 %v275, 0.0
      %v277 = vpack.c.bf16 %v276, %v254
      %v278 = vld [vmem:[%s1 + $0x40] sm:$0xf]
      %v279 = vld [vmem:[%s1 + $0x44] sm:$0xf]
      %v280 = vld [vmem:[%s1 + $0x48] sm:$0xf]
      %v281 = vld [vmem:[%s1 + $0x4c] sm:$0xf]
      %v282 = vld [vmem:[%s1 + $0x50] sm:$0xf]
      %v283 = vld [vmem:[%s1 + $0x54] sm:$0xf]
      %v284 = vld [vmem:[%s1 + $0x58] sm:$0xf]
      %v285 = vld [vmem:[%s1 + $0x5c] sm:$0xf]
      %v286 = vld [vmem:[%s1 + $0x60] sm:$0xf]
      %v287 = vld [vmem:[%s1 + $0x64] sm:$0xf]
      %v288 = vld [vmem:[%s1 + $0x68] sm:$0xf]
      %v289 = vld [vmem:[%s1 + $0x6c] sm:$0xf]
      %v290 = vld [vmem:[%s1 + $0x70] sm:$0xf]
      %v291 = vld [vmem:[%s1 + $0x74] sm:$0xf]
      %v292 = vld [vmem:[%s1 + $0x78] sm:$0xf]
      %v293 = vld [vmem:[%s1 + $0x7c] sm:$0xf]
      %vm294 = vsmask.f32 7424
      %v296 = vshrl.u32 %v255, 16
      %v298 = vshll.u32 %v255, 16
      %v300 = vrot.slane %v298, 1
      %v301 = vor.u32 %v296, %v300
      %v303 = vshll.u32 %v256, 16
      %v305 = vrot.slane %v303, 1
      %v306 = vsel %vm294, %v301, %v305
      %v307 = vshrl.u32 %v256, 16
      %v309 = vor.u32 %v307, %v305
      %v311 = vshll.u32 %v277, 16
      %v313 = vrot.slane %v311, 1
      %v314 = vsel %vm294, %v309, %v313
      %v315 = vshrl.u32 %v277, 16
      %v317 = vor.u32 %v315, %v313
      %v337 = vunpack.c.l.b16 %v278
      %v338 = vunpack.c.l.b16 %v279
      %v339 = vunpack.c.l.b16 %v280
      %v340 = vunpack.c.l.b16 %v281
      %v341 = vunpack.c.l.b16 %v282
      %v342 = vunpack.c.l.b16 %v283
      %v343 = vunpack.c.l.b16 %v284
      %v344 = vunpack.c.l.b16 %v285
      %v345 = vunpack.c.l.b16 %v286
      %v346 = vunpack.c.l.b16 %v287
      %v347 = vunpack.c.l.b16 %v288
      %v348 = vunpack.c.l.b16 %v289
      %v349 = vunpack.c.l.b16 %v290
      %v350 = vunpack.c.l.b16 %v291
      %v351 = vunpack.c.l.b16 %v292
      %v352 = vunpack.c.l.b16 %v293
      %v353 = vpack.c.b16 %v338, %v337
      %v354 = vpack.c.b16 %v340, %v339
      %v355 = vpack.c.b16 %v342, %v341
      %v356 = vpack.c.b16 %v344, %v343
      %v357 = vpack.c.b16 %v346, %v345
      %v358 = vpack.c.b16 %v348, %v347
      %v359 = vpack.c.b16 %v350, %v349
      %v360 = vpack.c.b16 %v352, %v351
      %369 = vmatpush.bf16.msra.mxu0 %v360
      %370 = vmatpush.bf16.msra.mxu0 %v359
      %371 = vmatpush.bf16.msra.mxu0 %v358
      %372 = vmatpush.bf16.msra.mxu0 %v357
      %373 = vmatpush.bf16.msra.mxu0 %v356
      %374 = vmatpush.bf16.msra.mxu0 %v355
      %375 = vmatpush.bf16.msra.mxu0 %v354
      %376 = vmatpush.bf16.msra.mxu0 %v353
      %377 = vmatmul.bf16.gmra.mxu0 %v306
      %v378 = vpop.f32.mrf.mxu0
      %v379 = vadd.f32 0.0, %v378
      %v380 = vpop.f32.mrf.mxu0
      %v381 = vadd.f32 0.0, %v380
      %382 = vmatmul.bf16.gmra.mxu0 %v314
      %v383 = vpop.f32.mrf.mxu0
      %v384 = vadd.f32 0.0, %v383
      %v385 = vpop.f32.mrf.mxu0
      %v386 = vadd.f32 0.0, %v385
      %387 = vmatmul.bf16.gmra.mxu0 %v317
      %v388 = vpop.f32.mrf.mxu0
      %v389 = vadd.f32 0.0, %v388
      %v390 = vpop.f32.mrf.mxu0
      %391 = vdwg.mxu0
      %v408 = vunpack.c.l.b16 %v258
      %v409 = vunpack.c.l.b16 %v259
      %v410 = vunpack.c.l.b16 %v260
      %v411 = vunpack.c.l.b16 %v261
      %v412 = vunpack.c.l.b16 %v262
      %v413 = vunpack.c.l.b16 %v263
      %v414 = vunpack.c.l.b16 %v264
      %v415 = vunpack.c.l.b16 %v265
      %v416 = vunpack.c.l.b16 %v266
      %v417 = vunpack.c.l.b16 %v267
      %v418 = vunpack.c.l.b16 %v268
      %v419 = vunpack.c.l.b16 %v269
      %v420 = vunpack.c.l.b16 %v270
      %v421 = vunpack.c.l.b16 %v271
      %v422 = vunpack.c.l.b16 %v272
      %v423 = vunpack.c.l.b16 %v273
      %v424 = vpack.c.b16 %v409, %v408
      %v425 = vpack.c.b16 %v411, %v410
      %v426 = vpack.c.b16 %v413, %v412
      %v427 = vpack.c.b16 %v415, %v414
      %v428 = vpack.c.b16 %v417, %v416
      %v429 = vpack.c.b16 %v419, %v418
      %v430 = vpack.c.b16 %v421, %v420
      %v431 = vpack.c.b16 %v423, %v422
      %440 = vmatpush.bf16.msra.mxu0 %v431
      %441 = vmatpush.bf16.msra.mxu0 %v430
      %442 = vmatpush.bf16.msra.mxu0 %v429
      %443 = vmatpush.bf16.msra.mxu0 %v428
      %444 = vmatpush.bf16.msra.mxu0 %v427
      %445 = vmatpush.bf16.msra.mxu0 %v426
      %446 = vmatpush.bf16.msra.mxu0 %v425
      %447 = vmatpush.bf16.msra.mxu0 %v424
      %448 = vmatmul.bf16.gmra.mxu0 %v255
      %v449 = vpop.f32.mrf.mxu0
      %v450 = vadd.f32 %v379, %v449
      %v451 = vpop.f32.mrf.mxu0
      %v452 = vadd.f32 %v381, %v451
      %453 = vmatmul.bf16.gmra.mxu0 %v256
      %v454 = vpop.f32.mrf.mxu0
      %v455 = vadd.f32 %v384, %v454
      %v456 = vpop.f32.mrf.mxu0
      %v457 = vadd.f32 %v386, %v456
      %458 = vmatmul.bf16.gmra.mxu0 %v257
      %v459 = vpop.f32.mrf.mxu0
      %v460 = vadd.f32 %v389, %v459
      %v461 = vpop.f32.mrf.mxu0
      %462 = vdwg.mxu0
      %v463 = vld [vmem:[%s224] sm:$0xe]
      %v464 = vunpack.c.l.bf16 %v463
      %v465 = vmax.f32 %v464, 0.0
      %v466 = vpack.c.bf16 %v251, %v465
      %v467 = vld [vmem:[%s1 + $0x80] sm:$0xf]
      %v468 = vld [vmem:[%s1 + $0x84] sm:$0xf]
      %v469 = vld [vmem:[%s1 + $0x88] sm:$0xf]
      %v470 = vld [vmem:[%s1 + $0x8c] sm:$0xf]
      %v471 = vld [vmem:[%s1 + $0x90] sm:$0xf]
      %v472 = vld [vmem:[%s1 + $0x94] sm:$0xf]
      %v473 = vld [vmem:[%s1 + $0x98] sm:$0xf]
      %v474 = vld [vmem:[%s1 + $0x9c] sm:$0xf]
      %v475 = vld [vmem:[%s1 + $0xa0] sm:$0xf]
      %v476 = vld [vmem:[%s1 + $0xa4] sm:$0xf]
      %v477 = vld [vmem:[%s1 + $0xa8] sm:$0xf]
      %v478 = vld [vmem:[%s1 + $0xac] sm:$0xf]
      %v479 = vld [vmem:[%s1 + $0xb0] sm:$0xf]
      %v480 = vld [vmem:[%s1 + $0xb4] sm:$0xf]
      %v481 = vld [vmem:[%s1 + $0xb8] sm:$0xf]
      %v482 = vld [vmem:[%s1 + $0xbc] sm:$0xf]
      %vm486 = vcmask 1046528
      %v487 = vrot.slane %v466, 1
      %v488 = vrot.slane %v256, 1
      %v489 = vsel %vm486, %v487, %v488
      %v490 = vrot.slane %v277, 1
      %v491 = vsel %vm486, %v488, %v490
      %v511 = vunpack.c.l.b16 %v467
      %v512 = vunpack.c.l.b16 %v468
      %v513 = vunpack.c.l.b16 %v469
      %v514 = vunpack.c.l.b16 %v470
      %v515 = vunpack.c.l.b16 %v471
      %v516 = vunpack.c.l.b16 %v472
      %v517 = vunpack.c.l.b16 %v473
      %v518 = vunpack.c.l.b16 %v474
      %v519 = vunpack.c.l.b16 %v475
      %v520 = vunpack.c.l.b16 %v476
      %v521 = vunpack.c.l.b16 %v477
      %v522 = vunpack.c.l.b16 %v478
      %v523 = vunpack.c.l.b16 %v479
      %v524 = vunpack.c.l.b16 %v480
      %v525 = vunpack.c.l.b16 %v481
      %v526 = vunpack.c.l.b16 %v482
      %v527 = vpack.c.b16 %v512, %v511
      %v528 = vpack.c.b16 %v514, %v513
      %v529 = vpack.c.b16 %v516, %v515
      %v530 = vpack.c.b16 %v518, %v517
      %v531 = vpack.c.b16 %v520, %v519
      %v532 = vpack.c.b16 %v522, %v521
      %v533 = vpack.c.b16 %v524, %v523
      %v534 = vpack.c.b16 %v526, %v525
      %543 = vmatpush.bf16.msra.mxu0 %v534
      %544 = vmatpush.bf16.msra.mxu0 %v533
      %545 = vmatpush.bf16.msra.mxu0 %v532
      %546 = vmatpush.bf16.msra.mxu0 %v531
      %547 = vmatpush.bf16.msra.mxu0 %v530
      %548 = vmatpush.bf16.msra.mxu0 %v529
      %549 = vmatpush.bf16.msra.mxu0 %v528
      %550 = vmatpush.bf16.msra.mxu0 %v527
      %551 = vmatmul.bf16.gmra.mxu0 %v489
      %v552 = vpop.f32.mrf.mxu0
      %v553 = vadd.f32 0.0, %v552
      %v554 = vpop.f32.mrf.mxu0
      %v555 = vadd.f32 0.0, %v554
      %556 = vmatmul.bf16.gmra.mxu0 %v491
      %v557 = vpop.f32.mrf.mxu0
      %v558 = vadd.f32 0.0, %v557
      %v559 = vpop.f32.mrf.mxu0
      %v560 = vadd.f32 0.0, %v559
      %561 = vmatmul.bf16.gmra.mxu0 %v490
      %v562 = vpop.f32.mrf.mxu0
      %v563 = vadd.f32 0.0, %v562
      %v564 = vpop.f32.mrf.mxu0
      %565 = vdwg.mxu0
      %v566 = vadd.f32 %v450, %v553
      %v567 = vadd.f32 %v452, %v555
      %v568 = vadd.f32 %v455, %v558
      %v569 = vadd.f32 %v457, %v560
      %v570 = vadd.f32 %v460, %v563
      %v571 = vld [vmem:[%s224] sm:$0x8]
      %v572 = vld [vmem:[%s224 + $0x14] sm:$0x7]
      %v573 = vunpack.c.l.bf16 %v571
      %v574 = vunpack.c.l.bf16 %v572
      %v575 = vmax.f32 %v573, 0.0
      %v576 = vmax.f32 %v574, 0.0
      %v577 = vpack.c.bf16 %v251, %v575
      %v578 = vpack.c.bf16 %v576, %v254
      %v579 = vld [vmem:[%s1 + $0xc0] sm:$0xf]
      %v580 = vld [vmem:[%s1 + $0xc4] sm:$0xf]
      %v581 = vld [vmem:[%s1 + $0xc8] sm:$0xf]
      %v582 = vld [vmem:[%s1 + $0xcc] sm:$0xf]
      %v583 = vld [vmem:[%s1 + $0xd0] sm:$0xf]
      %v584 = vld [vmem:[%s1 + $0xd4] sm:$0xf]
      %v585 = vld [vmem:[%s1 + $0xd8] sm:$0xf]
      %v586 = vld [vmem:[%s1 + $0xdc] sm:$0xf]
      %v587 = vld [vmem:[%s1 + $0xe0] sm:$0xf]
      %v588 = vld [vmem:[%s1 + $0xe4] sm:$0xf]
      %v589 = vld [vmem:[%s1 + $0xe8] sm:$0xf]
      %v590 = vld [vmem:[%s1 + $0xec] sm:$0xf]
      %v591 = vld [vmem:[%s1 + $0xf0] sm:$0xf]
      %v592 = vld [vmem:[%s1 + $0xf4] sm:$0xf]
      %v593 = vld [vmem:[%s1 + $0xf8] sm:$0xf]
      %v594 = vld [vmem:[%s1 + $0xfc] sm:$0xf]
      %vm597 = vcmask 1044480
      %v598 = vrot.slane %v577, 3
      %v599 = vrot.slane %v256, 3
      %v600 = vsel %vm597, %v598, %v599
      %v601 = vrot.slane %v578, 3
      %v602 = vsel %vm597, %v599, %v601
      %v622 = vunpack.c.l.b16 %v579
      %v623 = vunpack.c.l.b16 %v580
      %v624 = vunpack.c.l.b16 %v581
      %v625 = vunpack.c.l.b16 %v582
      %v626 = vunpack.c.l.b16 %v583
      %v627 = vunpack.c.l.b16 %v584
      %v628 = vunpack.c.l.b16 %v585
      %v629 = vunpack.c.l.b16 %v586
      %v630 = vunpack.c.l.b16 %v587
      %v631 = vunpack.c.l.b16 %v588
      %v632 = vunpack.c.l.b16 %v589
      %v633 = vunpack.c.l.b16 %v590
      %v634 = vunpack.c.l.b16 %v591
      %v635 = vunpack.c.l.b16 %v592
      %v636 = vunpack.c.l.b16 %v593
      %v637 = vunpack.c.l.b16 %v594
      %v638 = vpack.c.b16 %v623, %v622
      %v639 = vpack.c.b16 %v625, %v624
      %v640 = vpack.c.b16 %v627, %v626
      %v641 = vpack.c.b16 %v629, %v628
      %v642 = vpack.c.b16 %v631, %v630
      %v643 = vpack.c.b16 %v633, %v632
      %v644 = vpack.c.b16 %v635, %v634
      %v645 = vpack.c.b16 %v637, %v636
      %654 = vmatpush.bf16.msra.mxu0 %v645
      %655 = vmatpush.bf16.msra.mxu0 %v644
      %656 = vmatpush.bf16.msra.mxu0 %v643
      %657 = vmatpush.bf16.msra.mxu0 %v642
      %658 = vmatpush.bf16.msra.mxu0 %v641
      %659 = vmatpush.bf16.msra.mxu0 %v640
      %660 = vmatpush.bf16.msra.mxu0 %v639
      %661 = vmatpush.bf16.msra.mxu0 %v638
      %662 = vmatmul.bf16.gmra.mxu0 %v600
      %v663 = vpop.f32.mrf.mxu0
      %v664 = vadd.f32 0.0, %v663
      %v665 = vpop.f32.mrf.mxu0
      %v666 = vadd.f32 0.0, %v665
      %667 = vmatmul.bf16.gmra.mxu0 %v602
      %v668 = vpop.f32.mrf.mxu0
      %v669 = vadd.f32 0.0, %v668
      %v670 = vpop.f32.mrf.mxu0
      %v671 = vadd.f32 0.0, %v670
      %672 = vmatmul.bf16.gmra.mxu0 %v601
      %v673 = vpop.f32.mrf.mxu0
      %v674 = vadd.f32 0.0, %v673
      %v675 = vpop.f32.mrf.mxu0
      %676 = vdwg.mxu0
      %v677 = vadd.f32 %v566, %v664
      %v678 = vadd.f32 %v567, %v666
      %v679 = vadd.f32 %v568, %v669
      %v680 = vadd.f32 %v569, %v671
      %v681 = vadd.f32 %v570, %v674
      %v682 = vld [vmem:[%s224 + $0x14] sm:$0xf]
      %v683 = vunpack.c.l.bf16 %v682
      %v684 = vmax.f32 %v683, 0.0
      %v685 = vpack.c.bf16 %v684, %v254
      %v686 = vld [vmem:[%s1 + $0x100] sm:$0xf]
      %v687 = vld [vmem:[%s1 + $0x104] sm:$0xf]
      %v688 = vld [vmem:[%s1 + $0x108] sm:$0xf]
      %v689 = vld [vmem:[%s1 + $0x10c] sm:$0xf]
      %v690 = vld [vmem:[%s1 + $0x110] sm:$0xf]
      %v691 = vld [vmem:[%s1 + $0x114] sm:$0xf]
      %v692 = vld [vmem:[%s1 + $0x118] sm:$0xf]
      %v693 = vld [vmem:[%s1 + $0x11c] sm:$0xf]
      %v694 = vld [vmem:[%s1 + $0x120] sm:$0xf]
      %v695 = vld [vmem:[%s1 + $0x124] sm:$0xf]
      %v696 = vld [vmem:[%s1 + $0x128] sm:$0xf]
      %v697 = vld [vmem:[%s1 + $0x12c] sm:$0xf]
      %v698 = vld [vmem:[%s1 + $0x130] sm:$0xf]
      %v699 = vld [vmem:[%s1 + $0x134] sm:$0xf]
      %v700 = vld [vmem:[%s1 + $0x138] sm:$0xf]
      %v701 = vld [vmem:[%s1 + $0x13c] sm:$0xf]
      %vm702 = vsmask.f32 4352
      %v704 = vshrl.u32 %v577, 16
      %v706 = vrot.slane %v704, 3
      %v707 = vshll.u32 %v577, 16
      %v709 = vrot.slane %v707, 4
      %v710 = vor.u32 %v706, %v709
      %v711 = vrot.slane %v307, 3
      %v712 = vrot.slane %v303, 4
      %v713 = vor.u32 %v711, %v712
      %v714 = vsel %vm702, %v710, %v713
      %v716 = vshrl.u32 %v685, 16
      %v718 = vrot.slane %v716, 3
      %v719 = vshll.u32 %v685, 16
      %v721 = vrot.slane %v719, 4
      %v722 = vor.u32 %v718, %v721
      %v723 = vsel %vm702, %v713, %v722
      %v743 = vunpack.c.l.b16 %v686
      %v744 = vunpack.c.l.b16 %v687
      %v745 = vunpack.c.l.b16 %v688
      %v746 = vunpack.c.l.b16 %v689
      %v747 = vunpack.c.l.b16 %v690
      %v748 = vunpack.c.l.b16 %v691
      %v749 = vunpack.c.l.b16 %v692
      %v750 = vunpack.c.l.b16 %v693
      %v751 = vunpack.c.l.b16 %v694
      %v752 = vunpack.c.l.b16 %v695
      %v753 = vunpack.c.l.b16 %v696
      %v754 = vunpack.c.l.b16 %v697
      %v755 = vunpack.c.l.b16 %v698
      %v756 = vunpack.c.l.b16 %v699
      %v757 = vunpack.c.l.b16 %v700
      %v758 = vunpack.c.l.b16 %v701
      %v759 = vpack.c.b16 %v744, %v743
      %v760 = vpack.c.b16 %v746, %v745
      %v761 = vpack.c.b16 %v748, %v747
      %v762 = vpack.c.b16 %v750, %v749
      %v763 = vpack.c.b16 %v752, %v751
      %v764 = vpack.c.b16 %v754, %v753
      %v765 = vpack.c.b16 %v756, %v755
      %v766 = vpack.c.b16 %v758, %v757
      %775 = vmatpush.bf16.msra.mxu0 %v766
      %776 = vmatpush.bf16.msra.mxu0 %v765
      %777 = vmatpush.bf16.msra.mxu0 %v764
      %778 = vmatpush.bf16.msra.mxu0 %v763
      %779 = vmatpush.bf16.msra.mxu0 %v762
      %780 = vmatpush.bf16.msra.mxu0 %v761
      %781 = vmatpush.bf16.msra.mxu0 %v760
      %782 = vmatpush.bf16.msra.mxu0 %v759
      %783 = vmatmul.bf16.gmra.mxu0 %v714
      %v784 = vpop.f32.mrf.mxu0
      %v785 = vadd.f32 0.0, %v784
      %v786 = vpop.f32.mrf.mxu0
      %v787 = vadd.f32 0.0, %v786
      %788 = vmatmul.bf16.gmra.mxu0 %v723
      %v789 = vpop.f32.mrf.mxu0
      %v790 = vadd.f32 0.0, %v789
      %v791 = vpop.f32.mrf.mxu0
      %v792 = vadd.f32 0.0, %v791
      %793 = vmatmul.bf16.gmra.mxu0 %v722
      %v794 = vpop.f32.mrf.mxu0
      %v795 = vadd.f32 0.0, %v794
      %v796 = vpop.f32.mrf.mxu0
      %797 = vdwg.mxu0
      %v798 = vadd.f32 %v677, %v785
      %v799 = vadd.f32 %v678, %v787
      %v800 = vadd.f32 %v679, %v790
      %v801 = vadd.f32 %v680, %v792
      %v802 = vadd.f32 %v681, %v795
      %v803 = vpack.c.bf16 %v252, %v251
      %v804 = vpack.c.bf16 %v254, %v253
      %v805 = vpack.c.bf16 %v684, %v684
      %v806 = vld [vmem:[%s1 + $0x140] sm:$0xf]
      %v807 = vld [vmem:[%s1 + $0x144] sm:$0xf]
      %v808 = vld [vmem:[%s1 + $0x148] sm:$0xf]
      %v809 = vld [vmem:[%s1 + $0x14c] sm:$0xf]
      %v810 = vld [vmem:[%s1 + $0x150] sm:$0xf]
      %v811 = vld [vmem:[%s1 + $0x154] sm:$0xf]
      %v812 = vld [vmem:[%s1 + $0x158] sm:$0xf]
      %v813 = vld [vmem:[%s1 + $0x15c] sm:$0xf]
      %v814 = vld [vmem:[%s1 + $0x160] sm:$0xf]
      %v815 = vld [vmem:[%s1 + $0x164] sm:$0xf]
      %v816 = vld [vmem:[%s1 + $0x168] sm:$0xf]
      %v817 = vld [vmem:[%s1 + $0x16c] sm:$0xf]
      %v818 = vld [vmem:[%s1 + $0x170] sm:$0xf]
      %v819 = vld [vmem:[%s1 + $0x174] sm:$0xf]
      %v820 = vld [vmem:[%s1 + $0x178] sm:$0xf]
      %v821 = vld [vmem:[%s1 + $0x17c] sm:$0xf]
      %v838 = vunpack.c.l.b16 %v806
      %v839 = vunpack.c.l.b16 %v807
      %v840 = vunpack.c.l.b16 %v808
      %v841 = vunpack.c.l.b16 %v809
      %v842 = vunpack.c.l.b16 %v810
      %v843 = vunpack.c.l.b16 %v811
      %v844 = vunpack.c.l.b16 %v812
      %v845 = vunpack.c.l.b16 %v813
      %v846 = vunpack.c.l.b16 %v814
      %v847 = vunpack.c.l.b16 %v815
      %v848 = vunpack.c.l.b16 %v816
      %v849 = vunpack.c.l.b16 %v817
      %v850 = vunpack.c.l.b16 %v818
      %v851 = vunpack.c.l.b16 %v819
      %v852 = vunpack.c.l.b16 %v820
      %v853 = vunpack.c.l.b16 %v821
      %v854 = vpack.c.b16 %v839, %v838
      %v855 = vpack.c.b16 %v841, %v840
      %v856 = vpack.c.b16 %v843, %v842
      %v857 = vpack.c.b16 %v845, %v844
      %v858 = vpack.c.b16 %v847, %v846
      %v859 = vpack.c.b16 %v849, %v848
      %v860 = vpack.c.b16 %v851, %v850
      %v861 = vpack.c.b16 %v853, %v852
      %870 = vmatpush.bf16.msra.mxu0 %v861
      %871 = vmatpush.bf16.msra.mxu0 %v860
      %872 = vmatpush.bf16.msra.mxu0 %v859
      %873 = vmatpush.bf16.msra.mxu0 %v858
      %874 = vmatpush.bf16.msra.mxu0 %v857
      %875 = vmatpush.bf16.msra.mxu0 %v856
      %876 = vmatpush.bf16.msra.mxu0 %v855
      %877 = vmatpush.bf16.msra.mxu0 %v854
      %878 = vmatmul.bf16.gmra.mxu0 %v803
      %v879 = vpop.f32.mrf.mxu0
      %v880 = vadd.f32 0.0, %v879
      %v881 = vpop.f32.mrf.mxu0
      %v882 = vadd.f32 0.0, %v881
      %883 = vmatmul.bf16.gmra.mxu0 %v804
      %v884 = vpop.f32.mrf.mxu0
      %v885 = vadd.f32 0.0, %v884
      %v886 = vpop.f32.mrf.mxu0
      %v887 = vadd.f32 0.0, %v886
      %888 = vmatmul.bf16.gmra.mxu0 %v805
      %v889 = vpop.f32.mrf.mxu0
      %v890 = vadd.f32 0.0, %v889
      %v891 = vpop.f32.mrf.mxu0
      %892 = vdwg.mxu0
      %v893 = vadd.f32 %v798, %v880
      %v894 = vadd.f32 %v799, %v882
      %v895 = vadd.f32 %v800, %v885
      %v896 = vadd.f32 %v801, %v887
      %v897 = vadd.f32 %v802, %v890
      %v898 = vld [vmem:[%s224 + $0x4] sm:$0xc]
      %v899 = vld [vmem:[%s224 + $0x8] sm:$0xf]
      %v900 = vld [vmem:[%s224 + $0xc] sm:$0xf]
      %v901 = vld [vmem:[%s224 + $0x10] sm:$0xf]
      %v902 = vld [vmem:[%s224 + $0x14] sm:$0xf]
      %v903 = vld [vmem:[%s224 + $0x18] sm:$0x3]
      %v904 = vunpack.c.l.bf16 %v898
      %v905 = vunpack.c.l.bf16 %v899
      %v906 = vunpack.c.l.bf16 %v900
      %v907 = vunpack.c.l.bf16 %v901
      %v908 = vunpack.c.l.bf16 %v902
      %v909 = vunpack.c.l.bf16 %v903
      %v910 = vmax.f32 %v904, 0.0
      %v911 = vmax.f32 %v905, 0.0
      %v912 = vmax.f32 %v906, 0.0
      %v913 = vmax.f32 %v907, 0.0
      %v914 = vmax.f32 %v908, 0.0
      %v915 = vmax.f32 %v909, 0.0
      %v916 = vpack.c.bf16 %v911, %v910
      %v917 = vpack.c.bf16 %v913, %v912
      %v918 = vpack.c.bf16 %v915, %v914
      %v919 = vld [vmem:[%s1 + $0x180] sm:$0xf]
      %v920 = vld [vmem:[%s1 + $0x184] sm:$0xf]
      %v921 = vld [vmem:[%s1 + $0x188] sm:$0xf]
      %v922 = vld [vmem:[%s1 + $0x18c] sm:$0xf]
      %v923 = vld [vmem:[%s1 + $0x190] sm:$0xf]
      %v924 = vld [vmem:[%s1 + $0x194] sm:$0xf]
      %v925 = vld [vmem:[%s1 + $0x198] sm:$0xf]
      %v926 = vld [vmem:[%s1 + $0x19c] sm:$0xf]
      %v927 = vld [vmem:[%s1 + $0x1a0] sm:$0xf]
      %v928 = vld [vmem:[%s1 + $0x1a4] sm:$0xf]
      %v929 = vld [vmem:[%s1 + $0x1a8] sm:$0xf]
      %v930 = vld [vmem:[%s1 + $0x1ac] sm:$0xf]
      %v931 = vld [vmem:[%s1 + $0x1b0] sm:$0xf]
      %v932 = vld [vmem:[%s1 + $0x1b4] sm:$0xf]
      %v933 = vld [vmem:[%s1 + $0x1b8] sm:$0xf]
      %v934 = vld [vmem:[%s1 + $0x1bc] sm:$0xf]
      %vm938 = vcmask 1045504
      %v939 = vrot.slane %v916, 2
      %v940 = vrot.slane %v917, 2
      %v941 = vsel %vm938, %v939, %v940
      %v942 = vrot.slane %v918, 2
      %v943 = vsel %vm938, %v940, %v942
      %v963 = vunpack.c.l.b16 %v919
      %v964 = vunpack.c.l.b16 %v920
      %v965 = vunpack.c.l.b16 %v921
      %v966 = vunpack.c.l.b16 %v922
      %v967 = vunpack.c.l.b16 %v923
      %v968 = vunpack.c.l.b16 %v924
      %v969 = vunpack.c.l.b16 %v925
      %v970 = vunpack.c.l.b16 %v926
      %v971 = vunpack.c.l.b16 %v927
      %v972 = vunpack.c.l.b16 %v928
      %v973 = vunpack.c.l.b16 %v929
      %v974 = vunpack.c.l.b16 %v930
      %v975 = vunpack.c.l.b16 %v931
      %v976 = vunpack.c.l.b16 %v932
      %v977 = vunpack.c.l.b16 %v933
      %v978 = vunpack.c.l.b16 %v934
      %v979 = vpack.c.b16 %v964, %v963
      %v980 = vpack.c.b16 %v966, %v965
      %v981 = vpack.c.b16 %v968, %v967
      %v982 = vpack.c.b16 %v970, %v969
      %v983 = vpack.c.b16 %v972, %v971
      %v984 = vpack.c.b16 %v974, %v973
      %v985 = vpack.c.b16 %v976, %v975
      %v986 = vpack.c.b16 %v978, %v977
      %995 = vmatpush.bf16.msra.mxu0 %v986
      %996 = vmatpush.bf16.msra.mxu0 %v985
      %997 = vmatpush.bf16.msra.mxu0 %v984
      %998 = vmatpush.bf16.msra.mxu0 %v983
      %999 = vmatpush.bf16.msra.mxu0 %v982
      %1000 = vmatpush.bf16.msra.mxu0 %v981
      %1001 = vmatpush.bf16.msra.mxu0 %v980
      %1002 = vmatpush.bf16.msra.mxu0 %v979
      %1003 = vmatmul.bf16.gmra.mxu0 %v941
      %v1004 = vpop.f32.mrf.mxu0
      %v1005 = vadd.f32 0.0, %v1004
      %v1006 = vpop.f32.mrf.mxu0
      %v1007 = vadd.f32 0.0, %v1006
      %1008 = vmatmul.bf16.gmra.mxu0 %v943
      %v1009 = vpop.f32.mrf.mxu0
      %v1010 = vadd.f32 0.0, %v1009
      %v1011 = vpop.f32.mrf.mxu0
      %v1012 = vadd.f32 0.0, %v1011
      %1013 = vmatmul.bf16.gmra.mxu0 %v942
      %v1014 = vpop.f32.mrf.mxu0
      %v1015 = vadd.f32 0.0, %v1014
      %v1016 = vpop.f32.mrf.mxu0
      %1017 = vdwg.mxu0
      %v1018 = vadd.f32 %v893, %v1005
      %v1019 = vadd.f32 %v894, %v1007
      %v1020 = vadd.f32 %v895, %v1010
      %v1021 = vadd.f32 %v896, %v1012
      %v1022 = vadd.f32 %v897, %v1015
      %v1023 = vld [vmem:[%s224 + $0x18] sm:$0x7]
      %v1024 = vunpack.c.l.bf16 %v1023
      %v1025 = vmax.f32 %v1024, 0.0
      %v1026 = vpack.c.bf16 %v1025, %v914
      %v1027 = vld [vmem:[%s1 + $0x1c0] sm:$0xf]
      %v1028 = vld [vmem:[%s1 + $0x1c4] sm:$0xf]
      %v1029 = vld [vmem:[%s1 + $0x1c8] sm:$0xf]
      %v1030 = vld [vmem:[%s1 + $0x1cc] sm:$0xf]
      %v1031 = vld [vmem:[%s1 + $0x1d0] sm:$0xf]
      %v1032 = vld [vmem:[%s1 + $0x1d4] sm:$0xf]
      %v1033 = vld [vmem:[%s1 + $0x1d8] sm:$0xf]
      %v1034 = vld [vmem:[%s1 + $0x1dc] sm:$0xf]
      %v1035 = vld [vmem:[%s1 + $0x1e0] sm:$0xf]
      %v1036 = vld [vmem:[%s1 + $0x1e4] sm:$0xf]
      %v1037 = vld [vmem:[%s1 + $0x1e8] sm:$0xf]
      %v1038 = vld [vmem:[%s1 + $0x1ec] sm:$0xf]
      %v1039 = vld [vmem:[%s1 + $0x1f0] sm:$0xf]
      %v1040 = vld [vmem:[%s1 + $0x1f4] sm:$0xf]
      %v1041 = vld [vmem:[%s1 + $0x1f8] sm:$0xf]
      %v1042 = vld [vmem:[%s1 + $0x1fc] sm:$0xf]
      %vm1043 = vsmask.f32 5376
      %v1045 = vshrl.u32 %v916, 16
      %v1047 = vrot.slane %v1045, 2
      %v1048 = vshll.u32 %v916, 16
      %v1050 = vrot.slane %v1048, 3
      %v1051 = vor.u32 %v1047, %v1050
      %v1053 = vshrl.u32 %v917, 16
      %v1055 = vrot.slane %v1053, 2
      %v1056 = vshll.u32 %v917, 16
      %v1058 = vrot.slane %v1056, 3
      %v1059 = vor.u32 %v1055, %v1058
      %v1060 = vsel %vm1043, %v1051, %v1059
      %v1062 = vshrl.u32 %v1026, 16
      %v1064 = vrot.slane %v1062, 2
      %v1065 = vshll.u32 %v1026, 16
      %v1067 = vrot.slane %v1065, 3
      %v1068 = vor.u32 %v1064, %v1067
      %v1069 = vsel %vm1043, %v1059, %v1068
      %v1089 = vunpack.c.l.b16 %v1027
      %v1090 = vunpack.c.l.b16 %v1028
      %v1091 = vunpack.c.l.b16 %v1029
      %v1092 = vunpack.c.l.b16 %v1030
      %v1093 = vunpack.c.l.b16 %v1031
      %v1094 = vunpack.c.l.b16 %v1032
      %v1095 = vunpack.c.l.b16 %v1033
      %v1096 = vunpack.c.l.b16 %v1034
      %v1097 = vunpack.c.l.b16 %v1035
      %v1098 = vunpack.c.l.b16 %v1036
      %v1099 = vunpack.c.l.b16 %v1037
      %v1100 = vunpack.c.l.b16 %v1038
      %v1101 = vunpack.c.l.b16 %v1039
      %v1102 = vunpack.c.l.b16 %v1040
      %v1103 = vunpack.c.l.b16 %v1041
      %v1104 = vunpack.c.l.b16 %v1042
      %v1105 = vpack.c.b16 %v1090, %v1089
      %v1106 = vpack.c.b16 %v1092, %v1091
      %v1107 = vpack.c.b16 %v1094, %v1093
      %v1108 = vpack.c.b16 %v1096, %v1095
      %v1109 = vpack.c.b16 %v1098, %v1097
      %v1110 = vpack.c.b16 %v1100, %v1099
      %v1111 = vpack.c.b16 %v1102, %v1101
      %v1112 = vpack.c.b16 %v1104, %v1103
      %1121 = vmatpush.bf16.msra.mxu0 %v1112
      %1122 = vmatpush.bf16.msra.mxu0 %v1111
      %1123 = vmatpush.bf16.msra.mxu0 %v1110
      %1124 = vmatpush.bf16.msra.mxu0 %v1109
      %1125 = vmatpush.bf16.msra.mxu0 %v1108
      %1126 = vmatpush.bf16.msra.mxu0 %v1107
      %1127 = vmatpush.bf16.msra.mxu0 %v1106
      %1128 = vmatpush.bf16.msra.mxu0 %v1105
      %1129 = vmatmul.bf16.gmra.mxu0 %v1060
      %v1130 = vpop.f32.mrf.mxu0
      %v1131 = vadd.f32 0.0, %v1130
      %v1132 = vpop.f32.mrf.mxu0
      %v1133 = vadd.f32 0.0, %v1132
      %1134 = vmatmul.bf16.gmra.mxu0 %v1069
      %v1135 = vpop.f32.mrf.mxu0
      %v1136 = vadd.f32 0.0, %v1135
      %v1137 = vpop.f32.mrf.mxu0
      %v1138 = vadd.f32 0.0, %v1137
      %1139 = vmatmul.bf16.gmra.mxu0 %v1068
      %v1140 = vpop.f32.mrf.mxu0
      %v1141 = vadd.f32 0.0, %v1140
      %v1142 = vpop.f32.mrf.mxu0
      %1143 = vdwg.mxu0
      %v1144 = vadd.f32 %v1018, %v1131
      %v1145 = vadd.f32 %v1019, %v1133
      %v1146 = vadd.f32 %v1020, %v1136
      %v1147 = vadd.f32 %v1021, %v1138
      %v1148 = vadd.f32 %v1022, %v1141
      %v1149 = vld [vmem:[%s224 + $0x4] sm:$0x8]
      %v1150 = vunpack.c.l.bf16 %v1149
      %v1151 = vmax.f32 %v1150, 0.0
      %v1152 = vpack.c.bf16 %v911, %v1151
      %v1153 = vld [vmem:[%s1 + $0x200] sm:$0xf]
      %v1154 = vld [vmem:[%s1 + $0x204] sm:$0xf]
      %v1155 = vld [vmem:[%s1 + $0x208] sm:$0xf]
      %v1156 = vld [vmem:[%s1 + $0x20c] sm:$0xf]
      %v1157 = vld [vmem:[%s1 + $0x210] sm:$0xf]
      %v1158 = vld [vmem:[%s1 + $0x214] sm:$0xf]
      %v1159 = vld [vmem:[%s1 + $0x218] sm:$0xf]
      %v1160 = vld [vmem:[%s1 + $0x21c] sm:$0xf]
      %v1161 = vld [vmem:[%s1 + $0x220] sm:$0xf]
      %v1162 = vld [vmem:[%s1 + $0x224] sm:$0xf]
      %v1163 = vld [vmem:[%s1 + $0x228] sm:$0xf]
      %v1164 = vld [vmem:[%s1 + $0x22c] sm:$0xf]
      %v1165 = vld [vmem:[%s1 + $0x230] sm:$0xf]
      %v1166 = vld [vmem:[%s1 + $0x234] sm:$0xf]
      %v1167 = vld [vmem:[%s1 + $0x238] sm:$0xf]
      %v1168 = vld [vmem:[%s1 + $0x23c] sm:$0xf]
      %v1171 = vrot.slane %v1152, 3
      %v1172 = vrot.slane %v917, 3
      %v1173 = vsel %vm597, %v1171, %v1172
      %v1174 = vrot.slane %v1026, 3
      %v1175 = vsel %vm597, %v1172, %v1174
      %v1195 = vunpack.c.l.b16 %v1153
      %v1196 = vunpack.c.l.b16 %v1154
      %v1197 = vunpack.c.l.b16 %v1155
      %v1198 = vunpack.c.l.b16 %v1156
      %v1199 = vunpack.c.l.b16 %v1157
      %v1200 = vunpack.c.l.b16 %v1158
      %v1201 = vunpack.c.l.b16 %v1159
      %v1202 = vunpack.c.l.b16 %v1160
      %v1203 = vunpack.c.l.b16 %v1161
      %v1204 = vunpack.c.l.b16 %v1162
      %v1205 = vunpack.c.l.b16 %v1163
      %v1206 = vunpack.c.l.b16 %v1164
      %v1207 = vunpack.c.l.b16 %v1165
      %v1208 = vunpack.c.l.b16 %v1166
      %v1209 = vunpack.c.l.b16 %v1167
      %v1210 = vunpack.c.l.b16 %v1168
      %v1211 = vpack.c.b16 %v1196, %v1195
      %v1212 = vpack.c.b16 %v1198, %v1197
      %v1213 = vpack.c.b16 %v1200, %v1199
      %v1214 = vpack.c.b16 %v1202, %v1201
      %v1215 = vpack.c.b16 %v1204, %v1203
      %v1216 = vpack.c.b16 %v1206, %v1205
      %v1217 = vpack.c.b16 %v1208, %v1207
      %v1218 = vpack.c.b16 %v1210, %v1209
      %1227 = vmatpush.bf16.msra.mxu0 %v1218
      %1228 = vmatpush.bf16.msra.mxu0 %v1217
      %1229 = vmatpush.bf16.msra.mxu0 %v1216
      %1230 = vmatpush.bf16.msra.mxu0 %v1215
      %1231 = vmatpush.bf16.msra.mxu0 %v1214
      %1232 = vmatpush.bf16.msra.mxu0 %v1213
      %1233 = vmatpush.bf16.msra.mxu0 %v1212
      %1234 = vmatpush.bf16.msra.mxu0 %v1211
      %1235 = vmatmul.bf16.gmra.mxu0 %v1173
      %v1236 = vpop.f32.mrf.mxu0
      %v1237 = vadd.f32 0.0, %v1236
      %v1238 = vpop.f32.mrf.mxu0
      %v1239 = vadd.f32 0.0, %v1238
      %1240 = vmatmul.bf16.gmra.mxu0 %v1175
      %v1241 = vpop.f32.mrf.mxu0
      %v1242 = vadd.f32 0.0, %v1241
      %v1243 = vpop.f32.mrf.mxu0
      %v1244 = vadd.f32 0.0, %v1243
      %1245 = vmatmul.bf16.gmra.mxu0 %v1174
      %v1246 = vpop.f32.mrf.mxu0
      %v1247 = vadd.f32 0.0, %v1246
      %v1248 = vpop.f32.mrf.mxu0
      %1249 = vdwg.mxu0
      %v1250 = vadd.f32 %v1144, %v1237
      %v1251 = vadd.f32 %v1145, %v1239
      %v1252 = vadd.f32 %v1146, %v1242
      %v1253 = vadd.f32 %v1147, %v1244
      %v1254 = vadd.f32 %v1148, %v1247
      %v1255 = vmax.f32 %v1250, 0.0
      %v1256 = vmax.f32 %v1251, 0.0
      %v1257 = vmax.f32 %v1252, 0.0
      %v1258 = vmax.f32 %v1253, 0.0
      %v1259 = vmax.f32 %v1254, 0.0
      %v1260 = vpack.c.bf16 %v1256, %v1255
      %v1261 = vpack.c.bf16 %v1258, %v1257
      %v1262 = vpack.c.bf16 %v1259, %v1259
      %v1263 = vld [vmem:[%s2] sm:$0xf]
      %v1264 = vld [vmem:[%s2 + $0x4] sm:$0xf]
      %v1265 = vld [vmem:[%s2 + $0x8] sm:$0xf]
      %v1266 = vld [vmem:[%s2 + $0xc] sm:$0xf]
      %v1267 = vld [vmem:[%s2 + $0x10] sm:$0xf]
      %v1268 = vld [vmem:[%s2 + $0x14] sm:$0xf]
      %v1269 = vld [vmem:[%s2 + $0x18] sm:$0xf]
      %v1270 = vld [vmem:[%s2 + $0x1c] sm:$0xf]
      %v1271 = vld [vmem:[%s2 + $0x20] sm:$0xf]
      %v1272 = vld [vmem:[%s2 + $0x24] sm:$0xf]
      %v1273 = vld [vmem:[%s2 + $0x28] sm:$0xf]
      %v1274 = vld [vmem:[%s2 + $0x2c] sm:$0xf]
      %v1275 = vld [vmem:[%s2 + $0x30] sm:$0xf]
      %v1276 = vld [vmem:[%s2 + $0x34] sm:$0xf]
      %v1277 = vld [vmem:[%s2 + $0x38] sm:$0xf]
      %v1278 = vld [vmem:[%s2 + $0x3c] sm:$0xf]
      %v1295 = vunpack.c.l.b16 %v1263
      %v1296 = vunpack.c.l.b16 %v1264
      %v1297 = vunpack.c.l.b16 %v1265
      %v1298 = vunpack.c.l.b16 %v1266
      %v1299 = vunpack.c.l.b16 %v1267
      %v1300 = vunpack.c.l.b16 %v1268
      %v1301 = vunpack.c.l.b16 %v1269
      %v1302 = vunpack.c.l.b16 %v1270
      %v1303 = vunpack.c.l.b16 %v1271
      %v1304 = vunpack.c.l.b16 %v1272
      %v1305 = vunpack.c.l.b16 %v1273
      %v1306 = vunpack.c.l.b16 %v1274
      %v1307 = vunpack.c.l.b16 %v1275
      %v1308 = vunpack.c.l.b16 %v1276
      %v1309 = vunpack.c.l.b16 %v1277
      %v1310 = vunpack.c.l.b16 %v1278
      %v1311 = vpack.c.b16 %v1296, %v1295
      %v1312 = vpack.c.b16 %v1298, %v1297
      %v1313 = vpack.c.b16 %v1300, %v1299
      %v1314 = vpack.c.b16 %v1302, %v1301
      %v1315 = vpack.c.b16 %v1304, %v1303
      %v1316 = vpack.c.b16 %v1306, %v1305
      %v1317 = vpack.c.b16 %v1308, %v1307
      %v1318 = vpack.c.b16 %v1310, %v1309
      %vm1333 = vcmask 1040384
      %v1334 = vrot.slane %v573, 7
      %v1335 = vrot.slane %v246, 7
      %v1336 = vsel %vm1333, %v1334, %v1335
      %v1337 = vrot.slane %v247, 7
      %v1338 = vsel %vm1333, %v1335, %v1337
      %v1339 = vrot.slane %v248, 7
      %v1340 = vsel %vm1333, %v1337, %v1339
      %v1341 = vrot.slane %v249, 7
      %v1342 = vsel %vm1333, %v1339, %v1341
      %v1343 = vrot.slane %v683, 7
      %v1344 = vsel %vm1333, %v1341, %v1343
      %1350 = vmatpush.bf16.msra.mxu0 %v1318
      %1351 = vmatpush.bf16.msra.mxu0 %v1317
      %1352 = vmatpush.bf16.msra.mxu0 %v1316
      %1353 = vmatpush.bf16.msra.mxu0 %v1315
      %1354 = vmatpush.bf16.msra.mxu0 %v1314
      %1355 = vmatpush.bf16.msra.mxu0 %v1313
      %1356 = vmatpush.bf16.msra.mxu0 %v1312
      %1357 = vmatpush.bf16.msra.mxu0 %v1311
      %1358 = vmatmul.bf16.gmra.mxu0 %v1260
      %v1359 = vpop.f32.mrf.mxu0
      %v1360 = vadd.f32 %v1336, %v1359
      %v1361 = vpop.f32.mrf.mxu0
      %v1362 = vadd.f32 %v1338, %v1361
      %1363 = vmatmul.bf16.gmra.mxu0 %v1261
      %v1364 = vpop.f32.mrf.mxu0
      %v1365 = vadd.f32 %v1340, %v1364
      %v1366 = vpop.f32.mrf.mxu0
      %v1367 = vadd.f32 %v1342, %v1366
      %1368 = vmatmul.bf16.gmra.mxu0 %v1262
      %v1369 = vpop.f32.mrf.mxu0
      %v1370 = vadd.f32 %v1344, %v1369
      %v1371 = vpop.f32.mrf.mxu0
      %1372 = vdwg.mxu0
      %v1373 = vld [vmem:[%s230] sm:$0xff]
      %v1374 = vld [vmem:[%s230 + $0x8] sm:$0xff]
      %v1375 = vld [vmem:[%s230 + $0x10] sm:$0xff]
      %v1376 = vld [vmem:[%s230 + $0x18] sm:$0xff]
      %v1377 = vld [vmem:[%s230 + $0x20] sm:$0xff]
      %1379 = vset.pattern.permute.xlu0 0
      %1380 = vperm.xlu0 %1379, %v1373
      %v1381 = vpop.permute.xlu0 %1380
      %1384 = vset.pattern.permute.xlu0 0
      %1385 = vperm.xlu0 %1384, %v1374
      %v1386 = vpop.permute.xlu0 %1385
      %1389 = vset.pattern.permute.xlu0 0
      %1390 = vperm.xlu0 %1389, %v1375
      %v1391 = vpop.permute.xlu0 %1390
      %1394 = vset.pattern.permute.xlu0 0
      %1395 = vperm.xlu0 %1394, %v1376
      %v1396 = vpop.permute.xlu0 %1395
      %1399 = vset.pattern.permute.xlu0 0
      %1400 = vperm.xlu0 %1399, %v1377
      %v1401 = vpop.permute.xlu0 %1400
      %v1403 = vmul.f32 %v1360, %v1381
      %v1404 = vmul.f32 %v1362, %v1386
      %v1405 = vmul.f32 %v1365, %v1391
      %v1406 = vmul.f32 %v1367, %v1396
      %v1407 = vmul.f32 %v1370, %v1401
      %v1408 = vpack.c.bf16 %v1403, %v1403
      %v1409 = vpack.c.bf16 %v1404, %v1404
      %v1410 = vpack.c.bf16 %v1405, %v1405
      %v1411 = vpack.c.bf16 %v1406, %v1406
      %v1412 = vpack.c.bf16 %v1407, %v1407
      %1413 = vst [vmem:[%s237] sm:$0xf] %v1408
      %1414 = vst [vmem:[%s237 + $0x4] sm:$0xf] %v1409
      %1415 = vst [vmem:[%s237 + $0x8] sm:$0xf] %v1410
      %1416 = vst [vmem:[%s237 + $0xc] sm:$0xf] %v1411
      %1417 = vst [vmem:[%s237 + $0x10] sm:$0xf] %v1412
      %s1418 = sadd.s32 %s19, %s20
      %s1419 = smul.u32 5, %s1418
      %p1420 = scmp.lt.s32.totalorder %s1419, 9
      %s1421 = scalar_select %p1420, %s1419, 9
      %s1422 = smul.addr %s1421, 4
      %s1423 = scalar_lea.vmem %s4, %s1422
      // Predicated region
      $region37: #{vqvae_forward.14} parent=35 // pred_check
        %p1424 = pneg %p141
      $region38: #{vqvae_forward.14} parent=35 // pred_check_branch
        %1426 = sbr.rel (%p1424) target = $region40
      $region39: #{vqvae_forward.14} parent=35 // pred_region
        %s1427 = sadd.s32 %s19, %s20
        %s1428 = smul.u32 5, %s1427
      $region40: #{vqvae_forward.14} parent=35 // pred_fallthru
        _
    $region36: #{vqvae_forward.14} parent=5 // pred_fallthru
      _
    %p1429 = scmp.le.s32.totalorder 2, %s10
    // Predicated region
    $region41: #{vqvae_forward.14} parent=5 // pred_check
      %p1430 = pneg %p1429
    $region42: #{vqvae_forward.14} parent=5 // pred_check_branch
      %1432 = sbr.rel (%p1430) target = $region44
    $region43: #{vqvae_forward.14} parent=5 // pred_region
      %s1433 = ssub.s32 %s10, 2
      // Predicated region
      $region45: #{vqvae_forward.14} parent=43 // pred_check
        %p1434 = pneg %p147
      $region46: #{vqvae_forward.14} parent=43 // pred_check_branch
        %1436 = sbr.rel (%p1434) target = $region48
      $region47: #{vqvae_forward.14} parent=43 // pred_region
        %s1437 = sadd.s32 %s21, %s22
        %s1438 = smul.u32 5, %s1437
        %p1439 = scmp.lt.s32.totalorder %s1438, 9
        %s1440 = scalar_select %p1439, %s1438, 9
        %s1441 = smul.addr %s1440, 4
        %s1442 = scalar_lea.vmem %s4, %s1441
      $region48: #{vqvae_forward.14} parent=43 // pred_fallthru
        _
    $region44: #{vqvae_forward.14} parent=5 // pred_fallthru
      _
  $region6: #{vqvae_forward.14} parent=0 // loop_footer
    %s14 = sadd.s32 1, %s10
  $region7: #{vqvae_forward.14} parent=0 // loop_footer_branch
    %9 = sbr.rel target = $region3
  $region8: #{vqvae_forward.14} parent=0 // loop_exit
    _

// kernel: vqvae_forward.16
$region0: #{vqvae_forward.16}
  #allocation0 [shape = 'u32[]', space=smem, size = 0x4, offset = 0x4, fixed_abs, tag = 'smem constant byte address 0x4 - core index']
  #allocation1 [shape = 'u32[72,128]{1,0:T(1,128)}', space=vmem, size = 0x9000, scoped, tag = 'internal scratch']
  %s0 = inlined_call_operand.vmem [shape: bf16[32,128], index: 0, kind: input, shape index: {}]
  %s1 = inlined_call_operand.vmem [shape: bf16[128,128], index: 1, kind: input, shape index: {}]
  %s2 = inlined_call_operand.vmem [shape: f32[1,128], index: 2, kind: input, shape index: {}]
  %s3 = inlined_call_operand.vmem [shape: bf16[128,128], index: 3, kind: input, shape index: {}]
  %s4 = inlined_call_operand.vmem [shape: f32[1,128], index: 4, kind: input, shape index: {}]
  %s5 = inlined_call_operand.vmem [shape: bf16[32,128], index: 5, kind: output, shape index: {0}]
  %s6 = inlined_call_operand.vmem [shape: f32[8,128], index: 6, kind: output, shape index: {1}]
  %s7 = inlined_call_operand.vmem [shape: f32[8,128], index: 7, kind: output, shape index: {2}]
  %8 = xla_tuple %s5, %s6, %s7
  %s9 = sld [smem:[#allocation0]]
  $region46: #{vqvae_forward.16} parent=0
    _
  %s11 = ssub.s32 1, %s9
  %s12 = scalar_select 0, %s11, %s9
  // Predicated region
  $region2: #{vqvae_forward.16} parent=0 // pred_check
    _
  $region3: #{vqvae_forward.16} parent=0 // pred_check_branch
    %14 = sbr.rel (0) target = $region5
  $region4: #{vqvae_forward.16} parent=0 // pred_region
    _
  $region5: #{vqvae_forward.16} parent=0 // pred_fallthru
    _
  // Predicated region
  $region6: #{vqvae_forward.16} parent=0 // pred_check
    _
  $region7: #{vqvae_forward.16} parent=0 // pred_check_branch
    %16 = sbr.rel (0) target = $region9
  $region8: #{vqvae_forward.16} parent=0 // pred_region
    _
  $region9: #{vqvae_forward.16} parent=0 // pred_fallthru
    _
  // Predicated region
  $region10: #{vqvae_forward.16} parent=0 // pred_check
    _
  $region11: #{vqvae_forward.16} parent=0 // pred_check_branch
    %18 = sbr.rel (0) target = $region13
  $region12: #{vqvae_forward.16} parent=0 // pred_region
    _
  $region13: #{vqvae_forward.16} parent=0 // pred_fallthru
    _
  // Predicated region
  $region14: #{vqvae_forward.16} parent=0 // pred_check
    _
  $region15: #{vqvae_forward.16} parent=0 // pred_check_branch
    %20 = sbr.rel (0) target = $region17
  $region16: #{vqvae_forward.16} parent=0 // pred_region
    _
  $region17: #{vqvae_forward.16} parent=0 // pred_fallthru
    _
  // Predicated region
  $region18: #{vqvae_forward.16} parent=0 // pred_check
    _
  $region19: #{vqvae_forward.16} parent=0 // pred_check_branch
    %22 = sbr.rel (0) target = $region21
  $region20: #{vqvae_forward.16} parent=0 // pred_region
    _
  $region21: #{vqvae_forward.16} parent=0 // pred_fallthru
    _
  %v23 = vld [vmem:[%s0] sm:$0xf]
  %v24 = vld [vmem:[%s0 + $0x4] sm:$0xf]
  %v25 = vld [vmem:[%s0 + $0x8] sm:$0xf]
  %v26 = vld [vmem:[%s0 + $0xc] sm:$0xf]
  %v27 = vld [vmem:[%s1] sm:$0xf]
  %v28 = vld [vmem:[%s1 + $0x4] sm:$0xf]
  %v29 = vld [vmem:[%s1 + $0x8] sm:$0xf]
  %v30 = vld [vmem:[%s1 + $0xc] sm:$0xf]
  %v31 = vld [vmem:[%s1 + $0x10] sm:$0xf]
  %v32 = vld [vmem:[%s1 + $0x14] sm:$0xf]
  %v33 = vld [vmem:[%s1 + $0x18] sm:$0xf]
  %v34 = vld [vmem:[%s1 + $0x1c] sm:$0xf]
  %v35 = vld [vmem:[%s1 + $0x20] sm:$0xf]
  %v36 = vld [vmem:[%s1 + $0x24] sm:$0xf]
  %v37 = vld [vmem:[%s1 + $0x28] sm:$0xf]
  %v38 = vld [vmem:[%s1 + $0x2c] sm:$0xf]
  %v39 = vld [vmem:[%s1 + $0x30] sm:$0xf]
  %v40 = vld [vmem:[%s1 + $0x34] sm:$0xf]
  %v41 = vld [vmem:[%s1 + $0x38] sm:$0xf]
  %v42 = vld [vmem:[%s1 + $0x3c] sm:$0xf]
  %v43 = vld [vmem:[%s2] sm:$0x1]
  %v45 = vperm.slane %v43, 0
  %v51 = vunpack.c.l.b16 %v23
  %v52 = vunpack.c.l.b16 %v24
  %v53 = vunpack.c.l.b16 %v25
  %v54 = vunpack.c.l.b16 %v26
  %v55 = vpack.c.b16 %v52, %v51
  %v56 = vpack.c.b16 %v54, %v53
  %v75 = vunpack.c.l.b16 %v27
  %v76 = vunpack.c.l.b16 %v28
  %v77 = vunpack.c.l.b16 %v29
  %v78 = vunpack.c.l.b16 %v30
  %v79 = vunpack.c.l.b16 %v31
  %v80 = vunpack.c.l.b16 %v32
  %v81 = vunpack.c.l.b16 %v33
  %v82 = vunpack.c.l.b16 %v34
  %v83 = vunpack.c.l.b16 %v35
  %v84 = vunpack.c.l.b16 %v36
  %v85 = vunpack.c.l.b16 %v37
  %v86 = vunpack.c.l.b16 %v38
  %v87 = vunpack.c.l.b16 %v39
  %v88 = vunpack.c.l.b16 %v40
  %v89 = vunpack.c.l.b16 %v41
  %v90 = vunpack.c.l.b16 %v42
  %v91 = vpack.c.b16 %v76, %v75
  %v92 = vpack.c.b16 %v78, %v77
  %v93 = vpack.c.b16 %v80, %v79
  %v94 = vpack.c.b16 %v82, %v81
  %v95 = vpack.c.b16 %v84, %v83
  %v96 = vpack.c.b16 %v86, %v85
  %v97 = vpack.c.b16 %v88, %v87
  %v98 = vpack.c.b16 %v90, %v89
  %107 = vmatpush.bf16.msra.mxu0 %v98
  %108 = vmatpush.bf16.msra.mxu0 %v97
  %109 = vmatpush.bf16.msra.mxu0 %v96
  %110 = vmatpush.bf16.msra.mxu0 %v95
  %111 = vmatpush.bf16.msra.mxu0 %v94
  %112 = vmatpush.bf16.msra.mxu0 %v93
  %113 = vmatpush.bf16.msra.mxu0 %v92
  %114 = vmatpush.bf16.msra.mxu0 %v91
  %115 = vmatmul.bf16.gmra.mxu0 %v55
  %v116 = vpop.f32.mrf.mxu0
  %v117 = vadd.f32 %v45, %v116
  %v118 = vpop.f32.mrf.mxu0
  %v119 = vadd.f32 %v45, %v118
  %120 = vmatmul.bf16.gmra.mxu0 %v56
  %v121 = vpop.f32.mrf.mxu0
  %v122 = vadd.f32 %v45, %v121
  %v123 = vpop.f32.mrf.mxu0
  %v124 = vadd.f32 %v45, %v123
  %125 = vdwg.mxu0
  %v126 = vld [vmem:[%s3] sm:$0xf]
  %v127 = vld [vmem:[%s3 + $0x4] sm:$0xf]
  %v128 = vld [vmem:[%s3 + $0x8] sm:$0xf]
  %v129 = vld [vmem:[%s3 + $0xc] sm:$0xf]
  %v130 = vld [vmem:[%s3 + $0x10] sm:$0xf]
  %v131 = vld [vmem:[%s3 + $0x14] sm:$0xf]
  %v132 = vld [vmem:[%s3 + $0x18] sm:$0xf]
  %v133 = vld [vmem:[%s3 + $0x1c] sm:$0xf]
  %v134 = vld [vmem:[%s3 + $0x20] sm:$0xf]
  %v135 = vld [vmem:[%s3 + $0x24] sm:$0xf]
  %v136 = vld [vmem:[%s3 + $0x28] sm:$0xf]
  %v137 = vld [vmem:[%s3 + $0x2c] sm:$0xf]
  %v138 = vld [vmem:[%s3 + $0x30] sm:$0xf]
  %v139 = vld [vmem:[%s3 + $0x34] sm:$0xf]
  %v140 = vld [vmem:[%s3 + $0x38] sm:$0xf]
  %v141 = vld [vmem:[%s3 + $0x3c] sm:$0xf]
  %v142 = vld [vmem:[%s4] sm:$0x1]
  %v143 = vpack.c.bf16 %v119, %v117
  %v144 = vpack.c.bf16 %v124, %v122
  %v161 = vunpack.c.l.b16 %v126
  %v162 = vunpack.c.l.b16 %v127
  %v163 = vunpack.c.l.b16 %v128
  %v164 = vunpack.c.l.b16 %v129
  %v165 = vunpack.c.l.b16 %v130
  %v166 = vunpack.c.l.b16 %v131
  %v167 = vunpack.c.l.b16 %v132
  %v168 = vunpack.c.l.b16 %v133
  %v169 = vunpack.c.l.b16 %v134
  %v170 = vunpack.c.l.b16 %v135
  %v171 = vunpack.c.l.b16 %v136
  %v172 = vunpack.c.l.b16 %v137
  %v173 = vunpack.c.l.b16 %v138
  %v174 = vunpack.c.l.b16 %v139
  %v175 = vunpack.c.l.b16 %v140
  %v176 = vunpack.c.l.b16 %v141
  %v177 = vpack.c.b16 %v162, %v161
  %v178 = vpack.c.b16 %v164, %v163
  %v179 = vpack.c.b16 %v166, %v165
  %v180 = vpack.c.b16 %v168, %v167
  %v181 = vpack.c.b16 %v170, %v169
  %v182 = vpack.c.b16 %v172, %v171
  %v183 = vpack.c.b16 %v174, %v173
  %v184 = vpack.c.b16 %v176, %v175
  %193 = vmatpush.bf16.xpose.msra.mxu0 %v184
  %194 = vmatpush.bf16.xpose.msra.mxu0 %v183
  %195 = vmatpush.bf16.xpose.msra.mxu0 %v182
  %196 = vmatpush.bf16.xpose.msra.mxu0 %v181
  %197 = vmatpush.bf16.xpose.msra.mxu0 %v180
  %198 = vmatpush.bf16.xpose.msra.mxu0 %v179
  %199 = vmatpush.bf16.xpose.msra.mxu0 %v178
  %200 = vmatpush.bf16.xpose.msra.mxu0 %v177
  %201 = vmatmul.bf16.gmra.mxu0 %v143
  %v202 = vpop.f32.mrf.mxu0
  %v203 = vadd.f32 0.0, %v202
  %v204 = vpop.f32.mrf.mxu0
  %v205 = vadd.f32 0.0, %v204
  %206 = vmatmul.bf16.gmra.mxu0 %v144
  %v207 = vpop.f32.mrf.mxu0
  %v208 = vadd.f32 0.0, %v207
  %v209 = vpop.f32.mrf.mxu0
  %v210 = vadd.f32 0.0, %v209
  %211 = vdwg.mxu0
  %v212 = vmul.f32 %v203, 2.0
  %v213 = vmul.f32 %v205, 2.0
  %v214 = vmul.f32 %v208, 2.0
  %v215 = vmul.f32 %v210, 2.0
  %v217 = vperm.slane %v142, 0
  %v219 = vsub.f32 %v217, %v212
  %v220 = vsub.f32 %v217, %v213
  %v221 = vsub.f32 %v217, %v214
  %v222 = vsub.f32 %v217, %v215
  %v223 = vlaneseq
  %v224 = vand.u32 %v223, 127
  %vm225 = vcmp.lt.s32.totalorder %v224, 64
  %v226 = vsel %vm225, %v219, inf
  %v227 = vsel %vm225, %v220, inf
  %v228 = vsel %vm225, %v221, inf
  %v229 = vsel %vm225, %v222, inf
  %230 = vmin.xlane.f32.xlu0 %v226
  %v231 = vpop.xlane.xlu0 %230
  %232 = vmin.xlane.f32.xlu0 %v227
  %v233 = vpop.xlane.xlu0 %232
  %234 = vmin.xlane.f32.xlu0 %v228
  %v235 = vpop.xlane.xlu0 %234
  %236 = vmin.xlane.f32.xlu0 %v229
  %v237 = vpop.xlane.xlu0 %236
  %vm238 = vcmp.eq.f32.partialorder %v226, %v231
  %vm239 = vcmp.eq.f32.partialorder %v227, %v233
  %vm240 = vcmp.eq.f32.partialorder %v228, %v235
  %vm241 = vcmp.eq.f32.partialorder %v229, %v237
  %v242 = vsel %vm238, %v224, 128
  %v243 = vsel %vm239, %v224, 128
  %v244 = vsel %vm240, %v224, 128
  %v245 = vsel %vm241, %v224, 128
  %v246 = vand.u32 %v242, 65535
  %v247 = vshra.s32 %v242, 16
  %v248 = vcvt.s32.f32 %v246
  %v249 = vcvt.s32.f32 %v247
  %250 = vmin.xlane.f32.xlu0 %v249
  %v251 = vpop.xlane.xlu0 %250
  %vm252 = vcmp.eq.f32.partialorder %v249, %v251
  %v253 = vsel %vm252, %v248, inf
  %254 = vmin.xlane.f32.xlu0 %v253
  %v255 = vpop.xlane.xlu0 %254
  %v256 = vcvt.f32.s32 %v255
  %v257 = vcvt.f32.s32 %v251
  %v258 = vshll.u32 %v257, 16
  %v259 = vadd.s32 %v258, %v256
  %v260 = vand.u32 %v243, 65535
  %v261 = vshra.s32 %v243, 16
  %v262 = vcvt.s32.f32 %v260
  %v263 = vcvt.s32.f32 %v261
  %264 = vmin.xlane.f32.xlu0 %v263
  %v265 = vpop.xlane.xlu0 %264
  %vm266 = vcmp.eq.f32.partialorder %v263, %v265
  %v267 = vsel %vm266, %v262, inf
  %268 = vmin.xlane.f32.xlu0 %v267
  %v269 = vpop.xlane.xlu0 %268
  %v270 = vcvt.f32.s32 %v269
  %v271 = vcvt.f32.s32 %v265
  %v272 = vshll.u32 %v271, 16
  %v273 = vadd.s32 %v272, %v270
  %v274 = vand.u32 %v244, 65535
  %v275 = vshra.s32 %v244, 16
  %v276 = vcvt.s32.f32 %v274
  %v277 = vcvt.s32.f32 %v275
  %278 = vmin.xlane.f32.xlu0 %v277
  %v279 = vpop.xlane.xlu0 %278
  %vm280 = vcmp.eq.f32.partialorder %v277, %v279
  %v281 = vsel %vm280, %v276, inf
  %282 = vmin.xlane.f32.xlu0 %v281
  %v283 = vpop.xlane.xlu0 %282
  %v284 = vcvt.f32.s32 %v283
  %v285 = vcvt.f32.s32 %v279
  %v286 = vshll.u32 %v285, 16
  %v287 = vadd.s32 %v286, %v284
  %v288 = vand.u32 %v245, 65535
  %v289 = vshra.s32 %v245, 16
  %v290 = vcvt.s32.f32 %v288
  %v291 = vcvt.s32.f32 %v289
  %292 = vmin.xlane.f32.xlu0 %v291
  %v293 = vpop.xlane.xlu0 %292
  %vm294 = vcmp.eq.f32.partialorder %v291, %v293
  %v295 = vsel %vm294, %v290, inf
  %296 = vmin.xlane.f32.xlu0 %v295
  %v297 = vpop.xlane.xlu0 %296
  %v298 = vcvt.f32.s32 %v297
  %v299 = vcvt.f32.s32 %v293
  %v300 = vshll.u32 %v299, 16
  %v301 = vadd.s32 %v300, %v298
  %vm302 = vcmp.eq.s32.totalorder %v224, %v259
  %vm303 = vcmp.eq.s32.totalorder %v224, %v273
  %vm304 = vcmp.eq.s32.totalorder %v224, %v287
  %vm305 = vcmp.eq.s32.totalorder %v224, %v301
  %v306 = vsel %vm302, 1, 0
  %v307 = vsel %vm303, 1, 0
  %v308 = vsel %vm304, 1, 0
  %v309 = vsel %vm305, 1, 0
  %v310 = vcvt.s32.f32 %v306
  %v311 = vcvt.s32.f32 %v307
  %v312 = vcvt.s32.f32 %v308
  %v313 = vcvt.s32.f32 %v309
  %v314 = vpack.c.bf16 %v311, %v310
  %v315 = vpack.c.bf16 %v313, %v312
  %316 = vmatpush.bf16.msra.mxu0 %v184
  %317 = vmatpush.bf16.msra.mxu0 %v183
  %318 = vmatpush.bf16.msra.mxu0 %v182
  %319 = vmatpush.bf16.msra.mxu0 %v181
  %320 = vmatpush.bf16.msra.mxu0 %v180
  %321 = vmatpush.bf16.msra.mxu0 %v179
  %322 = vmatpush.bf16.msra.mxu0 %v178
  %323 = vmatpush.bf16.msra.mxu0 %v177
  %324 = vmatmul.bf16.gmra.mxu0 %v314
  %v325 = vpop.f32.mrf.mxu0
  %v326 = vadd.f32 0.0, %v325
  %v327 = vpop.f32.mrf.mxu0
  %v328 = vadd.f32 0.0, %v327
  %329 = vmatmul.bf16.gmra.mxu0 %v315
  %v330 = vpop.f32.mrf.mxu0
  %v331 = vadd.f32 0.0, %v330
  %v332 = vpop.f32.mrf.mxu0
  %v333 = vadd.f32 0.0, %v332
  %334 = vdwg.mxu0
  %v335 = vpack.c.bf16 %v326, %v326
  %v336 = vpack.c.bf16 %v328, %v328
  %v337 = vpack.c.bf16 %v331, %v331
  %v338 = vpack.c.bf16 %v333, %v333
  %339 = vst [vmem:[%s5] sm:$0xf] %v335
  %340 = vst [vmem:[%s5 + $0x4] sm:$0xf] %v336
  %341 = vst [vmem:[%s5 + $0x8] sm:$0xf] %v337
  %342 = vst [vmem:[%s5 + $0xc] sm:$0xf] %v338
  %v343 = vlaneseq
  %v344 = vshrl.u32 %v343, 7
  %v345 = vadd.s32 %v344, 8
  %v346 = vadd.s32 %v344, 16
  %v347 = vadd.s32 %v344, 24
  %s348 = smul.u32 0, 32
  %v349 = vstv %s348
  %v350 = vadd.s32 %v344, %v349
  %v351 = vadd.s32 %v345, %v349
  %v352 = vadd.s32 %v346, %v349
  %v353 = vadd.s32 %v347, %v349
  %vm354 = vcmp.lt.s32.totalorder %v350, 32
  %vm355 = vcmp.lt.s32.totalorder %v351, 32
  %vm356 = vcmp.lt.s32.totalorder %v352, 32
  %vm357 = vcmp.lt.s32.totalorder %v353, 32
  %v358 = vsel %vm354, 1, 0
  %v359 = vsel %vm355, 1, 0
  %v360 = vsel %vm356, 1, 0
  %v361 = vsel %vm357, 1, 0
  %v362 = vcvt.s32.f32 %v358
  %v363 = vcvt.s32.f32 %v359
  %v364 = vcvt.s32.f32 %v360
  %v365 = vcvt.s32.f32 %v361
  %v366 = vsub.f32 %v326, %v117
  %v367 = vsub.f32 %v328, %v119
  %v368 = vsub.f32 %v331, %v122
  %v369 = vsub.f32 %v333, %v124
  %v370 = vmul.f32 %v366, %v362
  %v371 = vmul.f32 %v367, %v363
  %v372 = vmul.f32 %v368, %v364
  %v373 = vmul.f32 %v369, %v365
  %v374 = vmul.f32 %v370, %v370
  %v375 = vmul.f32 %v371, %v371
  %v376 = vmul.f32 %v372, %v372
  %v377 = vmul.f32 %v373, %v373
  %378 = vadd.xlane.f32.xlu0 %v374
  %v379 = vpop.xlane.xlu0 %378
  %380 = vadd.xlane.f32.xlu0 %v375
  %v381 = vpop.xlane.xlu0 %380
  %382 = vadd.xlane.f32.xlu0 %v376
  %v383 = vpop.xlane.xlu0 %382
  %384 = vadd.xlane.f32.xlu0 %v377
  %v385 = vpop.xlane.xlu0 %384
  %v386 = vadd.f32 %v379, %v381
  %v387 = vadd.f32 %v386, %v383
  %v388 = vadd.f32 %v387, %v385
  %v389 = vrot.slane %v388, 4
  %v390 = vadd.f32 %v388, %v389
  %v391 = vrot.slane %v390, 2
  %v392 = vadd.f32 %v390, %v391
  %v393 = vrot.slane %v392, 1
  %v394 = vadd.f32 %v392, %v393
  %v395 = vmul.f32 %v310, %v362
  %v396 = vmul.f32 %v311, %v363
  %v397 = vmul.f32 %v312, %v364
  %v398 = vmul.f32 %v313, %v365
  %v399 = vadd.f32 %v395, %v396
  %v400 = vadd.f32 %v399, %v397
  %v401 = vadd.f32 %v400, %v398
  %v402 = vrot.slane %v401, 4
  %v403 = vadd.f32 %v401, %v402
  %v404 = vrot.slane %v403, 2
  %v405 = vadd.f32 %v403, %v404
  %v406 = vrot.slane %v405, 1
  %v407 = vadd.f32 %v405, %v406
  %408 = vst [vmem:[%s6] sm:$0xff] %v407
  %409 = vst [vmem:[%s7] sm:$0xff] %v394
  // Predicated region
  $region22: #{vqvae_forward.16} parent=0 // pred_check
    _
  $region23: #{vqvae_forward.16} parent=0 // pred_check_branch
    %411 = sbr.rel (0) target = $region25
  $region24: #{vqvae_forward.16} parent=0 // pred_region
    _
  $region25: #{vqvae_forward.16} parent=0 // pred_fallthru
    _
  // Predicated region
  $region26: #{vqvae_forward.16} parent=0 // pred_check
    _
  $region27: #{vqvae_forward.16} parent=0 // pred_check_branch
    %413 = sbr.rel (0) target = $region29
  $region28: #{vqvae_forward.16} parent=0 // pred_region
    _
  $region29: #{vqvae_forward.16} parent=0 // pred_fallthru
    _
  // Predicated region
  $region30: #{vqvae_forward.16} parent=0 // pred_check
    _
  $region31: #{vqvae_forward.16} parent=0 // pred_check_branch
    %415 = sbr.rel (0) target = $region33
  $region32: #{vqvae_forward.16} parent=0 // pred_region
    _
  $region33: #{vqvae_forward.16} parent=0 // pred_fallthru
    _
  // Predicated region
  $region34: #{vqvae_forward.16} parent=0 // pred_check
    _
  $region35: #{vqvae_forward.16} parent=0 // pred_check_branch
    %417 = sbr.rel (0) target = $region37
  $region36: #{vqvae_forward.16} parent=0 // pred_region
    _
  $region37: #{vqvae_forward.16} parent=0 // pred_fallthru
    _
  // Predicated region
  $region38: #{vqvae_forward.16} parent=0 // pred_check
    _
  $region39: #{vqvae_forward.16} parent=0 // pred_check_branch
    %419 = sbr.rel (0) target = $region41
  $region40: #{vqvae_forward.16} parent=0 // pred_region
    _
  $region41: #{vqvae_forward.16} parent=0 // pred_fallthru
    _
  // Predicated region
  $region42: #{vqvae_forward.16} parent=0 // pred_check
    _
  $region43: #{vqvae_forward.16} parent=0 // pred_check_branch
    %421 = sbr.rel (0) target = $region45
  $region44: #{vqvae_forward.16} parent=0 // pred_region
    _
  $region45: #{vqvae_forward.16} parent=0 // pred_fallthru
    _

// kernel: tile.13
$region0: #{tile.13}
  #allocation0 [shape = 's32[1]{0}', space=sflag, size = 0x4, scoped, tag = 'scoped memory for tile.13']
  %s0 = inlined_call_operand.vmem [shape: f32[16], index: 0, kind: input, shape index: {}]
  %s1 = inlined_call_operand.vmem [shape: f32[4,16], index: 1, kind: output, shape index: {}]
  // Predicated region
  $region2: #{tile.13} parent=0 // pred_check
    _
  $region3: #{tile.13} parent=0 // pred_check_branch
    %3 = sbr.rel (0) target = $region5
  $region4: #{tile.13} parent=0 // pred_region
    _
  $region5: #{tile.13} parent=0 // pred_fallthru
    _
  %v4 = vld [vmem:[%s0] ss:$0 sm:$0xff]
  %5 = vst [vmem:[%s1] sm:$0xf] %v4

// kernel: tile.14
$region0: #{tile.14}
  %s0 = inlined_call_operand.vmem [shape: f32[4,16], index: 0, kind: input, shape index: {}]
  %s1 = inlined_call_operand.vmem [shape: f32[1,64], index: 1, kind: output, shape index: {}]
  $region1: #{tile.14} parent=0
    #allocation0 [shape = 'u8[4096]{0}', space=vmem, size = 0x1000, scoped, tag = 'scoped mem for output reshape']
    #allocation1 [shape = 'u8[4096]{0}', space=vmem, size = 0x1000, scoped, tag = 'scoped mem for input reshape']
    %s3 = ssub.s32 16, 1
    %v4 = vld [vmem:[%s0] sm:%s3]
    %5 = vst [vmem:[#allocation1] sm:%s3] %v4
    %v6 = vld [vmem:[#allocation1] sm:$0x1]
    %vm7 = vcmask 130048
    %8 = vst.msk [vmem:[#allocation0] sm:$0x1] %vm7, %v6
    %s9 = scalar_lea.vmem [#allocation1], 3
    %v10 = vld [vmem:[%s9] sm:$0x1]
    %11 = vrot.lane.b32.xlu0 %v10, 48
    %v12 = vpop.permute.xlu0 %11
    %vm13 = vcmask 523648
    %14 = vst.msk [vmem:[#allocation0] sm:$0x1] %vm13, %v12
    %s15 = scalar_lea.vmem [#allocation1], 2
    %v16 = vld [vmem:[%s15] sm:$0x1]
    %17 = vrot.lane.b32.xlu0 %v16, 32
    %v18 = vpop.permute.xlu0 %17
    %vm19 = vcmask 392448
    %20 = vst.msk [vmem:[#allocation0] sm:$0x1] %vm19, %v18
    %s21 = scalar_lea.vmem [#allocation1], 1
    %v22 = vld [vmem:[%s21] sm:$0x1]
    %23 = vrot.lane.b32.xlu0 %v22, 16
    %v24 = vpop.permute.xlu0 %23
    %vm25 = vcmask 261248
    %26 = vst.msk [vmem:[#allocation0] sm:$0x1] %vm25, %v24
    %s28 = ssub.s32 2, 1
    %v29 = vld [vmem:[#allocation0] sm:%s28]
    %s31 = ssub.s32 2, 1
    %32 = vst [vmem:[%s1] sm:%s31] %v29

// kernel: tile.18
$region0: #{tile.18}
  #allocation0 [shape = 's32[1]{0}', space=sflag, size = 0x4, scoped, tag = 'scoped memory for tile.18']
  %s0 = inlined_call_operand.vmem [shape: f32[3], index: 0, kind: input, shape index: {}]
  %s1 = inlined_call_operand.vmem [shape: f32[4,3], index: 1, kind: output, shape index: {}]
  // Predicated region
  $region2: #{tile.18} parent=0 // pred_check
    _
  $region3: #{tile.18} parent=0 // pred_check_branch
    %3 = sbr.rel (0) target = $region5
  $region4: #{tile.18} parent=0 // pred_region
    _
  $region5: #{tile.18} parent=0 // pred_fallthru
    _
  %v4 = vld [vmem:[%s0] ss:$0 sm:$0xff]
  %5 = vst [vmem:[%s1] sm:$0xf] %v4

// kernel: tile.19
$region0: #{tile.19}
  %s0 = inlined_call_operand.vmem [shape: f32[4,3], index: 0, kind: input, shape index: {}]
  %s1 = inlined_call_operand.vmem [shape: f32[1,12], index: 1, kind: output, shape index: {}]
  $region1: #{tile.19} parent=0
    #allocation0 [shape = 'u8[4096]{0}', space=vmem, size = 0x1000, scoped, tag = 'scoped mem for output reshape']
    #allocation1 [shape = 'u8[4096]{0}', space=vmem, size = 0x1000, scoped, tag = 'scoped mem for input reshape']
    %s3 = ssub.s32 16, 1
    %v4 = vld [vmem:[%s0] sm:%s3]
    %5 = vst [vmem:[#allocation1] sm:%s3] %v4
    %v6 = vld [vmem:[#allocation1] sm:$0x1]
    %vm7 = vcmask 23552
    %8 = vst.msk [vmem:[#allocation0] sm:$0x1] %vm7, %v6
    %s9 = scalar_lea.vmem [#allocation1], 3
    %v10 = vld [vmem:[%s9] sm:$0x1]
    %11 = vrot.lane.b32.xlu0 %v10, 9
    %v12 = vpop.permute.xlu0 %11
    %vm13 = vcmask 97352
    %14 = vst.msk [vmem:[#allocation0] sm:$0x1] %vm13, %v12
    %s15 = scalar_lea.vmem [#allocation1], 2
    %v16 = vld [vmem:[%s15] sm:$0x1]
    %17 = vrot.lane.b32.xlu0 %v16, 6
    %v18 = vpop.permute.xlu0 %17
    %vm19 = vcmask 72752
    %20 = vst.msk [vmem:[#allocation0] sm:$0x1] %vm19, %v18
    %s21 = scalar_lea.vmem [#allocation1], 1
    %v22 = vld [vmem:[%s21] sm:$0x1]
    %23 = vrot.lane.b32.xlu0 %v22, 3
    %v24 = vpop.permute.xlu0 %23
    %vm25 = vcmask 48152
    %26 = vst.msk [vmem:[#allocation0] sm:$0x1] %vm25, %v24
    %s28 = ssub.s32 2, 1
    %v29 = vld [vmem:[#allocation0] sm:%s28]
    %s31 = ssub.s32 2, 1
    %32 = vst [vmem:[%s1] sm:%s31] %v29

// kernel: vqvae_forward.20
$region0: #{vqvae_forward.20}
  #allocation0 [shape = 'u32[]', space=smem, size = 0x4, offset = 0x4, fixed_abs, tag = 'smem constant byte address 0x4 - core index']
  #allocation1 [shape = 'u32[72,128]{1,0:T(1,128)}', space=vmem, size = 0x9000, scoped, tag = 'internal scratch']
  %s0 = inlined_call_operand.vmem [shape: bf16[112,128], index: 0, kind: input, shape index: {}]
  %s1 = inlined_call_operand.vmem [shape: bf16[1152,128], index: 1, kind: input, shape index: {}]
  %s2 = inlined_call_operand.vmem [shape: f32[1,128], index: 2, kind: input, shape index: {}]
  %s3 = inlined_call_operand.vmem [shape: f32[40,1], index: 3, kind: input, shape index: {}]
  %s4 = inlined_call_operand.vmem [shape: bf16[80,128], index: 4, kind: output, shape index: {}]
  %s5 = sld [smem:[#allocation0]]
  $region49: #{vqvae_forward.20} parent=0
    _
  %s7 = ssub.s32 1, %s5
  %s8 = scalar_select 0, %s7, %s5
  loop: start=0, step=1, limit=4
  $region2: #{vqvae_forward.20} parent=0 // loop_pre_header
    _
  $region3: #{vqvae_forward.20} parent=0 // loop_header
    %s10 = sphi 0, %s14
    %p11 = scmp.ge.s32.totalorder %s10, 4
    %s17 = sphi 0, %s29
    %s18 = sphi 0, %s25
    %s19 = sphi 0, %s17
    %s20 = sphi 0, %s18
    %s21 = sphi 0, %s19
    %s22 = sphi 0, %s20
    %s32 = sphi 0, %s34
    %s35 = sphi 0, %s32
    %s36 = sphi 0, %s35
    %s52 = sphi 0, %s36
    %s56 = sphi 0, %s56
    %s58 = sphi 0, %s56
    %s59 = sphi 0, %s58
    %s73 = sphi 0, %s59
    %s77 = sphi 0, %s77
    %s79 = sphi 0, %s77
    %s80 = sphi 0, %s79
    %s94 = sphi 0, %s80
    %s100 = sphi 0, %s102
    %s103 = sphi 0, %s100
    %s104 = sphi 0, %s103
    %s120 = sphi 0, %s104
    %s128 = sphi 0, %s130
    %s131 = sphi 0, %s128
    %s132 = sphi 0, %s131
    %s148 = sphi 0, %s132
  $region4: #{vqvae_forward.20} parent=0 // loop_header_branch
    %13 = sbr.rel (%p11) target = $region8
  $region5: #{vqvae_forward.20} parent=0 // loop_body
    %s15 = ssub.s32 %s10, 1
    %s16 = ssub.s32 %s10, 2
    %s23 = sadd.s32 1, %s18
    %p24 = scmp.ge.s32.totalorder %s23, 1
    %s25 = scalar_select %p24, 0, %s23
    %s26 = sadd.s32 1, %s17
    %s27 = scalar_select %p24, %s26, %s17
    %p28 = scmp.ge.s32.totalorder %s27, 2
    %s29 = scalar_select %p28, 0, %s27
    %s30 = ssub.s32 %s17, %s29
    %p31 = scmp.eq.s32.totalorder %s30, 0
    %s33 = sadd.s32 %s32, 1
    %s34 = scalar_select %p31, %s32, %s33
    %p37 = pneg %p31
    %p38 = scmp.eq.s32.totalorder %s10, 1
    %p39 = por %p37, %p38
    %p40 = scmp.ne.s32.totalorder %s32, %s35
    %p41 = scmp.eq.s32.totalorder %s10, 0
    %p42 = por %p40, %p41
    %p43 = scmp.ne.s32.totalorder %s32, %s35
    %p44 = scmp.eq.s32.totalorder %s15, 1
    %p45 = por %p43, %p44
    %p46 = scmp.ne.s32.totalorder %s35, %s36
    %p47 = scmp.eq.s32.totalorder %s15, 0
    %p48 = por %p46, %p47
    %p49 = scmp.ne.s32.totalorder %s35, %s36
    %p50 = scmp.eq.s32.totalorder %s16, 1
    %p51 = por %p49, %p50
    %p53 = scmp.ne.s32.totalorder %s36, %s52
    %p54 = scmp.eq.s32.totalorder %s16, 0
    %p55 = por %p53, %p54
    %s57 = sadd.s32 %s56, 1
    %p60 = scmp.eq.s32.totalorder %s10, 1
    %p61 = scmp.ne.s32.totalorder %s56, %s58
    %p62 = scmp.eq.s32.totalorder %s10, 0
    %p63 = por %p61, %p62
    %p64 = scmp.ne.s32.totalorder %s56, %s58
    %p65 = scmp.eq.s32.totalorder %s15, 1
    %p66 = por %p64, %p65
    %p67 = scmp.ne.s32.totalorder %s58, %s59
    %p68 = scmp.eq.s32.totalorder %s15, 0
    %p69 = por %p67, %p68
    %p70 = scmp.ne.s32.totalorder %s58, %s59
    %p71 = scmp.eq.s32.totalorder %s16, 1
    %p72 = por %p70, %p71
    %p74 = scmp.ne.s32.totalorder %s59, %s73
    %p75 = scmp.eq.s32.totalorder %s16, 0
    %p76 = por %p74, %p75
    %s78 = sadd.s32 %s77, 1
    %p81 = scmp.eq.s32.totalorder %s10, 1
    %p82 = scmp.ne.s32.totalorder %s77, %s79
    %p83 = scmp.eq.s32.totalorder %s10, 0
    %p84 = por %p82, %p83
    %p85 = scmp.ne.s32.totalorder %s77, %s79
    %p86 = scmp.eq.s32.totalorder %s15, 1
    %p87 = por %p85, %p86
    %p88 = scmp.ne.s32.totalorder %s79, %s80
    %p89 = scmp.eq.s32.totalorder %s15, 0
    %p90 = por %p88, %p89
    %p91 = scmp.ne.s32.totalorder %s79, %s80
    %p92 = scmp.eq.s32.totalorder %s16, 1
    %p93 = por %p91, %p92
    %p95 = scmp.ne.s32.totalorder %s80, %s94
    %p96 = scmp.eq.s32.totalorder %s16, 0
    %p97 = por %p95, %p96
    %s98 = ssub.s32 %s18, %s25
    %p99 = scmp.eq.s32.totalorder %s98, 0
    %s101 = sadd.s32 %s100, 1
    %s102 = scalar_select %p99, %s100, %s101
    %p105 = pneg %p99
    %p106 = scmp.eq.s32.totalorder %s10, 1
    %p107 = por %p105, %p106
    %p108 = scmp.ne.s32.totalorder %s100, %s103
    %p109 = scmp.eq.s32.totalorder %s10, 0
    %p110 = por %p108, %p109
    %p111 = scmp.ne.s32.totalorder %s100, %s103
    %p112 = scmp.eq.s32.totalorder %s15, 1
    %p113 = por %p111, %p112
    %p114 = scmp.ne.s32.totalorder %s103, %s104
    %p115 = scmp.eq.s32.totalorder %s15, 0
    %p116 = por %p114, %p115
    %p117 = scmp.ne.s32.totalorder %s103, %s104
    %p118 = scmp.eq.s32.totalorder %s16, 1
    %p119 = por %p117, %p118
    %p121 = scmp.ne.s32.totalorder %s104, %s120
    %p122 = scmp.eq.s32.totalorder %s16, 0
    %p123 = por %p121, %p122
    %s124 = sadd.s32 %s17, %s18
    %s125 = sadd.s32 %s29, %s25
    %s126 = ssub.s32 %s124, %s125
    %p127 = scmp.eq.s32.totalorder %s126, 0
    %s129 = sadd.s32 %s128, 1
    %s130 = scalar_select %p127, %s128, %s129
    %p133 = pneg %p127
    %p134 = scmp.eq.s32.totalorder %s10, 1
    %p135 = por %p133, %p134
    %p136 = scmp.ne.s32.totalorder %s128, %s131
    %p137 = scmp.eq.s32.totalorder %s10, 0
    %p138 = por %p136, %p137
    %p139 = scmp.ne.s32.totalorder %s128, %s131
    %p140 = scmp.eq.s32.totalorder %s15, 1
    %p141 = por %p139, %p140
    %p142 = scmp.ne.s32.totalorder %s131, %s132
    %p143 = scmp.eq.s32.totalorder %s15, 0
    %p144 = por %p142, %p143
    %p145 = scmp.ne.s32.totalorder %s131, %s132
    %p146 = scmp.eq.s32.totalorder %s16, 1
    %p147 = por %p145, %p146
    %p149 = scmp.ne.s32.totalorder %s132, %s148
    %p150 = scmp.eq.s32.totalorder %s16, 0
    %p151 = por %p149, %p150
    %p152 = scmp.le.s32.totalorder 1, %s10
    %p153 = scmp.lt.s32.totalorder %s10, 3
    %p154 = pnand %p152, %p153
    %p155 = pneg %p154
    // Predicated region
    $region9: #{vqvae_forward.20} parent=5 // pred_check
      _
    $region10: #{vqvae_forward.20} parent=5 // pred_check_branch
      %157 = sbr.rel (%p154) target = $region12
    $region11: #{vqvae_forward.20} parent=5 // pred_region
      %s158 = ssub.s32 %s10, 1
      // Predicated region
      $region13: #{vqvae_forward.20} parent=11 // pred_check
        %p159 = pneg %p69
      $region14: #{vqvae_forward.20} parent=11 // pred_check_branch
        %161 = sbr.rel (%p159) target = $region16
      $region15: #{vqvae_forward.20} parent=11 // pred_region
        _
      $region16: #{vqvae_forward.20} parent=11 // pred_fallthru
        _
      // Predicated region
      $region17: #{vqvae_forward.20} parent=11 // pred_check
        %p162 = pneg %p90
      $region18: #{vqvae_forward.20} parent=11 // pred_check_branch
        %164 = sbr.rel (%p162) target = $region20
      $region19: #{vqvae_forward.20} parent=11 // pred_region
        _
      $region20: #{vqvae_forward.20} parent=11 // pred_fallthru
        _
      // Predicated region
      $region21: #{vqvae_forward.20} parent=11 // pred_check
        %p165 = pneg %p116
      $region22: #{vqvae_forward.20} parent=11 // pred_check_branch
        %167 = sbr.rel (%p165) target = $region24
      $region23: #{vqvae_forward.20} parent=11 // pred_region
        %s168 = smul.u32 5, %s20
        %p169 = scmp.lt.s32.totalorder %s168, 4
        %s170 = scalar_select %p169, %s168, 4
        %s171 = smul.addr %s170, 8
        %s172 = scalar_lea.vmem %s3, %s171
        %s173 = smul.u32 5, %s20
      $region24: #{vqvae_forward.20} parent=11 // pred_fallthru
        _
    $region12: #{vqvae_forward.20} parent=5 // pred_fallthru
      _
    %p174 = scmp.lt.s32.totalorder %s10, 2
    // Predicated region
    $region25: #{vqvae_forward.20} parent=5 // pred_check
      %p175 = pneg %p174
    $region26: #{vqvae_forward.20} parent=5 // pred_check_branch
      %177 = sbr.rel (%p175) target = $region28
    $region27: #{vqvae_forward.20} parent=5 // pred_region
      // Predicated region
      $region29: #{vqvae_forward.20} parent=27 // pred_check
        %p178 = pneg %p42
      $region30: #{vqvae_forward.20} parent=27 // pred_check_branch
        %180 = sbr.rel (%p178) target = $region32
      $region31: #{vqvae_forward.20} parent=27 // pred_region
        %s181 = smul.u32 7, %s17
        %p182 = scmp.lt.s32.totalorder %s181, 13
        %s183 = scalar_select %p182, %s181, 13
        %s184 = smul.addr %s183, 4
        %s185 = scalar_lea.vmem %s0, %s184
        %s186 = smul.u32 7, %s17
      $region32: #{vqvae_forward.20} parent=27 // pred_fallthru
        _
    $region28: #{vqvae_forward.20} parent=5 // pred_fallthru
      _
    %p187 = scmp.le.s32.totalorder 1, %s10
    %p188 = scmp.lt.s32.totalorder %s10, 3
    %p189 = pnand %p187, %p188
    %p190 = pneg %p189
    // Predicated region
    $region33: #{vqvae_forward.20} parent=5 // pred_check
      _
    $region34: #{vqvae_forward.20} parent=5 // pred_check_branch
      %192 = sbr.rel (%p189) target = $region36
    $region35: #{vqvae_forward.20} parent=5 // pred_region
      %s193 = ssub.s32 %s10, 1
      %s194 = smul.u32 7, %s19
      %p195 = scmp.lt.s32.totalorder %s194, 13
      %s196 = scalar_select %p195, %s194, 13
      %s197 = smul.addr %s196, 4
      %s198 = scalar_lea.vmem %s0, %s197
      %p199 = pneg %p48
      %p200 = pneg %p45
      %p201 = pneg %p69
      %p202 = pneg %p66
      %p203 = pneg %p90
      %p204 = pneg %p87
      %s205 = smul.u32 5, %s20
      %p206 = scmp.lt.s32.totalorder %s205, 4
      %s207 = scalar_select %p206, %s205, 4
      %s208 = smul.addr %s207, 8
      %s209 = scalar_lea.vmem %s3, %s208
      %p210 = pneg %p116
      %p211 = pneg %p113
      %p212 = pneg %p144
      %p213 = pneg %p141
      %s214 = sadd.s32 %s19, %s20
      %s215 = smul.u32 5, %s214
      %p216 = scmp.lt.s32.totalorder %s215, 9
      %s217 = scalar_select %p216, %s215, 9
      %s218 = smul.addr %s217, 4
      %s219 = scalar_lea.vmem %s4, %s218
      %s220 = smul.u32 7, %s19
      %p221 = scmp.lt.s32.totalorder %s220, 13
      %s222 = scalar_select %p221, %s220, 13
      %s223 = smul.addr %s222, 4
      %s224 = scalar_lea.vmem %s0, %s223
      %s225 = smul.u32 7, %s19
      %s226 = smul.u32 5, %s20
      %p227 = scmp.lt.s32.totalorder %s226, 4
      %s228 = scalar_select %p227, %s226, 4
      %s229 = smul.addr %s228, 8
      %s230 = scalar_lea.vmem %s3, %s229
      %s231 = smul.u32 5, %s20
      %s232 = sadd.s32 %s19, %s20
      %s233 = smul.u32 5, %s232
      %p234 = scmp.lt.s32.totalorder %s233, 9
      %s235 = scalar_select %p234, %s233, 9
      %s236 = smul.addr %s235, 4
      %s237 = scalar_lea.vmem %s4, %s236
      %s238 = sadd.s32 %s19, %s20
      %s239 = smul.u32 5, %s238
      %v240 = vld [vmem:[%s224] sm:$0xf]
      %v241 = vld [vmem:[%s224 + $0x4] sm:$0xf]
      %v242 = vld [vmem:[%s224 + $0x8] sm:$0xf]
      %v243 = vld [vmem:[%s224 + $0xc] sm:$0xf]
      %v244 = vld [vmem:[%s224 + $0x10] sm:$0xf]
      %v245 = vld [vmem:[%s1] sm:$0xf]
      %v246 = vld [vmem:[%s1 + $0x4] sm:$0xf]
      %v247 = vld [vmem:[%s1 + $0x8] sm:$0xf]
      %v248 = vld [vmem:[%s1 + $0xc] sm:$0xf]
      %v249 = vld [vmem:[%s1 + $0x10] sm:$0xf]
      %v250 = vld [vmem:[%s1 + $0x14] sm:$0xf]
      %v251 = vld [vmem:[%s1 + $0x18] sm:$0xf]
      %v252 = vld [vmem:[%s1 + $0x1c] sm:$0xf]
      %v253 = vld [vmem:[%s1 + $0x20] sm:$0xf]
      %v254 = vld [vmem:[%s1 + $0x24] sm:$0xf]
      %v255 = vld [vmem:[%s1 + $0x28] sm:$0xf]
      %v256 = vld [vmem:[%s1 + $0x2c] sm:$0xf]
      %v257 = vld [vmem:[%s1 + $0x30] sm:$0xf]
      %v258 = vld [vmem:[%s1 + $0x34] sm:$0xf]
      %v259 = vld [vmem:[%s1 + $0x38] sm:$0xf]
      %v260 = vld [vmem:[%s1 + $0x3c] sm:$0xf]
      %v261 = vld [vmem:[%s224 + $0x14] sm:$0x1]
      %v262 = vld [vmem:[%s1 + $0x40] sm:$0xf]
      %v263 = vld [vmem:[%s1 + $0x44] sm:$0xf]
      %v264 = vld [vmem:[%s1 + $0x48] sm:$0xf]
      %v265 = vld [vmem:[%s1 + $0x4c] sm:$0xf]
      %v266 = vld [vmem:[%s1 + $0x50] sm:$0xf]
      %v267 = vld [vmem:[%s1 + $0x54] sm:$0xf]
      %v268 = vld [vmem:[%s1 + $0x58] sm:$0xf]
      %v269 = vld [vmem:[%s1 + $0x5c] sm:$0xf]
      %v270 = vld [vmem:[%s1 + $0x60] sm:$0xf]
      %v271 = vld [vmem:[%s1 + $0x64] sm:$0xf]
      %v272 = vld [vmem:[%s1 + $0x68] sm:$0xf]
      %v273 = vld [vmem:[%s1 + $0x6c] sm:$0xf]
      %v274 = vld [vmem:[%s1 + $0x70] sm:$0xf]
      %v275 = vld [vmem:[%s1 + $0x74] sm:$0xf]
      %v276 = vld [vmem:[%s1 + $0x78] sm:$0xf]
      %v277 = vld [vmem:[%s1 + $0x7c] sm:$0xf]
      %v284 = vunpack.c.l.b16 %v240
      %v285 = vunpack.c.l.b16 %v241
      %v286 = vunpack.c.l.b16 %v242
      %v287 = vunpack.c.l.b16 %v243
      %v288 = vunpack.c.l.b16 %v244
      %v289 = vunpack.c.l.b16 %v261
      %v290 = vpack.c.b16 %v285, %v284
      %v291 = vpack.c.b16 %v287, %v286
      %v292 = vpack.c.b16 %v289, %v288
      %vm293 = vsmask.f32 7424
      %v295 = vshrl.u32 %v290, 16
      %v297 = vshll.u32 %v290, 16
      %v299 = vrot.slane %v297, 1
      %v300 = vor.u32 %v295, %v299
      %v302 = vshll.u32 %v291, 16
      %v304 = vrot.slane %v302, 1
      %v305 = vsel %vm293, %v300, %v304
      %v306 = vshrl.u32 %v291, 16
      %v308 = vor.u32 %v306, %v304
      %v310 = vshll.u32 %v292, 16
      %v312 = vrot.slane %v310, 1
      %v313 = vsel %vm293, %v308, %v312
      %v314 = vshrl.u32 %v292, 16
      %v316 = vor.u32 %v314, %v312
      %v336 = vunpack.c.l.b16 %v262
      %v337 = vunpack.c.l.b16 %v263
      %v338 = vunpack.c.l.b16 %v264
      %v339 = vunpack.c.l.b16 %v265
      %v340 = vunpack.c.l.b16 %v266
      %v341 = vunpack.c.l.b16 %v267
      %v342 = vunpack.c.l.b16 %v268
      %v343 = vunpack.c.l.b16 %v269
      %v344 = vunpack.c.l.b16 %v270
      %v345 = vunpack.c.l.b16 %v271
      %v346 = vunpack.c.l.b16 %v272
      %v347 = vunpack.c.l.b16 %v273
      %v348 = vunpack.c.l.b16 %v274
      %v349 = vunpack.c.l.b16 %v275
      %v350 = vunpack.c.l.b16 %v276
      %v351 = vunpack.c.l.b16 %v277
      %v352 = vpack.c.b16 %v337, %v336
      %v353 = vpack.c.b16 %v339, %v338
      %v354 = vpack.c.b16 %v341, %v340
      %v355 = vpack.c.b16 %v343, %v342
      %v356 = vpack.c.b16 %v345, %v344
      %v357 = vpack.c.b16 %v347, %v346
      %v358 = vpack.c.b16 %v349, %v348
      %v359 = vpack.c.b16 %v351, %v350
      %368 = vmatpush.bf16.msra.mxu0 %v359
      %369 = vmatpush.bf16.msra.mxu0 %v358
      %370 = vmatpush.bf16.msra.mxu0 %v357
      %371 = vmatpush.bf16.msra.mxu0 %v356
      %372 = vmatpush.bf16.msra.mxu0 %v355
      %373 = vmatpush.bf16.msra.mxu0 %v354
      %374 = vmatpush.bf16.msra.mxu0 %v353
      %375 = vmatpush.bf16.msra.mxu0 %v352
      %376 = vmatmul.bf16.gmra.mxu0 %v305
      %v377 = vpop.f32.mrf.mxu0
      %v378 = vadd.f32 0.0, %v377
      %v379 = vpop.f32.mrf.mxu0
      %v380 = vadd.f32 0.0, %v379
      %381 = vmatmul.bf16.gmra.mxu0 %v313
      %v382 = vpop.f32.mrf.mxu0
      %v383 = vadd.f32 0.0, %v382
      %v384 = vpop.f32.mrf.mxu0
      %v385 = vadd.f32 0.0, %v384
      %386 = vmatmul.bf16.gmra.mxu0 %v316
      %v387 = vpop.f32.mrf.mxu0
      %v388 = vadd.f32 0.0, %v387
      %v389 = vpop.f32.mrf.mxu0
      %390 = vdwg.mxu0
      %v391 = vpack.c.b16 %v288, %v288
      %v411 = vunpack.c.l.b16 %v245
      %v412 = vunpack.c.l.b16 %v246
      %v413 = vunpack.c.l.b16 %v247
      %v414 = vunpack.c.l.b16 %v248
      %v415 = vunpack.c.l.b16 %v249
      %v416 = vunpack.c.l.b16 %v250
      %v417 = vunpack.c.l.b16 %v251
      %v418 = vunpack.c.l.b16 %v252
      %v419 = vunpack.c.l.b16 %v253
      %v420 = vunpack.c.l.b16 %v254
      %v421 = vunpack.c.l.b16 %v255
      %v422 = vunpack.c.l.b16 %v256
      %v423 = vunpack.c.l.b16 %v257
      %v424 = vunpack.c.l.b16 %v258
      %v425 = vunpack.c.l.b16 %v259
      %v426 = vunpack.c.l.b16 %v260
      %v427 = vpack.c.b16 %v412, %v411
      %v428 = vpack.c.b16 %v414, %v413
      %v429 = vpack.c.b16 %v416, %v415
      %v430 = vpack.c.b16 %v418, %v417
      %v431 = vpack.c.b16 %v420, %v419
      %v432 = vpack.c.b16 %v422, %v421
      %v433 = vpack.c.b16 %v424, %v423
      %v434 = vpack.c.b16 %v426, %v425
      %443 = vmatpush.bf16.msra.mxu0 %v434
      %444 = vmatpush.bf16.msra.mxu0 %v433
      %445 = vmatpush.bf16.msra.mxu0 %v432
      %446 = vmatpush.bf16.msra.mxu0 %v431
      %447 = vmatpush.bf16.msra.mxu0 %v430
      %448 = vmatpush.bf16.msra.mxu0 %v429
      %449 = vmatpush.bf16.msra.mxu0 %v428
      %450 = vmatpush.bf16.msra.mxu0 %v427
      %451 = vmatmul.bf16.gmra.mxu0 %v290
      %v452 = vpop.f32.mrf.mxu0
      %v453 = vadd.f32 %v378, %v452
      %v454 = vpop.f32.mrf.mxu0
      %v455 = vadd.f32 %v380, %v454
      %456 = vmatmul.bf16.gmra.mxu0 %v291
      %v457 = vpop.f32.mrf.mxu0
      %v458 = vadd.f32 %v383, %v457
      %v459 = vpop.f32.mrf.mxu0
      %v460 = vadd.f32 %v385, %v459
      %461 = vmatmul.bf16.gmra.mxu0 %v391
      %v462 = vpop.f32.mrf.mxu0
      %v463 = vadd.f32 %v388, %v462
      %v464 = vpop.f32.mrf.mxu0
      %465 = vdwg.mxu0
      %v466 = vld [vmem:[%s224] sm:$0xe]
      %v467 = vld [vmem:[%s1 + $0x80] sm:$0xf]
      %v468 = vld [vmem:[%s1 + $0x84] sm:$0xf]
      %v469 = vld [vmem:[%s1 + $0x88] sm:$0xf]
      %v470 = vld [vmem:[%s1 + $0x8c] sm:$0xf]
      %v471 = vld [vmem:[%s1 + $0x90] sm:$0xf]
      %v472 = vld [vmem:[%s1 + $0x94] sm:$0xf]
      %v473 = vld [vmem:[%s1 + $0x98] sm:$0xf]
      %v474 = vld [vmem:[%s1 + $0x9c] sm:$0xf]
      %v475 = vld [vmem:[%s1 + $0xa0] sm:$0xf]
      %v476 = vld [vmem:[%s1 + $0xa4] sm:$0xf]
      %v477 = vld [vmem:[%s1 + $0xa8] sm:$0xf]
      %v478 = vld [vmem:[%s1 + $0xac] sm:$0xf]
      %v479 = vld [vmem:[%s1 + $0xb0] sm:$0xf]
      %v480 = vld [vmem:[%s1 + $0xb4] sm:$0xf]
      %v481 = vld [vmem:[%s1 + $0xb8] sm:$0xf]
      %v482 = vld [vmem:[%s1 + $0xbc] sm:$0xf]
      %v484 = vunpack.c.l.b16 %v466
      %v485 = vpack.c.b16 %v285, %v484
      %vm486 = vcmask 1046528
      %v487 = vrot.slane %v485, 1
      %v488 = vrot.slane %v291, 1
      %v489 = vsel %vm486, %v487, %v488
      %v490 = vrot.slane %v292, 1
      %v491 = vsel %vm486, %v488, %v490
      %v511 = vunpack.c.l.b16 %v467
      %v512 = vunpack.c.l.b16 %v468
      %v513 = vunpack.c.l.b16 %v469
      %v514 = vunpack.c.l.b16 %v470
      %v515 = vunpack.c.l.b16 %v471
      %v516 = vunpack.c.l.b16 %v472
      %v517 = vunpack.c.l.b16 %v473
      %v518 = vunpack.c.l.b16 %v474
      %v519 = vunpack.c.l.b16 %v475
      %v520 = vunpack.c.l.b16 %v476
      %v521 = vunpack.c.l.b16 %v477
      %v522 = vunpack.c.l.b16 %v478
      %v523 = vunpack.c.l.b16 %v479
      %v524 = vunpack.c.l.b16 %v480
      %v525 = vunpack.c.l.b16 %v481
      %v526 = vunpack.c.l.b16 %v482
      %v527 = vpack.c.b16 %v512, %v511
      %v528 = vpack.c.b16 %v514, %v513
      %v529 = vpack.c.b16 %v516, %v515
      %v530 = vpack.c.b16 %v518, %v517
      %v531 = vpack.c.b16 %v520, %v519
      %v532 = vpack.c.b16 %v522, %v521
      %v533 = vpack.c.b16 %v524, %v523
      %v534 = vpack.c.b16 %v526, %v525
      %543 = vmatpush.bf16.msra.mxu0 %v534
      %544 = vmatpush.bf16.msra.mxu0 %v533
      %545 = vmatpush.bf16.msra.mxu0 %v532
      %546 = vmatpush.bf16.msra.mxu0 %v531
      %547 = vmatpush.bf16.msra.mxu0 %v530
      %548 = vmatpush.bf16.msra.mxu0 %v529
      %549 = vmatpush.bf16.msra.mxu0 %v528
      %550 = vmatpush.bf16.msra.mxu0 %v527
      %551 = vmatmul.bf16.gmra.mxu0 %v489
      %v552 = vpop.f32.mrf.mxu0
      %v553 = vadd.f32 0.0, %v552
      %v554 = vpop.f32.mrf.mxu0
      %v555 = vadd.f32 0.0, %v554
      %556 = vmatmul.bf16.gmra.mxu0 %v491
      %v557 = vpop.f32.mrf.mxu0
      %v558 = vadd.f32 0.0, %v557
      %v559 = vpop.f32.mrf.mxu0
      %v560 = vadd.f32 0.0, %v559
      %561 = vmatmul.bf16.gmra.mxu0 %v490
      %v562 = vpop.f32.mrf.mxu0
      %v563 = vadd.f32 0.0, %v562
      %v564 = vpop.f32.mrf.mxu0
      %565 = vdwg.mxu0
      %v566 = vadd.f32 %v453, %v553
      %v567 = vadd.f32 %v455, %v555
      %v568 = vadd.f32 %v458, %v558
      %v569 = vadd.f32 %v460, %v560
      %v570 = vadd.f32 %v463, %v563
      %v571 = vld [vmem:[%s224] sm:$0x8]
      %v572 = vld [vmem:[%s224 + $0x14] sm:$0x7]
      %v573 = vld [vmem:[%s1 + $0xc0] sm:$0xf]
      %v574 = vld [vmem:[%s1 + $0xc4] sm:$0xf]
      %v575 = vld [vmem:[%s1 + $0xc8] sm:$0xf]
      %v576 = vld [vmem:[%s1 + $0xcc] sm:$0xf]
      %v577 = vld [vmem:[%s1 + $0xd0] sm:$0xf]
      %v578 = vld [vmem:[%s1 + $0xd4] sm:$0xf]
      %v579 = vld [vmem:[%s1 + $0xd8] sm:$0xf]
      %v580 = vld [vmem:[%s1 + $0xdc] sm:$0xf]
      %v581 = vld [vmem:[%s1 + $0xe0] sm:$0xf]
      %v582 = vld [vmem:[%s1 + $0xe4] sm:$0xf]
      %v583 = vld [vmem:[%s1 + $0xe8] sm:$0xf]
      %v584 = vld [vmem:[%s1 + $0xec] sm:$0xf]
      %v585 = vld [vmem:[%s1 + $0xf0] sm:$0xf]
      %v586 = vld [vmem:[%s1 + $0xf4] sm:$0xf]
      %v587 = vld [vmem:[%s1 + $0xf8] sm:$0xf]
      %v588 = vld [vmem:[%s1 + $0xfc] sm:$0xf]
      %v591 = vunpack.c.l.b16 %v571
      %v592 = vunpack.c.l.b16 %v572
      %v593 = vpack.c.b16 %v285, %v591
      %v594 = vpack.c.b16 %v592, %v288
      %vm595 = vcmask 1044480
      %v596 = vrot.slane %v593, 3
      %v597 = vrot.slane %v291, 3
      %v598 = vsel %vm595, %v596, %v597
      %v599 = vrot.slane %v594, 3
      %v600 = vsel %vm595, %v597, %v599
      %v620 = vunpack.c.l.b16 %v573
      %v621 = vunpack.c.l.b16 %v574
      %v622 = vunpack.c.l.b16 %v575
      %v623 = vunpack.c.l.b16 %v576
      %v624 = vunpack.c.l.b16 %v577
      %v625 = vunpack.c.l.b16 %v578
      %v626 = vunpack.c.l.b16 %v579
      %v627 = vunpack.c.l.b16 %v580
      %v628 = vunpack.c.l.b16 %v581
      %v629 = vunpack.c.l.b16 %v582
      %v630 = vunpack.c.l.b16 %v583
      %v631 = vunpack.c.l.b16 %v584
      %v632 = vunpack.c.l.b16 %v585
      %v633 = vunpack.c.l.b16 %v586
      %v634 = vunpack.c.l.b16 %v587
      %v635 = vunpack.c.l.b16 %v588
      %v636 = vpack.c.b16 %v621, %v620
      %v637 = vpack.c.b16 %v623, %v622
      %v638 = vpack.c.b16 %v625, %v624
      %v639 = vpack.c.b16 %v627, %v626
      %v640 = vpack.c.b16 %v629, %v628
      %v641 = vpack.c.b16 %v631, %v630
      %v642 = vpack.c.b16 %v633, %v632
      %v643 = vpack.c.b16 %v635, %v634
      %652 = vmatpush.bf16.msra.mxu0 %v643
      %653 = vmatpush.bf16.msra.mxu0 %v642
      %654 = vmatpush.bf16.msra.mxu0 %v641
      %655 = vmatpush.bf16.msra.mxu0 %v640
      %656 = vmatpush.bf16.msra.mxu0 %v639
      %657 = vmatpush.bf16.msra.mxu0 %v638
      %658 = vmatpush.bf16.msra.mxu0 %v637
      %659 = vmatpush.bf16.msra.mxu0 %v636
      %660 = vmatmul.bf16.gmra.mxu0 %v598
      %v661 = vpop.f32.mrf.mxu0
      %v662 = vadd.f32 0.0, %v661
      %v663 = vpop.f32.mrf.mxu0
      %v664 = vadd.f32 0.0, %v663
      %665 = vmatmul.bf16.gmra.mxu0 %v600
      %v666 = vpop.f32.mrf.mxu0
      %v667 = vadd.f32 0.0, %v666
      %v668 = vpop.f32.mrf.mxu0
      %v669 = vadd.f32 0.0, %v668
      %670 = vmatmul.bf16.gmra.mxu0 %v599
      %v671 = vpop.f32.mrf.mxu0
      %v672 = vadd.f32 0.0, %v671
      %v673 = vpop.f32.mrf.mxu0
      %674 = vdwg.mxu0
      %v675 = vadd.f32 %v566, %v662
      %v676 = vadd.f32 %v567, %v664
      %v677 = vadd.f32 %v568, %v667
      %v678 = vadd.f32 %v569, %v669
      %v679 = vadd.f32 %v570, %v672
      %v680 = vld [vmem:[%s224 + $0x14] sm:$0xf]
      %v681 = vld [vmem:[%s1 + $0x100] sm:$0xf]
      %v682 = vld [vmem:[%s1 + $0x104] sm:$0xf]
      %v683 = vld [vmem:[%s1 + $0x108] sm:$0xf]
      %v684 = vld [vmem:[%s1 + $0x10c] sm:$0xf]
      %v685 = vld [vmem:[%s1 + $0x110] sm:$0xf]
      %v686 = vld [vmem:[%s1 + $0x114] sm:$0xf]
      %v687 = vld [vmem:[%s1 + $0x118] sm:$0xf]
      %v688 = vld [vmem:[%s1 + $0x11c] sm:$0xf]
      %v689 = vld [vmem:[%s1 + $0x120] sm:$0xf]
      %v690 = vld [vmem:[%s1 + $0x124] sm:$0xf]
      %v691 = vld [vmem:[%s1 + $0x128] sm:$0xf]
      %v692 = vld [vmem:[%s1 + $0x12c] sm:$0xf]
      %v693 = vld [vmem:[%s1 + $0x130] sm:$0xf]
      %v694 = vld [vmem:[%s1 + $0x134] sm:$0xf]
      %v695 = vld [vmem:[%s1 + $0x138] sm:$0xf]
      %v696 = vld [vmem:[%s1 + $0x13c] sm:$0xf]
      %v698 = vunpack.c.l.b16 %v680
      %v699 = vpack.c.b16 %v698, %v288
      %vm700 = vsmask.f32 4352
      %v702 = vshrl.u32 %v593, 16
      %v704 = vrot.slane %v702, 3
      %v705 = vshll.u32 %v593, 16
      %v707 = vrot.slane %v705, 4
      %v708 = vor.u32 %v704, %v707
      %v709 = vrot.slane %v306, 3
      %v710 = vrot.slane %v302, 4
      %v711 = vor.u32 %v709, %v710
      %v712 = vsel %vm700, %v708, %v711
      %v714 = vshrl.u32 %v699, 16
      %v716 = vrot.slane %v714, 3
      %v717 = vshll.u32 %v699, 16
      %v719 = vrot.slane %v717, 4
      %v720 = vor.u32 %v716, %v719
      %v721 = vsel %vm700, %v711, %v720
      %v741 = vunpack.c.l.b16 %v681
      %v742 = vunpack.c.l.b16 %v682
      %v743 = vunpack.c.l.b16 %v683
      %v744 = vunpack.c.l.b16 %v684
      %v745 = vunpack.c.l.b16 %v685
      %v746 = vunpack.c.l.b16 %v686
      %v747 = vunpack.c.l.b16 %v687
      %v748 = vunpack.c.l.b16 %v688
      %v749 = vunpack.c.l.b16 %v689
      %v750 = vunpack.c.l.b16 %v690
      %v751 = vunpack.c.l.b16 %v691
      %v752 = vunpack.c.l.b16 %v692
      %v753 = vunpack.c.l.b16 %v693
      %v754 = vunpack.c.l.b16 %v694
      %v755 = vunpack.c.l.b16 %v695
      %v756 = vunpack.c.l.b16 %v696
      %v757 = vpack.c.b16 %v742, %v741
      %v758 = vpack.c.b16 %v744, %v743
      %v759 = vpack.c.b16 %v746, %v745
      %v760 = vpack.c.b16 %v748, %v747
      %v761 = vpack.c.b16 %v750, %v749
      %v762 = vpack.c.b16 %v752, %v751
      %v763 = vpack.c.b16 %v754, %v753
      %v764 = vpack.c.b16 %v756, %v755
      %773 = vmatpush.bf16.msra.mxu0 %v764
      %774 = vmatpush.bf16.msra.mxu0 %v763
      %775 = vmatpush.bf16.msra.mxu0 %v762
      %776 = vmatpush.bf16.msra.mxu0 %v761
      %777 = vmatpush.bf16.msra.mxu0 %v760
      %778 = vmatpush.bf16.msra.mxu0 %v759
      %779 = vmatpush.bf16.msra.mxu0 %v758
      %780 = vmatpush.bf16.msra.mxu0 %v757
      %781 = vmatmul.bf16.gmra.mxu0 %v712
      %v782 = vpop.f32.mrf.mxu0
      %v783 = vadd.f32 0.0, %v782
      %v784 = vpop.f32.mrf.mxu0
      %v785 = vadd.f32 0.0, %v784
      %786 = vmatmul.bf16.gmra.mxu0 %v721
      %v787 = vpop.f32.mrf.mxu0
      %v788 = vadd.f32 0.0, %v787
      %v789 = vpop.f32.mrf.mxu0
      %v790 = vadd.f32 0.0, %v789
      %791 = vmatmul.bf16.gmra.mxu0 %v720
      %v792 = vpop.f32.mrf.mxu0
      %v793 = vadd.f32 0.0, %v792
      %v794 = vpop.f32.mrf.mxu0
      %795 = vdwg.mxu0
      %v796 = vadd.f32 %v675, %v783
      %v797 = vadd.f32 %v676, %v785
      %v798 = vadd.f32 %v677, %v788
      %v799 = vadd.f32 %v678, %v790
      %v800 = vadd.f32 %v679, %v793
      %v801 = vld [vmem:[%s1 + $0x140] sm:$0xf]
      %v802 = vld [vmem:[%s1 + $0x144] sm:$0xf]
      %v803 = vld [vmem:[%s1 + $0x148] sm:$0xf]
      %v804 = vld [vmem:[%s1 + $0x14c] sm:$0xf]
      %v805 = vld [vmem:[%s1 + $0x150] sm:$0xf]
      %v806 = vld [vmem:[%s1 + $0x154] sm:$0xf]
      %v807 = vld [vmem:[%s1 + $0x158] sm:$0xf]
      %v808 = vld [vmem:[%s1 + $0x15c] sm:$0xf]
      %v809 = vld [vmem:[%s1 + $0x160] sm:$0xf]
      %v810 = vld [vmem:[%s1 + $0x164] sm:$0xf]
      %v811 = vld [vmem:[%s1 + $0x168] sm:$0xf]
      %v812 = vld [vmem:[%s1 + $0x16c] sm:$0xf]
      %v813 = vld [vmem:[%s1 + $0x170] sm:$0xf]
      %v814 = vld [vmem:[%s1 + $0x174] sm:$0xf]
      %v815 = vld [vmem:[%s1 + $0x178] sm:$0xf]
      %v816 = vld [vmem:[%s1 + $0x17c] sm:$0xf]
      %v817 = vpack.c.b16 %v286, %v285
      %v818 = vpack.c.b16 %v288, %v287
      %v819 = vpack.c.b16 %v698, %v698
      %v839 = vunpack.c.l.b16 %v801
      %v840 = vunpack.c.l.b16 %v802
      %v841 = vunpack.c.l.b16 %v803
      %v842 = vunpack.c.l.b16 %v804
      %v843 = vunpack.c.l.b16 %v805
      %v844 = vunpack.c.l.b16 %v806
      %v845 = vunpack.c.l.b16 %v807
      %v846 = vunpack.c.l.b16 %v808
      %v847 = vunpack.c.l.b16 %v809
      %v848 = vunpack.c.l.b16 %v810
      %v849 = vunpack.c.l.b16 %v811
      %v850 = vunpack.c.l.b16 %v812
      %v851 = vunpack.c.l.b16 %v813
      %v852 = vunpack.c.l.b16 %v814
      %v853 = vunpack.c.l.b16 %v815
      %v854 = vunpack.c.l.b16 %v816
      %v855 = vpack.c.b16 %v840, %v839
      %v856 = vpack.c.b16 %v842, %v841
      %v857 = vpack.c.b16 %v844, %v843
      %v858 = vpack.c.b16 %v846, %v845
      %v859 = vpack.c.b16 %v848, %v847
      %v860 = vpack.c.b16 %v850, %v849
      %v861 = vpack.c.b16 %v852, %v851
      %v862 = vpack.c.b16 %v854, %v853
      %871 = vmatpush.bf16.msra.mxu0 %v862
      %872 = vmatpush.bf16.msra.mxu0 %v861
      %873 = vmatpush.bf16.msra.mxu0 %v860
      %874 = vmatpush.bf16.msra.mxu0 %v859
      %875 = vmatpush.bf16.msra.mxu0 %v858
      %876 = vmatpush.bf16.msra.mxu0 %v857
      %877 = vmatpush.bf16.msra.mxu0 %v856
      %878 = vmatpush.bf16.msra.mxu0 %v855
      %879 = vmatmul.bf16.gmra.mxu0 %v817
      %v880 = vpop.f32.mrf.mxu0
      %v881 = vadd.f32 0.0, %v880
      %v882 = vpop.f32.mrf.mxu0
      %v883 = vadd.f32 0.0, %v882
      %884 = vmatmul.bf16.gmra.mxu0 %v818
      %v885 = vpop.f32.mrf.mxu0
      %v886 = vadd.f32 0.0, %v885
      %v887 = vpop.f32.mrf.mxu0
      %v888 = vadd.f32 0.0, %v887
      %889 = vmatmul.bf16.gmra.mxu0 %v819
      %v890 = vpop.f32.mrf.mxu0
      %v891 = vadd.f32 0.0, %v890
      %v892 = vpop.f32.mrf.mxu0
      %893 = vdwg.mxu0
      %v894 = vadd.f32 %v796, %v881
      %v895 = vadd.f32 %v797, %v883
      %v896 = vadd.f32 %v798, %v886
      %v897 = vadd.f32 %v799, %v888
      %v898 = vadd.f32 %v800, %v891
      %v899 = vld [vmem:[%s224 + $0x4] sm:$0xc]
      %v900 = vld [vmem:[%s224 + $0x8] sm:$0xf]
      %v901 = vld [vmem:[%s224 + $0xc] sm:$0xf]
      %v902 = vld [vmem:[%s224 + $0x10] sm:$0xf]
      %v903 = vld [vmem:[%s224 + $0x14] sm:$0xf]
      %v904 = vld [vmem:[%s224 + $0x18] sm:$0x3]
      %v905 = vld [vmem:[%s1 + $0x180] sm:$0xf]
      %v906 = vld [vmem:[%s1 + $0x184] sm:$0xf]
      %v907 = vld [vmem:[%s1 + $0x188] sm:$0xf]
      %v908 = vld [vmem:[%s1 + $0x18c] sm:$0xf]
      %v909 = vld [vmem:[%s1 + $0x190] sm:$0xf]
      %v910 = vld [vmem:[%s1 + $0x194] sm:$0xf]
      %v911 = vld [vmem:[%s1 + $0x198] sm:$0xf]
      %v912 = vld [vmem:[%s1 + $0x19c] sm:$0xf]
      %v913 = vld [vmem:[%s1 + $0x1a0] sm:$0xf]
      %v914 = vld [vmem:[%s1 + $0x1a4] sm:$0xf]
      %v915 = vld [vmem:[%s1 + $0x1a8] sm:$0xf]
      %v916 = vld [vmem:[%s1 + $0x1ac] sm:$0xf]
      %v917 = vld [vmem:[%s1 + $0x1b0] sm:$0xf]
      %v918 = vld [vmem:[%s1 + $0x1b4] sm:$0xf]
      %v919 = vld [vmem:[%s1 + $0x1b8] sm:$0xf]
      %v920 = vld [vmem:[%s1 + $0x1bc] sm:$0xf]
      %v927 = vunpack.c.l.b16 %v899
      %v928 = vunpack.c.l.b16 %v900
      %v929 = vunpack.c.l.b16 %v901
      %v930 = vunpack.c.l.b16 %v902
      %v931 = vunpack.c.l.b16 %v903
      %v932 = vunpack.c.l.b16 %v904
      %v933 = vpack.c.b16 %v928, %v927
      %v934 = vpack.c.b16 %v930, %v929
      %v935 = vpack.c.b16 %v932, %v931
      %vm936 = vcmask 1045504
      %v937 = vrot.slane %v933, 2
      %v938 = vrot.slane %v934, 2
      %v939 = vsel %vm936, %v937, %v938
      %v940 = vrot.slane %v935, 2
      %v941 = vsel %vm936, %v938, %v940
      %v961 = vunpack.c.l.b16 %v905
      %v962 = vunpack.c.l.b16 %v906
      %v963 = vunpack.c.l.b16 %v907
      %v964 = vunpack.c.l.b16 %v908
      %v965 = vunpack.c.l.b16 %v909
      %v966 = vunpack.c.l.b16 %v910
      %v967 = vunpack.c.l.b16 %v911
      %v968 = vunpack.c.l.b16 %v912
      %v969 = vunpack.c.l.b16 %v913
      %v970 = vunpack.c.l.b16 %v914
      %v971 = vunpack.c.l.b16 %v915
      %v972 = vunpack.c.l.b16 %v916
      %v973 = vunpack.c.l.b16 %v917
      %v974 = vunpack.c.l.b16 %v918
      %v975 = vunpack.c.l.b16 %v919
      %v976 = vunpack.c.l.b16 %v920
      %v977 = vpack.c.b16 %v962, %v961
      %v978 = vpack.c.b16 %v964, %v963
      %v979 = vpack.c.b16 %v966, %v965
      %v980 = vpack.c.b16 %v968, %v967
      %v981 = vpack.c.b16 %v970, %v969
      %v982 = vpack.c.b16 %v972, %v971
      %v983 = vpack.c.b16 %v974, %v973
      %v984 = vpack.c.b16 %v976, %v975
      %993 = vmatpush.bf16.msra.mxu0 %v984
      %994 = vmatpush.bf16.msra.mxu0 %v983
      %995 = vmatpush.bf16.msra.mxu0 %v982
      %996 = vmatpush.bf16.msra.mxu0 %v981
      %997 = vmatpush.bf16.msra.mxu0 %v980
      %998 = vmatpush.bf16.msra.mxu0 %v979
      %999 = vmatpush.bf16.msra.mxu0 %v978
      %1000 = vmatpush.bf16.msra.mxu0 %v977
      %1001 = vmatmul.bf16.gmra.mxu0 %v939
      %v1002 = vpop.f32.mrf.mxu0
      %v1003 = vadd.f32 0.0, %v1002
      %v1004 = vpop.f32.mrf.mxu0
      %v1005 = vadd.f32 0.0, %v1004
      %1006 = vmatmul.bf16.gmra.mxu0 %v941
      %v1007 = vpop.f32.mrf.mxu0
      %v1008 = vadd.f32 0.0, %v1007
      %v1009 = vpop.f32.mrf.mxu0
      %v1010 = vadd.f32 0.0, %v1009
      %1011 = vmatmul.bf16.gmra.mxu0 %v940
      %v1012 = vpop.f32.mrf.mxu0
      %v1013 = vadd.f32 0.0, %v1012
      %v1014 = vpop.f32.mrf.mxu0
      %1015 = vdwg.mxu0
      %v1016 = vadd.f32 %v894, %v1003
      %v1017 = vadd.f32 %v895, %v1005
      %v1018 = vadd.f32 %v896, %v1008
      %v1019 = vadd.f32 %v897, %v1010
      %v1020 = vadd.f32 %v898, %v1013
      %v1021 = vld [vmem:[%s224 + $0x18] sm:$0x7]
      %v1022 = vld [vmem:[%s1 + $0x1c0] sm:$0xf]
      %v1023 = vld [vmem:[%s1 + $0x1c4] sm:$0xf]
      %v1024 = vld [vmem:[%s1 + $0x1c8] sm:$0xf]
      %v1025 = vld [vmem:[%s1 + $0x1cc] sm:$0xf]
      %v1026 = vld [vmem:[%s1 + $0x1d0] sm:$0xf]
      %v1027 = vld [vmem:[%s1 + $0x1d4] sm:$0xf]
      %v1028 = vld [vmem:[%s1 + $0x1d8] sm:$0xf]
      %v1029 = vld [vmem:[%s1 + $0x1dc] sm:$0xf]
      %v1030 = vld [vmem:[%s1 + $0x1e0] sm:$0xf]
      %v1031 = vld [vmem:[%s1 + $0x1e4] sm:$0xf]
      %v1032 = vld [vmem:[%s1 + $0x1e8] sm:$0xf]
      %v1033 = vld [vmem:[%s1 + $0x1ec] sm:$0xf]
      %v1034 = vld [vmem:[%s1 + $0x1f0] sm:$0xf]
      %v1035 = vld [vmem:[%s1 + $0x1f4] sm:$0xf]
      %v1036 = vld [vmem:[%s1 + $0x1f8] sm:$0xf]
      %v1037 = vld [vmem:[%s1 + $0x1fc] sm:$0xf]
      %v1039 = vunpack.c.l.b16 %v1021
      %v1040 = vpack.c.b16 %v1039, %v931
      %vm1041 = vsmask.f32 5376
      %v1043 = vshrl.u32 %v933, 16
      %v1045 = vrot.slane %v1043, 2
      %v1046 = vshll.u32 %v933, 16
      %v1048 = vrot.slane %v1046, 3
      %v1049 = vor.u32 %v1045, %v1048
      %v1051 = vshrl.u32 %v934, 16
      %v1053 = vrot.slane %v1051, 2
      %v1054 = vshll.u32 %v934, 16
      %v1056 = vrot.slane %v1054, 3
      %v1057 = vor.u32 %v1053, %v1056
      %v1058 = vsel %vm1041, %v1049, %v1057
      %v1060 = vshrl.u32 %v1040, 16
      %v1062 = vrot.slane %v1060, 2
      %v1063 = vshll.u32 %v1040, 16
      %v1065 = vrot.slane %v1063, 3
      %v1066 = vor.u32 %v1062, %v1065
      %v1067 = vsel %vm1041, %v1057, %v1066
      %v1087 = vunpack.c.l.b16 %v1022
      %v1088 = vunpack.c.l.b16 %v1023
      %v1089 = vunpack.c.l.b16 %v1024
      %v1090 = vunpack.c.l.b16 %v1025
      %v1091 = vunpack.c.l.b16 %v1026
      %v1092 = vunpack.c.l.b16 %v1027
      %v1093 = vunpack.c.l.b16 %v1028
      %v1094 = vunpack.c.l.b16 %v1029
      %v1095 = vunpack.c.l.b16 %v1030
      %v1096 = vunpack.c.l.b16 %v1031
      %v1097 = vunpack.c.l.b16 %v1032
      %v1098 = vunpack.c.l.b16 %v1033
      %v1099 = vunpack.c.l.b16 %v1034
      %v1100 = vunpack.c.l.b16 %v1035
      %v1101 = vunpack.c.l.b16 %v1036
      %v1102 = vunpack.c.l.b16 %v1037
      %v1103 = vpack.c.b16 %v1088, %v1087
      %v1104 = vpack.c.b16 %v1090, %v1089
      %v1105 = vpack.c.b16 %v1092, %v1091
      %v1106 = vpack.c.b16 %v1094, %v1093
      %v1107 = vpack.c.b16 %v1096, %v1095
      %v1108 = vpack.c.b16 %v1098, %v1097
      %v1109 = vpack.c.b16 %v1100, %v1099
      %v1110 = vpack.c.b16 %v1102, %v1101
      %1119 = vmatpush.bf16.msra.mxu0 %v1110
      %1120 = vmatpush.bf16.msra.mxu0 %v1109
      %1121 = vmatpush.bf16.msra.mxu0 %v1108
      %1122 = vmatpush.bf16.msra.mxu0 %v1107
      %1123 = vmatpush.bf16.msra.mxu0 %v1106
      %1124 = vmatpush.bf16.msra.mxu0 %v1105
      %1125 = vmatpush.bf16.msra.mxu0 %v1104
      %1126 = vmatpush.bf16.msra.mxu0 %v1103
      %1127 = vmatmul.bf16.gmra.mxu0 %v1058
      %v1128 = vpop.f32.mrf.mxu0
      %v1129 = vadd.f32 0.0, %v1128
      %v1130 = vpop.f32.mrf.mxu0
      %v1131 = vadd.f32 0.0, %v1130
      %1132 = vmatmul.bf16.gmra.mxu0 %v1067
      %v1133 = vpop.f32.mrf.mxu0
      %v1134 = vadd.f32 0.0, %v1133
      %v1135 = vpop.f32.mrf.mxu0
      %v1136 = vadd.f32 0.0, %v1135
      %1137 = vmatmul.bf16.gmra.mxu0 %v1066
      %v1138 = vpop.f32.mrf.mxu0
      %v1139 = vadd.f32 0.0, %v1138
      %v1140 = vpop.f32.mrf.mxu0
      %1141 = vdwg.mxu0
      %v1142 = vadd.f32 %v1016, %v1129
      %v1143 = vadd.f32 %v1017, %v1131
      %v1144 = vadd.f32 %v1018, %v1134
      %v1145 = vadd.f32 %v1019, %v1136
      %v1146 = vadd.f32 %v1020, %v1139
      %v1147 = vld [vmem:[%s224 + $0x4] sm:$0x8]
      %v1148 = vld [vmem:[%s1 + $0x200] sm:$0xf]
      %v1149 = vld [vmem:[%s1 + $0x204] sm:$0xf]
      %v1150 = vld [vmem:[%s1 + $0x208] sm:$0xf]
      %v1151 = vld [vmem:[%s1 + $0x20c] sm:$0xf]
      %v1152 = vld [vmem:[%s1 + $0x210] sm:$0xf]
      %v1153 = vld [vmem:[%s1 + $0x214] sm:$0xf]
      %v1154 = vld [vmem:[%s1 + $0x218] sm:$0xf]
      %v1155 = vld [vmem:[%s1 + $0x21c] sm:$0xf]
      %v1156 = vld [vmem:[%s1 + $0x220] sm:$0xf]
      %v1157 = vld [vmem:[%s1 + $0x224] sm:$0xf]
      %v1158 = vld [vmem:[%s1 + $0x228] sm:$0xf]
      %v1159 = vld [vmem:[%s1 + $0x22c] sm:$0xf]
      %v1160 = vld [vmem:[%s1 + $0x230] sm:$0xf]
      %v1161 = vld [vmem:[%s1 + $0x234] sm:$0xf]
      %v1162 = vld [vmem:[%s1 + $0x238] sm:$0xf]
      %v1163 = vld [vmem:[%s1 + $0x23c] sm:$0xf]
      %v1165 = vunpack.c.l.b16 %v1147
      %v1166 = vpack.c.b16 %v928, %v1165
      %v1167 = vrot.slane %v1166, 3
      %v1168 = vrot.slane %v934, 3
      %v1169 = vsel %vm595, %v1167, %v1168
      %v1170 = vrot.slane %v1040, 3
      %v1171 = vsel %vm595, %v1168, %v1170
      %v1191 = vunpack.c.l.b16 %v1148
      %v1192 = vunpack.c.l.b16 %v1149
      %v1193 = vunpack.c.l.b16 %v1150
      %v1194 = vunpack.c.l.b16 %v1151
      %v1195 = vunpack.c.l.b16 %v1152
      %v1196 = vunpack.c.l.b16 %v1153
      %v1197 = vunpack.c.l.b16 %v1154
      %v1198 = vunpack.c.l.b16 %v1155
      %v1199 = vunpack.c.l.b16 %v1156
      %v1200 = vunpack.c.l.b16 %v1157
      %v1201 = vunpack.c.l.b16 %v1158
      %v1202 = vunpack.c.l.b16 %v1159
      %v1203 = vunpack.c.l.b16 %v1160
      %v1204 = vunpack.c.l.b16 %v1161
      %v1205 = vunpack.c.l.b16 %v1162
      %v1206 = vunpack.c.l.b16 %v1163
      %v1207 = vpack.c.b16 %v1192, %v1191
      %v1208 = vpack.c.b16 %v1194, %v1193
      %v1209 = vpack.c.b16 %v1196, %v1195
      %v1210 = vpack.c.b16 %v1198, %v1197
      %v1211 = vpack.c.b16 %v1200, %v1199
      %v1212 = vpack.c.b16 %v1202, %v1201
      %v1213 = vpack.c.b16 %v1204, %v1203
      %v1214 = vpack.c.b16 %v1206, %v1205
      %1223 = vmatpush.bf16.msra.mxu0 %v1214
      %1224 = vmatpush.bf16.msra.mxu0 %v1213
      %1225 = vmatpush.bf16.msra.mxu0 %v1212
      %1226 = vmatpush.bf16.msra.mxu0 %v1211
      %1227 = vmatpush.bf16.msra.mxu0 %v1210
      %1228 = vmatpush.bf16.msra.mxu0 %v1209
      %1229 = vmatpush.bf16.msra.mxu0 %v1208
      %1230 = vmatpush.bf16.msra.mxu0 %v1207
      %1231 = vmatmul.bf16.gmra.mxu0 %v1169
      %v1232 = vpop.f32.mrf.mxu0
      %v1233 = vadd.f32 0.0, %v1232
      %v1234 = vpop.f32.mrf.mxu0
      %v1235 = vadd.f32 0.0, %v1234
      %1236 = vmatmul.bf16.gmra.mxu0 %v1171
      %v1237 = vpop.f32.mrf.mxu0
      %v1238 = vadd.f32 0.0, %v1237
      %v1239 = vpop.f32.mrf.mxu0
      %v1240 = vadd.f32 0.0, %v1239
      %1241 = vmatmul.bf16.gmra.mxu0 %v1170
      %v1242 = vpop.f32.mrf.mxu0
      %v1243 = vadd.f32 0.0, %v1242
      %v1244 = vpop.f32.mrf.mxu0
      %1245 = vdwg.mxu0
      %v1246 = vadd.f32 %v1142, %v1233
      %v1247 = vadd.f32 %v1143, %v1235
      %v1248 = vadd.f32 %v1144, %v1238
      %v1249 = vadd.f32 %v1145, %v1240
      %v1250 = vadd.f32 %v1146, %v1243
      %v1251 = vld [vmem:[%s2] sm:$0x1]
      %v1253 = vperm.slane %v1251, 0
      %v1255 = vadd.f32 %v1246, %v1253
      %v1256 = vadd.f32 %v1247, %v1253
      %v1257 = vadd.f32 %v1248, %v1253
      %v1258 = vadd.f32 %v1249, %v1253
      %v1259 = vadd.f32 %v1250, %v1253
      %v1260 = vmax.f32 %v1255, 0.0
      %v1261 = vmax.f32 %v1256, 0.0
      %v1262 = vmax.f32 %v1257, 0.0
      %v1263 = vmax.f32 %v1258, 0.0
      %v1264 = vmax.f32 %v1259, 0.0
      %v1265 = vld [vmem:[%s230] sm:$0xff]
      %v1266 = vld [vmem:[%s230 + $0x8] sm:$0xff]
      %v1267 = vld [vmem:[%s230 + $0x10] sm:$0xff]
      %v1268 = vld [vmem:[%s230 + $0x18] sm:$0xff]
      %v1269 = vld [vmem:[%s230 + $0x20] sm:$0xff]
      %1271 = vset.pattern.permute.xlu0 0
      %1272 = vperm.xlu0 %1271, %v1265
      %v1273 = vpop.permute.xlu0 %1272
      %1276 = vset.pattern.permute.xlu0 0
      %1277 = vperm.xlu0 %1276, %v1266
      %v1278 = vpop.permute.xlu0 %1277
      %1281 = vset.pattern.permute.xlu0 0
      %1282 = vperm.xlu0 %1281, %v1267
      %v1283 = vpop.permute.xlu0 %1282
      %1286 = vset.pattern.permute.xlu0 0
      %1287 = vperm.xlu0 %1286, %v1268
      %v1288 = vpop.permute.xlu0 %1287
      %1291 = vset.pattern.permute.xlu0 0
      %1292 = vperm.xlu0 %1291, %v1269
      %v1293 = vpop.permute.xlu0 %1292
      %v1295 = vmul.f32 %v1260, %v1273
      %v1296 = vmul.f32 %v1261, %v1278
      %v1297 = vmul.f32 %v1262, %v1283
      %v1298 = vmul.f32 %v1263, %v1288
      %v1299 = vmul.f32 %v1264, %v1293
      %v1300 = vpack.c.bf16 %v1295, %v1295
      %v1301 = vpack.c.bf16 %v1296, %v1296
      %v1302 = vpack.c.bf16 %v1297, %v1297
      %v1303 = vpack.c.bf16 %v1298, %v1298
      %v1304 = vpack.c.bf16 %v1299, %v1299
      %1305 = vst [vmem:[%s237] sm:$0xf] %v1300
      %1306 = vst [vmem:[%s237 + $0x4] sm:$0xf] %v1301
      %1307 = vst [vmem:[%s237 + $0x8] sm:$0xf] %v1302
      %1308 = vst [vmem:[%s237 + $0xc] sm:$0xf] %v1303
      %1309 = vst [vmem:[%s237 + $0x10] sm:$0xf] %v1304
      %s1310 = sadd.s32 %s19, %s20
      %s1311 = smul.u32 5, %s1310
      %p1312 = scmp.lt.s32.totalorder %s1311, 9
      %s1313 = scalar_select %p1312, %s1311, 9
      %s1314 = smul.addr %s1313, 4
      %s1315 = scalar_lea.vmem %s4, %s1314
      // Predicated region
      $region37: #{vqvae_forward.20} parent=35 // pred_check
        %p1316 = pneg %p141
      $region38: #{vqvae_forward.20} parent=35 // pred_check_branch
        %1318 = sbr.rel (%p1316) target = $region40
      $region39: #{vqvae_forward.20} parent=35 // pred_region
        %s1319 = sadd.s32 %s19, %s20
        %s1320 = smul.u32 5, %s1319
      $region40: #{vqvae_forward.20} parent=35 // pred_fallthru
        _
    $region36: #{vqvae_forward.20} parent=5 // pred_fallthru
      _
    %p1321 = scmp.le.s32.totalorder 2, %s10
    // Predicated region
    $region41: #{vqvae_forward.20} parent=5 // pred_check
      %p1322 = pneg %p1321
    $region42: #{vqvae_forward.20} parent=5 // pred_check_branch
      %1324 = sbr.rel (%p1322) target = $region44
    $region43: #{vqvae_forward.20} parent=5 // pred_region
      %s1325 = ssub.s32 %s10, 2
      // Predicated region
      $region45: #{vqvae_forward.20} parent=43 // pred_check
        %p1326 = pneg %p147
      $region46: #{vqvae_forward.20} parent=43 // pred_check_branch
        %1328 = sbr.rel (%p1326) target = $region48
      $region47: #{vqvae_forward.20} parent=43 // pred_region
        %s1329 = sadd.s32 %s21, %s22
        %s1330 = smul.u32 5, %s1329
        %p1331 = scmp.lt.s32.totalorder %s1330, 9
        %s1332 = scalar_select %p1331, %s1330, 9
        %s1333 = smul.addr %s1332, 4
        %s1334 = scalar_lea.vmem %s4, %s1333
      $region48: #{vqvae_forward.20} parent=43 // pred_fallthru
        _
    $region44: #{vqvae_forward.20} parent=5 // pred_fallthru
      _
  $region6: #{vqvae_forward.20} parent=0 // loop_footer
    %s14 = sadd.s32 1, %s10
  $region7: #{vqvae_forward.20} parent=0 // loop_footer_branch
    %9 = sbr.rel target = $region3
  $region8: #{vqvae_forward.20} parent=0 // loop_exit
    _

// kernel: vqvae_forward.21
$region0: #{vqvae_forward.21}
  #allocation0 [shape = 'u32[]', space=smem, size = 0x4, offset = 0x4, fixed_abs, tag = 'smem constant byte address 0x4 - core index']
  #allocation1 [shape = 'u32[72,128]{1,0:T(1,128)}', space=vmem, size = 0x9000, scoped, tag = 'internal scratch']
  %s0 = inlined_call_operand.vmem [shape: bf16[256,128], index: 0, kind: input, shape index: {}]
  %s1 = inlined_call_operand.vmem [shape: bf16[1152,128], index: 1, kind: input, shape index: {}]
  %s2 = inlined_call_operand.vmem [shape: f32[1,128], index: 2, kind: input, shape index: {}]
  %s3 = inlined_call_operand.vmem [shape: f32[104,1], index: 3, kind: input, shape index: {}]
  %s4 = inlined_call_operand.vmem [shape: f32[208,128], index: 4, kind: output, shape index: {}]
  %s5 = sld [smem:[#allocation0]]
  $region49: #{vqvae_forward.21} parent=0
    _
  %s7 = ssub.s32 1, %s5
  %s8 = scalar_select 0, %s7, %s5
  loop: start=0, step=1, limit=4
  $region2: #{vqvae_forward.21} parent=0 // loop_pre_header
    _
  $region3: #{vqvae_forward.21} parent=0 // loop_header
    %s10 = sphi 0, %s14
    %p11 = scmp.ge.s32.totalorder %s10, 4
    %s17 = sphi 0, %s29
    %s18 = sphi 0, %s25
    %s19 = sphi 0, %s17
    %s20 = sphi 0, %s18
    %s21 = sphi 0, %s19
    %s22 = sphi 0, %s20
    %s32 = sphi 0, %s34
    %s35 = sphi 0, %s32
    %s36 = sphi 0, %s35
    %s52 = sphi 0, %s36
    %s56 = sphi 0, %s56
    %s58 = sphi 0, %s56
    %s59 = sphi 0, %s58
    %s73 = sphi 0, %s59
    %s77 = sphi 0, %s77
    %s79 = sphi 0, %s77
    %s80 = sphi 0, %s79
    %s94 = sphi 0, %s80
    %s100 = sphi 0, %s102
    %s103 = sphi 0, %s100
    %s104 = sphi 0, %s103
    %s120 = sphi 0, %s104
    %s128 = sphi 0, %s130
    %s131 = sphi 0, %s128
    %s132 = sphi 0, %s131
    %s148 = sphi 0, %s132
  $region4: #{vqvae_forward.21} parent=0 // loop_header_branch
    %13 = sbr.rel (%p11) target = $region8
  $region5: #{vqvae_forward.21} parent=0 // loop_body
    %s15 = ssub.s32 %s10, 1
    %s16 = ssub.s32 %s10, 2
    %s23 = sadd.s32 1, %s18
    %p24 = scmp.ge.s32.totalorder %s23, 1
    %s25 = scalar_select %p24, 0, %s23
    %s26 = sadd.s32 1, %s17
    %s27 = scalar_select %p24, %s26, %s17
    %p28 = scmp.ge.s32.totalorder %s27, 2
    %s29 = scalar_select %p28, 0, %s27
    %s30 = ssub.s32 %s17, %s29
    %p31 = scmp.eq.s32.totalorder %s30, 0
    %s33 = sadd.s32 %s32, 1
    %s34 = scalar_select %p31, %s32, %s33
    %p37 = pneg %p31
    %p38 = scmp.eq.s32.totalorder %s10, 1
    %p39 = por %p37, %p38
    %p40 = scmp.ne.s32.totalorder %s32, %s35
    %p41 = scmp.eq.s32.totalorder %s10, 0
    %p42 = por %p40, %p41
    %p43 = scmp.ne.s32.totalorder %s32, %s35
    %p44 = scmp.eq.s32.totalorder %s15, 1
    %p45 = por %p43, %p44
    %p46 = scmp.ne.s32.totalorder %s35, %s36
    %p47 = scmp.eq.s32.totalorder %s15, 0
    %p48 = por %p46, %p47
    %p49 = scmp.ne.s32.totalorder %s35, %s36
    %p50 = scmp.eq.s32.totalorder %s16, 1
    %p51 = por %p49, %p50
    %p53 = scmp.ne.s32.totalorder %s36, %s52
    %p54 = scmp.eq.s32.totalorder %s16, 0
    %p55 = por %p53, %p54
    %s57 = sadd.s32 %s56, 1
    %p60 = scmp.eq.s32.totalorder %s10, 1
    %p61 = scmp.ne.s32.totalorder %s56, %s58
    %p62 = scmp.eq.s32.totalorder %s10, 0
    %p63 = por %p61, %p62
    %p64 = scmp.ne.s32.totalorder %s56, %s58
    %p65 = scmp.eq.s32.totalorder %s15, 1
    %p66 = por %p64, %p65
    %p67 = scmp.ne.s32.totalorder %s58, %s59
    %p68 = scmp.eq.s32.totalorder %s15, 0
    %p69 = por %p67, %p68
    %p70 = scmp.ne.s32.totalorder %s58, %s59
    %p71 = scmp.eq.s32.totalorder %s16, 1
    %p72 = por %p70, %p71
    %p74 = scmp.ne.s32.totalorder %s59, %s73
    %p75 = scmp.eq.s32.totalorder %s16, 0
    %p76 = por %p74, %p75
    %s78 = sadd.s32 %s77, 1
    %p81 = scmp.eq.s32.totalorder %s10, 1
    %p82 = scmp.ne.s32.totalorder %s77, %s79
    %p83 = scmp.eq.s32.totalorder %s10, 0
    %p84 = por %p82, %p83
    %p85 = scmp.ne.s32.totalorder %s77, %s79
    %p86 = scmp.eq.s32.totalorder %s15, 1
    %p87 = por %p85, %p86
    %p88 = scmp.ne.s32.totalorder %s79, %s80
    %p89 = scmp.eq.s32.totalorder %s15, 0
    %p90 = por %p88, %p89
    %p91 = scmp.ne.s32.totalorder %s79, %s80
    %p92 = scmp.eq.s32.totalorder %s16, 1
    %p93 = por %p91, %p92
    %p95 = scmp.ne.s32.totalorder %s80, %s94
    %p96 = scmp.eq.s32.totalorder %s16, 0
    %p97 = por %p95, %p96
    %s98 = ssub.s32 %s18, %s25
    %p99 = scmp.eq.s32.totalorder %s98, 0
    %s101 = sadd.s32 %s100, 1
    %s102 = scalar_select %p99, %s100, %s101
    %p105 = pneg %p99
    %p106 = scmp.eq.s32.totalorder %s10, 1
    %p107 = por %p105, %p106
    %p108 = scmp.ne.s32.totalorder %s100, %s103
    %p109 = scmp.eq.s32.totalorder %s10, 0
    %p110 = por %p108, %p109
    %p111 = scmp.ne.s32.totalorder %s100, %s103
    %p112 = scmp.eq.s32.totalorder %s15, 1
    %p113 = por %p111, %p112
    %p114 = scmp.ne.s32.totalorder %s103, %s104
    %p115 = scmp.eq.s32.totalorder %s15, 0
    %p116 = por %p114, %p115
    %p117 = scmp.ne.s32.totalorder %s103, %s104
    %p118 = scmp.eq.s32.totalorder %s16, 1
    %p119 = por %p117, %p118
    %p121 = scmp.ne.s32.totalorder %s104, %s120
    %p122 = scmp.eq.s32.totalorder %s16, 0
    %p123 = por %p121, %p122
    %s124 = sadd.s32 %s17, %s18
    %s125 = sadd.s32 %s29, %s25
    %s126 = ssub.s32 %s124, %s125
    %p127 = scmp.eq.s32.totalorder %s126, 0
    %s129 = sadd.s32 %s128, 1
    %s130 = scalar_select %p127, %s128, %s129
    %p133 = pneg %p127
    %p134 = scmp.eq.s32.totalorder %s10, 1
    %p135 = por %p133, %p134
    %p136 = scmp.ne.s32.totalorder %s128, %s131
    %p137 = scmp.eq.s32.totalorder %s10, 0
    %p138 = por %p136, %p137
    %p139 = scmp.ne.s32.totalorder %s128, %s131
    %p140 = scmp.eq.s32.totalorder %s15, 1
    %p141 = por %p139, %p140
    %p142 = scmp.ne.s32.totalorder %s131, %s132
    %p143 = scmp.eq.s32.totalorder %s15, 0
    %p144 = por %p142, %p143
    %p145 = scmp.ne.s32.totalorder %s131, %s132
    %p146 = scmp.eq.s32.totalorder %s16, 1
    %p147 = por %p145, %p146
    %p149 = scmp.ne.s32.totalorder %s132, %s148
    %p150 = scmp.eq.s32.totalorder %s16, 0
    %p151 = por %p149, %p150
    %p152 = scmp.le.s32.totalorder 1, %s10
    %p153 = scmp.lt.s32.totalorder %s10, 3
    %p154 = pnand %p152, %p153
    %p155 = pneg %p154
    // Predicated region
    $region9: #{vqvae_forward.21} parent=5 // pred_check
      _
    $region10: #{vqvae_forward.21} parent=5 // pred_check_branch
      %157 = sbr.rel (%p154) target = $region12
    $region11: #{vqvae_forward.21} parent=5 // pred_region
      %s158 = ssub.s32 %s10, 1
      // Predicated region
      $region13: #{vqvae_forward.21} parent=11 // pred_check
        %p159 = pneg %p69
      $region14: #{vqvae_forward.21} parent=11 // pred_check_branch
        %161 = sbr.rel (%p159) target = $region16
      $region15: #{vqvae_forward.21} parent=11 // pred_region
        _
      $region16: #{vqvae_forward.21} parent=11 // pred_fallthru
        _
      // Predicated region
      $region17: #{vqvae_forward.21} parent=11 // pred_check
        %p162 = pneg %p90
      $region18: #{vqvae_forward.21} parent=11 // pred_check_branch
        %164 = sbr.rel (%p162) target = $region20
      $region19: #{vqvae_forward.21} parent=11 // pred_region
        _
      $region20: #{vqvae_forward.21} parent=11 // pred_fallthru
        _
      // Predicated region
      $region21: #{vqvae_forward.21} parent=11 // pred_check
        %p165 = pneg %p116
      $region22: #{vqvae_forward.21} parent=11 // pred_check_branch
        %167 = sbr.rel (%p165) target = $region24
      $region23: #{vqvae_forward.21} parent=11 // pred_region
        %s168 = smul.u32 13, %s20
        %p169 = scmp.lt.s32.totalorder %s168, 12
        %s170 = scalar_select %p169, %s168, 12
        %s171 = smul.addr %s170, 8
        %s172 = scalar_lea.vmem %s3, %s171
        %s173 = smul.u32 13, %s20
      $region24: #{vqvae_forward.21} parent=11 // pred_fallthru
        _
    $region12: #{vqvae_forward.21} parent=5 // pred_fallthru
      _
    %p174 = scmp.lt.s32.totalorder %s10, 2
    // Predicated region
    $region25: #{vqvae_forward.21} parent=5 // pred_check
      %p175 = pneg %p174
    $region26: #{vqvae_forward.21} parent=5 // pred_check_branch
      %177 = sbr.rel (%p175) target = $region28
    $region27: #{vqvae_forward.21} parent=5 // pred_region
      // Predicated region
      $region29: #{vqvae_forward.21} parent=27 // pred_check
        %p178 = pneg %p42
      $region30: #{vqvae_forward.21} parent=27 // pred_check_branch
        %180 = sbr.rel (%p178) target = $region32
      $region31: #{vqvae_forward.21} parent=27 // pred_region
        %s181 = smul.u32 16, %s17
        %p182 = scmp.lt.s32.totalorder %s181, 31
        %s183 = scalar_select %p182, %s181, 31
        %s184 = smul.addr %s183, 4
        %s185 = scalar_lea.vmem %s0, %s184
        %s186 = smul.u32 16, %s17
      $region32: #{vqvae_forward.21} parent=27 // pred_fallthru
        _
    $region28: #{vqvae_forward.21} parent=5 // pred_fallthru
      _
    %p187 = scmp.le.s32.totalorder 1, %s10
    %p188 = scmp.lt.s32.totalorder %s10, 3
    %p189 = pnand %p187, %p188
    %p190 = pneg %p189
    // Predicated region
    $region33: #{vqvae_forward.21} parent=5 // pred_check
      _
    $region34: #{vqvae_forward.21} parent=5 // pred_check_branch
      %192 = sbr.rel (%p189) target = $region36
    $region35: #{vqvae_forward.21} parent=5 // pred_region
      %s193 = ssub.s32 %s10, 1
      %s194 = smul.u32 16, %s19
      %p195 = scmp.lt.s32.totalorder %s194, 31
      %s196 = scalar_select %p195, %s194, 31
      %s197 = smul.addr %s196, 4
      %s198 = scalar_lea.vmem %s0, %s197
      %p199 = pneg %p48
      %p200 = pneg %p45
      %p201 = pneg %p69
      %p202 = pneg %p66
      %p203 = pneg %p90
      %p204 = pneg %p87
      %s205 = smul.u32 13, %s20
      %p206 = scmp.lt.s32.totalorder %s205, 12
      %s207 = scalar_select %p206, %s205, 12
      %s208 = smul.addr %s207, 8
      %s209 = scalar_lea.vmem %s3, %s208
      %p210 = pneg %p116
      %p211 = pneg %p113
      %p212 = pneg %p144
      %p213 = pneg %p141
      %s214 = sadd.s32 %s19, %s20
      %s215 = smul.u32 13, %s214
      %p216 = scmp.lt.s32.totalorder %s215, 25
      %s217 = scalar_select %p216, %s215, 25
      %s218 = smul.addr %s217, 8
      %s219 = scalar_lea.vmem %s4, %s218
      %s220 = smul.u32 16, %s19
      %p221 = scmp.lt.s32.totalorder %s220, 31
      %s222 = scalar_select %p221, %s220, 31
      %s223 = smul.addr %s222, 4
      %s224 = scalar_lea.vmem %s0, %s223
      %s225 = smul.u32 16, %s19
      %s226 = smul.u32 13, %s20
      %p227 = scmp.lt.s32.totalorder %s226, 12
      %s228 = scalar_select %p227, %s226, 12
      %s229 = smul.addr %s228, 8
      %s230 = scalar_lea.vmem %s3, %s229
      %s231 = smul.u32 13, %s20
      %s232 = sadd.s32 %s19, %s20
      %s233 = smul.u32 13, %s232
      %p234 = scmp.lt.s32.totalorder %s233, 25
      %s235 = scalar_select %p234, %s233, 25
      %s236 = smul.addr %s235, 8
      %s237 = scalar_lea.vmem %s4, %s236
      %s238 = sadd.s32 %s19, %s20
      %s239 = smul.u32 13, %s238
      %v240 = vld [vmem:[%s224] sm:$0xf]
      %v241 = vld [vmem:[%s224 + $0x4] sm:$0xf]
      %v242 = vld [vmem:[%s224 + $0x8] sm:$0xf]
      %v243 = vld [vmem:[%s224 + $0xc] sm:$0xf]
      %v244 = vld [vmem:[%s224 + $0x10] sm:$0xf]
      %v245 = vld [vmem:[%s224 + $0x14] sm:$0xf]
      %v246 = vld [vmem:[%s224 + $0x18] sm:$0xf]
      %v247 = vld [vmem:[%s224 + $0x1c] sm:$0xf]
      %v248 = vld [vmem:[%s224 + $0x20] sm:$0xf]
      %v249 = vld [vmem:[%s224 + $0x24] sm:$0xf]
      %v250 = vld [vmem:[%s224 + $0x28] sm:$0xf]
      %v251 = vld [vmem:[%s224 + $0x2c] sm:$0xf]
      %v252 = vld [vmem:[%s224 + $0x30] sm:$0xf]
      %v253 = vld [vmem:[%s1] sm:$0xf]
      %v254 = vld [vmem:[%s1 + $0x4] sm:$0xf]
      %v255 = vld [vmem:[%s1 + $0x8] sm:$0xf]
      %v256 = vld [vmem:[%s1 + $0xc] sm:$0xf]
      %v257 = vld [vmem:[%s1 + $0x10] sm:$0xf]
      %v258 = vld [vmem:[%s1 + $0x14] sm:$0xf]
      %v259 = vld [vmem:[%s1 + $0x18] sm:$0xf]
      %v260 = vld [vmem:[%s1 + $0x1c] sm:$0xf]
      %v261 = vld [vmem:[%s1 + $0x20] sm:$0xf]
      %v262 = vld [vmem:[%s1 + $0x24] sm:$0xf]
      %v263 = vld [vmem:[%s1 + $0x28] sm:$0xf]
      %v264 = vld [vmem:[%s1 + $0x2c] sm:$0xf]
      %v265 = vld [vmem:[%s1 + $0x30] sm:$0xf]
      %v266 = vld [vmem:[%s1 + $0x34] sm:$0xf]
      %v267 = vld [vmem:[%s1 + $0x38] sm:$0xf]
      %v268 = vld [vmem:[%s1 + $0x3c] sm:$0xf]
      %v269 = vld [vmem:[%s224 + $0x34] sm:$0x1]
      %v270 = vld [vmem:[%s1 + $0x40] sm:$0xf]
      %v271 = vld [vmem:[%s1 + $0x44] sm:$0xf]
      %v272 = vld [vmem:[%s1 + $0x48] sm:$0xf]
      %v273 = vld [vmem:[%s1 + $0x4c] sm:$0xf]
      %v274 = vld [vmem:[%s1 + $0x50] sm:$0xf]
      %v275 = vld [vmem:[%s1 + $0x54] sm:$0xf]
      %v276 = vld [vmem:[%s1 + $0x58] sm:$0xf]
      %v277 = vld [vmem:[%s1 + $0x5c] sm:$0xf]
      %v278 = vld [vmem:[%s1 + $0x60] sm:$0xf]
      %v279 = vld [vmem:[%s1 + $0x64] sm:$0xf]
      %v280 = vld [vmem:[%s1 + $0x68] sm:$0xf]
      %v281 = vld [vmem:[%s1 + $0x6c] sm:$0xf]
      %v282 = vld [vmem:[%s1 + $0x70] sm:$0xf]
      %v283 = vld [vmem:[%s1 + $0x74] sm:$0xf]
      %v284 = vld [vmem:[%s1 + $0x78] sm:$0xf]
      %v285 = vld [vmem:[%s1 + $0x7c] sm:$0xf]
      %v300 = vunpack.c.l.b16 %v240
      %v301 = vunpack.c.l.b16 %v241
      %v302 = vunpack.c.l.b16 %v242
      %v303 = vunpack.c.l.b16 %v243
      %v304 = vunpack.c.l.b16 %v244
      %v305 = vunpack.c.l.b16 %v245
      %v306 = vunpack.c.l.b16 %v246
      %v307 = vunpack.c.l.b16 %v247
      %v308 = vunpack.c.l.b16 %v248
      %v309 = vunpack.c.l.b16 %v249
      %v310 = vunpack.c.l.b16 %v250
      %v311 = vunpack.c.l.b16 %v251
      %v312 = vunpack.c.l.b16 %v252
      %v313 = vunpack.c.l.b16 %v269
      %v314 = vpack.c.b16 %v301, %v300
      %v315 = vpack.c.b16 %v303, %v302
      %v316 = vpack.c.b16 %v305, %v304
      %v317 = vpack.c.b16 %v307, %v306
      %v318 = vpack.c.b16 %v309, %v308
      %v319 = vpack.c.b16 %v311, %v310
      %v320 = vpack.c.b16 %v313, %v312
      %vm321 = vsmask.f32 7424
      %v323 = vshrl.u32 %v314, 16
      %v325 = vshll.u32 %v314, 16
      %v327 = vrot.slane %v325, 1
      %v328 = vor.u32 %v323, %v327
      %v330 = vshll.u32 %v315, 16
      %v332 = vrot.slane %v330, 1
      %v333 = vsel %vm321, %v328, %v332
      %v334 = vshrl.u32 %v315, 16
      %v336 = vor.u32 %v334, %v332
      %v338 = vshll.u32 %v316, 16
      %v340 = vrot.slane %v338, 1
      %v341 = vsel %vm321, %v336, %v340
      %v342 = vshrl.u32 %v316, 16
      %v344 = vor.u32 %v342, %v340
      %v346 = vshll.u32 %v317, 16
      %v348 = vrot.slane %v346, 1
      %v349 = vsel %vm321, %v344, %v348
      %v350 = vshrl.u32 %v317, 16
      %v352 = vor.u32 %v350, %v348
      %v354 = vshll.u32 %v318, 16
      %v356 = vrot.slane %v354, 1
      %v357 = vsel %vm321, %v352, %v356
      %v358 = vshrl.u32 %v318, 16
      %v360 = vor.u32 %v358, %v356
      %v362 = vshll.u32 %v319, 16
      %v364 = vrot.slane %v362, 1
      %v365 = vsel %vm321, %v360, %v364
      %v366 = vshrl.u32 %v319, 16
      %v368 = vor.u32 %v366, %v364
      %v370 = vshll.u32 %v320, 16
      %v372 = vrot.slane %v370, 1
      %v373 = vsel %vm321, %v368, %v372
      %v374 = vshrl.u32 %v320, 16
      %v376 = vor.u32 %v374, %v372
      %v400 = vunpack.c.l.b16 %v270
      %v401 = vunpack.c.l.b16 %v271
      %v402 = vunpack.c.l.b16 %v272
      %v403 = vunpack.c.l.b16 %v273
      %v404 = vunpack.c.l.b16 %v274
      %v405 = vunpack.c.l.b16 %v275
      %v406 = vunpack.c.l.b16 %v276
      %v407 = vunpack.c.l.b16 %v277
      %v408 = vunpack.c.l.b16 %v278
      %v409 = vunpack.c.l.b16 %v279
      %v410 = vunpack.c.l.b16 %v280
      %v411 = vunpack.c.l.b16 %v281
      %v412 = vunpack.c.l.b16 %v282
      %v413 = vunpack.c.l.b16 %v283
      %v414 = vunpack.c.l.b16 %v284
      %v415 = vunpack.c.l.b16 %v285
      %v416 = vpack.c.b16 %v401, %v400
      %v417 = vpack.c.b16 %v403, %v402
      %v418 = vpack.c.b16 %v405, %v404
      %v419 = vpack.c.b16 %v407, %v406
      %v420 = vpack.c.b16 %v409, %v408
      %v421 = vpack.c.b16 %v411, %v410
      %v422 = vpack.c.b16 %v413, %v412
      %v423 = vpack.c.b16 %v415, %v414
      %432 = vmatpush.bf16.msra.mxu0 %v423
      %433 = vmatpush.bf16.msra.mxu0 %v422
      %434 = vmatpush.bf16.msra.mxu0 %v421
      %435 = vmatpush.bf16.msra.mxu0 %v420
      %436 = vmatpush.bf16.msra.mxu0 %v419
      %437 = vmatpush.bf16.msra.mxu0 %v418
      %438 = vmatpush.bf16.msra.mxu0 %v417
      %439 = vmatpush.bf16.msra.mxu0 %v416
      %440 = vmatmul.bf16.gmra.mxu0 %v333
      %v441 = vpop.f32.mrf.mxu0
      %v442 = vadd.f32 0.0, %v441
      %v443 = vpop.f32.mrf.mxu0
      %v444 = vadd.f32 0.0, %v443
      %445 = vmatmul.bf16.gmra.mxu0 %v341
      %v446 = vpop.f32.mrf.mxu0
      %v447 = vadd.f32 0.0, %v446
      %v448 = vpop.f32.mrf.mxu0
      %v449 = vadd.f32 0.0, %v448
      %450 = vmatmul.bf16.gmra.mxu0 %v349
      %v451 = vpop.f32.mrf.mxu0
      %v452 = vadd.f32 0.0, %v451
      %v453 = vpop.f32.mrf.mxu0
      %v454 = vadd.f32 0.0, %v453
      %455 = vmatmul.bf16.gmra.mxu0 %v357
      %v456 = vpop.f32.mrf.mxu0
      %v457 = vadd.f32 0.0, %v456
      %v458 = vpop.f32.mrf.mxu0
      %v459 = vadd.f32 0.0, %v458
      %460 = vmatmul.bf16.gmra.mxu0 %v365
      %v461 = vpop.f32.mrf.mxu0
      %v462 = vadd.f32 0.0, %v461
      %v463 = vpop.f32.mrf.mxu0
      %v464 = vadd.f32 0.0, %v463
      %465 = vmatmul.bf16.gmra.mxu0 %v373
      %v466 = vpop.f32.mrf.mxu0
      %v467 = vadd.f32 0.0, %v466
      %v468 = vpop.f32.mrf.mxu0
      %v469 = vadd.f32 0.0, %v468
      %470 = vmatmul.bf16.gmra.mxu0 %v376
      %v471 = vpop.f32.mrf.mxu0
      %v472 = vadd.f32 0.0, %v471
      %v473 = vpop.f32.mrf.mxu0
      %474 = vdwg.mxu0
      %v475 = vpack.c.b16 %v312, %v312
      %v499 = vunpack.c.l.b16 %v253
      %v500 = vunpack.c.l.b16 %v254
      %v501 = vunpack.c.l.b16 %v255
      %v502 = vunpack.c.l.b16 %v256
      %v503 = vunpack.c.l.b16 %v257
      %v504 = vunpack.c.l.b16 %v258
      %v505 = vunpack.c.l.b16 %v259
      %v506 = vunpack.c.l.b16 %v260
      %v507 = vunpack.c.l.b16 %v261
      %v508 = vunpack.c.l.b16 %v262
      %v509 = vunpack.c.l.b16 %v263
      %v510 = vunpack.c.l.b16 %v264
      %v511 = vunpack.c.l.b16 %v265
      %v512 = vunpack.c.l.b16 %v266
      %v513 = vunpack.c.l.b16 %v267
      %v514 = vunpack.c.l.b16 %v268
      %v515 = vpack.c.b16 %v500, %v499
      %v516 = vpack.c.b16 %v502, %v501
      %v517 = vpack.c.b16 %v504, %v503
      %v518 = vpack.c.b16 %v506, %v505
      %v519 = vpack.c.b16 %v508, %v507
      %v520 = vpack.c.b16 %v510, %v509
      %v521 = vpack.c.b16 %v512, %v511
      %v522 = vpack.c.b16 %v514, %v513
      %531 = vmatpush.bf16.msra.mxu0 %v522
      %532 = vmatpush.bf16.msra.mxu0 %v521
      %533 = vmatpush.bf16.msra.mxu0 %v520
      %534 = vmatpush.bf16.msra.mxu0 %v519
      %535 = vmatpush.bf16.msra.mxu0 %v518
      %536 = vmatpush.bf16.msra.mxu0 %v517
      %537 = vmatpush.bf16.msra.mxu0 %v516
      %538 = vmatpush.bf16.msra.mxu0 %v515
      %539 = vmatmul.bf16.gmra.mxu0 %v314
      %v540 = vpop.f32.mrf.mxu0
      %v541 = vadd.f32 %v442, %v540
      %v542 = vpop.f32.mrf.mxu0
      %v543 = vadd.f32 %v444, %v542
      %544 = vmatmul.bf16.gmra.mxu0 %v315
      %v545 = vpop.f32.mrf.mxu0
      %v546 = vadd.f32 %v447, %v545
      %v547 = vpop.f32.mrf.mxu0
      %v548 = vadd.f32 %v449, %v547
      %549 = vmatmul.bf16.gmra.mxu0 %v316
      %v550 = vpop.f32.mrf.mxu0
      %v551 = vadd.f32 %v452, %v550
      %v552 = vpop.f32.mrf.mxu0
      %v553 = vadd.f32 %v454, %v552
      %554 = vmatmul.bf16.gmra.mxu0 %v317
      %v555 = vpop.f32.mrf.mxu0
      %v556 = vadd.f32 %v457, %v555
      %v557 = vpop.f32.mrf.mxu0
      %v558 = vadd.f32 %v459, %v557
      %559 = vmatmul.bf16.gmra.mxu0 %v318
      %v560 = vpop.f32.mrf.mxu0
      %v561 = vadd.f32 %v462, %v560
      %v562 = vpop.f32.mrf.mxu0
      %v563 = vadd.f32 %v464, %v562
      %564 = vmatmul.bf16.gmra.mxu0 %v319
      %v565 = vpop.f32.mrf.mxu0
      %v566 = vadd.f32 %v467, %v565
      %v567 = vpop.f32.mrf.mxu0
      %v568 = vadd.f32 %v469, %v567
      %569 = vmatmul.bf16.gmra.mxu0 %v475
      %v570 = vpop.f32.mrf.mxu0
      %v571 = vadd.f32 %v472, %v570
      %v572 = vpop.f32.mrf.mxu0
      %573 = vdwg.mxu0
      %v574 = vld [vmem:[%s224] sm:$0xe]
      %v575 = vld [vmem:[%s1 + $0x80] sm:$0xf]
      %v576 = vld [vmem:[%s1 + $0x84] sm:$0xf]
      %v577 = vld [vmem:[%s1 + $0x88] sm:$0xf]
      %v578 = vld [vmem:[%s1 + $0x8c] sm:$0xf]
      %v579 = vld [vmem:[%s1 + $0x90] sm:$0xf]
      %v580 = vld [vmem:[%s1 + $0x94] sm:$0xf]
      %v581 = vld [vmem:[%s1 + $0x98] sm:$0xf]
      %v582 = vld [vmem:[%s1 + $0x9c] sm:$0xf]
      %v583 = vld [vmem:[%s1 + $0xa0] sm:$0xf]
      %v584 = vld [vmem:[%s1 + $0xa4] sm:$0xf]
      %v585 = vld [vmem:[%s1 + $0xa8] sm:$0xf]
      %v586 = vld [vmem:[%s1 + $0xac] sm:$0xf]
      %v587 = vld [vmem:[%s1 + $0xb0] sm:$0xf]
      %v588 = vld [vmem:[%s1 + $0xb4] sm:$0xf]
      %v589 = vld [vmem:[%s1 + $0xb8] sm:$0xf]
      %v590 = vld [vmem:[%s1 + $0xbc] sm:$0xf]
      %v592 = vunpack.c.l.b16 %v574
      %v593 = vpack.c.b16 %v301, %v592
      %vm594 = vcmask 1046528
      %v595 = vrot.slane %v593, 1
      %v596 = vrot.slane %v315, 1
      %v597 = vsel %vm594, %v595, %v596
      %v598 = vrot.slane %v316, 1
      %v599 = vsel %vm594, %v596, %v598
      %v600 = vrot.slane %v317, 1
      %v601 = vsel %vm594, %v598, %v600
      %v602 = vrot.slane %v318, 1
      %v603 = vsel %vm594, %v600, %v602
      %v604 = vrot.slane %v319, 1
      %v605 = vsel %vm594, %v602, %v604
      %v606 = vrot.slane %v320, 1
      %v607 = vsel %vm594, %v604, %v606
      %v631 = vunpack.c.l.b16 %v575
      %v632 = vunpack.c.l.b16 %v576
      %v633 = vunpack.c.l.b16 %v577
      %v634 = vunpack.c.l.b16 %v578
      %v635 = vunpack.c.l.b16 %v579
      %v636 = vunpack.c.l.b16 %v580
      %v637 = vunpack.c.l.b16 %v581
      %v638 = vunpack.c.l.b16 %v582
      %v639 = vunpack.c.l.b16 %v583
      %v640 = vunpack.c.l.b16 %v584
      %v641 = vunpack.c.l.b16 %v585
      %v642 = vunpack.c.l.b16 %v586
      %v643 = vunpack.c.l.b16 %v587
      %v644 = vunpack.c.l.b16 %v588
      %v645 = vunpack.c.l.b16 %v589
      %v646 = vunpack.c.l.b16 %v590
      %v647 = vpack.c.b16 %v632, %v631
      %v648 = vpack.c.b16 %v634, %v633
      %v649 = vpack.c.b16 %v636, %v635
      %v650 = vpack.c.b16 %v638, %v637
      %v651 = vpack.c.b16 %v640, %v639
      %v652 = vpack.c.b16 %v642, %v641
      %v653 = vpack.c.b16 %v644, %v643
      %v654 = vpack.c.b16 %v646, %v645
      %663 = vmatpush.bf16.msra.mxu0 %v654
      %664 = vmatpush.bf16.msra.mxu0 %v653
      %665 = vmatpush.bf16.msra.mxu0 %v652
      %666 = vmatpush.bf16.msra.mxu0 %v651
      %667 = vmatpush.bf16.msra.mxu0 %v650
      %668 = vmatpush.bf16.msra.mxu0 %v649
      %669 = vmatpush.bf16.msra.mxu0 %v648
      %670 = vmatpush.bf16.msra.mxu0 %v647
      %671 = vmatmul.bf16.gmra.mxu0 %v597
      %v672 = vpop.f32.mrf.mxu0
      %v673 = vadd.f32 0.0, %v672
      %v674 = vpop.f32.mrf.mxu0
      %v675 = vadd.f32 0.0, %v674
      %676 = vmatmul.bf16.gmra.mxu0 %v599
      %v677 = vpop.f32.mrf.mxu0
      %v678 = vadd.f32 0.0, %v677
      %v679 = vpop.f32.mrf.mxu0
      %v680 = vadd.f32 0.0, %v679
      %681 = vmatmul.bf16.gmra.mxu0 %v601
      %v682 = vpop.f32.mrf.mxu0
      %v683 = vadd.f32 0.0, %v682
      %v684 = vpop.f32.mrf.mxu0
      %v685 = vadd.f32 0.0, %v684
      %686 = vmatmul.bf16.gmra.mxu0 %v603
      %v687 = vpop.f32.mrf.mxu0
      %v688 = vadd.f32 0.0, %v687
      %v689 = vpop.f32.mrf.mxu0
      %v690 = vadd.f32 0.0, %v689
      %691 = vmatmul.bf16.gmra.mxu0 %v605
      %v692 = vpop.f32.mrf.mxu0
      %v693 = vadd.f32 0.0, %v692
      %v694 = vpop.f32.mrf.mxu0
      %v695 = vadd.f32 0.0, %v694
      %696 = vmatmul.bf16.gmra.mxu0 %v607
      %v697 = vpop.f32.mrf.mxu0
      %v698 = vadd.f32 0.0, %v697
      %v699 = vpop.f32.mrf.mxu0
      %v700 = vadd.f32 0.0, %v699
      %701 = vmatmul.bf16.gmra.mxu0 %v606
      %v702 = vpop.f32.mrf.mxu0
      %v703 = vadd.f32 0.0, %v702
      %v704 = vpop.f32.mrf.mxu0
      %705 = vdwg.mxu0
      %v706 = vadd.f32 %v541, %v673
      %v707 = vadd.f32 %v543, %v675
      %v708 = vadd.f32 %v546, %v678
      %v709 = vadd.f32 %v548, %v680
      %v710 = vadd.f32 %v551, %v683
      %v711 = vadd.f32 %v553, %v685
      %v712 = vadd.f32 %v556, %v688
      %v713 = vadd.f32 %v558, %v690
      %v714 = vadd.f32 %v561, %v693
      %v715 = vadd.f32 %v563, %v695
      %v716 = vadd.f32 %v566, %v698
      %v717 = vadd.f32 %v568, %v700
      %v718 = vadd.f32 %v571, %v703
      %v719 = vld [vmem:[%s224 + $0x4] sm:$0xe]
      %v720 = vld [vmem:[%s224 + $0x8] sm:$0xf]
      %v721 = vld [vmem:[%s224 + $0xc] sm:$0xf]
      %v722 = vld [vmem:[%s224 + $0x10] sm:$0xf]
      %v723 = vld [vmem:[%s224 + $0x14] sm:$0xf]
      %v724 = vld [vmem:[%s224 + $0x18] sm:$0xf]
      %v725 = vld [vmem:[%s224 + $0x1c] sm:$0xf]
      %v726 = vld [vmem:[%s224 + $0x20] sm:$0xf]
      %v727 = vld [vmem:[%s224 + $0x24] sm:$0xf]
      %v728 = vld [vmem:[%s224 + $0x28] sm:$0xf]
      %v729 = vld [vmem:[%s224 + $0x2c] sm:$0xf]
      %v730 = vld [vmem:[%s224 + $0x30] sm:$0xf]
      %v731 = vld [vmem:[%s224 + $0x34] sm:$0xf]
      %v732 = vld [vmem:[%s224 + $0x38] sm:$0x1]
      %v733 = vld [vmem:[%s1 + $0xc0] sm:$0xf]
      %v734 = vld [vmem:[%s1 + $0xc4] sm:$0xf]
      %v735 = vld [vmem:[%s1 + $0xc8] sm:$0xf]
      %v736 = vld [vmem:[%s1 + $0xcc] sm:$0xf]
      %v737 = vld [vmem:[%s1 + $0xd0] sm:$0xf]
      %v738 = vld [vmem:[%s1 + $0xd4] sm:$0xf]
      %v739 = vld [vmem:[%s1 + $0xd8] sm:$0xf]
      %v740 = vld [vmem:[%s1 + $0xdc] sm:$0xf]
      %v741 = vld [vmem:[%s1 + $0xe0] sm:$0xf]
      %v742 = vld [vmem:[%s1 + $0xe4] sm:$0xf]
      %v743 = vld [vmem:[%s1 + $0xe8] sm:$0xf]
      %v744 = vld [vmem:[%s1 + $0xec] sm:$0xf]
      %v745 = vld [vmem:[%s1 + $0xf0] sm:$0xf]
      %v746 = vld [vmem:[%s1 + $0xf4] sm:$0xf]
      %v747 = vld [vmem:[%s1 + $0xf8] sm:$0xf]
      %v748 = vld [vmem:[%s1 + $0xfc] sm:$0xf]
      %v763 = vunpack.c.l.b16 %v719
      %v764 = vunpack.c.l.b16 %v720
      %v765 = vunpack.c.l.b16 %v721
      %v766 = vunpack.c.l.b16 %v722
      %v767 = vunpack.c.l.b16 %v723
      %v768 = vunpack.c.l.b16 %v724
      %v769 = vunpack.c.l.b16 %v725
      %v770 = vunpack.c.l.b16 %v726
      %v771 = vunpack.c.l.b16 %v727
      %v772 = vunpack.c.l.b16 %v728
      %v773 = vunpack.c.l.b16 %v729
      %v774 = vunpack.c.l.b16 %v730
      %v775 = vunpack.c.l.b16 %v731
      %v776 = vunpack.c.l.b16 %v732
      %v777 = vpack.c.b16 %v764, %v763
      %v778 = vpack.c.b16 %v766, %v765
      %v779 = vpack.c.b16 %v768, %v767
      %v780 = vpack.c.b16 %v770, %v769
      %v781 = vpack.c.b16 %v772, %v771
      %v782 = vpack.c.b16 %v774, %v773
      %v783 = vpack.c.b16 %v776, %v775
      %v784 = vrot.slane %v777, 1
      %v785 = vrot.slane %v778, 1
      %v786 = vsel %vm594, %v784, %v785
      %v787 = vrot.slane %v779, 1
      %v788 = vsel %vm594, %v785, %v787
      %v789 = vrot.slane %v780, 1
      %v790 = vsel %vm594, %v787, %v789
      %v791 = vrot.slane %v781, 1
      %v792 = vsel %vm594, %v789, %v791
      %v793 = vrot.slane %v782, 1
      %v794 = vsel %vm594, %v791, %v793
      %v795 = vrot.slane %v783, 1
      %v796 = vsel %vm594, %v793, %v795
      %v820 = vunpack.c.l.b16 %v733
      %v821 = vunpack.c.l.b16 %v734
      %v822 = vunpack.c.l.b16 %v735
      %v823 = vunpack.c.l.b16 %v736
      %v824 = vunpack.c.l.b16 %v737
      %v825 = vunpack.c.l.b16 %v738
      %v826 = vunpack.c.l.b16 %v739
      %v827 = vunpack.c.l.b16 %v740
      %v828 = vunpack.c.l.b16 %v741
      %v829 = vunpack.c.l.b16 %v742
      %v830 = vunpack.c.l.b16 %v743
      %v831 = vunpack.c.l.b16 %v744
      %v832 = vunpack.c.l.b16 %v745
      %v833 = vunpack.c.l.b16 %v746
      %v834 = vunpack.c.l.b16 %v747
      %v835 = vunpack.c.l.b16 %v748
      %v836 = vpack.c.b16 %v821, %v820
      %v837 = vpack.c.b16 %v823, %v822
      %v838 = vpack.c.b16 %v825, %v824
      %v839 = vpack.c.b16 %v827, %v826
      %v840 = vpack.c.b16 %v829, %v828
      %v841 = vpack.c.b16 %v831, %v830
      %v842 = vpack.c.b16 %v833, %v832
      %v843 = vpack.c.b16 %v835, %v834
      %852 = vmatpush.bf16.msra.mxu0 %v843
      %853 = vmatpush.bf16.msra.mxu0 %v842
      %854 = vmatpush.bf16.msra.mxu0 %v841
      %855 = vmatpush.bf16.msra.mxu0 %v840
      %856 = vmatpush.bf16.msra.mxu0 %v839
      %857 = vmatpush.bf16.msra.mxu0 %v838
      %858 = vmatpush.bf16.msra.mxu0 %v837
      %859 = vmatpush.bf16.msra.mxu0 %v836
      %860 = vmatmul.bf16.gmra.mxu0 %v786
      %v861 = vpop.f32.mrf.mxu0
      %v862 = vadd.f32 0.0, %v861
      %v863 = vpop.f32.mrf.mxu0
      %v864 = vadd.f32 0.0, %v863
      %865 = vmatmul.bf16.gmra.mxu0 %v788
      %v866 = vpop.f32.mrf.mxu0
      %v867 = vadd.f32 0.0, %v866
      %v868 = vpop.f32.mrf.mxu0
      %v869 = vadd.f32 0.0, %v868
      %870 = vmatmul.bf16.gmra.mxu0 %v790
      %v871 = vpop.f32.mrf.mxu0
      %v872 = vadd.f32 0.0, %v871
      %v873 = vpop.f32.mrf.mxu0
      %v874 = vadd.f32 0.0, %v873
      %875 = vmatmul.bf16.gmra.mxu0 %v792
      %v876 = vpop.f32.mrf.mxu0
      %v877 = vadd.f32 0.0, %v876
      %v878 = vpop.f32.mrf.mxu0
      %v879 = vadd.f32 0.0, %v878
      %880 = vmatmul.bf16.gmra.mxu0 %v794
      %v881 = vpop.f32.mrf.mxu0
      %v882 = vadd.f32 0.0, %v881
      %v883 = vpop.f32.mrf.mxu0
      %v884 = vadd.f32 0.0, %v883
      %885 = vmatmul.bf16.gmra.mxu0 %v796
      %v886 = vpop.f32.mrf.mxu0
      %v887 = vadd.f32 0.0, %v886
      %v888 = vpop.f32.mrf.mxu0
      %v889 = vadd.f32 0.0, %v888
      %890 = vmatmul.bf16.gmra.mxu0 %v795
      %v891 = vpop.f32.mrf.mxu0
      %v892 = vadd.f32 0.0, %v891
      %v893 = vpop.f32.mrf.mxu0
      %894 = vdwg.mxu0
      %v895 = vadd.f32 %v706, %v862
      %v896 = vadd.f32 %v707, %v864
      %v897 = vadd.f32 %v708, %v867
      %v898 = vadd.f32 %v709, %v869
      %v899 = vadd.f32 %v710, %v872
      %v900 = vadd.f32 %v711, %v874
      %v901 = vadd.f32 %v712, %v877
      %v902 = vadd.f32 %v713, %v879
      %v903 = vadd.f32 %v714, %v882
      %v904 = vadd.f32 %v715, %v884
      %v905 = vadd.f32 %v716, %v887
      %v906 = vadd.f32 %v717, %v889
      %v907 = vadd.f32 %v718, %v892
      %v908 = vld [vmem:[%s224 + $0x38] sm:$0x3]
      %v909 = vld [vmem:[%s1 + $0x100] sm:$0xf]
      %v910 = vld [vmem:[%s1 + $0x104] sm:$0xf]
      %v911 = vld [vmem:[%s1 + $0x108] sm:$0xf]
      %v912 = vld [vmem:[%s1 + $0x10c] sm:$0xf]
      %v913 = vld [vmem:[%s1 + $0x110] sm:$0xf]
      %v914 = vld [vmem:[%s1 + $0x114] sm:$0xf]
      %v915 = vld [vmem:[%s1 + $0x118] sm:$0xf]
      %v916 = vld [vmem:[%s1 + $0x11c] sm:$0xf]
      %v917 = vld [vmem:[%s1 + $0x120] sm:$0xf]
      %v918 = vld [vmem:[%s1 + $0x124] sm:$0xf]
      %v919 = vld [vmem:[%s1 + $0x128] sm:$0xf]
      %v920 = vld [vmem:[%s1 + $0x12c] sm:$0xf]
      %v921 = vld [vmem:[%s1 + $0x130] sm:$0xf]
      %v922 = vld [vmem:[%s1 + $0x134] sm:$0xf]
      %v923 = vld [vmem:[%s1 + $0x138] sm:$0xf]
      %v924 = vld [vmem:[%s1 + $0x13c] sm:$0xf]
      %v926 = vunpack.c.l.b16 %v908
      %v927 = vpack.c.b16 %v926, %v775
      %vm928 = vsmask.f32 6400
      %v930 = vshrl.u32 %v777, 16
      %v932 = vrot.slane %v930, 1
      %v933 = vshll.u32 %v777, 16
      %v935 = vrot.slane %v933, 2
      %v936 = vor.u32 %v932, %v935
      %v938 = vshrl.u32 %v778, 16
      %v940 = vrot.slane %v938, 1
      %v941 = vshll.u32 %v778, 16
      %v943 = vrot.slane %v941, 2
      %v944 = vor.u32 %v940, %v943
      %v945 = vsel %vm928, %v936, %v944
      %v947 = vshrl.u32 %v779, 16
      %v949 = vrot.slane %v947, 1
      %v950 = vshll.u32 %v779, 16
      %v952 = vrot.slane %v950, 2
      %v953 = vor.u32 %v949, %v952
      %v954 = vsel %vm928, %v944, %v953
      %v956 = vshrl.u32 %v780, 16
      %v958 = vrot.slane %v956, 1
      %v959 = vshll.u32 %v780, 16
      %v961 = vrot.slane %v959, 2
      %v962 = vor.u32 %v958, %v961
      %v963 = vsel %vm928, %v953, %v962
      %v965 = vshrl.u32 %v781, 16
      %v967 = vrot.slane %v965, 1
      %v968 = vshll.u32 %v781, 16
      %v970 = vrot.slane %v968, 2
      %v971 = vor.u32 %v967, %v970
      %v972 = vsel %vm928, %v962, %v971
      %v974 = vshrl.u32 %v782, 16
      %v976 = vrot.slane %v974, 1
      %v977 = vshll.u32 %v782, 16
      %v979 = vrot.slane %v977, 2
      %v980 = vor.u32 %v976, %v979
      %v981 = vsel %vm928, %v971, %v980
      %v983 = vshrl.u32 %v927, 16
      %v985 = vrot.slane %v983, 1
      %v986 = vshll.u32 %v927, 16
      %v988 = vrot.slane %v986, 2
      %v989 = vor.u32 %v985, %v988
      %v990 = vsel %vm928, %v980, %v989
      %v1014 = vunpack.c.l.b16 %v909
      %v1015 = vunpack.c.l.b16 %v910
      %v1016 = vunpack.c.l.b16 %v911
      %v1017 = vunpack.c.l.b16 %v912
      %v1018 = vunpack.c.l.b16 %v913
      %v1019 = vunpack.c.l.b16 %v914
      %v1020 = vunpack.c.l.b16 %v915
      %v1021 = vunpack.c.l.b16 %v916
      %v1022 = vunpack.c.l.b16 %v917
      %v1023 = vunpack.c.l.b16 %v918
      %v1024 = vunpack.c.l.b16 %v919
      %v1025 = vunpack.c.l.b16 %v920
      %v1026 = vunpack.c.l.b16 %v921
      %v1027 = vunpack.c.l.b16 %v922
      %v1028 = vunpack.c.l.b16 %v923
      %v1029 = vunpack.c.l.b16 %v924
      %v1030 = vpack.c.b16 %v1015, %v1014
      %v1031 = vpack.c.b16 %v1017, %v1016
      %v1032 = vpack.c.b16 %v1019, %v1018
      %v1033 = vpack.c.b16 %v1021, %v1020
      %v1034 = vpack.c.b16 %v1023, %v1022
      %v1035 = vpack.c.b16 %v1025, %v1024
      %v1036 = vpack.c.b16 %v1027, %v1026
      %v1037 = vpack.c.b16 %v1029, %v1028
      %1046 = vmatpush.bf16.msra.mxu0 %v1037
      %1047 = vmatpush.bf16.msra.mxu0 %v1036
      %1048 = vmatpush.bf16.msra.mxu0 %v1035
      %1049 = vmatpush.bf16.msra.mxu0 %v1034
      %1050 = vmatpush.bf16.msra.mxu0 %v1033
      %1051 = vmatpush.bf16.msra.mxu0 %v1032
      %1052 = vmatpush.bf16.msra.mxu0 %v1031
      %1053 = vmatpush.bf16.msra.mxu0 %v1030
      %1054 = vmatmul.bf16.gmra.mxu0 %v945
      %v1055 = vpop.f32.mrf.mxu0
      %v1056 = vadd.f32 0.0, %v1055
      %v1057 = vpop.f32.mrf.mxu0
      %v1058 = vadd.f32 0.0, %v1057
      %1059 = vmatmul.bf16.gmra.mxu0 %v954
      %v1060 = vpop.f32.mrf.mxu0
      %v1061 = vadd.f32 0.0, %v1060
      %v1062 = vpop.f32.mrf.mxu0
      %v1063 = vadd.f32 0.0, %v1062
      %1064 = vmatmul.bf16.gmra.mxu0 %v963
      %v1065 = vpop.f32.mrf.mxu0
      %v1066 = vadd.f32 0.0, %v1065
      %v1067 = vpop.f32.mrf.mxu0
      %v1068 = vadd.f32 0.0, %v1067
      %1069 = vmatmul.bf16.gmra.mxu0 %v972
      %v1070 = vpop.f32.mrf.mxu0
      %v1071 = vadd.f32 0.0, %v1070
      %v1072 = vpop.f32.mrf.mxu0
      %v1073 = vadd.f32 0.0, %v1072
      %1074 = vmatmul.bf16.gmra.mxu0 %v981
      %v1075 = vpop.f32.mrf.mxu0
      %v1076 = vadd.f32 0.0, %v1075
      %v1077 = vpop.f32.mrf.mxu0
      %v1078 = vadd.f32 0.0, %v1077
      %1079 = vmatmul.bf16.gmra.mxu0 %v990
      %v1080 = vpop.f32.mrf.mxu0
      %v1081 = vadd.f32 0.0, %v1080
      %v1082 = vpop.f32.mrf.mxu0
      %v1083 = vadd.f32 0.0, %v1082
      %1084 = vmatmul.bf16.gmra.mxu0 %v989
      %v1085 = vpop.f32.mrf.mxu0
      %v1086 = vadd.f32 0.0, %v1085
      %v1087 = vpop.f32.mrf.mxu0
      %1088 = vdwg.mxu0
      %v1089 = vadd.f32 %v895, %v1056
      %v1090 = vadd.f32 %v896, %v1058
      %v1091 = vadd.f32 %v897, %v1061
      %v1092 = vadd.f32 %v898, %v1063
      %v1093 = vadd.f32 %v899, %v1066
      %v1094 = vadd.f32 %v900, %v1068
      %v1095 = vadd.f32 %v901, %v1071
      %v1096 = vadd.f32 %v902, %v1073
      %v1097 = vadd.f32 %v903, %v1076
      %v1098 = vadd.f32 %v904, %v1078
      %v1099 = vadd.f32 %v905, %v1081
      %v1100 = vadd.f32 %v906, %v1083
      %v1101 = vadd.f32 %v907, %v1086
      %v1102 = vld [vmem:[%s224 + $0x4] sm:$0xc]
      %v1103 = vld [vmem:[%s1 + $0x140] sm:$0xf]
      %v1104 = vld [vmem:[%s1 + $0x144] sm:$0xf]
      %v1105 = vld [vmem:[%s1 + $0x148] sm:$0xf]
      %v1106 = vld [vmem:[%s1 + $0x14c] sm:$0xf]
      %v1107 = vld [vmem:[%s1 + $0x150] sm:$0xf]
      %v1108 = vld [vmem:[%s1 + $0x154] sm:$0xf]
      %v1109 = vld [vmem:[%s1 + $0x158] sm:$0xf]
      %v1110 = vld [vmem:[%s1 + $0x15c] sm:$0xf]
      %v1111 = vld [vmem:[%s1 + $0x160] sm:$0xf]
      %v1112 = vld [vmem:[%s1 + $0x164] sm:$0xf]
      %v1113 = vld [vmem:[%s1 + $0x168] sm:$0xf]
      %v1114 = vld [vmem:[%s1 + $0x16c] sm:$0xf]
      %v1115 = vld [vmem:[%s1 + $0x170] sm:$0xf]
      %v1116 = vld [vmem:[%s1 + $0x174] sm:$0xf]
      %v1117 = vld [vmem:[%s1 + $0x178] sm:$0xf]
      %v1118 = vld [vmem:[%s1 + $0x17c] sm:$0xf]
      %v1120 = vunpack.c.l.b16 %v1102
      %v1121 = vpack.c.b16 %v764, %v1120
      %vm1122 = vcmask 1045504
      %v1123 = vrot.slane %v1121, 2
      %v1124 = vrot.slane %v778, 2
      %v1125 = vsel %vm1122, %v1123, %v1124
      %v1126 = vrot.slane %v779, 2
      %v1127 = vsel %vm1122, %v1124, %v1126
      %v1128 = vrot.slane %v780, 2
      %v1129 = vsel %vm1122, %v1126, %v1128
      %v1130 = vrot.slane %v781, 2
      %v1131 = vsel %vm1122, %v1128, %v1130
      %v1132 = vrot.slane %v782, 2
      %v1133 = vsel %vm1122, %v1130, %v1132
      %v1134 = vrot.slane %v927, 2
      %v1135 = vsel %vm1122, %v1132, %v1134
      %v1159 = vunpack.c.l.b16 %v1103
      %v1160 = vunpack.c.l.b16 %v1104
      %v1161 = vunpack.c.l.b16 %v1105
      %v1162 = vunpack.c.l.b16 %v1106
      %v1163 = vunpack.c.l.b16 %v1107
      %v1164 = vunpack.c.l.b16 %v1108
      %v1165 = vunpack.c.l.b16 %v1109
      %v1166 = vunpack.c.l.b16 %v1110
      %v1167 = vunpack.c.l.b16 %v1111
      %v1168 = vunpack.c.l.b16 %v1112
      %v1169 = vunpack.c.l.b16 %v1113
      %v1170 = vunpack.c.l.b16 %v1114
      %v1171 = vunpack.c.l.b16 %v1115
      %v1172 = vunpack.c.l.b16 %v1116
      %v1173 = vunpack.c.l.b16 %v1117
      %v1174 = vunpack.c.l.b16 %v1118
      %v1175 = vpack.c.b16 %v1160, %v1159
      %v1176 = vpack.c.b16 %v1162, %v1161
      %v1177 = vpack.c.b16 %v1164, %v1163
      %v1178 = vpack.c.b16 %v1166, %v1165
      %v1179 = vpack.c.b16 %v1168, %v1167
      %v1180 = vpack.c.b16 %v1170, %v1169
      %v1181 = vpack.c.b16 %v1172, %v1171
      %v1182 = vpack.c.b16 %v1174, %v1173
      %1191 = vmatpush.bf16.msra.mxu0 %v1182
      %1192 = vmatpush.bf16.msra.mxu0 %v1181
      %1193 = vmatpush.bf16.msra.mxu0 %v1180
      %1194 = vmatpush.bf16.msra.mxu0 %v1179
      %1195 = vmatpush.bf16.msra.mxu0 %v1178
      %1196 = vmatpush.bf16.msra.mxu0 %v1177
      %1197 = vmatpush.bf16.msra.mxu0 %v1176
      %1198 = vmatpush.bf16.msra.mxu0 %v1175
      %1199 = vmatmul.bf16.gmra.mxu0 %v1125
      %v1200 = vpop.f32.mrf.mxu0
      %v1201 = vadd.f32 0.0, %v1200
      %v1202 = vpop.f32.mrf.mxu0
      %v1203 = vadd.f32 0.0, %v1202
      %1204 = vmatmul.bf16.gmra.mxu0 %v1127
      %v1205 = vpop.f32.mrf.mxu0
      %v1206 = vadd.f32 0.0, %v1205
      %v1207 = vpop.f32.mrf.mxu0
      %v1208 = vadd.f32 0.0, %v1207
      %1209 = vmatmul.bf16.gmra.mxu0 %v1129
      %v1210 = vpop.f32.mrf.mxu0
      %v1211 = vadd.f32 0.0, %v1210
      %v1212 = vpop.f32.mrf.mxu0
      %v1213 = vadd.f32 0.0, %v1212
      %1214 = vmatmul.bf16.gmra.mxu0 %v1131
      %v1215 = vpop.f32.mrf.mxu0
      %v1216 = vadd.f32 0.0, %v1215
      %v1217 = vpop.f32.mrf.mxu0
      %v1218 = vadd.f32 0.0, %v1217
      %1219 = vmatmul.bf16.gmra.mxu0 %v1133
      %v1220 = vpop.f32.mrf.mxu0
      %v1221 = vadd.f32 0.0, %v1220
      %v1222 = vpop.f32.mrf.mxu0
      %v1223 = vadd.f32 0.0, %v1222
      %1224 = vmatmul.bf16.gmra.mxu0 %v1135
      %v1225 = vpop.f32.mrf.mxu0
      %v1226 = vadd.f32 0.0, %v1225
      %v1227 = vpop.f32.mrf.mxu0
      %v1228 = vadd.f32 0.0, %v1227
      %1229 = vmatmul.bf16.gmra.mxu0 %v1134
      %v1230 = vpop.f32.mrf.mxu0
      %v1231 = vadd.f32 0.0, %v1230
      %v1232 = vpop.f32.mrf.mxu0
      %1233 = vdwg.mxu0
      %v1234 = vadd.f32 %v1089, %v1201
      %v1235 = vadd.f32 %v1090, %v1203
      %v1236 = vadd.f32 %v1091, %v1206
      %v1237 = vadd.f32 %v1092, %v1208
      %v1238 = vadd.f32 %v1093, %v1211
      %v1239 = vadd.f32 %v1094, %v1213
      %v1240 = vadd.f32 %v1095, %v1216
      %v1241 = vadd.f32 %v1096, %v1218
      %v1242 = vadd.f32 %v1097, %v1221
      %v1243 = vadd.f32 %v1098, %v1223
      %v1244 = vadd.f32 %v1099, %v1226
      %v1245 = vadd.f32 %v1100, %v1228
      %v1246 = vadd.f32 %v1101, %v1231
      %v1247 = vld [vmem:[%s224 + $0x8] sm:$0xc]
      %v1248 = vld [vmem:[%s224 + $0xc] sm:$0xf]
      %v1249 = vld [vmem:[%s224 + $0x10] sm:$0xf]
      %v1250 = vld [vmem:[%s224 + $0x14] sm:$0xf]
      %v1251 = vld [vmem:[%s224 + $0x18] sm:$0xf]
      %v1252 = vld [vmem:[%s224 + $0x1c] sm:$0xf]
      %v1253 = vld [vmem:[%s224 + $0x20] sm:$0xf]
      %v1254 = vld [vmem:[%s224 + $0x24] sm:$0xf]
      %v1255 = vld [vmem:[%s224 + $0x28] sm:$0xf]
      %v1256 = vld [vmem:[%s224 + $0x2c] sm:$0xf]
      %v1257 = vld [vmem:[%s224 + $0x30] sm:$0xf]
      %v1258 = vld [vmem:[%s224 + $0x34] sm:$0xf]
      %v1259 = vld [vmem:[%s224 + $0x38] sm:$0xf]
      %v1260 = vld [vmem:[%s224 + $0x3c] sm:$0x3]
      %v1261 = vld [vmem:[%s1 + $0x180] sm:$0xf]
      %v1262 = vld [vmem:[%s1 + $0x184] sm:$0xf]
      %v1263 = vld [vmem:[%s1 + $0x188] sm:$0xf]
      %v1264 = vld [vmem:[%s1 + $0x18c] sm:$0xf]
      %v1265 = vld [vmem:[%s1 + $0x190] sm:$0xf]
      %v1266 = vld [vmem:[%s1 + $0x194] sm:$0xf]
      %v1267 = vld [vmem:[%s1 + $0x198] sm:$0xf]
      %v1268 = vld [vmem:[%s1 + $0x19c] sm:$0xf]
      %v1269 = vld [vmem:[%s1 + $0x1a0] sm:$0xf]
      %v1270 = vld [vmem:[%s1 + $0x1a4] sm:$0xf]
      %v1271 = vld [vmem:[%s1 + $0x1a8] sm:$0xf]
      %v1272 = vld [vmem:[%s1 + $0x1ac] sm:$0xf]
      %v1273 = vld [vmem:[%s1 + $0x1b0] sm:$0xf]
      %v1274 = vld [vmem:[%s1 + $0x1b4] sm:$0xf]
      %v1275 = vld [vmem:[%s1 + $0x1b8] sm:$0xf]
      %v1276 = vld [vmem:[%s1 + $0x1bc] sm:$0xf]
      %v1291 = vunpack.c.l.b16 %v1247
      %v1292 = vunpack.c.l.b16 %v1248
      %v1293 = vunpack.c.l.b16 %v1249
      %v1294 = vunpack.c.l.b16 %v1250
      %v1295 = vunpack.c.l.b16 %v1251
      %v1296 = vunpack.c.l.b16 %v1252
      %v1297 = vunpack.c.l.b16 %v1253
      %v1298 = vunpack.c.l.b16 %v1254
      %v1299 = vunpack.c.l.b16 %v1255
      %v1300 = vunpack.c.l.b16 %v1256
      %v1301 = vunpack.c.l.b16 %v1257
      %v1302 = vunpack.c.l.b16 %v1258
      %v1303 = vunpack.c.l.b16 %v1259
      %v1304 = vunpack.c.l.b16 %v1260
      %v1305 = vpack.c.b16 %v1292, %v1291
      %v1306 = vpack.c.b16 %v1294, %v1293
      %v1307 = vpack.c.b16 %v1296, %v1295
      %v1308 = vpack.c.b16 %v1298, %v1297
      %v1309 = vpack.c.b16 %v1300, %v1299
      %v1310 = vpack.c.b16 %v1302, %v1301
      %v1311 = vpack.c.b16 %v1304, %v1303
      %v1312 = vrot.slane %v1305, 2
      %v1313 = vrot.slane %v1306, 2
      %v1314 = vsel %vm1122, %v1312, %v1313
      %v1315 = vrot.slane %v1307, 2
      %v1316 = vsel %vm1122, %v1313, %v1315
      %v1317 = vrot.slane %v1308, 2
      %v1318 = vsel %vm1122, %v1315, %v1317
      %v1319 = vrot.slane %v1309, 2
      %v1320 = vsel %vm1122, %v1317, %v1319
      %v1321 = vrot.slane %v1310, 2
      %v1322 = vsel %vm1122, %v1319, %v1321
      %v1323 = vrot.slane %v1311, 2
      %v1324 = vsel %vm1122, %v1321, %v1323
      %v1348 = vunpack.c.l.b16 %v1261
      %v1349 = vunpack.c.l.b16 %v1262
      %v1350 = vunpack.c.l.b16 %v1263
      %v1351 = vunpack.c.l.b16 %v1264
      %v1352 = vunpack.c.l.b16 %v1265
      %v1353 = vunpack.c.l.b16 %v1266
      %v1354 = vunpack.c.l.b16 %v1267
      %v1355 = vunpack.c.l.b16 %v1268
      %v1356 = vunpack.c.l.b16 %v1269
      %v1357 = vunpack.c.l.b16 %v1270
      %v1358 = vunpack.c.l.b16 %v1271
      %v1359 = vunpack.c.l.b16 %v1272
      %v1360 = vunpack.c.l.b16 %v1273
      %v1361 = vunpack.c.l.b16 %v1274
      %v1362 = vunpack.c.l.b16 %v1275
      %v1363 = vunpack.c.l.b16 %v1276
      %v1364 = vpack.c.b16 %v1349, %v1348
      %v1365 = vpack.c.b16 %v1351, %v1350
      %v1366 = vpack.c.b16 %v1353, %v1352
      %v1367 = vpack.c.b16 %v1355, %v1354
      %v1368 = vpack.c.b16 %v1357, %v1356
      %v1369 = vpack.c.b16 %v1359, %v1358
      %v1370 = vpack.c.b16 %v1361, %v1360
      %v1371 = vpack.c.b16 %v1363, %v1362
      %1380 = vmatpush.bf16.msra.mxu0 %v1371
      %1381 = vmatpush.bf16.msra.mxu0 %v1370
      %1382 = vmatpush.bf16.msra.mxu0 %v1369
      %1383 = vmatpush.bf16.msra.mxu0 %v1368
      %1384 = vmatpush.bf16.msra.mxu0 %v1367
      %1385 = vmatpush.bf16.msra.mxu0 %v1366
      %1386 = vmatpush.bf16.msra.mxu0 %v1365
      %1387 = vmatpush.bf16.msra.mxu0 %v1364
      %1388 = vmatmul.bf16.gmra.mxu0 %v1314
      %v1389 = vpop.f32.mrf.mxu0
      %v1390 = vadd.f32 0.0, %v1389
      %v1391 = vpop.f32.mrf.mxu0
      %v1392 = vadd.f32 0.0, %v1391
      %1393 = vmatmul.bf16.gmra.mxu0 %v1316
      %v1394 = vpop.f32.mrf.mxu0
      %v1395 = vadd.f32 0.0, %v1394
      %v1396 = vpop.f32.mrf.mxu0
      %v1397 = vadd.f32 0.0, %v1396
      %1398 = vmatmul.bf16.gmra.mxu0 %v1318
      %v1399 = vpop.f32.mrf.mxu0
      %v1400 = vadd.f32 0.0, %v1399
      %v1401 = vpop.f32.mrf.mxu0
      %v1402 = vadd.f32 0.0, %v1401
      %1403 = vmatmul.bf16.gmra.mxu0 %v1320
      %v1404 = vpop.f32.mrf.mxu0
      %v1405 = vadd.f32 0.0, %v1404
      %v1406 = vpop.f32.mrf.mxu0
      %v1407 = vadd.f32 0.0, %v1406
      %1408 = vmatmul.bf16.gmra.mxu0 %v1322
      %v1409 = vpop.f32.mrf.mxu0
      %v1410 = vadd.f32 0.0, %v1409
      %v1411 = vpop.f32.mrf.mxu0
      %v1412 = vadd.f32 0.0, %v1411
      %1413 = vmatmul.bf16.gmra.mxu0 %v1324
      %v1414 = vpop.f32.mrf.mxu0
      %v1415 = vadd.f32 0.0, %v1414
      %v1416 = vpop.f32.mrf.mxu0
      %v1417 = vadd.f32 0.0, %v1416
      %1418 = vmatmul.bf16.gmra.mxu0 %v1323
      %v1419 = vpop.f32.mrf.mxu0
      %v1420 = vadd.f32 0.0, %v1419
      %v1421 = vpop.f32.mrf.mxu0
      %1422 = vdwg.mxu0
      %v1423 = vadd.f32 %v1234, %v1390
      %v1424 = vadd.f32 %v1235, %v1392
      %v1425 = vadd.f32 %v1236, %v1395
      %v1426 = vadd.f32 %v1237, %v1397
      %v1427 = vadd.f32 %v1238, %v1400
      %v1428 = vadd.f32 %v1239, %v1402
      %v1429 = vadd.f32 %v1240, %v1405
      %v1430 = vadd.f32 %v1241, %v1407
      %v1431 = vadd.f32 %v1242, %v1410
      %v1432 = vadd.f32 %v1243, %v1412
      %v1433 = vadd.f32 %v1244, %v1415
      %v1434 = vadd.f32 %v1245, %v1417
      %v1435 = vadd.f32 %v1246, %v1420
      %v1436 = vld [vmem:[%s224 + $0x3c] sm:$0x7]
      %v1437 = vld [vmem:[%s1 + $0x1c0] sm:$0xf]
      %v1438 = vld [vmem:[%s1 + $0x1c4] sm:$0xf]
      %v1439 = vld [vmem:[%s1 + $0x1c8] sm:$0xf]
      %v1440 = vld [vmem:[%s1 + $0x1cc] sm:$0xf]
      %v1441 = vld [vmem:[%s1 + $0x1d0] sm:$0xf]
      %v1442 = vld [vmem:[%s1 + $0x1d4] sm:$0xf]
      %v1443 = vld [vmem:[%s1 + $0x1d8] sm:$0xf]
      %v1444 = vld [vmem:[%s1 + $0x1dc] sm:$0xf]
      %v1445 = vld [vmem:[%s1 + $0x1e0] sm:$0xf]
      %v1446 = vld [vmem:[%s1 + $0x1e4] sm:$0xf]
      %v1447 = vld [vmem:[%s1 + $0x1e8] sm:$0xf]
      %v1448 = vld [vmem:[%s1 + $0x1ec] sm:$0xf]
      %v1449 = vld [vmem:[%s1 + $0x1f0] sm:$0xf]
      %v1450 = vld [vmem:[%s1 + $0x1f4] sm:$0xf]
      %v1451 = vld [vmem:[%s1 + $0x1f8] sm:$0xf]
      %v1452 = vld [vmem:[%s1 + $0x1fc] sm:$0xf]
      %v1454 = vunpack.c.l.b16 %v1436
      %v1455 = vpack.c.b16 %v1454, %v1303
      %vm1456 = vsmask.f32 5376
      %v1458 = vshrl.u32 %v1305, 16
      %v1460 = vrot.slane %v1458, 2
      %v1461 = vshll.u32 %v1305, 16
      %v1463 = vrot.slane %v1461, 3
      %v1464 = vor.u32 %v1460, %v1463
      %v1466 = vshrl.u32 %v1306, 16
      %v1468 = vrot.slane %v1466, 2
      %v1469 = vshll.u32 %v1306, 16
      %v1471 = vrot.slane %v1469, 3
      %v1472 = vor.u32 %v1468, %v1471
      %v1473 = vsel %vm1456, %v1464, %v1472
      %v1475 = vshrl.u32 %v1307, 16
      %v1477 = vrot.slane %v1475, 2
      %v1478 = vshll.u32 %v1307, 16
      %v1480 = vrot.slane %v1478, 3
      %v1481 = vor.u32 %v1477, %v1480
      %v1482 = vsel %vm1456, %v1472, %v1481
      %v1484 = vshrl.u32 %v1308, 16
      %v1486 = vrot.slane %v1484, 2
      %v1487 = vshll.u32 %v1308, 16
      %v1489 = vrot.slane %v1487, 3
      %v1490 = vor.u32 %v1486, %v1489
      %v1491 = vsel %vm1456, %v1481, %v1490
      %v1493 = vshrl.u32 %v1309, 16
      %v1495 = vrot.slane %v1493, 2
      %v1496 = vshll.u32 %v1309, 16
      %v1498 = vrot.slane %v1496, 3
      %v1499 = vor.u32 %v1495, %v1498
      %v1500 = vsel %vm1456, %v1490, %v1499
      %v1502 = vshrl.u32 %v1310, 16
      %v1504 = vrot.slane %v1502, 2
      %v1505 = vshll.u32 %v1310, 16
      %v1507 = vrot.slane %v1505, 3
      %v1508 = vor.u32 %v1504, %v1507
      %v1509 = vsel %vm1456, %v1499, %v1508
      %v1511 = vshrl.u32 %v1455, 16
      %v1513 = vrot.slane %v1511, 2
      %v1514 = vshll.u32 %v1455, 16
      %v1516 = vrot.slane %v1514, 3
      %v1517 = vor.u32 %v1513, %v1516
      %v1518 = vsel %vm1456, %v1508, %v1517
      %v1542 = vunpack.c.l.b16 %v1437
      %v1543 = vunpack.c.l.b16 %v1438
      %v1544 = vunpack.c.l.b16 %v1439
      %v1545 = vunpack.c.l.b16 %v1440
      %v1546 = vunpack.c.l.b16 %v1441
      %v1547 = vunpack.c.l.b16 %v1442
      %v1548 = vunpack.c.l.b16 %v1443
      %v1549 = vunpack.c.l.b16 %v1444
      %v1550 = vunpack.c.l.b16 %v1445
      %v1551 = vunpack.c.l.b16 %v1446
      %v1552 = vunpack.c.l.b16 %v1447
      %v1553 = vunpack.c.l.b16 %v1448
      %v1554 = vunpack.c.l.b16 %v1449
      %v1555 = vunpack.c.l.b16 %v1450
      %v1556 = vunpack.c.l.b16 %v1451
      %v1557 = vunpack.c.l.b16 %v1452
      %v1558 = vpack.c.b16 %v1543, %v1542
      %v1559 = vpack.c.b16 %v1545, %v1544
      %v1560 = vpack.c.b16 %v1547, %v1546
      %v1561 = vpack.c.b16 %v1549, %v1548
      %v1562 = vpack.c.b16 %v1551, %v1550
      %v1563 = vpack.c.b16 %v1553, %v1552
      %v1564 = vpack.c.b16 %v1555, %v1554
      %v1565 = vpack.c.b16 %v1557, %v1556
      %1574 = vmatpush.bf16.msra.mxu0 %v1565
      %1575 = vmatpush.bf16.msra.mxu0 %v1564
      %1576 = vmatpush.bf16.msra.mxu0 %v1563
      %1577 = vmatpush.bf16.msra.mxu0 %v1562
      %1578 = vmatpush.bf16.msra.mxu0 %v1561
      %1579 = vmatpush.bf16.msra.mxu0 %v1560
      %1580 = vmatpush.bf16.msra.mxu0 %v1559
      %1581 = vmatpush.bf16.msra.mxu0 %v1558
      %1582 = vmatmul.bf16.gmra.mxu0 %v1473
      %v1583 = vpop.f32.mrf.mxu0
      %v1584 = vadd.f32 0.0, %v1583
      %v1585 = vpop.f32.mrf.mxu0
      %v1586 = vadd.f32 0.0, %v1585
      %1587 = vmatmul.bf16.gmra.mxu0 %v1482
      %v1588 = vpop.f32.mrf.mxu0
      %v1589 = vadd.f32 0.0, %v1588
      %v1590 = vpop.f32.mrf.mxu0
      %v1591 = vadd.f32 0.0, %v1590
      %1592 = vmatmul.bf16.gmra.mxu0 %v1491
      %v1593 = vpop.f32.mrf.mxu0
      %v1594 = vadd.f32 0.0, %v1593
      %v1595 = vpop.f32.mrf.mxu0
      %v1596 = vadd.f32 0.0, %v1595
      %1597 = vmatmul.bf16.gmra.mxu0 %v1500
      %v1598 = vpop.f32.mrf.mxu0
      %v1599 = vadd.f32 0.0, %v1598
      %v1600 = vpop.f32.mrf.mxu0
      %v1601 = vadd.f32 0.0, %v1600
      %1602 = vmatmul.bf16.gmra.mxu0 %v1509
      %v1603 = vpop.f32.mrf.mxu0
      %v1604 = vadd.f32 0.0, %v1603
      %v1605 = vpop.f32.mrf.mxu0
      %v1606 = vadd.f32 0.0, %v1605
      %1607 = vmatmul.bf16.gmra.mxu0 %v1518
      %v1608 = vpop.f32.mrf.mxu0
      %v1609 = vadd.f32 0.0, %v1608
      %v1610 = vpop.f32.mrf.mxu0
      %v1611 = vadd.f32 0.0, %v1610
      %1612 = vmatmul.bf16.gmra.mxu0 %v1517
      %v1613 = vpop.f32.mrf.mxu0
      %v1614 = vadd.f32 0.0, %v1613
      %v1615 = vpop.f32.mrf.mxu0
      %1616 = vdwg.mxu0
      %v1617 = vadd.f32 %v1423, %v1584
      %v1618 = vadd.f32 %v1424, %v1586
      %v1619 = vadd.f32 %v1425, %v1589
      %v1620 = vadd.f32 %v1426, %v1591
      %v1621 = vadd.f32 %v1427, %v1594
      %v1622 = vadd.f32 %v1428, %v1596
      %v1623 = vadd.f32 %v1429, %v1599
      %v1624 = vadd.f32 %v1430, %v1601
      %v1625 = vadd.f32 %v1431, %v1604
      %v1626 = vadd.f32 %v1432, %v1606
      %v1627 = vadd.f32 %v1433, %v1609
      %v1628 = vadd.f32 %v1434, %v1611
      %v1629 = vadd.f32 %v1435, %v1614
      %v1630 = vld [vmem:[%s224 + $0x8] sm:$0x8]
      %v1631 = vld [vmem:[%s1 + $0x200] sm:$0xf]
      %v1632 = vld [vmem:[%s1 + $0x204] sm:$0xf]
      %v1633 = vld [vmem:[%s1 + $0x208] sm:$0xf]
      %v1634 = vld [vmem:[%s1 + $0x20c] sm:$0xf]
      %v1635 = vld [vmem:[%s1 + $0x210] sm:$0xf]
      %v1636 = vld [vmem:[%s1 + $0x214] sm:$0xf]
      %v1637 = vld [vmem:[%s1 + $0x218] sm:$0xf]
      %v1638 = vld [vmem:[%s1 + $0x21c] sm:$0xf]
      %v1639 = vld [vmem:[%s1 + $0x220] sm:$0xf]
      %v1640 = vld [vmem:[%s1 + $0x224] sm:$0xf]
      %v1641 = vld [vmem:[%s1 + $0x228] sm:$0xf]
      %v1642 = vld [vmem:[%s1 + $0x22c] sm:$0xf]
      %v1643 = vld [vmem:[%s1 + $0x230] sm:$0xf]
      %v1644 = vld [vmem:[%s1 + $0x234] sm:$0xf]
      %v1645 = vld [vmem:[%s1 + $0x238] sm:$0xf]
      %v1646 = vld [vmem:[%s1 + $0x23c] sm:$0xf]
      %v1648 = vunpack.c.l.b16 %v1630
      %v1649 = vpack.c.b16 %v1292, %v1648
      %vm1650 = vcmask 1044480
      %v1651 = vrot.slane %v1649, 3
      %v1652 = vrot.slane %v1306, 3
      %v1653 = vsel %vm1650, %v1651, %v1652
      %v1654 = vrot.slane %v1307, 3
      %v1655 = vsel %vm1650, %v1652, %v1654
      %v1656 = vrot.slane %v1308, 3
      %v1657 = vsel %vm1650, %v1654, %v1656
      %v1658 = vrot.slane %v1309, 3
      %v1659 = vsel %vm1650, %v1656, %v1658
      %v1660 = vrot.slane %v1310, 3
      %v1661 = vsel %vm1650, %v1658, %v1660
      %v1662 = vrot.slane %v1455, 3
      %v1663 = vsel %vm1650, %v1660, %v1662
      %v1687 = vunpack.c.l.b16 %v1631
      %v1688 = vunpack.c.l.b16 %v1632
      %v1689 = vunpack.c.l.b16 %v1633
      %v1690 = vunpack.c.l.b16 %v1634
      %v1691 = vunpack.c.l.b16 %v1635
      %v1692 = vunpack.c.l.b16 %v1636
      %v1693 = vunpack.c.l.b16 %v1637
      %v1694 = vunpack.c.l.b16 %v1638
      %v1695 = vunpack.c.l.b16 %v1639
      %v1696 = vunpack.c.l.b16 %v1640
      %v1697 = vunpack.c.l.b16 %v1641
      %v1698 = vunpack.c.l.b16 %v1642
      %v1699 = vunpack.c.l.b16 %v1643
      %v1700 = vunpack.c.l.b16 %v1644
      %v1701 = vunpack.c.l.b16 %v1645
      %v1702 = vunpack.c.l.b16 %v1646
      %v1703 = vpack.c.b16 %v1688, %v1687
      %v1704 = vpack.c.b16 %v1690, %v1689
      %v1705 = vpack.c.b16 %v1692, %v1691
      %v1706 = vpack.c.b16 %v1694, %v1693
      %v1707 = vpack.c.b16 %v1696, %v1695
      %v1708 = vpack.c.b16 %v1698, %v1697
      %v1709 = vpack.c.b16 %v1700, %v1699
      %v1710 = vpack.c.b16 %v1702, %v1701
      %1719 = vmatpush.bf16.msra.mxu0 %v1710
      %1720 = vmatpush.bf16.msra.mxu0 %v1709
      %1721 = vmatpush.bf16.msra.mxu0 %v1708
      %1722 = vmatpush.bf16.msra.mxu0 %v1707
      %1723 = vmatpush.bf16.msra.mxu0 %v1706
      %1724 = vmatpush.bf16.msra.mxu0 %v1705
      %1725 = vmatpush.bf16.msra.mxu0 %v1704
      %1726 = vmatpush.bf16.msra.mxu0 %v1703
      %1727 = vmatmul.bf16.gmra.mxu0 %v1653
      %v1728 = vpop.f32.mrf.mxu0
      %v1729 = vadd.f32 0.0, %v1728
      %v1730 = vpop.f32.mrf.mxu0
      %v1731 = vadd.f32 0.0, %v1730
      %1732 = vmatmul.bf16.gmra.mxu0 %v1655
      %v1733 = vpop.f32.mrf.mxu0
      %v1734 = vadd.f32 0.0, %v1733
      %v1735 = vpop.f32.mrf.mxu0
      %v1736 = vadd.f32 0.0, %v1735
      %1737 = vmatmul.bf16.gmra.mxu0 %v1657
      %v1738 = vpop.f32.mrf.mxu0
      %v1739 = vadd.f32 0.0, %v1738
      %v1740 = vpop.f32.mrf.mxu0
      %v1741 = vadd.f32 0.0, %v1740
      %1742 = vmatmul.bf16.gmra.mxu0 %v1659
      %v1743 = vpop.f32.mrf.mxu0
      %v1744 = vadd.f32 0.0, %v1743
      %v1745 = vpop.f32.mrf.mxu0
      %v1746 = vadd.f32 0.0, %v1745
      %1747 = vmatmul.bf16.gmra.mxu0 %v1661
      %v1748 = vpop.f32.mrf.mxu0
      %v1749 = vadd.f32 0.0, %v1748
      %v1750 = vpop.f32.mrf.mxu0
      %v1751 = vadd.f32 0.0, %v1750
      %1752 = vmatmul.bf16.gmra.mxu0 %v1663
      %v1753 = vpop.f32.mrf.mxu0
      %v1754 = vadd.f32 0.0, %v1753
      %v1755 = vpop.f32.mrf.mxu0
      %v1756 = vadd.f32 0.0, %v1755
      %1757 = vmatmul.bf16.gmra.mxu0 %v1662
      %v1758 = vpop.f32.mrf.mxu0
      %v1759 = vadd.f32 0.0, %v1758
      %v1760 = vpop.f32.mrf.mxu0
      %1761 = vdwg.mxu0
      %v1762 = vadd.f32 %v1617, %v1729
      %v1763 = vadd.f32 %v1618, %v1731
      %v1764 = vadd.f32 %v1619, %v1734
      %v1765 = vadd.f32 %v1620, %v1736
      %v1766 = vadd.f32 %v1621, %v1739
      %v1767 = vadd.f32 %v1622, %v1741
      %v1768 = vadd.f32 %v1623, %v1744
      %v1769 = vadd.f32 %v1624, %v1746
      %v1770 = vadd.f32 %v1625, %v1749
      %v1771 = vadd.f32 %v1626, %v1751
      %v1772 = vadd.f32 %v1627, %v1754
      %v1773 = vadd.f32 %v1628, %v1756
      %v1774 = vadd.f32 %v1629, %v1759
      %v1775 = vld [vmem:[%s2] sm:$0x1]
      %v1777 = vperm.slane %v1775, 0
      %v1779 = vadd.f32 %v1762, %v1777
      %v1780 = vadd.f32 %v1763, %v1777
      %v1781 = vadd.f32 %v1764, %v1777
      %v1782 = vadd.f32 %v1765, %v1777
      %v1783 = vadd.f32 %v1766, %v1777
      %v1784 = vadd.f32 %v1767, %v1777
      %v1785 = vadd.f32 %v1768, %v1777
      %v1786 = vadd.f32 %v1769, %v1777
      %v1787 = vadd.f32 %v1770, %v1777
      %v1788 = vadd.f32 %v1771, %v1777
      %v1789 = vadd.f32 %v1772, %v1777
      %v1790 = vadd.f32 %v1773, %v1777
      %v1791 = vadd.f32 %v1774, %v1777
      %v1792 = vld [vmem:[%s230] sm:$0xff]
      %v1793 = vld [vmem:[%s230 + $0x8] sm:$0xff]
      %v1794 = vld [vmem:[%s230 + $0x10] sm:$0xff]
      %v1795 = vld [vmem:[%s230 + $0x18] sm:$0xff]
      %v1796 = vld [vmem:[%s230 + $0x20] sm:$0xff]
      %v1797 = vld [vmem:[%s230 + $0x28] sm:$0xff]
      %v1798 = vld [vmem:[%s230 + $0x30] sm:$0xff]
      %v1799 = vld [vmem:[%s230 + $0x38] sm:$0xff]
      %v1800 = vld [vmem:[%s230 + $0x40] sm:$0xff]
      %v1801 = vld [vmem:[%s230 + $0x48] sm:$0xff]
      %v1802 = vld [vmem:[%s230 + $0x50] sm:$0xff]
      %v1803 = vld [vmem:[%s230 + $0x58] sm:$0xff]
      %v1804 = vld [vmem:[%s230 + $0x60] sm:$0xff]
      %1806 = vset.pattern.permute.xlu0 0
      %1807 = vperm.xlu0 %1806, %v1792
      %v1808 = vpop.permute.xlu0 %1807
      %1811 = vset.pattern.permute.xlu0 0
      %1812 = vperm.xlu0 %1811, %v1793
      %v1813 = vpop.permute.xlu0 %1812
      %1816 = vset.pattern.permute.xlu0 0
      %1817 = vperm.xlu0 %1816, %v1794
      %v1818 = vpop.permute.xlu0 %1817
      %1821 = vset.pattern.permute.xlu0 0
      %1822 = vperm.xlu0 %1821, %v1795
      %v1823 = vpop.permute.xlu0 %1822
      %1826 = vset.pattern.permute.xlu0 0
      %1827 = vperm.xlu0 %1826, %v1796
      %v1828 = vpop.permute.xlu0 %1827
      %1831 = vset.pattern.permute.xlu0 0
      %1832 = vperm.xlu0 %1831, %v1797
      %v1833 = vpop.permute.xlu0 %1832
      %1836 = vset.pattern.permute.xlu0 0
      %1837 = vperm.xlu0 %1836, %v1798
      %v1838 = vpop.permute.xlu0 %1837
      %1841 = vset.pattern.permute.xlu0 0
      %1842 = vperm.xlu0 %1841, %v1799
      %v1843 = vpop.permute.xlu0 %1842
      %1846 = vset.pattern.permute.xlu0 0
      %1847 = vperm.xlu0 %1846, %v1800
      %v1848 = vpop.permute.xlu0 %1847
      %1851 = vset.pattern.permute.xlu0 0
      %1852 = vperm.xlu0 %1851, %v1801
      %v1853 = vpop.permute.xlu0 %1852
      %1856 = vset.pattern.permute.xlu0 0
      %1857 = vperm.xlu0 %1856, %v1802
      %v1858 = vpop.permute.xlu0 %1857
      %1861 = vset.pattern.permute.xlu0 0
      %1862 = vperm.xlu0 %1861, %v1803
      %v1863 = vpop.permute.xlu0 %1862
      %1866 = vset.pattern.permute.xlu0 0
      %1867 = vperm.xlu0 %1866, %v1804
      %v1868 = vpop.permute.xlu0 %1867
      %v1870 = vmul.f32 %v1779, %v1808
      %v1871 = vmul.f32 %v1780, %v1813
      %v1872 = vmul.f32 %v1781, %v1818
      %v1873 = vmul.f32 %v1782, %v1823
      %v1874 = vmul.f32 %v1783, %v1828
      %v1875 = vmul.f32 %v1784, %v1833
      %v1876 = vmul.f32 %v1785, %v1838
      %v1877 = vmul.f32 %v1786, %v1843
      %v1878 = vmul.f32 %v1787, %v1848
      %v1879 = vmul.f32 %v1788, %v1853
      %v1880 = vmul.f32 %v1789, %v1858
      %v1881 = vmul.f32 %v1790, %v1863
      %v1882 = vmul.f32 %v1791, %v1868
      %1883 = vst [vmem:[%s237] sm:$0xff] %v1870
      %1884 = vst [vmem:[%s237 + $0x8] sm:$0xff] %v1871
      %1885 = vst [vmem:[%s237 + $0x10] sm:$0xff] %v1872
      %1886 = vst [vmem:[%s237 + $0x18] sm:$0xff] %v1873
      %1887 = vst [vmem:[%s237 + $0x20] sm:$0xff] %v1874
      %1888 = vst [vmem:[%s237 + $0x28] sm:$0xff] %v1875
      %1889 = vst [vmem:[%s237 + $0x30] sm:$0xff] %v1876
      %1890 = vst [vmem:[%s237 + $0x38] sm:$0xff] %v1877
      %1891 = vst [vmem:[%s237 + $0x40] sm:$0xff] %v1878
      %1892 = vst [vmem:[%s237 + $0x48] sm:$0xff] %v1879
      %1893 = vst [vmem:[%s237 + $0x50] sm:$0xff] %v1880
      %1894 = vst [vmem:[%s237 + $0x58] sm:$0xff] %v1881
      %1895 = vst [vmem:[%s237 + $0x60] sm:$0xff] %v1882
      %s1896 = sadd.s32 %s19, %s20
      %s1897 = smul.u32 13, %s1896
      %p1898 = scmp.lt.s32.totalorder %s1897, 25
      %s1899 = scalar_select %p1898, %s1897, 25
      %s1900 = smul.addr %s1899, 8
      %s1901 = scalar_lea.vmem %s4, %s1900
      // Predicated region
      $region37: #{vqvae_forward.21} parent=35 // pred_check
        %p1902 = pneg %p141
      $region38: #{vqvae_forward.21} parent=35 // pred_check_branch
        %1904 = sbr.rel (%p1902) target = $region40
      $region39: #{vqvae_forward.21} parent=35 // pred_region
        %s1905 = sadd.s32 %s19, %s20
        %s1906 = smul.u32 13, %s1905
      $region40: #{vqvae_forward.21} parent=35 // pred_fallthru
        _
    $region36: #{vqvae_forward.21} parent=5 // pred_fallthru
      _
    %p1907 = scmp.le.s32.totalorder 2, %s10
    // Predicated region
    $region41: #{vqvae_forward.21} parent=5 // pred_check
      %p1908 = pneg %p1907
    $region42: #{vqvae_forward.21} parent=5 // pred_check_branch
      %1910 = sbr.rel (%p1908) target = $region44
    $region43: #{vqvae_forward.21} parent=5 // pred_region
      %s1911 = ssub.s32 %s10, 2
      // Predicated region
      $region45: #{vqvae_forward.21} parent=43 // pred_check
        %p1912 = pneg %p147
      $region46: #{vqvae_forward.21} parent=43 // pred_check_branch
        %1914 = sbr.rel (%p1912) target = $region48
      $region47: #{vqvae_forward.21} parent=43 // pred_region
        %s1915 = sadd.s32 %s21, %s22
        %s1916 = smul.u32 13, %s1915
        %p1917 = scmp.lt.s32.totalorder %s1916, 25
        %s1918 = scalar_select %p1917, %s1916, 25
        %s1919 = smul.addr %s1918, 8
        %s1920 = scalar_lea.vmem %s4, %s1919
      $region48: #{vqvae_forward.21} parent=43 // pred_fallthru
        _
    $region44: #{vqvae_forward.21} parent=5 // pred_fallthru
      _
  $region6: #{vqvae_forward.21} parent=0 // loop_footer
    %s14 = sadd.s32 1, %s10
  $region7: #{vqvae_forward.21} parent=0 // loop_footer_branch
    %9 = sbr.rel target = $region3
  $region8: #{vqvae_forward.21} parent=0 // loop_exit
    _

</llo_original>
